<compile_context>
chip_gen: v7x
topology: tpu7x:2x2x1
jax: 0.10.0
libtpu: 0.0.40
codegen_flags: <defaults>
</compile_context>

<pallas_src>
import functools
import math

import jax
import jax.numpy as jnp
from jax import lax
from jax.experimental import pallas as pl
from jax.experimental.pallas import tpu as pltpu

R_SOFTPLUS_0 = 1.442695041


def _round_up(v, m):
  return (v + m - 1) // m * m


def _mhsa_kernel(x_ref, bias_ref, w_in_ref, b_in_ref, qs_ref, w_out_ref,
                 b_out_ref, o_ref, acc_ref, ogrp_ref, *, head_dim, group_size,
                 compute_dtype):
  """One (batch, head_group) pair per grid step.

  x_ref    : (1, T, D)   cd   input activations (resident across the head-group axis)
  bias_ref : (1, 1, T)   f32  additive key-padding bias (0 valid / -1e30 padded)
  w_in_ref : (1, D, 3*G*Dh)   this group's in_proj cols, ordered [q_g0..q_gG | k.. | v..]
  b_in_ref : (1, 1, 3*G*Dh)   matching in_proj bias slice (f32)
  qs_ref   : (1, G*Dh)   f32  r_softplus_0*softplus(p)/sqrt(Dh), tiled per head
  w_out_ref: (1, G*Dh, D)     this group's out_proj rows, temperature folded in
  b_out_ref: (1, D)      f32  out_proj bias (added once, at group 0)
  o_ref    : (1, T, D)        output block (written once, at the last group)
  acc_ref  : (T, D)      f32  VMEM accumulator over the head-group axis
  ogrp_ref : (T, G*Dh)   cd   VMEM staging for this group's attention outputs
  """
  hg = pl.program_id(1)
  dh = head_dim
  gdh = group_size * dh
  cd = compute_dtype

  x = x_ref[0]                                            # (T, D), already cd
  bias = bias_ref[0]                                      # (1, T) f32

  # Fused QKV projection for all G heads of this group (f32 accumulation).
  qkv = jnp.dot(x, w_in_ref[0], preferred_element_type=jnp.float32)
  qkv = qkv + b_in_ref[0]                                 # (T, 3*G*Dh)

  # QueryScaler * 1/sqrt(Dh) already folded into qs_ref (wrapper-side).
  q_all = (qkv[:, 0 * gdh:1 * gdh] * qs_ref[...]).astype(cd)
  k_all = qkv[:, 1 * gdh:2 * gdh].astype(cd)
  v_all = qkv[:, 2 * gdh:3 * gdh].astype(cd)

  # Per-head attention (static unroll, G <= 4).  Only (T, T) + (T, Dh) buffers live.
  for g in range(group_size):
    lo = g * dh
    q = q_all[:, lo:lo + dh]
    k = k_all[:, lo:lo + dh]
    v = v_all[:, lo:lo + dh]
    # Contract the Dh axis directly (no explicit k.T / XLU transpose).
    s = lax.dot_general(q, k, (((1,), (1,)), ((), ())),
                        preferred_element_type=jnp.float32)          # (T, T)
    s = s + bias                                                     # additive key mask
    m = jnp.max(s, axis=-1, keepdims=True)                           # (T, 1)
    p = jnp.exp(s - m)
    inv = pl.reciprocal(jnp.sum(p, axis=-1, keepdims=True), approx=True)
    # Unnormalized P·V, then deferred normalization on the (T, Dh) result.
    o_g = lax.dot_general(p.astype(cd), v, (((1,), (0,)), ((), ())),
                          preferred_element_type=jnp.float32)        # (T, Dh)
    ogrp_ref[:, lo:lo + dh] = (o_g * inv).astype(cd)

  # Fused out_proj for the whole group (attention temperature folded into w_out).
  contrib = jnp.dot(ogrp_ref[...], w_out_ref[0],
                    preferred_element_type=jnp.float32)              # (T, D)

  @pl.when(hg == 0)
  def _():
    acc_ref[...] = contrib + b_out_ref[...]

  @pl.when(hg != 0)
  def _():
    acc_ref[...] = acc_ref[...] + contrib

  @pl.when(hg == pl.num_programs(1) - 1)
  def _():
    o_ref[0] = acc_ref[...].astype(o_ref.dtype)


def mhsa_with_qs(x, key_padding_mask, params, *, num_heads, temperature=1.0,
                 compute_dtype=jnp.float32, group_size=None):
  """x: (B, T, D); key_padding_mask: (B, T) bool, True = padded."""
  B, T, D = x.shape
  H = num_heads
  assert D % H == 0
  Dh = D // H
  if group_size is None:
    group_size = next(g for g in (4, 2, 1) if H % g == 0)   # v5e: pass group_size=2
  G = group_size
  assert H % G == 0
  HG = H // G
  GDh = G * Dh
  cd = compute_dtype
  out_dtype = x.dtype

  # ---- wrapper-side layout plumbing (grid-invariant, done once) ----
  # Pad T to a multiple of 128 so all (T, T)/(T, D) blocks are lane/sublane-dense.
  Tp = _round_up(T, 128)
  x_p = x
  mask = key_padding_mask
  if Tp != T:
    x_p = jnp.pad(x, ((0, 0), (0, Tp - T), (0, 0)))
    mask = jnp.pad(key_padding_mask, ((0, 0), (0, Tp - T)), constant_values=True)
  x_p = x_p.astype(cd)                                               # cast once, wrapper

  # Additive key-padding bias; large finite negative avoids NaN for fully padded rows.
  mask_bias = jnp.where(mask, -1e30, 0.0).astype(jnp.float32)[:, None, :]   # (B,1,Tp)

  # in_proj weight (3D, D) -> head-group-major (HG, D, 3*G*Dh),
  # columns ordered [q_g0..q_g(G-1) | k_g0.. | v_g0..] within each group.
  w_in_h = (params["w_in"].T.reshape(D, 3, HG, G, Dh)
            .transpose(2, 0, 1, 3, 4).reshape(HG, D, 3 * GDh).astype(cd))
  b_in_h = (params["b_in"].reshape(3, HG, G, Dh)
            .transpose(1, 0, 2, 3).reshape(HG, 1, 3 * GDh).astype(jnp.float32))

  # out_proj weight (D, D) -> (HG, G*Dh, D) in (in, out) layout, this group's head rows,
  # with the attention temperature folded in (out_proj is linear; bias NOT scaled).
  w_out_h = (params["w_out"].T * temperature).reshape(HG, GDh, D).astype(cd)
  b_out = params["b_out"].reshape(1, D).astype(jnp.float32)

  # QueryScaler scale with the 1/sqrt(Dh) attention scale folded in, tiled per group.
  qs = (R_SOFTPLUS_0 * jax.nn.softplus(params["qs_scale"])) / math.sqrt(Dh)
  qs_tiled = jnp.tile(qs.astype(jnp.float32), G).reshape(1, GDh)

  kernel = functools.partial(_mhsa_kernel, head_dim=Dh, group_size=G,
                             compute_dtype=cd)

  def run(single_buffer):
    def spec(shape, imap, invariant):
      if single_buffer and invariant:
        # Grid/head-invariant blocks: single buffering halves their VMEM footprint.
        return pl.BlockSpec(shape, imap, pipeline_mode=pl.Buffered(1))
      return pl.BlockSpec(shape, imap)

    return pl.pallas_call(
        kernel,
        out_shape=jax.ShapeDtypeStruct((B, Tp, D), out_dtype),
        grid_spec=pltpu.PrefetchScalarGridSpec(
            num_scalar_prefetch=0,
            grid=(B, HG),
            in_specs=[
                spec((1, Tp, D), lambda b, h: (b, 0, 0), True),         # x
                spec((1, 1, Tp), lambda b, h: (b, 0, 0), True),         # mask bias
                spec((1, D, 3 * GDh), lambda b, h: (h, 0, 0), False),   # w_in group
                spec((1, 1, 3 * GDh), lambda b, h: (h, 0, 0), False),   # b_in group
                spec((1, GDh), lambda b, h: (0, 0), True),              # qs scale
                spec((1, GDh, D), lambda b, h: (h, 0, 0), False),       # w_out group
                spec((1, D), lambda b, h: (0, 0), True),                # b_out
            ],
            out_specs=pl.BlockSpec((1, Tp, D), lambda b, h: (b, 0, 0)),
            scratch_shapes=[
                pltpu.VMEM((Tp, D), jnp.float32),   # f32 head-group accumulator
                pltpu.VMEM((Tp, GDh), cd),          # per-group attention outputs
            ]),
        compiler_params=pltpu.CompilerParams(
            dimension_semantics=("parallel", "arbitrary"),
            vmem_limit_bytes=64 * 1024 * 1024),
    )(x_p, mask_bias, w_in_h, b_in_h, qs_tiled, w_out_h, b_out)

  if hasattr(pl, "Buffered"):
    try:
      out = jax.block_until_ready(run(True))
      return out[:, :T, :]
    except Exception:  # fall back if Buffered(1)/pipeline_mode is unsupported
      pass
  out = run(False)
  return out[:, :T, :]


def mhsa_reference(x, key_padding_mask, params, *, num_heads, temperature=1.0):
  """Pure-JAX reference matching the PyTorch forward semantics."""
  B, T, D = x.shape
  Dh = D // num_heads
  qkv = x @ params["w_in"].T + params["b_in"]
  q, k, v = jnp.split(qkv, 3, axis=-1)
  scale = R_SOFTPLUS_0 * jax.nn.softplus(params["qs_scale"])          # (Dh,)
  q = (q.reshape(B, T, num_heads, Dh) * scale).transpose(0, 2, 1, 3)
  k = k.reshape(B, T, num_heads, Dh).transpose(0, 2, 1, 3)
  v = v.reshape(B, T, num_heads, Dh).transpose(0, 2, 1, 3)
  s = jnp.einsum("bhqd,bhkd->bhqk", q, k) / math.sqrt(Dh)
  s = jnp.where(key_padding_mask[:, None, None, :], -jnp.inf, s)
  p = jax.nn.softmax(s, axis=-1)
  o = jnp.einsum("bhqk,bhkd->bhqd", p, v)
  o = o.transpose(0, 2, 1, 3).reshape(B, T, D) * temperature
  return o @ params["w_out"].T + params["b_out"]


if __name__ == "__main__":
  # Small ConformerConfig-consistent shapes: encoder_dim=32, num_heads=4.
  B, T, D, H = 2, 16, 32, 4
  Dh = D // H
  temperature = 0.5  # exercise the attention-temperature path

  key = jax.random.PRNGKey(0)
  k_x, k_win, k_bin, k_wout, k_bout, k_qs = jax.random.split(key, 6)

  x = jax.random.normal(k_x, (B, T, D), dtype=jnp.float32)

  bound_in = 1.0 / math.sqrt(D)
  params = {
      "w_in": jax.random.uniform(k_win, (3 * D, D), jnp.float32, -bound_in, bound_in),
      "b_in": jax.random.uniform(k_bin, (3 * D,), jnp.float32, -bound_in, bound_in),
      "w_out": jax.random.uniform(k_wout, (D, D), jnp.float32, -bound_in, bound_in),
      "b_out": jax.random.uniform(k_bout, (D,), jnp.float32, -bound_in, bound_in),
      # QueryScaler param is zeros in the module; perturb so softplus path is exercised.
      "qs_scale": 0.1 * jax.random.normal(k_qs, (Dh,), dtype=jnp.float32),
  }

  # key_padding_mask: True = padded.  Pad the tail of each sequence.
  pos = jnp.arange(T)[None, :]
  valid_lens = jnp.array([T, T - 5], dtype=jnp.int32)
  key_padding_mask = pos >= valid_lens[:, None]            # (B, T) bool

  ref = mhsa_reference(x, key_padding_mask, params,
                       num_heads=H, temperature=temperature)

  # f32 path, fused head-group (G=4 -> single head-group step per batch).
  out = mhsa_with_qs(x, key_padding_mask, params, num_heads=H,
                     temperature=temperature, compute_dtype=jnp.float32)
  out = jax.block_until_ready(out)
  assert out.shape == (B, T, D)
  assert jnp.allclose(out, ref, atol=5e-3, rtol=5e-3), (
      float(jnp.max(jnp.abs(out - ref))))

  # f32 path with G=2 (exercises the head-group reduction / f32 accumulator path).
  out_g2 = mhsa_with_qs(x, key_padding_mask, params, num_heads=H,
                        temperature=temperature, compute_dtype=jnp.float32,
                        group_size=2)
  out_g2 = jax.block_until_ready(out_g2)
  assert jnp.allclose(out_g2, ref, atol=5e-3, rtol=5e-3), (
      float(jnp.max(jnp.abs(out_g2 - ref))))

  # bf16 MXU-operand path (f32 accumulation), looser tolerance.
  out_bf16 = mhsa_with_qs(x, key_padding_mask, params, num_heads=H,
                          temperature=temperature, compute_dtype=jnp.bfloat16)
  out_bf16 = jax.block_until_ready(out_bf16)
  assert out_bf16.shape == (B, T, D)
  assert jnp.allclose(out_bf16, ref, atol=5e-2, rtol=5e-2), (
      float(jnp.max(jnp.abs(out_bf16 - ref))))

  print("KERNEL_OK")
</pallas_src>

<mosaic_0001>
module attributes {stable_mosaic.version = 11 : i64} {
  func.func @_mhsa_kernel(%arg0: i32, %arg1: i32, %arg2: memref<1x128x32xf32, #tpu.memory_space<vmem>>, %arg3: memref<1x1x128xf32, #tpu.memory_space<vmem>>, %arg4: memref<1x32x96xf32, #tpu.memory_space<vmem>>, %arg5: memref<1x1x96xf32, #tpu.memory_space<vmem>>, %arg6: memref<1x32xf32, #tpu.memory_space<vmem>>, %arg7: memref<1x32x32xf32, #tpu.memory_space<vmem>>, %arg8: memref<1x32xf32, #tpu.memory_space<vmem>>, %arg9: memref<1x128x32xf32, #tpu.memory_space<vmem>>, %arg10: memref<128x32xf32, #tpu.memory_space<vmem>>, %arg11: memref<128x32xf32, #tpu.memory_space<vmem>>) attributes {dimension_semantics = [#tpu.dimension_semantics<parallel>, #tpu.dimension_semantics<arbitrary>], iteration_bounds = array<i64: 2, 1>, scalar_prefetch = 0 : i64, scratch_operands = 2 : i64, tpu.core_type = #tpu.core_type<tc>, window_params = [{pipeline_mode = #tpu.pipeline_mode<synchronous>, transform_indices = @transform_0, window_bounds = array<i64: 1, 128, 32>}, {pipeline_mode = #tpu.pipeline_mode<synchronous>, transform_indices = @transform_1, window_bounds = array<i64: 1, 1, 128>}, {transform_indices = @transform_2, window_bounds = array<i64: 1, 32, 96>}, {transform_indices = @transform_3, window_bounds = array<i64: 1, 1, 96>}, {pipeline_mode = #tpu.pipeline_mode<synchronous>, transform_indices = @transform_4, window_bounds = array<i64: 1, 32>}, {transform_indices = @transform_5, window_bounds = array<i64: 1, 32, 32>}, {pipeline_mode = #tpu.pipeline_mode<synchronous>, transform_indices = @transform_6, window_bounds = array<i64: 1, 32>}, {transform_indices = @transform_7, window_bounds = array<i64: 1, 128, 32>}]} {
    %c0 = arith.constant 0 : index
    %c0_0 = arith.constant 0 : index
    %c0_1 = arith.constant 0 : index
    %0 = vector.load %arg2[%c0, %c0_0, %c0_1] : memref<1x128x32xf32, #tpu.memory_space<vmem>>, vector<1x128x32xf32>
    %1 = vector.shape_cast %0 : vector<1x128x32xf32> to vector<128x32xf32>
    %c0_2 = arith.constant 0 : index
    %c0_3 = arith.constant 0 : index
    %c0_4 = arith.constant 0 : index
    %2 = vector.load %arg3[%c0_2, %c0_3, %c0_4] : memref<1x1x128xf32, #tpu.memory_space<vmem>>, vector<1x1x128xf32>
    %3 = vector.shape_cast %2 : vector<1x1x128xf32> to vector<1x128xf32>
    %c0_5 = arith.constant 0 : index
    %c0_6 = arith.constant 0 : index
    %c0_7 = arith.constant 0 : index
    %4 = vector.load %arg4[%c0_5, %c0_6, %c0_7] : memref<1x32x96xf32, #tpu.memory_space<vmem>>, vector<1x32x96xf32>
    %5 = vector.shape_cast %4 : vector<1x32x96xf32> to vector<32x96xf32>
    %cst = arith.constant dense<0.000000e+00> : vector<128x96xf32>
    %6 = tpu.matmul %1, %5, %cst {dimension_numbers = #tpu.dot_dimension_numbers<[1], [0], [0], [1], [0, 0, 1, 1], [], []>} : vector<128x32xf32>, vector<32x96xf32>, vector<128x96xf32> -> vector<128x96xf32>
    %c0_8 = arith.constant 0 : index
    %c0_9 = arith.constant 0 : index
    %c0_10 = arith.constant 0 : index
    %7 = vector.load %arg5[%c0_8, %c0_9, %c0_10] : memref<1x1x96xf32, #tpu.memory_space<vmem>>, vector<1x1x96xf32>
    %8 = vector.shape_cast %7 : vector<1x1x96xf32> to vector<1x96xf32>
    %9 = vector.broadcast %8 : vector<1x96xf32> to vector<128x96xf32>
    %10 = arith.addf %6, %9 : vector<128x96xf32>
    %11 = vector.extract_strided_slice %10 {offsets = [0, 0], sizes = [128, 32], strides = [1, 1]} : vector<128x96xf32> to vector<128x32xf32>
    %c0_11 = arith.constant 0 : index
    %c0_12 = arith.constant 0 : index
    %12 = vector.load %arg6[%c0_11, %c0_12] : memref<1x32xf32, #tpu.memory_space<vmem>>, vector<1x32xf32>
    %13 = vector.broadcast %12 : vector<1x32xf32> to vector<128x32xf32>
    %14 = arith.mulf %11, %13 : vector<128x32xf32>
    %15 = vector.extract_strided_slice %10 {offsets = [0, 32], sizes = [128, 32], strides = [1, 1]} : vector<128x96xf32> to vector<128x32xf32>
    %16 = vector.extract_strided_slice %10 {offsets = [0, 64], sizes = [128, 32], strides = [1, 1]} : vector<128x96xf32> to vector<128x32xf32>
    %17 = vector.extract_strided_slice %14 {offsets = [0, 0], sizes = [128, 8], strides = [1, 1]} : vector<128x32xf32> to vector<128x8xf32>
    %18 = vector.extract_strided_slice %15 {offsets = [0, 0], sizes = [128, 8], strides = [1, 1]} : vector<128x32xf32> to vector<128x8xf32>
    %19 = vector.extract_strided_slice %16 {offsets = [0, 0], sizes = [128, 8], strides = [1, 1]} : vector<128x32xf32> to vector<128x8xf32>
    %cst_13 = arith.constant dense<0.000000e+00> : vector<128x128xf32>
    %20 = tpu.matmul %17, %18, %cst_13 {dimension_numbers = #tpu.dot_dimension_numbers<[1], [1], [0], [0], [0, 0, 1, 0], [], []>} : vector<128x8xf32>, vector<128x8xf32>, vector<128x128xf32> -> vector<128x128xf32>
    %21 = vector.broadcast %3 : vector<1x128xf32> to vector<128x128xf32>
    %22 = arith.addf %20, %21 : vector<128x128xf32>
    %cst_14 = arith.constant dense<0xFF800000> : vector<128xf32>
    %23 = vector.multi_reduction <maximumf>, %22, %cst_14 [1] : vector<128x128xf32> to vector<128xf32>
    %24 = vector.shape_cast %23 : vector<128xf32> to vector<128x1xf32>
    %25 = vector.broadcast %24 : vector<128x1xf32> to vector<128x128xf32>
    %26 = arith.subf %22, %25 : vector<128x128xf32>
    %27 = math.exp %26 : vector<128x128xf32>
    %cst_15 = arith.constant dense<0.000000e+00> : vector<128xf32>
    %28 = vector.multi_reduction <add>, %27, %cst_15 [1] : vector<128x128xf32> to vector<128xf32>
    %29 = vector.shape_cast %28 : vector<128xf32> to vector<128x1xf32>
    %30 = tpu.reciprocal %29 {approx = true} : vector<128x1xf32> -> vector<128x1xf32>
    %cst_16 = arith.constant dense<0.000000e+00> : vector<128x8xf32>
    %31 = tpu.matmul %27, %19, %cst_16 {dimension_numbers = #tpu.dot_dimension_numbers<[1], [0], [0], [1], [0, 0, 1, 1], [], []>} : vector<128x128xf32>, vector<128x8xf32>, vector<128x8xf32> -> vector<128x8xf32>
    %32 = vector.broadcast %30 : vector<128x1xf32> to vector<128x8xf32>
    %33 = arith.mulf %31, %32 : vector<128x8xf32>
    %c0_17 = arith.constant 0 : index
    %c0_18 = arith.constant 0 : index
    %34 = vector.load %arg11[%c0_17, %c0_18] : memref<128x32xf32, #tpu.memory_space<vmem>>, vector<128x8xf32>
    tpu.vector_store %arg11[%c0_17, %c0_18], %33 {strides = array<i32>} : memref<128x32xf32, #tpu.memory_space<vmem>>, vector<128x8xf32>,
    %35 = vector.extract_strided_slice %14 {offsets = [0, 8], sizes = [128, 8], strides = [1, 1]} : vector<128x32xf32> to vector<128x8xf32>
    %36 = vector.extract_strided_slice %15 {offsets = [0, 8], sizes = [128, 8], strides = [1, 1]} : vector<128x32xf32> to vector<128x8xf32>
    %37 = vector.extract_strided_slice %16 {offsets = [0, 8], sizes = [128, 8], strides = [1, 1]} : vector<128x32xf32> to vector<128x8xf32>
    %cst_19 = arith.constant dense<0.000000e+00> : vector<128x128xf32>
    %38 = tpu.matmul %35, %36, %cst_19 {dimension_numbers = #tpu.dot_dimension_numbers<[1], [1], [0], [0], [0, 0, 1, 0], [], []>} : vector<128x8xf32>, vector<128x8xf32>, vector<128x128xf32> -> vector<128x128xf32>
    %39 = vector.broadcast %3 : vector<1x128xf32> to vector<128x128xf32>
    %40 = arith.addf %38, %39 : vector<128x128xf32>
    %cst_20 = arith.constant dense<0xFF800000> : vector<128xf32>
    %41 = vector.multi_reduction <maximumf>, %40, %cst_20 [1] : vector<128x128xf32> to vector<128xf32>
    %42 = vector.shape_cast %41 : vector<128xf32> to vector<128x1xf32>
    %43 = vector.broadcast %42 : vector<128x1xf32> to vector<128x128xf32>
    %44 = arith.subf %40, %43 : vector<128x128xf32>
    %45 = math.exp %44 : vector<128x128xf32>
    %cst_21 = arith.constant dense<0.000000e+00> : vector<128xf32>
    %46 = vector.multi_reduction <add>, %45, %cst_21 [1] : vector<128x128xf32> to vector<128xf32>
    %47 = vector.shape_cast %46 : vector<128xf32> to vector<128x1xf32>
    %48 = tpu.reciprocal %47 {approx = true} : vector<128x1xf32> -> vector<128x1xf32>
    %cst_22 = arith.constant dense<0.000000e+00> : vector<128x8xf32>
    %49 = tpu.matmul %45, %37, %cst_22 {dimension_numbers = #tpu.dot_dimension_numbers<[1], [0], [0], [1], [0, 0, 1, 1], [], []>} : vector<128x128xf32>, vector<128x8xf32>, vector<128x8xf32> -> vector<128x8xf32>
    %50 = vector.broadcast %48 : vector<128x1xf32> to vector<128x8xf32>
    %51 = arith.mulf %49, %50 : vector<128x8xf32>
    %c0_23 = arith.constant 0 : index
    %c8 = arith.constant 8 : index
    %52 = vector.load %arg11[%c0_23, %c8] : memref<128x32xf32, #tpu.memory_space<vmem>>, vector<128x8xf32>
    tpu.vector_store %arg11[%c0_23, %c8], %51 {strides = array<i32>} : memref<128x32xf32, #tpu.memory_space<vmem>>, vector<128x8xf32>,
    %53 = vector.extract_strided_slice %14 {offsets = [0, 16], sizes = [128, 8], strides = [1, 1]} : vector<128x32xf32> to vector<128x8xf32>
    %54 = vector.extract_strided_slice %15 {offsets = [0, 16], sizes = [128, 8], strides = [1, 1]} : vector<128x32xf32> to vector<128x8xf32>
    %55 = vector.extract_strided_slice %16 {offsets = [0, 16], sizes = [128, 8], strides = [1, 1]} : vector<128x32xf32> to vector<128x8xf32>
    %cst_24 = arith.constant dense<0.000000e+00> : vector<128x128xf32>
    %56 = tpu.matmul %53, %54, %cst_24 {dimension_numbers = #tpu.dot_dimension_numbers<[1], [1], [0], [0], [0, 0, 1, 0], [], []>} : vector<128x8xf32>, vector<128x8xf32>, vector<128x128xf32> -> vector<128x128xf32>
    %57 = vector.broadcast %3 : vector<1x128xf32> to vector<128x128xf32>
    %58 = arith.addf %56, %57 : vector<128x128xf32>
    %cst_25 = arith.constant dense<0xFF800000> : vector<128xf32>
    %59 = vector.multi_reduction <maximumf>, %58, %cst_25 [1] : vector<128x128xf32> to vector<128xf32>
    %60 = vector.shape_cast %59 : vector<128xf32> to vector<128x1xf32>
    %61 = vector.broadcast %60 : vector<128x1xf32> to vector<128x128xf32>
    %62 = arith.subf %58, %61 : vector<128x128xf32>
    %63 = math.exp %62 : vector<128x128xf32>
    %cst_26 = arith.constant dense<0.000000e+00> : vector<128xf32>
    %64 = vector.multi_reduction <add>, %63, %cst_26 [1] : vector<128x128xf32> to vector<128xf32>
    %65 = vector.shape_cast %64 : vector<128xf32> to vector<128x1xf32>
    %66 = tpu.reciprocal %65 {approx = true} : vector<128x1xf32> -> vector<128x1xf32>
    %cst_27 = arith.constant dense<0.000000e+00> : vector<128x8xf32>
    %67 = tpu.matmul %63, %55, %cst_27 {dimension_numbers = #tpu.dot_dimension_numbers<[1], [0], [0], [1], [0, 0, 1, 1], [], []>} : vector<128x128xf32>, vector<128x8xf32>, vector<128x8xf32> -> vector<128x8xf32>
    %68 = vector.broadcast %66 : vector<128x1xf32> to vector<128x8xf32>
    %69 = arith.mulf %67, %68 : vector<128x8xf32>
    %c0_28 = arith.constant 0 : index
    %c16 = arith.constant 16 : index
    %70 = vector.load %arg11[%c0_28, %c16] : memref<128x32xf32, #tpu.memory_space<vmem>>, vector<128x8xf32>
    tpu.vector_store %arg11[%c0_28, %c16], %69 {strides = array<i32>} : memref<128x32xf32, #tpu.memory_space<vmem>>, vector<128x8xf32>,
    %71 = vector.extract_strided_slice %14 {offsets = [0, 24], sizes = [128, 8], strides = [1, 1]} : vector<128x32xf32> to vector<128x8xf32>
    %72 = vector.extract_strided_slice %15 {offsets = [0, 24], sizes = [128, 8], strides = [1, 1]} : vector<128x32xf32> to vector<128x8xf32>
    %73 = vector.extract_strided_slice %16 {offsets = [0, 24], sizes = [128, 8], strides = [1, 1]} : vector<128x32xf32> to vector<128x8xf32>
    %cst_29 = arith.constant dense<0.000000e+00> : vector<128x128xf32>
    %74 = tpu.matmul %71, %72, %cst_29 {dimension_numbers = #tpu.dot_dimension_numbers<[1], [1], [0], [0], [0, 0, 1, 0], [], []>} : vector<128x8xf32>, vector<128x8xf32>, vector<128x128xf32> -> vector<128x128xf32>
    %75 = vector.broadcast %3 : vector<1x128xf32> to vector<128x128xf32>
    %76 = arith.addf %74, %75 : vector<128x128xf32>
    %cst_30 = arith.constant dense<0xFF800000> : vector<128xf32>
    %77 = vector.multi_reduction <maximumf>, %76, %cst_30 [1] : vector<128x128xf32> to vector<128xf32>
    %78 = vector.shape_cast %77 : vector<128xf32> to vector<128x1xf32>
    %79 = vector.broadcast %78 : vector<128x1xf32> to vector<128x128xf32>
    %80 = arith.subf %76, %79 : vector<128x128xf32>
    %81 = math.exp %80 : vector<128x128xf32>
    %cst_31 = arith.constant dense<0.000000e+00> : vector<128xf32>
    %82 = vector.multi_reduction <add>, %81, %cst_31 [1] : vector<128x128xf32> to vector<128xf32>
    %83 = vector.shape_cast %82 : vector<128xf32> to vector<128x1xf32>
    %84 = tpu.reciprocal %83 {approx = true} : vector<128x1xf32> -> vector<128x1xf32>
    %cst_32 = arith.constant dense<0.000000e+00> : vector<128x8xf32>
    %85 = tpu.matmul %81, %73, %cst_32 {dimension_numbers = #tpu.dot_dimension_numbers<[1], [0], [0], [1], [0, 0, 1, 1], [], []>} : vector<128x128xf32>, vector<128x8xf32>, vector<128x8xf32> -> vector<128x8xf32>
    %86 = vector.broadcast %84 : vector<128x1xf32> to vector<128x8xf32>
    %87 = arith.mulf %85, %86 : vector<128x8xf32>
    %c0_33 = arith.constant 0 : index
    %c24 = arith.constant 24 : index
    %88 = vector.load %arg11[%c0_33, %c24] : memref<128x32xf32, #tpu.memory_space<vmem>>, vector<128x8xf32>
    tpu.vector_store %arg11[%c0_33, %c24], %87 {strides = array<i32>} : memref<128x32xf32, #tpu.memory_space<vmem>>, vector<128x8xf32>,
    %c0_34 = arith.constant 0 : index
    %c0_35 = arith.constant 0 : index
    %89 = vector.load %arg11[%c0_34, %c0_35] : memref<128x32xf32, #tpu.memory_space<vmem>>, vector<128x32xf32>
    %c0_36 = arith.constant 0 : index
    %c0_37 = arith.constant 0 : index
    %c0_38 = arith.constant 0 : index
    %90 = vector.load %arg7[%c0_36, %c0_37, %c0_38] : memref<1x32x32xf32, #tpu.memory_space<vmem>>, vector<1x32x32xf32>
    %91 = vector.shape_cast %90 : vector<1x32x32xf32> to vector<32x32xf32>
    %cst_39 = arith.constant dense<0.000000e+00> : vector<128x32xf32>
    %92 = tpu.matmul %89, %91, %cst_39 {dimension_numbers = #tpu.dot_dimension_numbers<[1], [0], [0], [1], [0, 0, 1, 1], [], []>} : vector<128x32xf32>, vector<32x32xf32>, vector<128x32xf32> -> vector<128x32xf32>
    %c0_i32 = arith.constant 0 : i32
    %93 = arith.cmpi eq, %arg1, %c0_i32 : i32
    %94 = arith.extui %93 : i1 to i32
    %c0_i32_40 = arith.constant 0 : i32
    %95 = arith.cmpi ne, %94, %c0_i32_40 : i32
    scf.if %95 {
      %c0_45 = arith.constant 0 : index
      %c0_46 = arith.constant 0 : index
      %102 = vector.load %arg8[%c0_45, %c0_46] : memref<1x32xf32, #tpu.memory_space<vmem>>, vector<1x32xf32>
      %103 = vector.broadcast %102 : vector<1x32xf32> to vector<128x32xf32>
      %104 = arith.addf %92, %103 : vector<128x32xf32>
      %c0_47 = arith.constant 0 : index
      %c0_48 = arith.constant 0 : index
      %105 = vector.load %arg10[%c0_47, %c0_48] : memref<128x32xf32, #tpu.memory_space<vmem>>, vector<128x32xf32>
      tpu.vector_store %arg10[%c0_47, %c0_48], %104 {strides = array<i32>} : memref<128x32xf32, #tpu.memory_space<vmem>>, vector<128x32xf32>,
    } else {
    }
    %c0_i32_41 = arith.constant 0 : i32
    %96 = arith.cmpi ne, %arg1, %c0_i32_41 : i32
    %97 = arith.extui %96 : i1 to i32
    %c0_i32_42 = arith.constant 0 : i32
    %98 = arith.cmpi ne, %97, %c0_i32_42 : i32
    scf.if %98 {
      %c0_45 = arith.constant 0 : index
      %c0_46 = arith.constant 0 : index
      %102 = vector.load %arg10[%c0_45, %c0_46] : memref<128x32xf32, #tpu.memory_space<vmem>>, vector<128x32xf32>
      %103 = arith.addf %102, %92 : vector<128x32xf32>
      %c0_47 = arith.constant 0 : index
      %c0_48 = arith.constant 0 : index
      %104 = vector.load %arg10[%c0_47, %c0_48] : memref<128x32xf32, #tpu.memory_space<vmem>>, vector<128x32xf32>
      tpu.vector_store %arg10[%c0_47, %c0_48], %103 {strides = array<i32>} : memref<128x32xf32, #tpu.memory_space<vmem>>, vector<128x32xf32>,
    } else {
    }
    %c0_i32_43 = arith.constant 0 : i32
    %99 = arith.cmpi eq, %arg1, %c0_i32_43 : i32
    %100 = arith.extui %99 : i1 to i32
    %c0_i32_44 = arith.constant 0 : i32
    %101 = arith.cmpi ne, %100, %c0_i32_44 : i32
    scf.if %101 {
      %c0_45 = arith.constant 0 : index
      %c0_46 = arith.constant 0 : index
      %102 = vector.load %arg10[%c0_45, %c0_46] : memref<128x32xf32, #tpu.memory_space<vmem>>, vector<128x32xf32>
      %c0_47 = arith.constant 0 : index
      %c0_48 = arith.constant 0 : index
      %c0_49 = arith.constant 0 : index
      %103 = vector.load %arg9[%c0_47, %c0_48, %c0_49] : memref<1x128x32xf32, #tpu.memory_space<vmem>>, vector<1x128x32xf32>
      %104 = vector.shape_cast %103 : vector<1x128x32xf32> to vector<128x32xf32>
      %105 = vector.shape_cast %102 : vector<128x32xf32> to vector<1x128x32xf32>
      tpu.vector_store %arg9[%c0_47, %c0_48, %c0_49], %105 {strides = array<i32>} : memref<1x128x32xf32, #tpu.memory_space<vmem>>, vector<1x128x32xf32>,
    } else {
    }
    return
  }
  func.func @transform_0(%arg0: i32, %arg1: i32) -> (i32, i32, i32) {
    %c0_i32 = arith.constant 0 : i32
    %c0_i32_0 = arith.constant 0 : i32
    %c0_i32_1 = arith.constant 0 : i32
    return %arg0, %c0_i32, %c0_i32_0 : i32, i32, i32
  }
  func.func @transform_1(%arg0: i32, %arg1: i32) -> (i32, i32, i32) {
    %c0_i32 = arith.constant 0 : i32
    %c0_i32_0 = arith.constant 0 : i32
    %c0_i32_1 = arith.constant 0 : i32
    return %arg0, %c0_i32, %c0_i32_0 : i32, i32, i32
  }
  func.func @transform_2(%arg0: i32, %arg1: i32) -> (i32, i32, i32) {
    %c0_i32 = arith.constant 0 : i32
    %c0_i32_0 = arith.constant 0 : i32
    %c0_i32_1 = arith.constant 0 : i32
    return %arg1, %c0_i32, %c0_i32_0 : i32, i32, i32
  }
  func.func @transform_3(%arg0: i32, %arg1: i32) -> (i32, i32, i32) {
    %c0_i32 = arith.constant 0 : i32
    %c0_i32_0 = arith.constant 0 : i32
    %c0_i32_1 = arith.constant 0 : i32
    return %arg1, %c0_i32, %c0_i32_0 : i32, i32, i32
  }
  func.func @transform_4(%arg0: i32, %arg1: i32) -> (i32, i32) {
    %c0_i32 = arith.constant 0 : i32
    %c0_i32_0 = arith.constant 0 : i32
    %c0_i32_1 = arith.constant 0 : i32
    return %c0_i32, %c0_i32_0 : i32, i32
  }
  func.func @transform_5(%arg0: i32, %arg1: i32) -> (i32, i32, i32) {
    %c0_i32 = arith.constant 0 : i32
    %c0_i32_0 = arith.constant 0 : i32
    %c0_i32_1 = arith.constant 0 : i32
    return %arg1, %c0_i32, %c0_i32_0 : i32, i32, i32
  }
  func.func @transform_6(%arg0: i32, %arg1: i32) -> (i32, i32) {
    %c0_i32 = arith.constant 0 : i32
    %c0_i32_0 = arith.constant 0 : i32
    %c0_i32_1 = arith.constant 0 : i32
    return %c0_i32, %c0_i32_0 : i32, i32
  }
  func.func @transform_7(%arg0: i32, %arg1: i32) -> (i32, i32, i32) {
    %c0_i32 = arith.constant 0 : i32
    %c0_i32_0 = arith.constant 0 : i32
    %c0_i32_1 = arith.constant 0 : i32
    return %arg0, %c0_i32, %c0_i32_0 : i32, i32, i32
  }
}

module attributes {stable_mosaic.version = 11 : i64} {
  func.func @_mhsa_kernel(%arg0: i32, %arg1: i32, %arg2: memref<1x128x32xf32, #tpu.memory_space<vmem>>, %arg3: memref<1x1x128xf32, #tpu.memory_space<vmem>>, %arg4: memref<1x32x96xf32, #tpu.memory_space<vmem>>, %arg5: memref<1x1x96xf32, #tpu.memory_space<vmem>>, %arg6: memref<1x32xf32, #tpu.memory_space<vmem>>, %arg7: memref<1x32x32xf32, #tpu.memory_space<vmem>>, %arg8: memref<1x32xf32, #tpu.memory_space<vmem>>, %arg9: memref<1x128x32xf32, #tpu.memory_space<vmem>>, %arg10: memref<128x32xf32, #tpu.memory_space<vmem>>, %arg11: memref<128x32xf32, #tpu.memory_space<vmem>>) attributes {dimension_semantics = [#tpu.dimension_semantics<parallel>, #tpu.dimension_semantics<arbitrary>], iteration_bounds = array<i64: 2, 1>, scalar_prefetch = 0 : i64, scratch_operands = 2 : i64, tpu.core_type = #tpu.core_type<tc>, window_params = [{transform_indices = @transform_0, window_bounds = array<i64: 1, 128, 32>}, {transform_indices = @transform_1, window_bounds = array<i64: 1, 1, 128>}, {transform_indices = @transform_2, window_bounds = array<i64: 1, 32, 96>}, {transform_indices = @transform_3, window_bounds = array<i64: 1, 1, 96>}, {pipeline_mode = #tpu.pipeline_mode<synchronous>, transform_indices = @transform_4, window_bounds = array<i64: 1, 32>}, {transform_indices = @transform_5, window_bounds = array<i64: 1, 32, 32>}, {pipeline_mode = #tpu.pipeline_mode<synchronous>, transform_indices = @transform_6, window_bounds = array<i64: 1, 32>}, {transform_indices = @transform_7, window_bounds = array<i64: 1, 128, 32>}]} {
    %c0 = arith.constant 0 : index
    %c0_0 = arith.constant 0 : index
    %c0_1 = arith.constant 0 : index
    %0 = vector.load %arg2[%c0, %c0_0, %c0_1] : memref<1x128x32xf32, #tpu.memory_space<vmem>>, vector<1x128x32xf32>
    %1 = vector.shape_cast %0 : vector<1x128x32xf32> to vector<128x32xf32>
    %c0_2 = arith.constant 0 : index
    %c0_3 = arith.constant 0 : index
    %c0_4 = arith.constant 0 : index
    %2 = vector.load %arg3[%c0_2, %c0_3, %c0_4] : memref<1x1x128xf32, #tpu.memory_space<vmem>>, vector<1x1x128xf32>
    %3 = vector.shape_cast %2 : vector<1x1x128xf32> to vector<1x128xf32>
    %c0_5 = arith.constant 0 : index
    %c0_6 = arith.constant 0 : index
    %c0_7 = arith.constant 0 : index
    %4 = vector.load %arg4[%c0_5, %c0_6, %c0_7] : memref<1x32x96xf32, #tpu.memory_space<vmem>>, vector<1x32x96xf32>
    %5 = vector.shape_cast %4 : vector<1x32x96xf32> to vector<32x96xf32>
    %cst = arith.constant dense<0.000000e+00> : vector<128x96xf32>
    %6 = tpu.matmul %1, %5, %cst {dimension_numbers = #tpu.dot_dimension_numbers<[1], [0], [0], [1], [0, 0, 1, 1], [], []>} : vector<128x32xf32>, vector<32x96xf32>, vector<128x96xf32> -> vector<128x96xf32>
    %c0_8 = arith.constant 0 : index
    %c0_9 = arith.constant 0 : index
    %c0_10 = arith.constant 0 : index
    %7 = vector.load %arg5[%c0_8, %c0_9, %c0_10] : memref<1x1x96xf32, #tpu.memory_space<vmem>>, vector<1x1x96xf32>
    %8 = vector.shape_cast %7 : vector<1x1x96xf32> to vector<1x96xf32>
    %9 = vector.broadcast %8 : vector<1x96xf32> to vector<128x96xf32>
    %10 = arith.addf %6, %9 : vector<128x96xf32>
    %11 = vector.extract_strided_slice %10 {offsets = [0, 0], sizes = [128, 32], strides = [1, 1]} : vector<128x96xf32> to vector<128x32xf32>
    %c0_11 = arith.constant 0 : index
    %c0_12 = arith.constant 0 : index
    %12 = vector.load %arg6[%c0_11, %c0_12] : memref<1x32xf32, #tpu.memory_space<vmem>>, vector<1x32xf32>
    %13 = vector.broadcast %12 : vector<1x32xf32> to vector<128x32xf32>
    %14 = arith.mulf %11, %13 : vector<128x32xf32>
    %15 = vector.extract_strided_slice %10 {offsets = [0, 32], sizes = [128, 32], strides = [1, 1]} : vector<128x96xf32> to vector<128x32xf32>
    %16 = vector.extract_strided_slice %10 {offsets = [0, 64], sizes = [128, 32], strides = [1, 1]} : vector<128x96xf32> to vector<128x32xf32>
    %17 = vector.extract_strided_slice %14 {offsets = [0, 0], sizes = [128, 8], strides = [1, 1]} : vector<128x32xf32> to vector<128x8xf32>
    %18 = vector.extract_strided_slice %15 {offsets = [0, 0], sizes = [128, 8], strides = [1, 1]} : vector<128x32xf32> to vector<128x8xf32>
    %19 = vector.extract_strided_slice %16 {offsets = [0, 0], sizes = [128, 8], strides = [1, 1]} : vector<128x32xf32> to vector<128x8xf32>
    %cst_13 = arith.constant dense<0.000000e+00> : vector<128x128xf32>
    %20 = tpu.matmul %17, %18, %cst_13 {dimension_numbers = #tpu.dot_dimension_numbers<[1], [1], [0], [0], [0, 0, 1, 0], [], []>} : vector<128x8xf32>, vector<128x8xf32>, vector<128x128xf32> -> vector<128x128xf32>
    %21 = vector.broadcast %3 : vector<1x128xf32> to vector<128x128xf32>
    %22 = arith.addf %20, %21 : vector<128x128xf32>
    %cst_14 = arith.constant dense<0xFF800000> : vector<128xf32>
    %23 = vector.multi_reduction <maximumf>, %22, %cst_14 [1] : vector<128x128xf32> to vector<128xf32>
    %24 = vector.shape_cast %23 : vector<128xf32> to vector<128x1xf32>
    %25 = vector.broadcast %24 : vector<128x1xf32> to vector<128x128xf32>
    %26 = arith.subf %22, %25 : vector<128x128xf32>
    %27 = math.exp %26 : vector<128x128xf32>
    %cst_15 = arith.constant dense<0.000000e+00> : vector<128xf32>
    %28 = vector.multi_reduction <add>, %27, %cst_15 [1] : vector<128x128xf32> to vector<128xf32>
    %29 = vector.shape_cast %28 : vector<128xf32> to vector<128x1xf32>
    %30 = tpu.reciprocal %29 {approx = true} : vector<128x1xf32> -> vector<128x1xf32>
    %cst_16 = arith.constant dense<0.000000e+00> : vector<128x8xf32>
    %31 = tpu.matmul %27, %19, %cst_16 {dimension_numbers = #tpu.dot_dimension_numbers<[1], [0], [0], [1], [0, 0, 1, 1], [], []>} : vector<128x128xf32>, vector<128x8xf32>, vector<128x8xf32> -> vector<128x8xf32>
    %32 = vector.broadcast %30 : vector<128x1xf32> to vector<128x8xf32>
    %33 = arith.mulf %31, %32 : vector<128x8xf32>
    %c0_17 = arith.constant 0 : index
    %c0_18 = arith.constant 0 : index
    %34 = vector.load %arg11[%c0_17, %c0_18] : memref<128x32xf32, #tpu.memory_space<vmem>>, vector<128x8xf32>
    tpu.vector_store %arg11[%c0_17, %c0_18], %33 {strides = array<i32>} : memref<128x32xf32, #tpu.memory_space<vmem>>, vector<128x8xf32>,
    %35 = vector.extract_strided_slice %14 {offsets = [0, 8], sizes = [128, 8], strides = [1, 1]} : vector<128x32xf32> to vector<128x8xf32>
    %36 = vector.extract_strided_slice %15 {offsets = [0, 8], sizes = [128, 8], strides = [1, 1]} : vector<128x32xf32> to vector<128x8xf32>
    %37 = vector.extract_strided_slice %16 {offsets = [0, 8], sizes = [128, 8], strides = [1, 1]} : vector<128x32xf32> to vector<128x8xf32>
    %cst_19 = arith.constant dense<0.000000e+00> : vector<128x128xf32>
    %38 = tpu.matmul %35, %36, %cst_19 {dimension_numbers = #tpu.dot_dimension_numbers<[1], [1], [0], [0], [0, 0, 1, 0], [], []>} : vector<128x8xf32>, vector<128x8xf32>, vector<128x128xf32> -> vector<128x128xf32>
    %39 = vector.broadcast %3 : vector<1x128xf32> to vector<128x128xf32>
    %40 = arith.addf %38, %39 : vector<128x128xf32>
    %cst_20 = arith.constant dense<0xFF800000> : vector<128xf32>
    %41 = vector.multi_reduction <maximumf>, %40, %cst_20 [1] : vector<128x128xf32> to vector<128xf32>
    %42 = vector.shape_cast %41 : vector<128xf32> to vector<128x1xf32>
    %43 = vector.broadcast %42 : vector<128x1xf32> to vector<128x128xf32>
    %44 = arith.subf %40, %43 : vector<128x128xf32>
    %45 = math.exp %44 : vector<128x128xf32>
    %cst_21 = arith.constant dense<0.000000e+00> : vector<128xf32>
    %46 = vector.multi_reduction <add>, %45, %cst_21 [1] : vector<128x128xf32> to vector<128xf32>
    %47 = vector.shape_cast %46 : vector<128xf32> to vector<128x1xf32>
    %48 = tpu.reciprocal %47 {approx = true} : vector<128x1xf32> -> vector<128x1xf32>
    %cst_22 = arith.constant dense<0.000000e+00> : vector<128x8xf32>
    %49 = tpu.matmul %45, %37, %cst_22 {dimension_numbers = #tpu.dot_dimension_numbers<[1], [0], [0], [1], [0, 0, 1, 1], [], []>} : vector<128x128xf32>, vector<128x8xf32>, vector<128x8xf32> -> vector<128x8xf32>
    %50 = vector.broadcast %48 : vector<128x1xf32> to vector<128x8xf32>
    %51 = arith.mulf %49, %50 : vector<128x8xf32>
    %c0_23 = arith.constant 0 : index
    %c8 = arith.constant 8 : index
    %52 = vector.load %arg11[%c0_23, %c8] : memref<128x32xf32, #tpu.memory_space<vmem>>, vector<128x8xf32>
    tpu.vector_store %arg11[%c0_23, %c8], %51 {strides = array<i32>} : memref<128x32xf32, #tpu.memory_space<vmem>>, vector<128x8xf32>,
    %53 = vector.extract_strided_slice %14 {offsets = [0, 16], sizes = [128, 8], strides = [1, 1]} : vector<128x32xf32> to vector<128x8xf32>
    %54 = vector.extract_strided_slice %15 {offsets = [0, 16], sizes = [128, 8], strides = [1, 1]} : vector<128x32xf32> to vector<128x8xf32>
    %55 = vector.extract_strided_slice %16 {offsets = [0, 16], sizes = [128, 8], strides = [1, 1]} : vector<128x32xf32> to vector<128x8xf32>
    %cst_24 = arith.constant dense<0.000000e+00> : vector<128x128xf32>
    %56 = tpu.matmul %53, %54, %cst_24 {dimension_numbers = #tpu.dot_dimension_numbers<[1], [1], [0], [0], [0, 0, 1, 0], [], []>} : vector<128x8xf32>, vector<128x8xf32>, vector<128x128xf32> -> vector<128x128xf32>
    %57 = vector.broadcast %3 : vector<1x128xf32> to vector<128x128xf32>
    %58 = arith.addf %56, %57 : vector<128x128xf32>
    %cst_25 = arith.constant dense<0xFF800000> : vector<128xf32>
    %59 = vector.multi_reduction <maximumf>, %58, %cst_25 [1] : vector<128x128xf32> to vector<128xf32>
    %60 = vector.shape_cast %59 : vector<128xf32> to vector<128x1xf32>
    %61 = vector.broadcast %60 : vector<128x1xf32> to vector<128x128xf32>
    %62 = arith.subf %58, %61 : vector<128x128xf32>
    %63 = math.exp %62 : vector<128x128xf32>
    %cst_26 = arith.constant dense<0.000000e+00> : vector<128xf32>
    %64 = vector.multi_reduction <add>, %63, %cst_26 [1] : vector<128x128xf32> to vector<128xf32>
    %65 = vector.shape_cast %64 : vector<128xf32> to vector<128x1xf32>
    %66 = tpu.reciprocal %65 {approx = true} : vector<128x1xf32> -> vector<128x1xf32>
    %cst_27 = arith.constant dense<0.000000e+00> : vector<128x8xf32>
    %67 = tpu.matmul %63, %55, %cst_27 {dimension_numbers = #tpu.dot_dimension_numbers<[1], [0], [0], [1], [0, 0, 1, 1], [], []>} : vector<128x128xf32>, vector<128x8xf32>, vector<128x8xf32> -> vector<128x8xf32>
    %68 = vector.broadcast %66 : vector<128x1xf32> to vector<128x8xf32>
    %69 = arith.mulf %67, %68 : vector<128x8xf32>
    %c0_28 = arith.constant 0 : index
    %c16 = arith.constant 16 : index
    %70 = vector.load %arg11[%c0_28, %c16] : memref<128x32xf32, #tpu.memory_space<vmem>>, vector<128x8xf32>
    tpu.vector_store %arg11[%c0_28, %c16], %69 {strides = array<i32>} : memref<128x32xf32, #tpu.memory_space<vmem>>, vector<128x8xf32>,
    %71 = vector.extract_strided_slice %14 {offsets = [0, 24], sizes = [128, 8], strides = [1, 1]} : vector<128x32xf32> to vector<128x8xf32>
    %72 = vector.extract_strided_slice %15 {offsets = [0, 24], sizes = [128, 8], strides = [1, 1]} : vector<128x32xf32> to vector<128x8xf32>
    %73 = vector.extract_strided_slice %16 {offsets = [0, 24], sizes = [128, 8], strides = [1, 1]} : vector<128x32xf32> to vector<128x8xf32>
    %cst_29 = arith.constant dense<0.000000e+00> : vector<128x128xf32>
    %74 = tpu.matmul %71, %72, %cst_29 {dimension_numbers = #tpu.dot_dimension_numbers<[1], [1], [0], [0], [0, 0, 1, 0], [], []>} : vector<128x8xf32>, vector<128x8xf32>, vector<128x128xf32> -> vector<128x128xf32>
    %75 = vector.broadcast %3 : vector<1x128xf32> to vector<128x128xf32>
    %76 = arith.addf %74, %75 : vector<128x128xf32>
    %cst_30 = arith.constant dense<0xFF800000> : vector<128xf32>
    %77 = vector.multi_reduction <maximumf>, %76, %cst_30 [1] : vector<128x128xf32> to vector<128xf32>
    %78 = vector.shape_cast %77 : vector<128xf32> to vector<128x1xf32>
    %79 = vector.broadcast %78 : vector<128x1xf32> to vector<128x128xf32>
    %80 = arith.subf %76, %79 : vector<128x128xf32>
    %81 = math.exp %80 : vector<128x128xf32>
    %cst_31 = arith.constant dense<0.000000e+00> : vector<128xf32>
    %82 = vector.multi_reduction <add>, %81, %cst_31 [1] : vector<128x128xf32> to vector<128xf32>
    %83 = vector.shape_cast %82 : vector<128xf32> to vector<128x1xf32>
    %84 = tpu.reciprocal %83 {approx = true} : vector<128x1xf32> -> vector<128x1xf32>
    %cst_32 = arith.constant dense<0.000000e+00> : vector<128x8xf32>
    %85 = tpu.matmul %81, %73, %cst_32 {dimension_numbers = #tpu.dot_dimension_numbers<[1], [0], [0], [1], [0, 0, 1, 1], [], []>} : vector<128x128xf32>, vector<128x8xf32>, vector<128x8xf32> -> vector<128x8xf32>
    %86 = vector.broadcast %84 : vector<128x1xf32> to vector<128x8xf32>
    %87 = arith.mulf %85, %86 : vector<128x8xf32>
    %c0_33 = arith.constant 0 : index
    %c24 = arith.constant 24 : index
    %88 = vector.load %arg11[%c0_33, %c24] : memref<128x32xf32, #tpu.memory_space<vmem>>, vector<128x8xf32>
    tpu.vector_store %arg11[%c0_33, %c24], %87 {strides = array<i32>} : memref<128x32xf32, #tpu.memory_space<vmem>>, vector<128x8xf32>,
    %c0_34 = arith.constant 0 : index
    %c0_35 = arith.constant 0 : index
    %89 = vector.load %arg11[%c0_34, %c0_35] : memref<128x32xf32, #tpu.memory_space<vmem>>, vector<128x32xf32>
    %c0_36 = arith.constant 0 : index
    %c0_37 = arith.constant 0 : index
    %c0_38 = arith.constant 0 : index
    %90 = vector.load %arg7[%c0_36, %c0_37, %c0_38] : memref<1x32x32xf32, #tpu.memory_space<vmem>>, vector<1x32x32xf32>
    %91 = vector.shape_cast %90 : vector<1x32x32xf32> to vector<32x32xf32>
    %cst_39 = arith.constant dense<0.000000e+00> : vector<128x32xf32>
    %92 = tpu.matmul %89, %91, %cst_39 {dimension_numbers = #tpu.dot_dimension_numbers<[1], [0], [0], [1], [0, 0, 1, 1], [], []>} : vector<128x32xf32>, vector<32x32xf32>, vector<128x32xf32> -> vector<128x32xf32>
    %c0_i32 = arith.constant 0 : i32
    %93 = arith.cmpi eq, %arg1, %c0_i32 : i32
    %94 = arith.extui %93 : i1 to i32
    %c0_i32_40 = arith.constant 0 : i32
    %95 = arith.cmpi ne, %94, %c0_i32_40 : i32
    scf.if %95 {
      %c0_45 = arith.constant 0 : index
      %c0_46 = arith.constant 0 : index
      %102 = vector.load %arg8[%c0_45, %c0_46] : memref<1x32xf32, #tpu.memory_space<vmem>>, vector<1x32xf32>
      %103 = vector.broadcast %102 : vector<1x32xf32> to vector<128x32xf32>
      %104 = arith.addf %92, %103 : vector<128x32xf32>
      %c0_47 = arith.constant 0 : index
      %c0_48 = arith.constant 0 : index
      %105 = vector.load %arg10[%c0_47, %c0_48] : memref<128x32xf32, #tpu.memory_space<vmem>>, vector<128x32xf32>
      tpu.vector_store %arg10[%c0_47, %c0_48], %104 {strides = array<i32>} : memref<128x32xf32, #tpu.memory_space<vmem>>, vector<128x32xf32>,
    } else {
    }
    %c0_i32_41 = arith.constant 0 : i32
    %96 = arith.cmpi ne, %arg1, %c0_i32_41 : i32
    %97 = arith.extui %96 : i1 to i32
    %c0_i32_42 = arith.constant 0 : i32
    %98 = arith.cmpi ne, %97, %c0_i32_42 : i32
    scf.if %98 {
      %c0_45 = arith.constant 0 : index
      %c0_46 = arith.constant 0 : index
      %102 = vector.load %arg10[%c0_45, %c0_46] : memref<128x32xf32, #tpu.memory_space<vmem>>, vector<128x32xf32>
      %103 = arith.addf %102, %92 : vector<128x32xf32>
      %c0_47 = arith.constant 0 : index
      %c0_48 = arith.constant 0 : index
      %104 = vector.load %arg10[%c0_47, %c0_48] : memref<128x32xf32, #tpu.memory_space<vmem>>, vector<128x32xf32>
      tpu.vector_store %arg10[%c0_47, %c0_48], %103 {strides = array<i32>} : memref<128x32xf32, #tpu.memory_space<vmem>>, vector<128x32xf32>,
    } else {
    }
    %c0_i32_43 = arith.constant 0 : i32
    %99 = arith.cmpi eq, %arg1, %c0_i32_43 : i32
    %100 = arith.extui %99 : i1 to i32
    %c0_i32_44 = arith.constant 0 : i32
    %101 = arith.cmpi ne, %100, %c0_i32_44 : i32
    scf.if %101 {
      %c0_45 = arith.constant 0 : index
      %c0_46 = arith.constant 0 : index
      %102 = vector.load %arg10[%c0_45, %c0_46] : memref<128x32xf32, #tpu.memory_space<vmem>>, vector<128x32xf32>
      %c0_47 = arith.constant 0 : index
      %c0_48 = arith.constant 0 : index
      %c0_49 = arith.constant 0 : index
      %103 = vector.load %arg9[%c0_47, %c0_48, %c0_49] : memref<1x128x32xf32, #tpu.memory_space<vmem>>, vector<1x128x32xf32>
      %104 = vector.shape_cast %103 : vector<1x128x32xf32> to vector<128x32xf32>
      %105 = vector.shape_cast %102 : vector<128x32xf32> to vector<1x128x32xf32>
      tpu.vector_store %arg9[%c0_47, %c0_48, %c0_49], %105 {strides = array<i32>} : memref<1x128x32xf32, #tpu.memory_space<vmem>>, vector<1x128x32xf32>,
    } else {
    }
    return
  }
  func.func @transform_0(%arg0: i32, %arg1: i32) -> (i32, i32, i32) {
    %c0_i32 = arith.constant 0 : i32
    %c0_i32_0 = arith.constant 0 : i32
    %c0_i32_1 = arith.constant 0 : i32
    return %arg0, %c0_i32, %c0_i32_0 : i32, i32, i32
  }
  func.func @transform_1(%arg0: i32, %arg1: i32) -> (i32, i32, i32) {
    %c0_i32 = arith.constant 0 : i32
    %c0_i32_0 = arith.constant 0 : i32
    %c0_i32_1 = arith.constant 0 : i32
    return %arg0, %c0_i32, %c0_i32_0 : i32, i32, i32
  }
  func.func @transform_2(%arg0: i32, %arg1: i32) -> (i32, i32, i32) {
    %c0_i32 = arith.constant 0 : i32
    %c0_i32_0 = arith.constant 0 : i32
    %c0_i32_1 = arith.constant 0 : i32
    return %arg1, %c0_i32, %c0_i32_0 : i32, i32, i32
  }
  func.func @transform_3(%arg0: i32, %arg1: i32) -> (i32, i32, i32) {
    %c0_i32 = arith.constant 0 : i32
    %c0_i32_0 = arith.constant 0 : i32
    %c0_i32_1 = arith.constant 0 : i32
    return %arg1, %c0_i32, %c0_i32_0 : i32, i32, i32
  }
  func.func @transform_4(%arg0: i32, %arg1: i32) -> (i32, i32) {
    %c0_i32 = arith.constant 0 : i32
    %c0_i32_0 = arith.constant 0 : i32
    %c0_i32_1 = arith.constant 0 : i32
    return %c0_i32, %c0_i32_0 : i32, i32
  }
  func.func @transform_5(%arg0: i32, %arg1: i32) -> (i32, i32, i32) {
    %c0_i32 = arith.constant 0 : i32
    %c0_i32_0 = arith.constant 0 : i32
    %c0_i32_1 = arith.constant 0 : i32
    return %arg1, %c0_i32, %c0_i32_0 : i32, i32, i32
  }
  func.func @transform_6(%arg0: i32, %arg1: i32) -> (i32, i32) {
    %c0_i32 = arith.constant 0 : i32
    %c0_i32_0 = arith.constant 0 : i32
    %c0_i32_1 = arith.constant 0 : i32
    return %c0_i32, %c0_i32_0 : i32, i32
  }
  func.func @transform_7(%arg0: i32, %arg1: i32) -> (i32, i32, i32) {
    %c0_i32 = arith.constant 0 : i32
    %c0_i32_0 = arith.constant 0 : i32
    %c0_i32_1 = arith.constant 0 : i32
    return %arg0, %c0_i32, %c0_i32_0 : i32, i32, i32
  }
}

</mosaic_0001>

<llo_original>
// kernel: tpu_custom_call.1
$region0: #{tpu_custom_call.1}
  #allocation0 [shape = 'u32[]', space=smem, size = 0x4, offset = 0x4, fixed_abs, tag = 'smem constant byte address 0x4 - core index']
  #allocation1 [shape = 'u32[144,128]{1,0:T(1,128)}', space=vmem, size = 0x12000, scoped, tag = 'internal scratch']
  #allocation2 [shape = 'f32[128,32]{1,0:T(8,128)}', space=vmem, size = 0x10000, scoped, tag = 'scratch operand']
  #allocation3 [shape = 'f32[128,32]{1,0:T(8,128)}', space=vmem, size = 0x10000, scoped, tag = 'scratch operand']
  %s0 = inlined_call_operand.hbm [shape: f32[2,128,32], index: 0, kind: input, shape index: {}]
  %s1 = inlined_call_operand.hbm [shape: f32[2,1,128], index: 1, kind: input, shape index: {}]
  %s2 = inlined_call_operand.hbm [shape: f32[1,32,96], index: 2, kind: input, shape index: {}]
  %s3 = inlined_call_operand.hbm [shape: f32[1,1,96], index: 3, kind: input, shape index: {}]
  %s4 = inlined_call_operand.hbm [shape: f32[1,32], index: 4, kind: input, shape index: {}]
  %s5 = inlined_call_operand.hbm [shape: f32[1,32,32], index: 5, kind: input, shape index: {}]
  %s6 = inlined_call_operand.hbm [shape: f32[1,32], index: 6, kind: input, shape index: {}]
  %s7 = inlined_call_operand.hbm [shape: f32[2,128,32], index: 7, kind: output, shape index: {}]
  %s8 = sld [smem:[#allocation0]]
  $region101: #{tpu_custom_call.1} parent=0
    _
  %s10 = ssub.s32 1, %s8
  %s11 = scalar_select 0, %s10, %s8
  $region1: #{tpu_custom_call.1} parent=0
    #allocation4 [shape = 'u8[65536]{0}', space=vmem, size = 0x10000, scoped, tag = 'input window, operand 0, single buffered']
    #allocation5 [shape = 's32[2]{0}', space=sflag, size = 0x8, scoped, tag = 'scoped memory for tpu_custom_call.1']
    #allocation6 [shape = 's32[2]{0}', space=sflag, size = 0x8, scoped, tag = 'scoped memory for tpu_custom_call.1']
    #allocation7 [shape = 'u8[512]{0}', space=vmem, size = 0x400, scoped, tag = 'input window, operand 1, single buffered']
    #allocation8 [shape = 's32[1]{0}', space=sflag, size = 0x4, scoped, tag = 'scoped memory for tpu_custom_call.1']
    #allocation9 [shape = 'u8[16384]{0}', space=vmem, size = 0x4000, scoped, tag = 'input window, operand 2, single buffered']
    #allocation10 [shape = 'u8[512]{0}', space=vmem, size = 0x400, scoped, tag = 'input window, operand 3, single buffered']
    #allocation11 [shape = 's32[1]{0}', space=sflag, size = 0x4, scoped, tag = 'scoped memory for tpu_custom_call.1']
    #allocation12 [shape = 'u8[512]{0}', space=vmem, size = 0x400, scoped, tag = 'input window, operand 4, single buffered']
    #allocation13 [shape = 'u8[16384]{0}', space=vmem, size = 0x4000, scoped, tag = 'input window, operand 5, single buffered']
    #allocation14 [shape = 's32[1]{0}', space=sflag, size = 0x4, scoped, tag = 'scoped memory for tpu_custom_call.1']
    #allocation15 [shape = 'u8[512]{0}', space=vmem, size = 0x400, scoped, tag = 'input window, operand 6, single buffered']
    #allocation16 [shape = 'u8[131072]{0}', space=vmem, size = 0x20000, scoped, tag = 'output window, operand 0']
    %12 = vsyncpa [#allocation5], 0
    %13 = vsyncpa [#allocation8], 0
    %14 = vsyncpa [#allocation11], 0
    %15 = vsyncpa [#allocation14], 0
    %16 = vsyncpa [#allocation6], 0
    %s17 = scalar_lea.sflag [#allocation6], 1
    %18 = vsyncpa %s17, 0
    loop: start=0, step=1, limit=4
    $region2: #{tpu_custom_call.1} parent=1 // loop_pre_header
      _
    $region3: #{tpu_custom_call.1} parent=1 // loop_header
      %s20 = sphi 0, %s24
      %p21 = scmp.ge.s32.totalorder %s20, 4
      %s27 = sphi 0, %s39
      %s28 = sphi 0, %s35
      %s29 = sphi 0, %s27
      %s30 = sphi 0, %s28
      %s31 = sphi 0, %s29
      %s32 = sphi 0, %s30
      %s42 = sphi 0, %s44
      %s45 = sphi 0, %s42
      %s46 = sphi 0, %s45
      %s62 = sphi 0, %s46
      %s68 = sphi 0, %s70
      %s71 = sphi 0, %s68
      %s72 = sphi 0, %s71
      %s88 = sphi 0, %s72
      %s94 = sphi 0, %s96
      %s97 = sphi 0, %s94
      %s98 = sphi 0, %s97
      %s114 = sphi 0, %s98
      %s120 = sphi 0, %s122
      %s123 = sphi 0, %s120
      %s124 = sphi 0, %s123
      %s140 = sphi 0, %s124
      %s144 = sphi 0, %s144
      %s146 = sphi 0, %s144
      %s147 = sphi 0, %s146
      %s161 = sphi 0, %s147
      %s167 = sphi 0, %s169
      %s170 = sphi 0, %s167
      %s171 = sphi 0, %s170
      %s187 = sphi 0, %s171
      %s191 = sphi 0, %s191
      %s193 = sphi 0, %s191
      %s194 = sphi 0, %s193
      %s208 = sphi 0, %s194
      %s214 = sphi 0, %s216
      %s217 = sphi 0, %s214
      %s218 = sphi 0, %s217
      %s234 = sphi 0, %s218
    $region4: #{tpu_custom_call.1} parent=1 // loop_header_branch
      %23 = sbr.rel (%p21) target = $region8
    $region5: #{tpu_custom_call.1} parent=1 // loop_body
      %s25 = ssub.s32 %s20, 1
      %s26 = ssub.s32 %s20, 2
      %s33 = sadd.s32 1, %s28
      %p34 = scmp.ge.s32.totalorder %s33, 1
      %s35 = scalar_select %p34, 0, %s33
      %s36 = sadd.s32 1, %s27
      %s37 = scalar_select %p34, %s36, %s27
      %p38 = scmp.ge.s32.totalorder %s37, 2
      %s39 = scalar_select %p38, 0, %s37
      %s40 = ssub.s32 %s27, %s39
      %p41 = scmp.eq.s32.totalorder %s40, 0
      %s43 = sadd.s32 %s42, 1
      %s44 = scalar_select %p41, %s42, %s43
      %p47 = pneg %p41
      %p48 = scmp.eq.s32.totalorder %s20, 1
      %p49 = por %p47, %p48
      %p50 = scmp.ne.s32.totalorder %s42, %s45
      %p51 = scmp.eq.s32.totalorder %s20, 0
      %p52 = por %p50, %p51
      %p53 = scmp.ne.s32.totalorder %s42, %s45
      %p54 = scmp.eq.s32.totalorder %s25, 1
      %p55 = por %p53, %p54
      %p56 = scmp.ne.s32.totalorder %s45, %s46
      %p57 = scmp.eq.s32.totalorder %s25, 0
      %p58 = por %p56, %p57
      %p59 = scmp.ne.s32.totalorder %s45, %s46
      %p60 = scmp.eq.s32.totalorder %s26, 1
      %p61 = por %p59, %p60
      %p63 = scmp.ne.s32.totalorder %s46, %s62
      %p64 = scmp.eq.s32.totalorder %s26, 0
      %p65 = por %p63, %p64
      %s66 = ssub.s32 %s27, %s39
      %p67 = scmp.eq.s32.totalorder %s66, 0
      %s69 = sadd.s32 %s68, 1
      %s70 = scalar_select %p67, %s68, %s69
      %p73 = pneg %p67
      %p74 = scmp.eq.s32.totalorder %s20, 1
      %p75 = por %p73, %p74
      %p76 = scmp.ne.s32.totalorder %s68, %s71
      %p77 = scmp.eq.s32.totalorder %s20, 0
      %p78 = por %p76, %p77
      %p79 = scmp.ne.s32.totalorder %s68, %s71
      %p80 = scmp.eq.s32.totalorder %s25, 1
      %p81 = por %p79, %p80
      %p82 = scmp.ne.s32.totalorder %s71, %s72
      %p83 = scmp.eq.s32.totalorder %s25, 0
      %p84 = por %p82, %p83
      %p85 = scmp.ne.s32.totalorder %s71, %s72
      %p86 = scmp.eq.s32.totalorder %s26, 1
      %p87 = por %p85, %p86
      %p89 = scmp.ne.s32.totalorder %s72, %s88
      %p90 = scmp.eq.s32.totalorder %s26, 0
      %p91 = por %p89, %p90
      %s92 = ssub.s32 %s28, %s35
      %p93 = scmp.eq.s32.totalorder %s92, 0
      %s95 = sadd.s32 %s94, 1
      %s96 = scalar_select %p93, %s94, %s95
      %p99 = pneg %p93
      %p100 = scmp.eq.s32.totalorder %s20, 1
      %p101 = por %p99, %p100
      %p102 = scmp.ne.s32.totalorder %s94, %s97
      %p103 = scmp.eq.s32.totalorder %s20, 0
      %p104 = por %p102, %p103
      %p105 = scmp.ne.s32.totalorder %s94, %s97
      %p106 = scmp.eq.s32.totalorder %s25, 1
      %p107 = por %p105, %p106
      %p108 = scmp.ne.s32.totalorder %s97, %s98
      %p109 = scmp.eq.s32.totalorder %s25, 0
      %p110 = por %p108, %p109
      %p111 = scmp.ne.s32.totalorder %s97, %s98
      %p112 = scmp.eq.s32.totalorder %s26, 1
      %p113 = por %p111, %p112
      %p115 = scmp.ne.s32.totalorder %s98, %s114
      %p116 = scmp.eq.s32.totalorder %s26, 0
      %p117 = por %p115, %p116
      %s118 = ssub.s32 %s28, %s35
      %p119 = scmp.eq.s32.totalorder %s118, 0
      %s121 = sadd.s32 %s120, 1
      %s122 = scalar_select %p119, %s120, %s121
      %p125 = pneg %p119
      %p126 = scmp.eq.s32.totalorder %s20, 1
      %p127 = por %p125, %p126
      %p128 = scmp.ne.s32.totalorder %s120, %s123
      %p129 = scmp.eq.s32.totalorder %s20, 0
      %p130 = por %p128, %p129
      %p131 = scmp.ne.s32.totalorder %s120, %s123
      %p132 = scmp.eq.s32.totalorder %s25, 1
      %p133 = por %p131, %p132
      %p134 = scmp.ne.s32.totalorder %s123, %s124
      %p135 = scmp.eq.s32.totalorder %s25, 0
      %p136 = por %p134, %p135
      %p137 = scmp.ne.s32.totalorder %s123, %s124
      %p138 = scmp.eq.s32.totalorder %s26, 1
      %p139 = por %p137, %p138
      %p141 = scmp.ne.s32.totalorder %s124, %s140
      %p142 = scmp.eq.s32.totalorder %s26, 0
      %p143 = por %p141, %p142
      %s145 = sadd.s32 %s144, 1
      %p148 = scmp.eq.s32.totalorder %s20, 1
      %p149 = scmp.ne.s32.totalorder %s144, %s146
      %p150 = scmp.eq.s32.totalorder %s20, 0
      %p151 = por %p149, %p150
      %p152 = scmp.ne.s32.totalorder %s144, %s146
      %p153 = scmp.eq.s32.totalorder %s25, 1
      %p154 = por %p152, %p153
      %p155 = scmp.ne.s32.totalorder %s146, %s147
      %p156 = scmp.eq.s32.totalorder %s25, 0
      %p157 = por %p155, %p156
      %p158 = scmp.ne.s32.totalorder %s146, %s147
      %p159 = scmp.eq.s32.totalorder %s26, 1
      %p160 = por %p158, %p159
      %p162 = scmp.ne.s32.totalorder %s147, %s161
      %p163 = scmp.eq.s32.totalorder %s26, 0
      %p164 = por %p162, %p163
      %s165 = ssub.s32 %s28, %s35
      %p166 = scmp.eq.s32.totalorder %s165, 0
      %s168 = sadd.s32 %s167, 1
      %s169 = scalar_select %p166, %s167, %s168
      %p172 = pneg %p166
      %p173 = scmp.eq.s32.totalorder %s20, 1
      %p174 = por %p172, %p173
      %p175 = scmp.ne.s32.totalorder %s167, %s170
      %p176 = scmp.eq.s32.totalorder %s20, 0
      %p177 = por %p175, %p176
      %p178 = scmp.ne.s32.totalorder %s167, %s170
      %p179 = scmp.eq.s32.totalorder %s25, 1
      %p180 = por %p178, %p179
      %p181 = scmp.ne.s32.totalorder %s170, %s171
      %p182 = scmp.eq.s32.totalorder %s25, 0
      %p183 = por %p181, %p182
      %p184 = scmp.ne.s32.totalorder %s170, %s171
      %p185 = scmp.eq.s32.totalorder %s26, 1
      %p186 = por %p184, %p185
      %p188 = scmp.ne.s32.totalorder %s171, %s187
      %p189 = scmp.eq.s32.totalorder %s26, 0
      %p190 = por %p188, %p189
      %s192 = sadd.s32 %s191, 1
      %p195 = scmp.eq.s32.totalorder %s20, 1
      %p196 = scmp.ne.s32.totalorder %s191, %s193
      %p197 = scmp.eq.s32.totalorder %s20, 0
      %p198 = por %p196, %p197
      %p199 = scmp.ne.s32.totalorder %s191, %s193
      %p200 = scmp.eq.s32.totalorder %s25, 1
      %p201 = por %p199, %p200
      %p202 = scmp.ne.s32.totalorder %s193, %s194
      %p203 = scmp.eq.s32.totalorder %s25, 0
      %p204 = por %p202, %p203
      %p205 = scmp.ne.s32.totalorder %s193, %s194
      %p206 = scmp.eq.s32.totalorder %s26, 1
      %p207 = por %p205, %p206
      %p209 = scmp.ne.s32.totalorder %s194, %s208
      %p210 = scmp.eq.s32.totalorder %s26, 0
      %p211 = por %p209, %p210
      %s212 = ssub.s32 %s27, %s39
      %p213 = scmp.eq.s32.totalorder %s212, 0
      %s215 = sadd.s32 %s214, 1
      %s216 = scalar_select %p213, %s214, %s215
      %p219 = pneg %p213
      %p220 = scmp.eq.s32.totalorder %s20, 1
      %p221 = por %p219, %p220
      %p222 = scmp.ne.s32.totalorder %s214, %s217
      %p223 = scmp.eq.s32.totalorder %s20, 0
      %p224 = por %p222, %p223
      %p225 = scmp.ne.s32.totalorder %s214, %s217
      %p226 = scmp.eq.s32.totalorder %s25, 1
      %p227 = por %p225, %p226
      %p228 = scmp.ne.s32.totalorder %s217, %s218
      %p229 = scmp.eq.s32.totalorder %s25, 0
      %p230 = por %p228, %p229
      %p231 = scmp.ne.s32.totalorder %s217, %s218
      %p232 = scmp.eq.s32.totalorder %s26, 1
      %p233 = por %p231, %p232
      %p235 = scmp.ne.s32.totalorder %s218, %s234
      %p236 = scmp.eq.s32.totalorder %s26, 0
      %p237 = por %p235, %p236
      %p238 = scmp.le.s32.totalorder 1, %s20
      %p239 = scmp.lt.s32.totalorder %s20, 3
      %p240 = pnand %p238, %p239
      %p241 = pneg %p240
      // Predicated region
      $region9: #{tpu_custom_call.1} parent=5 // pred_check
        _
      $region10: #{tpu_custom_call.1} parent=5 // pred_check_branch
        %243 = sbr.rel (%p240) target = $region12
      $region11: #{tpu_custom_call.1} parent=5 // pred_region
        %s244 = ssub.s32 %s20, 1
        // Predicated region
        $region13: #{tpu_custom_call.1} parent=11 // pred_check
          %p245 = pneg %p58
        $region14: #{tpu_custom_call.1} parent=11 // pred_check_branch
          %247 = sbr.rel (%p245) target = $region16
        $region15: #{tpu_custom_call.1} parent=11 // pred_region
          %s249 = ssub.s32 2048, 2048
          %250 = vsyncadd [#allocation5], %s249
          %s251 = smul.addr %s29, 16
          %s252 = smul.addr %s251, 128
          %s253 = scalar_lea.hbm %s0, %s252
          %s254 = sshll.u32 [#allocation4], 4
          %s255 = int_to_ptr.vmem [resolvable:$true] %s254
          %260 = dma.hbm_to_vmem [thread:$0]  %s253, 2048, %s255, [#allocation5], 128, 128, 8
        $region16: #{tpu_custom_call.1} parent=11 // pred_fallthru
          _
        // Predicated region
        $region17: #{tpu_custom_call.1} parent=11 // pred_check
          %p261 = pneg %p84
        $region18: #{tpu_custom_call.1} parent=11 // pred_check_branch
          %263 = sbr.rel (%p261) target = $region20
        $region19: #{tpu_custom_call.1} parent=11 // pred_region
          %s265 = ssub.s32 16, 16
          %266 = vsyncadd [#allocation8], %s265
          %s267 = smul.addr %s29, 16
          %s268 = scalar_lea.hbm %s1, %s267
          %s270 = sshll.u32 [#allocation7], 4
          %s271 = int_to_ptr.vmem [resolvable:$true] %s270
          %273 = dma.hbm_to_vmem [thread:$0]  %s268, 16, %s271, [#allocation8]
        $region20: #{tpu_custom_call.1} parent=11 // pred_fallthru
          _
        // Predicated region
        $region21: #{tpu_custom_call.1} parent=11 // pred_check
          %p274 = pneg %p110
        $region22: #{tpu_custom_call.1} parent=11 // pred_check_branch
          %276 = sbr.rel (%p274) target = $region24
        $region23: #{tpu_custom_call.1} parent=11 // pred_region
          %s278 = ssub.s32 512, 512
          %279 = vsyncadd [#allocation8], %s278
          %s280 = smul.addr %s30, 4
          %s281 = smul.addr %s280, 128
          %s282 = scalar_lea.hbm %s2, %s281
          %s283 = sshll.u32 [#allocation9], 4
          %s284 = int_to_ptr.vmem [resolvable:$true] %s283
          %289 = dma.hbm_to_vmem [thread:$0]  %s282, 512, %s284, [#allocation8], 128, 128, 8
        $region24: #{tpu_custom_call.1} parent=11 // pred_fallthru
          _
        // Predicated region
        $region25: #{tpu_custom_call.1} parent=11 // pred_check
          %p290 = pneg %p136
        $region26: #{tpu_custom_call.1} parent=11 // pred_check_branch
          %292 = sbr.rel (%p290) target = $region28
        $region27: #{tpu_custom_call.1} parent=11 // pred_region
          %s294 = ssub.s32 16, 16
          %295 = vsyncadd [#allocation11], %s294
          %s296 = smul.addr %s30, 16
          %s297 = scalar_lea.hbm %s3, %s296
          %s299 = sshll.u32 [#allocation10], 4
          %s300 = int_to_ptr.vmem [resolvable:$true] %s299
          %302 = dma.hbm_to_vmem [thread:$0]  %s297, 16, %s300, [#allocation11]
        $region28: #{tpu_custom_call.1} parent=11 // pred_fallthru
          _
        // Predicated region
        $region29: #{tpu_custom_call.1} parent=11 // pred_check
          %p303 = pneg %p157
        $region30: #{tpu_custom_call.1} parent=11 // pred_check_branch
          %305 = sbr.rel (%p303) target = $region32
        $region31: #{tpu_custom_call.1} parent=11 // pred_region
          %s307 = ssub.s32 16, 16
          %308 = vsyncadd [#allocation11], %s307
          %s310 = sshll.u32 [#allocation12], 4
          %s311 = int_to_ptr.vmem [resolvable:$true] %s310
          %313 = dma.hbm_to_vmem [thread:$0]  %s4, 16, %s311, [#allocation11]
        $region32: #{tpu_custom_call.1} parent=11 // pred_fallthru
          _
        // Predicated region
        $region33: #{tpu_custom_call.1} parent=11 // pred_check
          %p314 = pneg %p183
        $region34: #{tpu_custom_call.1} parent=11 // pred_check_branch
          %316 = sbr.rel (%p314) target = $region36
        $region35: #{tpu_custom_call.1} parent=11 // pred_region
          %s318 = ssub.s32 512, 512
          %319 = vsyncadd [#allocation14], %s318
          %s320 = smul.addr %s30, 4
          %s321 = smul.addr %s320, 128
          %s322 = scalar_lea.hbm %s5, %s321
          %s323 = sshll.u32 [#allocation13], 4
          %s324 = int_to_ptr.vmem [resolvable:$true] %s323
          %329 = dma.hbm_to_vmem [thread:$0]  %s322, 512, %s324, [#allocation14], 128, 128, 8
        $region36: #{tpu_custom_call.1} parent=11 // pred_fallthru
          _
        // Predicated region
        $region37: #{tpu_custom_call.1} parent=11 // pred_check
          %p330 = pneg %p204
        $region38: #{tpu_custom_call.1} parent=11 // pred_check_branch
          %332 = sbr.rel (%p330) target = $region40
        $region39: #{tpu_custom_call.1} parent=11 // pred_region
          %s334 = ssub.s32 16, 16
          %335 = vsyncadd [#allocation14], %s334
          %s337 = sshll.u32 [#allocation15], 4
          %s338 = int_to_ptr.vmem [resolvable:$true] %s337
          %340 = dma.hbm_to_vmem [thread:$0]  %s6, 16, %s338, [#allocation14]
        $region40: #{tpu_custom_call.1} parent=11 // pred_fallthru
          _
      $region12: #{tpu_custom_call.1} parent=5 // pred_fallthru
        _
      %p341 = scmp.lt.s32.totalorder %s20, 2
      // Predicated region
      $region41: #{tpu_custom_call.1} parent=5 // pred_check
        %p342 = pneg %p341
      $region42: #{tpu_custom_call.1} parent=5 // pred_check_branch
        %344 = sbr.rel (%p342) target = $region44
      $region43: #{tpu_custom_call.1} parent=5 // pred_region
        _
      $region44: #{tpu_custom_call.1} parent=5 // pred_fallthru
        _
      %p345 = scmp.le.s32.totalorder 1, %s20
      %p346 = scmp.lt.s32.totalorder %s20, 3
      %p347 = pnand %p345, %p346
      %p348 = pneg %p347
      // Predicated region
      $region45: #{tpu_custom_call.1} parent=5 // pred_check
        _
      $region46: #{tpu_custom_call.1} parent=5 // pred_check_branch
        %350 = sbr.rel (%p347) target = $region48
      $region47: #{tpu_custom_call.1} parent=5 // pred_region
        %s351 = ssub.s32 %s20, 1
        // Predicated region
        $region49: #{tpu_custom_call.1} parent=47 // pred_check
          %p352 = pneg %p58
        $region50: #{tpu_custom_call.1} parent=47 // pred_check_branch
          %354 = sbr.rel (%p352) target = $region52
        $region51: #{tpu_custom_call.1} parent=47 // pred_region
          %355 = dma.done [#allocation5], 2048
        $region52: #{tpu_custom_call.1} parent=47 // pred_fallthru
          _
        // Predicated region
        $region53: #{tpu_custom_call.1} parent=47 // pred_check
          %p356 = pneg %p84
        $region54: #{tpu_custom_call.1} parent=47 // pred_check_branch
          %358 = sbr.rel (%p356) target = $region56
        $region55: #{tpu_custom_call.1} parent=47 // pred_region
          %359 = dma.done [#allocation8], 16
        $region56: #{tpu_custom_call.1} parent=47 // pred_fallthru
          _
        // Predicated region
        $region57: #{tpu_custom_call.1} parent=47 // pred_check
          %p360 = pneg %p110
        $region58: #{tpu_custom_call.1} parent=47 // pred_check_branch
          %362 = sbr.rel (%p360) target = $region60
        $region59: #{tpu_custom_call.1} parent=47 // pred_region
          %363 = dma.done [#allocation8], 512
        $region60: #{tpu_custom_call.1} parent=47 // pred_fallthru
          _
        // Predicated region
        $region61: #{tpu_custom_call.1} parent=47 // pred_check
          %p364 = pneg %p136
        $region62: #{tpu_custom_call.1} parent=47 // pred_check_branch
          %366 = sbr.rel (%p364) target = $region64
        $region63: #{tpu_custom_call.1} parent=47 // pred_region
          %367 = dma.done [#allocation11], 16
        $region64: #{tpu_custom_call.1} parent=47 // pred_fallthru
          _
        // Predicated region
        $region65: #{tpu_custom_call.1} parent=47 // pred_check
          %p368 = pneg %p157
        $region66: #{tpu_custom_call.1} parent=47 // pred_check_branch
          %370 = sbr.rel (%p368) target = $region68
        $region67: #{tpu_custom_call.1} parent=47 // pred_region
          %371 = dma.done [#allocation11], 16
        $region68: #{tpu_custom_call.1} parent=47 // pred_fallthru
          _
        // Predicated region
        $region69: #{tpu_custom_call.1} parent=47 // pred_check
          %p372 = pneg %p183
        $region70: #{tpu_custom_call.1} parent=47 // pred_check_branch
          %374 = sbr.rel (%p372) target = $region72
        $region71: #{tpu_custom_call.1} parent=47 // pred_region
          %375 = dma.done [#allocation14], 512
        $region72: #{tpu_custom_call.1} parent=47 // pred_fallthru
          _
        // Predicated region
        $region73: #{tpu_custom_call.1} parent=47 // pred_check
          %p376 = pneg %p204
        $region74: #{tpu_custom_call.1} parent=47 // pred_check_branch
          %378 = sbr.rel (%p376) target = $region76
        $region75: #{tpu_custom_call.1} parent=47 // pred_region
          %379 = dma.done [#allocation14], 16
        $region76: #{tpu_custom_call.1} parent=47 // pred_fallthru
          _
        %p380 = pneg %p58
        %p381 = pneg %p55
        %p382 = pneg %p84
        %p383 = pneg %p81
        %p384 = pneg %p110
        %p385 = pneg %p107
        %p386 = pneg %p136
        %p387 = pneg %p133
        %p388 = pneg %p157
        %p389 = pneg %p154
        %p390 = pneg %p183
        %p391 = pneg %p180
        %p392 = pneg %p204
        %p393 = pneg %p201
        %p394 = pneg %p230
        %p395 = pneg %p227
        %s396 = sand.u32 %s217, 1
        %s397 = scalar_lea.sflag [#allocation6], %s396
        %s398 = sand.u32 %s217, 1
        %s399 = smul.addr %s398, 128
        %s400 = scalar_lea.vmem [#allocation16], %s399
        %v401 = vld [vmem:[#allocation4] sm:$0xff]
        %v402 = vld [vmem:[#allocation4 + $0x8] sm:$0xff]
        %v403 = vld [vmem:[#allocation4 + $0x10] sm:$0xff]
        %v404 = vld [vmem:[#allocation4 + $0x18] sm:$0xff]
        %v405 = vld [vmem:[#allocation4 + $0x20] sm:$0xff]
        %v406 = vld [vmem:[#allocation4 + $0x28] sm:$0xff]
        %v407 = vld [vmem:[#allocation4 + $0x30] sm:$0xff]
        %v408 = vld [vmem:[#allocation4 + $0x38] sm:$0xff]
        %v409 = vld [vmem:[#allocation4 + $0x40] sm:$0xff]
        %v410 = vld [vmem:[#allocation4 + $0x48] sm:$0xff]
        %v411 = vld [vmem:[#allocation4 + $0x50] sm:$0xff]
        %v412 = vld [vmem:[#allocation4 + $0x58] sm:$0xff]
        %v413 = vld [vmem:[#allocation4 + $0x60] sm:$0xff]
        %v414 = vld [vmem:[#allocation4 + $0x68] sm:$0xff]
        %v415 = vld [vmem:[#allocation4 + $0x70] sm:$0xff]
        %v416 = vld [vmem:[#allocation4 + $0x78] sm:$0xff]
        %v417 = vld [vmem:[#allocation7] sm:$0x1]
        %v418 = vld [vmem:[#allocation9] sm:$0xff]
        %v419 = vld [vmem:[#allocation9 + $0x8] sm:$0xff]
        %v420 = vld [vmem:[#allocation9 + $0x10] sm:$0xff]
        %v421 = vld [vmem:[#allocation9 + $0x18] sm:$0xff]
        %v422 = vld [vmem:[#allocation10] sm:$0x1]
        %v424 = vlaneseq
        %v425 = vshrl.u32 %v424, 7
        %v426 = vsub.s32 0, %v425
        %v427 = vrot.slane %v422, %v426
        %vm429 = vcmask 261120
        %v431 = vsel %vm429, %v401, 0
        %v434 = vsel %vm429, %v402, 0
        %v437 = vsel %vm429, %v403, 0
        %v440 = vsel %vm429, %v404, 0
        %v443 = vsel %vm429, %v405, 0
        %v446 = vsel %vm429, %v406, 0
        %v449 = vsel %vm429, %v407, 0
        %v452 = vsel %vm429, %v408, 0
        %v455 = vsel %vm429, %v409, 0
        %v458 = vsel %vm429, %v410, 0
        %v461 = vsel %vm429, %v411, 0
        %v464 = vsel %vm429, %v412, 0
        %v467 = vsel %vm429, %v413, 0
        %v470 = vsel %vm429, %v414, 0
        %v473 = vsel %vm429, %v415, 0
        %v476 = vsel %vm429, %v416, 0
        %478 = vmatprep.subr.mxu0 0.0
        %479 = vmatpush1.msra.mxu0 %v418
        %480 = vmatprep.subr.mxu0 0.0
        %481 = vmatpush1.msra.mxu0 %v419
        %482 = vmatprep.subr.mxu0 0.0
        %483 = vmatpush1.msra.mxu0 %v420
        %484 = vmatprep.subr.mxu0 0.0
        %485 = vmatpush1.msra.mxu0 %v421
        %486 = vmatprep.subr.mxu0 0.0
        %487 = vmatpush1.msra.mxu0 0.0
        %488 = vmatprep.subr.mxu0 0.0
        %489 = vmatpush1.msra.mxu0 0.0
        %490 = vmatprep.subr.mxu0 0.0
        %491 = vmatpush1.msra.mxu0 0.0
        %492 = vmatprep.subr.mxu0 0.0
        %493 = vmatpush1.msra.mxu0 0.0
        %494 = vmatprep.subr.mxu0 0.0
        %495 = vmatpush1.msra.mxu0 0.0
        %496 = vmatprep.subr.mxu0 0.0
        %497 = vmatpush1.msra.mxu0 0.0
        %498 = vmatprep.subr.mxu0 0.0
        %499 = vmatpush1.msra.mxu0 0.0
        %500 = vmatprep.subr.mxu0 0.0
        %501 = vmatpush1.msra.mxu0 0.0
        %502 = vmatprep.subr.mxu0 0.0
        %503 = vmatpush1.msra.mxu0 0.0
        %504 = vmatprep.subr.mxu0 0.0
        %505 = vmatpush1.msra.mxu0 0.0
        %506 = vmatprep.subr.mxu0 0.0
        %507 = vmatpush1.msra.mxu0 0.0
        %508 = vmatprep.subr.mxu0 0.0
        %509 = vmatpush1.msra.mxu0 0.0
        %510 = vmatprep.subr.mxu0 0.0
        %511 = vmatpush1.msra.mxu0 0.0
        %512 = vmatprep.subr.mxu0 0.0
        %513 = vmatpush1.msra.mxu0 0.0
        %514 = vmatprep.subr.mxu0 0.0
        %515 = vmatpush1.msra.mxu0 0.0
        %516 = vmatprep.subr.mxu0 0.0
        %517 = vmatpush1.msra.mxu0 0.0
        %518 = vmatprep.subr.mxu0 0.0
        %519 = vmatpush1.msra.mxu0 0.0
        %520 = vmatprep.subr.mxu0 0.0
        %521 = vmatpush1.msra.mxu0 0.0
        %522 = vmatprep.subr.mxu0 0.0
        %523 = vmatpush1.msra.mxu0 0.0
        %524 = vmatprep.subr.mxu0 0.0
        %525 = vmatpush1.msra.mxu0 0.0
        %526 = vmatprep.subr.mxu0 0.0
        %527 = vmatpush1.msra.mxu0 0.0
        %528 = vmatprep.subr.mxu0 0.0
        %529 = vmatpush1.msra.mxu0 0.0
        %530 = vmatprep.subr.mxu0 0.0
        %531 = vmatpush1.msra.mxu0 0.0
        %532 = vmatprep.subr.mxu0 0.0
        %533 = vmatpush1.msra.mxu0 0.0
        %534 = vmatprep.subr.mxu0 0.0
        %535 = vmatpush1.msra.mxu0 0.0
        %536 = vmatprep.subr.mxu0 0.0
        %537 = vmatpush1.msra.mxu0 0.0
        %538 = vmatprep.subr.mxu0 0.0
        %539 = vmatpush1.msra.mxu0 0.0
        %540 = vmatprep.subr.mxu0 0.0
        %541 = vmatpush1.msra.mxu0 0.0
        %542 = vmatprep.mubr.f32.mxu0 0.0
        %543 = vmatmul.mubr.f32.gmra.mrb[0].mxu0 %v431
        %v544 = vpop.f32.mrb[0].mxu0
        %v545 = vadd.f32 %v427, %v544
        %v546 = vpop.f32.mrb[0].mxu0
        %547 = vmatprep.mubr.f32.mxu0 0.0
        %548 = vmatmul.mubr.f32.gmra.mrb[0].mxu0 %v434
        %v549 = vpop.f32.mrb[0].mxu0
        %v550 = vadd.f32 %v427, %v549
        %v551 = vpop.f32.mrb[0].mxu0
        %552 = vmatprep.mubr.f32.mxu0 0.0
        %553 = vmatmul.mubr.f32.gmra.mrb[0].mxu0 %v437
        %v554 = vpop.f32.mrb[0].mxu0
        %v555 = vadd.f32 %v427, %v554
        %v556 = vpop.f32.mrb[0].mxu0
        %557 = vmatprep.mubr.f32.mxu0 0.0
        %558 = vmatmul.mubr.f32.gmra.mrb[0].mxu0 %v440
        %v559 = vpop.f32.mrb[0].mxu0
        %v560 = vadd.f32 %v427, %v559
        %v561 = vpop.f32.mrb[0].mxu0
        %562 = vmatprep.mubr.f32.mxu0 0.0
        %563 = vmatmul.mubr.f32.gmra.mrb[0].mxu0 %v443
        %v564 = vpop.f32.mrb[0].mxu0
        %v565 = vadd.f32 %v427, %v564
        %v566 = vpop.f32.mrb[0].mxu0
        %567 = vmatprep.mubr.f32.mxu0 0.0
        %568 = vmatmul.mubr.f32.gmra.mrb[0].mxu0 %v446
        %v569 = vpop.f32.mrb[0].mxu0
        %v570 = vadd.f32 %v427, %v569
        %v571 = vpop.f32.mrb[0].mxu0
        %572 = vmatprep.mubr.f32.mxu0 0.0
        %573 = vmatmul.mubr.f32.gmra.mrb[0].mxu0 %v449
        %v574 = vpop.f32.mrb[0].mxu0
        %v575 = vadd.f32 %v427, %v574
        %v576 = vpop.f32.mrb[0].mxu0
        %577 = vmatprep.mubr.f32.mxu0 0.0
        %578 = vmatmul.mubr.f32.gmra.mrb[0].mxu0 %v452
        %v579 = vpop.f32.mrb[0].mxu0
        %v580 = vadd.f32 %v427, %v579
        %v581 = vpop.f32.mrb[0].mxu0
        %582 = vmatprep.mubr.f32.mxu0 0.0
        %583 = vmatmul.mubr.f32.gmra.mrb[0].mxu0 %v455
        %v584 = vpop.f32.mrb[0].mxu0
        %v585 = vadd.f32 %v427, %v584
        %v586 = vpop.f32.mrb[0].mxu0
        %587 = vmatprep.mubr.f32.mxu0 0.0
        %588 = vmatmul.mubr.f32.gmra.mrb[0].mxu0 %v458
        %v589 = vpop.f32.mrb[0].mxu0
        %v590 = vadd.f32 %v427, %v589
        %v591 = vpop.f32.mrb[0].mxu0
        %592 = vmatprep.mubr.f32.mxu0 0.0
        %593 = vmatmul.mubr.f32.gmra.mrb[0].mxu0 %v461
        %v594 = vpop.f32.mrb[0].mxu0
        %v595 = vadd.f32 %v427, %v594
        %v596 = vpop.f32.mrb[0].mxu0
        %597 = vmatprep.mubr.f32.mxu0 0.0
        %598 = vmatmul.mubr.f32.gmra.mrb[0].mxu0 %v464
        %v599 = vpop.f32.mrb[0].mxu0
        %v600 = vadd.f32 %v427, %v599
        %v601 = vpop.f32.mrb[0].mxu0
        %602 = vmatprep.mubr.f32.mxu0 0.0
        %603 = vmatmul.mubr.f32.gmra.mrb[0].mxu0 %v467
        %v604 = vpop.f32.mrb[0].mxu0
        %v605 = vadd.f32 %v427, %v604
        %v606 = vpop.f32.mrb[0].mxu0
        %607 = vmatprep.mubr.f32.mxu0 0.0
        %608 = vmatmul.mubr.f32.gmra.mrb[0].mxu0 %v470
        %v609 = vpop.f32.mrb[0].mxu0
        %v610 = vadd.f32 %v427, %v609
        %v611 = vpop.f32.mrb[0].mxu0
        %612 = vmatprep.mubr.f32.mxu0 0.0
        %613 = vmatmul.mubr.f32.gmra.mrb[0].mxu0 %v473
        %v614 = vpop.f32.mrb[0].mxu0
        %v615 = vadd.f32 %v427, %v614
        %v616 = vpop.f32.mrb[0].mxu0
        %617 = vmatprep.mubr.f32.mxu0 0.0
        %618 = vmatmul.mubr.f32.gmra.mrb[0].mxu0 %v476
        %v619 = vpop.f32.mrb[0].mxu0
        %v620 = vadd.f32 %v427, %v619
        %v621 = vpop.f32.mrb[0].mxu0
        %622 = vdwg.mxu0
        %v623 = vld [vmem:[#allocation12] sm:$0x1]
        %v625 = vlaneseq
        %v626 = vshrl.u32 %v625, 7
        %v627 = vsub.s32 0, %v626
        %v628 = vrot.slane %v623, %v627
        %v630 = vmul.f32 %v545, %v628
        %v631 = vmul.f32 %v550, %v628
        %v632 = vmul.f32 %v555, %v628
        %v633 = vmul.f32 %v560, %v628
        %v634 = vmul.f32 %v565, %v628
        %v635 = vmul.f32 %v570, %v628
        %v636 = vmul.f32 %v575, %v628
        %v637 = vmul.f32 %v580, %v628
        %v638 = vmul.f32 %v585, %v628
        %v639 = vmul.f32 %v590, %v628
        %v640 = vmul.f32 %v595, %v628
        %v641 = vmul.f32 %v600, %v628
        %v642 = vmul.f32 %v605, %v628
        %v643 = vmul.f32 %v610, %v628
        %v644 = vmul.f32 %v615, %v628
        %v645 = vmul.f32 %v620, %v628
        %v647 = vlaneseq
        %v648 = vshrl.u32 %v647, 7
        %v649 = vsub.s32 0, %v648
        %v650 = vrot.slane %v417, %v649
        %668 = vrot.lane.b32.xlu0 %v545, 96
        %v669 = vpop.permute.xlu0 %668
        %670 = vrot.lane.b32.xlu0 %v550, 96
        %v671 = vpop.permute.xlu0 %670
        %672 = vrot.lane.b32.xlu0 %v555, 96
        %v673 = vpop.permute.xlu0 %672
        %674 = vrot.lane.b32.xlu0 %v560, 96
        %v675 = vpop.permute.xlu0 %674
        %676 = vrot.lane.b32.xlu0 %v565, 96
        %v677 = vpop.permute.xlu0 %676
        %678 = vrot.lane.b32.xlu0 %v570, 96
        %v679 = vpop.permute.xlu0 %678
        %680 = vrot.lane.b32.xlu0 %v575, 96
        %v681 = vpop.permute.xlu0 %680
        %682 = vrot.lane.b32.xlu0 %v580, 96
        %v683 = vpop.permute.xlu0 %682
        %684 = vrot.lane.b32.xlu0 %v585, 96
        %v685 = vpop.permute.xlu0 %684
        %686 = vrot.lane.b32.xlu0 %v590, 96
        %v687 = vpop.permute.xlu0 %686
        %688 = vrot.lane.b32.xlu0 %v595, 96
        %v689 = vpop.permute.xlu0 %688
        %690 = vrot.lane.b32.xlu0 %v600, 96
        %v691 = vpop.permute.xlu0 %690
        %692 = vrot.lane.b32.xlu0 %v605, 96
        %v693 = vpop.permute.xlu0 %692
        %694 = vrot.lane.b32.xlu0 %v610, 96
        %v695 = vpop.permute.xlu0 %694
        %696 = vrot.lane.b32.xlu0 %v615, 96
        %v697 = vpop.permute.xlu0 %696
        %698 = vrot.lane.b32.xlu0 %v620, 96
        %v699 = vpop.permute.xlu0 %698
        %vm700 = vcmask 64512
        %v702 = vsel %vm700, %v630, 0
        %v705 = vsel %vm700, %v631, 0
        %v708 = vsel %vm700, %v632, 0
        %v711 = vsel %vm700, %v633, 0
        %v714 = vsel %vm700, %v634, 0
        %v717 = vsel %vm700, %v635, 0
        %v720 = vsel %vm700, %v636, 0
        %v723 = vsel %vm700, %v637, 0
        %v726 = vsel %vm700, %v638, 0
        %v729 = vsel %vm700, %v639, 0
        %v732 = vsel %vm700, %v640, 0
        %v735 = vsel %vm700, %v641, 0
        %v738 = vsel %vm700, %v642, 0
        %v741 = vsel %vm700, %v643, 0
        %v744 = vsel %vm700, %v644, 0
        %v747 = vsel %vm700, %v645, 0
        %v749 = vsel %vm700, %v669, 0
        %v751 = vsel %vm700, %v671, 0
        %v753 = vsel %vm700, %v673, 0
        %v755 = vsel %vm700, %v675, 0
        %v757 = vsel %vm700, %v677, 0
        %v759 = vsel %vm700, %v679, 0
        %v761 = vsel %vm700, %v681, 0
        %v763 = vsel %vm700, %v683, 0
        %v765 = vsel %vm700, %v685, 0
        %v767 = vsel %vm700, %v687, 0
        %v769 = vsel %vm700, %v689, 0
        %v771 = vsel %vm700, %v691, 0
        %v773 = vsel %vm700, %v693, 0
        %v775 = vsel %vm700, %v695, 0
        %v777 = vsel %vm700, %v697, 0
        %v779 = vsel %vm700, %v699, 0
        %781 = vmatprep.subr.mxu0 0.0
        %782 = vmatpush1.xpose.msra.mxu0 %v749
        %783 = vmatprep.subr.mxu0 0.0
        %784 = vmatpush1.xpose.msra.mxu0 %v751
        %785 = vmatprep.subr.mxu0 0.0
        %786 = vmatpush1.xpose.msra.mxu0 %v753
        %787 = vmatprep.subr.mxu0 0.0
        %788 = vmatpush1.xpose.msra.mxu0 %v755
        %789 = vmatprep.subr.mxu0 0.0
        %790 = vmatpush1.xpose.msra.mxu0 %v757
        %791 = vmatprep.subr.mxu0 0.0
        %792 = vmatpush1.xpose.msra.mxu0 %v759
        %793 = vmatprep.subr.mxu0 0.0
        %794 = vmatpush1.xpose.msra.mxu0 %v761
        %795 = vmatprep.subr.mxu0 0.0
        %796 = vmatpush1.xpose.msra.mxu0 %v763
        %797 = vmatprep.subr.mxu0 0.0
        %798 = vmatpush1.xpose.msra.mxu0 %v765
        %799 = vmatprep.subr.mxu0 0.0
        %800 = vmatpush1.xpose.msra.mxu0 %v767
        %801 = vmatprep.subr.mxu0 0.0
        %802 = vmatpush1.xpose.msra.mxu0 %v769
        %803 = vmatprep.subr.mxu0 0.0
        %804 = vmatpush1.xpose.msra.mxu0 %v771
        %805 = vmatprep.subr.mxu0 0.0
        %806 = vmatpush1.xpose.msra.mxu0 %v773
        %807 = vmatprep.subr.mxu0 0.0
        %808 = vmatpush1.xpose.msra.mxu0 %v775
        %809 = vmatprep.subr.mxu0 0.0
        %810 = vmatpush1.xpose.msra.mxu0 %v777
        %811 = vmatprep.subr.mxu0 0.0
        %812 = vmatpush1.xpose.msra.mxu0 %v779
        %813 = vmatprep.subr.mxu0 0.0
        %814 = vmatpush1.xpose.msra.mxu0 0.0
        %815 = vmatprep.subr.mxu0 0.0
        %816 = vmatpush1.xpose.msra.mxu0 0.0
        %817 = vmatprep.subr.mxu0 0.0
        %818 = vmatpush1.xpose.msra.mxu0 0.0
        %819 = vmatprep.subr.mxu0 0.0
        %820 = vmatpush1.xpose.msra.mxu0 0.0
        %821 = vmatprep.subr.mxu0 0.0
        %822 = vmatpush1.xpose.msra.mxu0 0.0
        %823 = vmatprep.subr.mxu0 0.0
        %824 = vmatpush1.xpose.msra.mxu0 0.0
        %825 = vmatprep.subr.mxu0 0.0
        %826 = vmatpush1.xpose.msra.mxu0 0.0
        %827 = vmatprep.subr.mxu0 0.0
        %828 = vmatpush1.xpose.msra.mxu0 0.0
        %829 = vmatprep.subr.mxu0 0.0
        %830 = vmatpush1.xpose.msra.mxu0 0.0
        %831 = vmatprep.subr.mxu0 0.0
        %832 = vmatpush1.xpose.msra.mxu0 0.0
        %833 = vmatprep.subr.mxu0 0.0
        %834 = vmatpush1.xpose.msra.mxu0 0.0
        %835 = vmatprep.subr.mxu0 0.0
        %836 = vmatpush1.xpose.msra.mxu0 0.0
        %837 = vmatprep.subr.mxu0 0.0
        %838 = vmatpush1.xpose.msra.mxu0 0.0
        %839 = vmatprep.subr.mxu0 0.0
        %840 = vmatpush1.xpose.msra.mxu0 0.0
        %841 = vmatprep.subr.mxu0 0.0
        %842 = vmatpush1.xpose.msra.mxu0 0.0
        %843 = vmatprep.subr.mxu0 0.0
        %844 = vmatpush1.xpose.msra.mxu0 0.0
        %845 = vmatprep.mubr.f32.mxu0 0.0
        %846 = vmatmul.mubr.f32.gmra.mrb[0].mxu0 %v702
        %v847 = vpop.f32.mrb[0].mxu0
        %v848 = vadd.f32 %v650, %v847
        %v849 = vpop.f32.mrb[0].mxu0
        %850 = vmatprep.mubr.f32.mxu0 0.0
        %851 = vmatmul.mubr.f32.gmra.mrb[0].mxu0 %v705
        %v852 = vpop.f32.mrb[0].mxu0
        %v853 = vadd.f32 %v650, %v852
        %v854 = vpop.f32.mrb[0].mxu0
        %855 = vmatprep.mubr.f32.mxu0 0.0
        %856 = vmatmul.mubr.f32.gmra.mrb[0].mxu0 %v708
        %v857 = vpop.f32.mrb[0].mxu0
        %v858 = vadd.f32 %v650, %v857
        %v859 = vpop.f32.mrb[0].mxu0
        %860 = vmatprep.mubr.f32.mxu0 0.0
        %861 = vmatmul.mubr.f32.gmra.mrb[0].mxu0 %v711
        %v862 = vpop.f32.mrb[0].mxu0
        %v863 = vadd.f32 %v650, %v862
        %v864 = vpop.f32.mrb[0].mxu0
        %865 = vmatprep.mubr.f32.mxu0 0.0
        %866 = vmatmul.mubr.f32.gmra.mrb[0].mxu0 %v714
        %v867 = vpop.f32.mrb[0].mxu0
        %v868 = vadd.f32 %v650, %v867
        %v869 = vpop.f32.mrb[0].mxu0
        %870 = vmatprep.mubr.f32.mxu0 0.0
        %871 = vmatmul.mubr.f32.gmra.mrb[0].mxu0 %v717
        %v872 = vpop.f32.mrb[0].mxu0
        %v873 = vadd.f32 %v650, %v872
        %v874 = vpop.f32.mrb[0].mxu0
        %875 = vmatprep.mubr.f32.mxu0 0.0
        %876 = vmatmul.mubr.f32.gmra.mrb[0].mxu0 %v720
        %v877 = vpop.f32.mrb[0].mxu0
        %v878 = vadd.f32 %v650, %v877
        %v879 = vpop.f32.mrb[0].mxu0
        %880 = vmatprep.mubr.f32.mxu0 0.0
        %881 = vmatmul.mubr.f32.gmra.mrb[0].mxu0 %v723
        %v882 = vpop.f32.mrb[0].mxu0
        %v883 = vadd.f32 %v650, %v882
        %v884 = vpop.f32.mrb[0].mxu0
        %885 = vmatprep.mubr.f32.mxu0 0.0
        %886 = vmatmul.mubr.f32.gmra.mrb[0].mxu0 %v726
        %v887 = vpop.f32.mrb[0].mxu0
        %v888 = vadd.f32 %v650, %v887
        %v889 = vpop.f32.mrb[0].mxu0
        %890 = vmatprep.mubr.f32.mxu0 0.0
        %891 = vmatmul.mubr.f32.gmra.mrb[0].mxu0 %v729
        %v892 = vpop.f32.mrb[0].mxu0
        %v893 = vadd.f32 %v650, %v892
        %v894 = vpop.f32.mrb[0].mxu0
        %895 = vmatprep.mubr.f32.mxu0 0.0
        %896 = vmatmul.mubr.f32.gmra.mrb[0].mxu0 %v732
        %v897 = vpop.f32.mrb[0].mxu0
        %v898 = vadd.f32 %v650, %v897
        %v899 = vpop.f32.mrb[0].mxu0
        %900 = vmatprep.mubr.f32.mxu0 0.0
        %901 = vmatmul.mubr.f32.gmra.mrb[0].mxu0 %v735
        %v902 = vpop.f32.mrb[0].mxu0
        %v903 = vadd.f32 %v650, %v902
        %v904 = vpop.f32.mrb[0].mxu0
        %905 = vmatprep.mubr.f32.mxu0 0.0
        %906 = vmatmul.mubr.f32.gmra.mrb[0].mxu0 %v738
        %v907 = vpop.f32.mrb[0].mxu0
        %v908 = vadd.f32 %v650, %v907
        %v909 = vpop.f32.mrb[0].mxu0
        %910 = vmatprep.mubr.f32.mxu0 0.0
        %911 = vmatmul.mubr.f32.gmra.mrb[0].mxu0 %v741
        %v912 = vpop.f32.mrb[0].mxu0
        %v913 = vadd.f32 %v650, %v912
        %v914 = vpop.f32.mrb[0].mxu0
        %915 = vmatprep.mubr.f32.mxu0 0.0
        %916 = vmatmul.mubr.f32.gmra.mrb[0].mxu0 %v744
        %v917 = vpop.f32.mrb[0].mxu0
        %v918 = vadd.f32 %v650, %v917
        %v919 = vpop.f32.mrb[0].mxu0
        %920 = vmatprep.mubr.f32.mxu0 0.0
        %921 = vmatmul.mubr.f32.gmra.mrb[0].mxu0 %v747
        %v922 = vpop.f32.mrb[0].mxu0
        %v923 = vadd.f32 %v650, %v922
        %v924 = vpop.f32.mrb[0].mxu0
        %925 = vdwg.mxu0
        %926 = vmax.xlane.f32.xlu0 %v848
        %v927 = vpop.xlane.xlu0 %926
        %928 = vmax.xlane.f32.xlu0 %v853
        %v929 = vpop.xlane.xlu0 %928
        %930 = vmax.xlane.f32.xlu0 %v858
        %v931 = vpop.xlane.xlu0 %930
        %932 = vmax.xlane.f32.xlu0 %v863
        %v933 = vpop.xlane.xlu0 %932
        %934 = vmax.xlane.f32.xlu0 %v868
        %v935 = vpop.xlane.xlu0 %934
        %936 = vmax.xlane.f32.xlu0 %v873
        %v937 = vpop.xlane.xlu0 %936
        %938 = vmax.xlane.f32.xlu0 %v878
        %v939 = vpop.xlane.xlu0 %938
        %940 = vmax.xlane.f32.xlu0 %v883
        %v941 = vpop.xlane.xlu0 %940
        %942 = vmax.xlane.f32.xlu0 %v888
        %v943 = vpop.xlane.xlu0 %942
        %944 = vmax.xlane.f32.xlu0 %v893
        %v945 = vpop.xlane.xlu0 %944
        %946 = vmax.xlane.f32.xlu0 %v898
        %v947 = vpop.xlane.xlu0 %946
        %948 = vmax.xlane.f32.xlu0 %v903
        %v949 = vpop.xlane.xlu0 %948
        %950 = vmax.xlane.f32.xlu0 %v908
        %v951 = vpop.xlane.xlu0 %950
        %952 = vmax.xlane.f32.xlu0 %v913
        %v953 = vpop.xlane.xlu0 %952
        %954 = vmax.xlane.f32.xlu0 %v918
        %v955 = vpop.xlane.xlu0 %954
        %956 = vmax.xlane.f32.xlu0 %v923
        %v957 = vpop.xlane.xlu0 %956
        %v958 = vsub.f32 %v848, %v927
        %v959 = vsub.f32 %v853, %v929
        %v960 = vsub.f32 %v858, %v931
        %v961 = vsub.f32 %v863, %v933
        %v962 = vsub.f32 %v868, %v935
        %v963 = vsub.f32 %v873, %v937
        %v964 = vsub.f32 %v878, %v939
        %v965 = vsub.f32 %v883, %v941
        %v966 = vsub.f32 %v888, %v943
        %v967 = vsub.f32 %v893, %v945
        %v968 = vsub.f32 %v898, %v947
        %v969 = vsub.f32 %v903, %v949
        %v970 = vsub.f32 %v908, %v951
        %v971 = vsub.f32 %v913, %v953
        %v972 = vsub.f32 %v918, %v955
        %v973 = vsub.f32 %v923, %v957
        %v974 = vmul.f32 %v958, 1.442695
        %v975 = vpow.pop %v974
        %v976 = vmul.f32 %v959, 1.442695
        %v977 = vpow.pop %v976
        %v978 = vmul.f32 %v960, 1.442695
        %v979 = vpow.pop %v978
        %v980 = vmul.f32 %v961, 1.442695
        %v981 = vpow.pop %v980
        %v982 = vmul.f32 %v962, 1.442695
        %v983 = vpow.pop %v982
        %v984 = vmul.f32 %v963, 1.442695
        %v985 = vpow.pop %v984
        %v986 = vmul.f32 %v964, 1.442695
        %v987 = vpow.pop %v986
        %v988 = vmul.f32 %v965, 1.442695
        %v989 = vpow.pop %v988
        %v990 = vmul.f32 %v966, 1.442695
        %v991 = vpow.pop %v990
        %v992 = vmul.f32 %v967, 1.442695
        %v993 = vpow.pop %v992
        %v994 = vmul.f32 %v968, 1.442695
        %v995 = vpow.pop %v994
        %v996 = vmul.f32 %v969, 1.442695
        %v997 = vpow.pop %v996
        %v998 = vmul.f32 %v970, 1.442695
        %v999 = vpow.pop %v998
        %v1000 = vmul.f32 %v971, 1.442695
        %v1001 = vpow.pop %v1000
        %v1002 = vmul.f32 %v972, 1.442695
        %v1003 = vpow.pop %v1002
        %v1004 = vmul.f32 %v973, 1.442695
        %v1005 = vpow.pop %v1004
        %1006 = vadd.xlane.f32.xlu0 %v975
        %v1007 = vpop.xlane.xlu0 %1006
        %1008 = vadd.xlane.f32.xlu0 %v977
        %v1009 = vpop.xlane.xlu0 %1008
        %1010 = vadd.xlane.f32.xlu0 %v979
        %v1011 = vpop.xlane.xlu0 %1010
        %1012 = vadd.xlane.f32.xlu0 %v981
        %v1013 = vpop.xlane.xlu0 %1012
        %1014 = vadd.xlane.f32.xlu0 %v983
        %v1015 = vpop.xlane.xlu0 %1014
        %1016 = vadd.xlane.f32.xlu0 %v985
        %v1017 = vpop.xlane.xlu0 %1016
        %1018 = vadd.xlane.f32.xlu0 %v987
        %v1019 = vpop.xlane.xlu0 %1018
        %1020 = vadd.xlane.f32.xlu0 %v989
        %v1021 = vpop.xlane.xlu0 %1020
        %1022 = vadd.xlane.f32.xlu0 %v991
        %v1023 = vpop.xlane.xlu0 %1022
        %1024 = vadd.xlane.f32.xlu0 %v993
        %v1025 = vpop.xlane.xlu0 %1024
        %1026 = vadd.xlane.f32.xlu0 %v995
        %v1027 = vpop.xlane.xlu0 %1026
        %1028 = vadd.xlane.f32.xlu0 %v997
        %v1029 = vpop.xlane.xlu0 %1028
        %1030 = vadd.xlane.f32.xlu0 %v999
        %v1031 = vpop.xlane.xlu0 %1030
        %1032 = vadd.xlane.f32.xlu0 %v1001
        %v1033 = vpop.xlane.xlu0 %1032
        %1034 = vadd.xlane.f32.xlu0 %v1003
        %v1035 = vpop.xlane.xlu0 %1034
        %1036 = vadd.xlane.f32.xlu0 %v1005
        %v1037 = vpop.xlane.xlu0 %1036
        %v1038 = vrcp.pop %v1007
        %v1039 = vrcp.pop %v1009
        %v1040 = vrcp.pop %v1011
        %v1041 = vrcp.pop %v1013
        %v1042 = vrcp.pop %v1015
        %v1043 = vrcp.pop %v1017
        %v1044 = vrcp.pop %v1019
        %v1045 = vrcp.pop %v1021
        %v1046 = vrcp.pop %v1023
        %v1047 = vrcp.pop %v1025
        %v1048 = vrcp.pop %v1027
        %v1049 = vrcp.pop %v1029
        %v1050 = vrcp.pop %v1031
        %v1051 = vrcp.pop %v1033
        %v1052 = vrcp.pop %v1035
        %v1053 = vrcp.pop %v1037
        %1054 = vrot.lane.b32.xlu0 %v545, 64
        %v1055 = vpop.permute.xlu0 %1054
        %1056 = vrot.lane.b32.xlu0 %v550, 64
        %v1057 = vpop.permute.xlu0 %1056
        %1058 = vrot.lane.b32.xlu0 %v555, 64
        %v1059 = vpop.permute.xlu0 %1058
        %1060 = vrot.lane.b32.xlu0 %v560, 64
        %v1061 = vpop.permute.xlu0 %1060
        %1062 = vrot.lane.b32.xlu0 %v565, 64
        %v1063 = vpop.permute.xlu0 %1062
        %1064 = vrot.lane.b32.xlu0 %v570, 64
        %v1065 = vpop.permute.xlu0 %1064
        %1066 = vrot.lane.b32.xlu0 %v575, 64
        %v1067 = vpop.permute.xlu0 %1066
        %1068 = vrot.lane.b32.xlu0 %v580, 64
        %v1069 = vpop.permute.xlu0 %1068
        %1070 = vrot.lane.b32.xlu0 %v585, 64
        %v1071 = vpop.permute.xlu0 %1070
        %1072 = vrot.lane.b32.xlu0 %v590, 64
        %v1073 = vpop.permute.xlu0 %1072
        %1074 = vrot.lane.b32.xlu0 %v595, 64
        %v1075 = vpop.permute.xlu0 %1074
        %1076 = vrot.lane.b32.xlu0 %v600, 64
        %v1077 = vpop.permute.xlu0 %1076
        %1078 = vrot.lane.b32.xlu0 %v605, 64
        %v1079 = vpop.permute.xlu0 %1078
        %1080 = vrot.lane.b32.xlu0 %v610, 64
        %v1081 = vpop.permute.xlu0 %1080
        %1082 = vrot.lane.b32.xlu0 %v615, 64
        %v1083 = vpop.permute.xlu0 %1082
        %1084 = vrot.lane.b32.xlu0 %v620, 64
        %v1085 = vpop.permute.xlu0 %1084
        %1102 = vmatprep.subr.mxu0 0.0
        %1103 = vmatpush1.msra.mxu0 %v1055
        %1104 = vmatprep.subr.mxu0 0.0
        %1105 = vmatpush1.msra.mxu0 %v1057
        %1106 = vmatprep.subr.mxu0 0.0
        %1107 = vmatpush1.msra.mxu0 %v1059
        %1108 = vmatprep.subr.mxu0 0.0
        %1109 = vmatpush1.msra.mxu0 %v1061
        %1110 = vmatprep.subr.mxu0 0.0
        %1111 = vmatpush1.msra.mxu0 %v1063
        %1112 = vmatprep.subr.mxu0 0.0
        %1113 = vmatpush1.msra.mxu0 %v1065
        %1114 = vmatprep.subr.mxu0 0.0
        %1115 = vmatpush1.msra.mxu0 %v1067
        %1116 = vmatprep.subr.mxu0 0.0
        %1117 = vmatpush1.msra.mxu0 %v1069
        %1118 = vmatprep.subr.mxu0 0.0
        %1119 = vmatpush1.msra.mxu0 %v1071
        %1120 = vmatprep.subr.mxu0 0.0
        %1121 = vmatpush1.msra.mxu0 %v1073
        %1122 = vmatprep.subr.mxu0 0.0
        %1123 = vmatpush1.msra.mxu0 %v1075
        %1124 = vmatprep.subr.mxu0 0.0
        %1125 = vmatpush1.msra.mxu0 %v1077
        %1126 = vmatprep.subr.mxu0 0.0
        %1127 = vmatpush1.msra.mxu0 %v1079
        %1128 = vmatprep.subr.mxu0 0.0
        %1129 = vmatpush1.msra.mxu0 %v1081
        %1130 = vmatprep.subr.mxu0 0.0
        %1131 = vmatpush1.msra.mxu0 %v1083
        %1132 = vmatprep.subr.mxu0 0.0
        %1133 = vmatpush1.msra.mxu0 %v1085
        %1134 = vmatprep.subr.mxu0 0.0
        %1135 = vmatpush1.msra.mxu0 0.0
        %1136 = vmatprep.subr.mxu0 0.0
        %1137 = vmatpush1.msra.mxu0 0.0
        %1138 = vmatprep.subr.mxu0 0.0
        %1139 = vmatpush1.msra.mxu0 0.0
        %1140 = vmatprep.subr.mxu0 0.0
        %1141 = vmatpush1.msra.mxu0 0.0
        %1142 = vmatprep.subr.mxu0 0.0
        %1143 = vmatpush1.msra.mxu0 0.0
        %1144 = vmatprep.subr.mxu0 0.0
        %1145 = vmatpush1.msra.mxu0 0.0
        %1146 = vmatprep.subr.mxu0 0.0
        %1147 = vmatpush1.msra.mxu0 0.0
        %1148 = vmatprep.subr.mxu0 0.0
        %1149 = vmatpush1.msra.mxu0 0.0
        %1150 = vmatprep.subr.mxu0 0.0
        %1151 = vmatpush1.msra.mxu0 0.0
        %1152 = vmatprep.subr.mxu0 0.0
        %1153 = vmatpush1.msra.mxu0 0.0
        %1154 = vmatprep.subr.mxu0 0.0
        %1155 = vmatpush1.msra.mxu0 0.0
        %1156 = vmatprep.subr.mxu0 0.0
        %1157 = vmatpush1.msra.mxu0 0.0
        %1158 = vmatprep.subr.mxu0 0.0
        %1159 = vmatpush1.msra.mxu0 0.0
        %1160 = vmatprep.subr.mxu0 0.0
        %1161 = vmatpush1.msra.mxu0 0.0
        %1162 = vmatprep.subr.mxu0 0.0
        %1163 = vmatpush1.msra.mxu0 0.0
        %1164 = vmatprep.subr.mxu0 0.0
        %1165 = vmatpush1.msra.mxu0 0.0
        %1166 = vmatprep.mubr.f32.mxu0 0.0
        %1167 = vmatmul.mubr.f32.gmra.mrb[0].mxu0 %v975
        %v1168 = vpop.f32.mrb[0].mxu0
        %v1169 = vadd.f32 0.0, %v1168
        %v1170 = vpop.f32.mrb[0].mxu0
        %1171 = vmatprep.mubr.f32.mxu0 0.0
        %1172 = vmatmul.mubr.f32.gmra.mrb[0].mxu0 %v977
        %v1173 = vpop.f32.mrb[0].mxu0
        %v1174 = vadd.f32 0.0, %v1173
        %v1175 = vpop.f32.mrb[0].mxu0
        %1176 = vmatprep.mubr.f32.mxu0 0.0
        %1177 = vmatmul.mubr.f32.gmra.mrb[0].mxu0 %v979
        %v1178 = vpop.f32.mrb[0].mxu0
        %v1179 = vadd.f32 0.0, %v1178
        %v1180 = vpop.f32.mrb[0].mxu0
        %1181 = vmatprep.mubr.f32.mxu0 0.0
        %1182 = vmatmul.mubr.f32.gmra.mrb[0].mxu0 %v981
        %v1183 = vpop.f32.mrb[0].mxu0
        %v1184 = vadd.f32 0.0, %v1183
        %v1185 = vpop.f32.mrb[0].mxu0
        %1186 = vmatprep.mubr.f32.mxu0 0.0
        %1187 = vmatmul.mubr.f32.gmra.mrb[0].mxu0 %v983
        %v1188 = vpop.f32.mrb[0].mxu0
        %v1189 = vadd.f32 0.0, %v1188
        %v1190 = vpop.f32.mrb[0].mxu0
        %1191 = vmatprep.mubr.f32.mxu0 0.0
        %1192 = vmatmul.mubr.f32.gmra.mrb[0].mxu0 %v985
        %v1193 = vpop.f32.mrb[0].mxu0
        %v1194 = vadd.f32 0.0, %v1193
        %v1195 = vpop.f32.mrb[0].mxu0
        %1196 = vmatprep.mubr.f32.mxu0 0.0
        %1197 = vmatmul.mubr.f32.gmra.mrb[0].mxu0 %v987
        %v1198 = vpop.f32.mrb[0].mxu0
        %v1199 = vadd.f32 0.0, %v1198
        %v1200 = vpop.f32.mrb[0].mxu0
        %1201 = vmatprep.mubr.f32.mxu0 0.0
        %1202 = vmatmul.mubr.f32.gmra.mrb[0].mxu0 %v989
        %v1203 = vpop.f32.mrb[0].mxu0
        %v1204 = vadd.f32 0.0, %v1203
        %v1205 = vpop.f32.mrb[0].mxu0
        %1206 = vmatprep.mubr.f32.mxu0 0.0
        %1207 = vmatmul.mubr.f32.gmra.mrb[0].mxu0 %v991
        %v1208 = vpop.f32.mrb[0].mxu0
        %v1209 = vadd.f32 0.0, %v1208
        %v1210 = vpop.f32.mrb[0].mxu0
        %1211 = vmatprep.mubr.f32.mxu0 0.0
        %1212 = vmatmul.mubr.f32.gmra.mrb[0].mxu0 %v993
        %v1213 = vpop.f32.mrb[0].mxu0
        %v1214 = vadd.f32 0.0, %v1213
        %v1215 = vpop.f32.mrb[0].mxu0
        %1216 = vmatprep.mubr.f32.mxu0 0.0
        %1217 = vmatmul.mubr.f32.gmra.mrb[0].mxu0 %v995
        %v1218 = vpop.f32.mrb[0].mxu0
        %v1219 = vadd.f32 0.0, %v1218
        %v1220 = vpop.f32.mrb[0].mxu0
        %1221 = vmatprep.mubr.f32.mxu0 0.0
        %1222 = vmatmul.mubr.f32.gmra.mrb[0].mxu0 %v997
        %v1223 = vpop.f32.mrb[0].mxu0
        %v1224 = vadd.f32 0.0, %v1223
        %v1225 = vpop.f32.mrb[0].mxu0
        %1226 = vmatprep.mubr.f32.mxu0 0.0
        %1227 = vmatmul.mubr.f32.gmra.mrb[0].mxu0 %v999
        %v1228 = vpop.f32.mrb[0].mxu0
        %v1229 = vadd.f32 0.0, %v1228
        %v1230 = vpop.f32.mrb[0].mxu0
        %1231 = vmatprep.mubr.f32.mxu0 0.0
        %1232 = vmatmul.mubr.f32.gmra.mrb[0].mxu0 %v1001
        %v1233 = vpop.f32.mrb[0].mxu0
        %v1234 = vadd.f32 0.0, %v1233
        %v1235 = vpop.f32.mrb[0].mxu0
        %1236 = vmatprep.mubr.f32.mxu0 0.0
        %1237 = vmatmul.mubr.f32.gmra.mrb[0].mxu0 %v1003
        %v1238 = vpop.f32.mrb[0].mxu0
        %v1239 = vadd.f32 0.0, %v1238
        %v1240 = vpop.f32.mrb[0].mxu0
        %1241 = vmatprep.mubr.f32.mxu0 0.0
        %1242 = vmatmul.mubr.f32.gmra.mrb[0].mxu0 %v1005
        %v1243 = vpop.f32.mrb[0].mxu0
        %v1244 = vadd.f32 0.0, %v1243
        %v1245 = vpop.f32.mrb[0].mxu0
        %1246 = vdwg.mxu0
        %v1247 = vmul.f32 %v1169, %v1038
        %v1248 = vmul.f32 %v1174, %v1039
        %v1249 = vmul.f32 %v1179, %v1040
        %v1250 = vmul.f32 %v1184, %v1041
        %v1251 = vmul.f32 %v1189, %v1042
        %v1252 = vmul.f32 %v1194, %v1043
        %v1253 = vmul.f32 %v1199, %v1044
        %v1254 = vmul.f32 %v1204, %v1045
        %v1255 = vmul.f32 %v1209, %v1046
        %v1256 = vmul.f32 %v1214, %v1047
        %v1257 = vmul.f32 %v1219, %v1048
        %v1258 = vmul.f32 %v1224, %v1049
        %v1259 = vmul.f32 %v1229, %v1050
        %v1260 = vmul.f32 %v1234, %v1051
        %v1261 = vmul.f32 %v1239, %v1052
        %v1262 = vmul.f32 %v1244, %v1053
        %1263 = vst.msk [vmem:[#allocation3] sm:$0xff] %vm700, %v1247
        %1264 = vst.msk [vmem:[#allocation3 + $0x8] sm:$0xff] %vm700, %v1248
        %1265 = vst.msk [vmem:[#allocation3 + $0x10] sm:$0xff] %vm700, %v1249
        %1266 = vst.msk [vmem:[#allocation3 + $0x18] sm:$0xff] %vm700, %v1250
        %1267 = vst.msk [vmem:[#allocation3 + $0x20] sm:$0xff] %vm700, %v1251
        %1268 = vst.msk [vmem:[#allocation3 + $0x28] sm:$0xff] %vm700, %v1252
        %1269 = vst.msk [vmem:[#allocation3 + $0x30] sm:$0xff] %vm700, %v1253
        %1270 = vst.msk [vmem:[#allocation3 + $0x38] sm:$0xff] %vm700, %v1254
        %1271 = vst.msk [vmem:[#allocation3 + $0x40] sm:$0xff] %vm700, %v1255
        %1272 = vst.msk [vmem:[#allocation3 + $0x48] sm:$0xff] %vm700, %v1256
        %1273 = vst.msk [vmem:[#allocation3 + $0x50] sm:$0xff] %vm700, %v1257
        %1274 = vst.msk [vmem:[#allocation3 + $0x58] sm:$0xff] %vm700, %v1258
        %1275 = vst.msk [vmem:[#allocation3 + $0x60] sm:$0xff] %vm700, %v1259
        %1276 = vst.msk [vmem:[#allocation3 + $0x68] sm:$0xff] %vm700, %v1260
        %1277 = vst.msk [vmem:[#allocation3 + $0x70] sm:$0xff] %vm700, %v1261
        %1278 = vst.msk [vmem:[#allocation3 + $0x78] sm:$0xff] %vm700, %v1262
        %1279 = vrot.lane.b32.xlu0 %v630, 120
        %v1280 = vpop.permute.xlu0 %1279
        %1281 = vrot.lane.b32.xlu0 %v631, 120
        %v1282 = vpop.permute.xlu0 %1281
        %1283 = vrot.lane.b32.xlu0 %v632, 120
        %v1284 = vpop.permute.xlu0 %1283
        %1285 = vrot.lane.b32.xlu0 %v633, 120
        %v1286 = vpop.permute.xlu0 %1285
        %1287 = vrot.lane.b32.xlu0 %v634, 120
        %v1288 = vpop.permute.xlu0 %1287
        %1289 = vrot.lane.b32.xlu0 %v635, 120
        %v1290 = vpop.permute.xlu0 %1289
        %1291 = vrot.lane.b32.xlu0 %v636, 120
        %v1292 = vpop.permute.xlu0 %1291
        %1293 = vrot.lane.b32.xlu0 %v637, 120
        %v1294 = vpop.permute.xlu0 %1293
        %1295 = vrot.lane.b32.xlu0 %v638, 120
        %v1296 = vpop.permute.xlu0 %1295
        %1297 = vrot.lane.b32.xlu0 %v639, 120
        %v1298 = vpop.permute.xlu0 %1297
        %1299 = vrot.lane.b32.xlu0 %v640, 120
        %v1300 = vpop.permute.xlu0 %1299
        %1301 = vrot.lane.b32.xlu0 %v641, 120
        %v1302 = vpop.permute.xlu0 %1301
        %1303 = vrot.lane.b32.xlu0 %v642, 120
        %v1304 = vpop.permute.xlu0 %1303
        %1305 = vrot.lane.b32.xlu0 %v643, 120
        %v1306 = vpop.permute.xlu0 %1305
        %1307 = vrot.lane.b32.xlu0 %v644, 120
        %v1308 = vpop.permute.xlu0 %1307
        %1309 = vrot.lane.b32.xlu0 %v645, 120
        %v1310 = vpop.permute.xlu0 %1309
        %1311 = vrot.lane.b32.xlu0 %v545, 88
        %v1312 = vpop.permute.xlu0 %1311
        %1313 = vrot.lane.b32.xlu0 %v550, 88
        %v1314 = vpop.permute.xlu0 %1313
        %1315 = vrot.lane.b32.xlu0 %v555, 88
        %v1316 = vpop.permute.xlu0 %1315
        %1317 = vrot.lane.b32.xlu0 %v560, 88
        %v1318 = vpop.permute.xlu0 %1317
        %1319 = vrot.lane.b32.xlu0 %v565, 88
        %v1320 = vpop.permute.xlu0 %1319
        %1321 = vrot.lane.b32.xlu0 %v570, 88
        %v1322 = vpop.permute.xlu0 %1321
        %1323 = vrot.lane.b32.xlu0 %v575, 88
        %v1324 = vpop.permute.xlu0 %1323
        %1325 = vrot.lane.b32.xlu0 %v580, 88
        %v1326 = vpop.permute.xlu0 %1325
        %1327 = vrot.lane.b32.xlu0 %v585, 88
        %v1328 = vpop.permute.xlu0 %1327
        %1329 = vrot.lane.b32.xlu0 %v590, 88
        %v1330 = vpop.permute.xlu0 %1329
        %1331 = vrot.lane.b32.xlu0 %v595, 88
        %v1332 = vpop.permute.xlu0 %1331
        %1333 = vrot.lane.b32.xlu0 %v600, 88
        %v1334 = vpop.permute.xlu0 %1333
        %1335 = vrot.lane.b32.xlu0 %v605, 88
        %v1336 = vpop.permute.xlu0 %1335
        %1337 = vrot.lane.b32.xlu0 %v610, 88
        %v1338 = vpop.permute.xlu0 %1337
        %1339 = vrot.lane.b32.xlu0 %v615, 88
        %v1340 = vpop.permute.xlu0 %1339
        %1341 = vrot.lane.b32.xlu0 %v620, 88
        %v1342 = vpop.permute.xlu0 %1341
        %v1343 = vsel %vm700, %v1280, 0
        %v1345 = vsel %vm700, %v1282, 0
        %v1347 = vsel %vm700, %v1284, 0
        %v1349 = vsel %vm700, %v1286, 0
        %v1351 = vsel %vm700, %v1288, 0
        %v1353 = vsel %vm700, %v1290, 0
        %v1355 = vsel %vm700, %v1292, 0
        %v1357 = vsel %vm700, %v1294, 0
        %v1359 = vsel %vm700, %v1296, 0
        %v1361 = vsel %vm700, %v1298, 0
        %v1363 = vsel %vm700, %v1300, 0
        %v1365 = vsel %vm700, %v1302, 0
        %v1367 = vsel %vm700, %v1304, 0
        %v1369 = vsel %vm700, %v1306, 0
        %v1371 = vsel %vm700, %v1308, 0
        %v1373 = vsel %vm700, %v1310, 0
        %v1375 = vsel %vm700, %v1312, 0
        %v1377 = vsel %vm700, %v1314, 0
        %v1379 = vsel %vm700, %v1316, 0
        %v1381 = vsel %vm700, %v1318, 0
        %v1383 = vsel %vm700, %v1320, 0
        %v1385 = vsel %vm700, %v1322, 0
        %v1387 = vsel %vm700, %v1324, 0
        %v1389 = vsel %vm700, %v1326, 0
        %v1391 = vsel %vm700, %v1328, 0
        %v1393 = vsel %vm700, %v1330, 0
        %v1395 = vsel %vm700, %v1332, 0
        %v1397 = vsel %vm700, %v1334, 0
        %v1399 = vsel %vm700, %v1336, 0
        %v1401 = vsel %vm700, %v1338, 0
        %v1403 = vsel %vm700, %v1340, 0
        %v1405 = vsel %vm700, %v1342, 0
        %1407 = vmatprep.subr.mxu0 0.0
        %1408 = vmatpush1.xpose.msra.mxu0 %v1375
        %1409 = vmatprep.subr.mxu0 0.0
        %1410 = vmatpush1.xpose.msra.mxu0 %v1377
        %1411 = vmatprep.subr.mxu0 0.0
        %1412 = vmatpush1.xpose.msra.mxu0 %v1379
        %1413 = vmatprep.subr.mxu0 0.0
        %1414 = vmatpush1.xpose.msra.mxu0 %v1381
        %1415 = vmatprep.subr.mxu0 0.0
        %1416 = vmatpush1.xpose.msra.mxu0 %v1383
        %1417 = vmatprep.subr.mxu0 0.0
        %1418 = vmatpush1.xpose.msra.mxu0 %v1385
        %1419 = vmatprep.subr.mxu0 0.0
        %1420 = vmatpush1.xpose.msra.mxu0 %v1387
        %1421 = vmatprep.subr.mxu0 0.0
        %1422 = vmatpush1.xpose.msra.mxu0 %v1389
        %1423 = vmatprep.subr.mxu0 0.0
        %1424 = vmatpush1.xpose.msra.mxu0 %v1391
        %1425 = vmatprep.subr.mxu0 0.0
        %1426 = vmatpush1.xpose.msra.mxu0 %v1393
        %1427 = vmatprep.subr.mxu0 0.0
        %1428 = vmatpush1.xpose.msra.mxu0 %v1395
        %1429 = vmatprep.subr.mxu0 0.0
        %1430 = vmatpush1.xpose.msra.mxu0 %v1397
        %1431 = vmatprep.subr.mxu0 0.0
        %1432 = vmatpush1.xpose.msra.mxu0 %v1399
        %1433 = vmatprep.subr.mxu0 0.0
        %1434 = vmatpush1.xpose.msra.mxu0 %v1401
        %1435 = vmatprep.subr.mxu0 0.0
        %1436 = vmatpush1.xpose.msra.mxu0 %v1403
        %1437 = vmatprep.subr.mxu0 0.0
        %1438 = vmatpush1.xpose.msra.mxu0 %v1405
        %1439 = vmatprep.subr.mxu0 0.0
        %1440 = vmatpush1.xpose.msra.mxu0 0.0
        %1441 = vmatprep.subr.mxu0 0.0
        %1442 = vmatpush1.xpose.msra.mxu0 0.0
        %1443 = vmatprep.subr.mxu0 0.0
        %1444 = vmatpush1.xpose.msra.mxu0 0.0
        %1445 = vmatprep.subr.mxu0 0.0
        %1446 = vmatpush1.xpose.msra.mxu0 0.0
        %1447 = vmatprep.subr.mxu0 0.0
        %1448 = vmatpush1.xpose.msra.mxu0 0.0
        %1449 = vmatprep.subr.mxu0 0.0
        %1450 = vmatpush1.xpose.msra.mxu0 0.0
        %1451 = vmatprep.subr.mxu0 0.0
        %1452 = vmatpush1.xpose.msra.mxu0 0.0
        %1453 = vmatprep.subr.mxu0 0.0
        %1454 = vmatpush1.xpose.msra.mxu0 0.0
        %1455 = vmatprep.subr.mxu0 0.0
        %1456 = vmatpush1.xpose.msra.mxu0 0.0
        %1457 = vmatprep.subr.mxu0 0.0
        %1458 = vmatpush1.xpose.msra.mxu0 0.0
        %1459 = vmatprep.subr.mxu0 0.0
        %1460 = vmatpush1.xpose.msra.mxu0 0.0
        %1461 = vmatprep.subr.mxu0 0.0
        %1462 = vmatpush1.xpose.msra.mxu0 0.0
        %1463 = vmatprep.subr.mxu0 0.0
        %1464 = vmatpush1.xpose.msra.mxu0 0.0
        %1465 = vmatprep.subr.mxu0 0.0
        %1466 = vmatpush1.xpose.msra.mxu0 0.0
        %1467 = vmatprep.subr.mxu0 0.0
        %1468 = vmatpush1.xpose.msra.mxu0 0.0
        %1469 = vmatprep.subr.mxu0 0.0
        %1470 = vmatpush1.xpose.msra.mxu0 0.0
        %1471 = vmatprep.mubr.f32.mxu0 0.0
        %1472 = vmatmul.mubr.f32.gmra.mrb[0].mxu0 %v1343
        %v1473 = vpop.f32.mrb[0].mxu0
        %v1474 = vadd.f32 %v650, %v1473
        %v1475 = vpop.f32.mrb[0].mxu0
        %1476 = vmatprep.mubr.f32.mxu0 0.0
        %1477 = vmatmul.mubr.f32.gmra.mrb[0].mxu0 %v1345
        %v1478 = vpop.f32.mrb[0].mxu0
        %v1479 = vadd.f32 %v650, %v1478
        %v1480 = vpop.f32.mrb[0].mxu0
        %1481 = vmatprep.mubr.f32.mxu0 0.0
        %1482 = vmatmul.mubr.f32.gmra.mrb[0].mxu0 %v1347
        %v1483 = vpop.f32.mrb[0].mxu0
        %v1484 = vadd.f32 %v650, %v1483
        %v1485 = vpop.f32.mrb[0].mxu0
        %1486 = vmatprep.mubr.f32.mxu0 0.0
        %1487 = vmatmul.mubr.f32.gmra.mrb[0].mxu0 %v1349
        %v1488 = vpop.f32.mrb[0].mxu0
        %v1489 = vadd.f32 %v650, %v1488
        %v1490 = vpop.f32.mrb[0].mxu0
        %1491 = vmatprep.mubr.f32.mxu0 0.0
        %1492 = vmatmul.mubr.f32.gmra.mrb[0].mxu0 %v1351
        %v1493 = vpop.f32.mrb[0].mxu0
        %v1494 = vadd.f32 %v650, %v1493
        %v1495 = vpop.f32.mrb[0].mxu0
        %1496 = vmatprep.mubr.f32.mxu0 0.0
        %1497 = vmatmul.mubr.f32.gmra.mrb[0].mxu0 %v1353
        %v1498 = vpop.f32.mrb[0].mxu0
        %v1499 = vadd.f32 %v650, %v1498
        %v1500 = vpop.f32.mrb[0].mxu0
        %1501 = vmatprep.mubr.f32.mxu0 0.0
        %1502 = vmatmul.mubr.f32.gmra.mrb[0].mxu0 %v1355
        %v1503 = vpop.f32.mrb[0].mxu0
        %v1504 = vadd.f32 %v650, %v1503
        %v1505 = vpop.f32.mrb[0].mxu0
        %1506 = vmatprep.mubr.f32.mxu0 0.0
        %1507 = vmatmul.mubr.f32.gmra.mrb[0].mxu0 %v1357
        %v1508 = vpop.f32.mrb[0].mxu0
        %v1509 = vadd.f32 %v650, %v1508
        %v1510 = vpop.f32.mrb[0].mxu0
        %1511 = vmatprep.mubr.f32.mxu0 0.0
        %1512 = vmatmul.mubr.f32.gmra.mrb[0].mxu0 %v1359
        %v1513 = vpop.f32.mrb[0].mxu0
        %v1514 = vadd.f32 %v650, %v1513
        %v1515 = vpop.f32.mrb[0].mxu0
        %1516 = vmatprep.mubr.f32.mxu0 0.0
        %1517 = vmatmul.mubr.f32.gmra.mrb[0].mxu0 %v1361
        %v1518 = vpop.f32.mrb[0].mxu0
        %v1519 = vadd.f32 %v650, %v1518
        %v1520 = vpop.f32.mrb[0].mxu0
        %1521 = vmatprep.mubr.f32.mxu0 0.0
        %1522 = vmatmul.mubr.f32.gmra.mrb[0].mxu0 %v1363
        %v1523 = vpop.f32.mrb[0].mxu0
        %v1524 = vadd.f32 %v650, %v1523
        %v1525 = vpop.f32.mrb[0].mxu0
        %1526 = vmatprep.mubr.f32.mxu0 0.0
        %1527 = vmatmul.mubr.f32.gmra.mrb[0].mxu0 %v1365
        %v1528 = vpop.f32.mrb[0].mxu0
        %v1529 = vadd.f32 %v650, %v1528
        %v1530 = vpop.f32.mrb[0].mxu0
        %1531 = vmatprep.mubr.f32.mxu0 0.0
        %1532 = vmatmul.mubr.f32.gmra.mrb[0].mxu0 %v1367
        %v1533 = vpop.f32.mrb[0].mxu0
        %v1534 = vadd.f32 %v650, %v1533
        %v1535 = vpop.f32.mrb[0].mxu0
        %1536 = vmatprep.mubr.f32.mxu0 0.0
        %1537 = vmatmul.mubr.f32.gmra.mrb[0].mxu0 %v1369
        %v1538 = vpop.f32.mrb[0].mxu0
        %v1539 = vadd.f32 %v650, %v1538
        %v1540 = vpop.f32.mrb[0].mxu0
        %1541 = vmatprep.mubr.f32.mxu0 0.0
        %1542 = vmatmul.mubr.f32.gmra.mrb[0].mxu0 %v1371
        %v1543 = vpop.f32.mrb[0].mxu0
        %v1544 = vadd.f32 %v650, %v1543
        %v1545 = vpop.f32.mrb[0].mxu0
        %1546 = vmatprep.mubr.f32.mxu0 0.0
        %1547 = vmatmul.mubr.f32.gmra.mrb[0].mxu0 %v1373
        %v1548 = vpop.f32.mrb[0].mxu0
        %v1549 = vadd.f32 %v650, %v1548
        %v1550 = vpop.f32.mrb[0].mxu0
        %1551 = vdwg.mxu0
        %1552 = vmax.xlane.f32.xlu0 %v1474
        %v1553 = vpop.xlane.xlu0 %1552
        %1554 = vmax.xlane.f32.xlu0 %v1479
        %v1555 = vpop.xlane.xlu0 %1554
        %1556 = vmax.xlane.f32.xlu0 %v1484
        %v1557 = vpop.xlane.xlu0 %1556
        %1558 = vmax.xlane.f32.xlu0 %v1489
        %v1559 = vpop.xlane.xlu0 %1558
        %1560 = vmax.xlane.f32.xlu0 %v1494
        %v1561 = vpop.xlane.xlu0 %1560
        %1562 = vmax.xlane.f32.xlu0 %v1499
        %v1563 = vpop.xlane.xlu0 %1562
        %1564 = vmax.xlane.f32.xlu0 %v1504
        %v1565 = vpop.xlane.xlu0 %1564
        %1566 = vmax.xlane.f32.xlu0 %v1509
        %v1567 = vpop.xlane.xlu0 %1566
        %1568 = vmax.xlane.f32.xlu0 %v1514
        %v1569 = vpop.xlane.xlu0 %1568
        %1570 = vmax.xlane.f32.xlu0 %v1519
        %v1571 = vpop.xlane.xlu0 %1570
        %1572 = vmax.xlane.f32.xlu0 %v1524
        %v1573 = vpop.xlane.xlu0 %1572
        %1574 = vmax.xlane.f32.xlu0 %v1529
        %v1575 = vpop.xlane.xlu0 %1574
        %1576 = vmax.xlane.f32.xlu0 %v1534
        %v1577 = vpop.xlane.xlu0 %1576
        %1578 = vmax.xlane.f32.xlu0 %v1539
        %v1579 = vpop.xlane.xlu0 %1578
        %1580 = vmax.xlane.f32.xlu0 %v1544
        %v1581 = vpop.xlane.xlu0 %1580
        %1582 = vmax.xlane.f32.xlu0 %v1549
        %v1583 = vpop.xlane.xlu0 %1582
        %v1584 = vsub.f32 %v1474, %v1553
        %v1585 = vsub.f32 %v1479, %v1555
        %v1586 = vsub.f32 %v1484, %v1557
        %v1587 = vsub.f32 %v1489, %v1559
        %v1588 = vsub.f32 %v1494, %v1561
        %v1589 = vsub.f32 %v1499, %v1563
        %v1590 = vsub.f32 %v1504, %v1565
        %v1591 = vsub.f32 %v1509, %v1567
        %v1592 = vsub.f32 %v1514, %v1569
        %v1593 = vsub.f32 %v1519, %v1571
        %v1594 = vsub.f32 %v1524, %v1573
        %v1595 = vsub.f32 %v1529, %v1575
        %v1596 = vsub.f32 %v1534, %v1577
        %v1597 = vsub.f32 %v1539, %v1579
        %v1598 = vsub.f32 %v1544, %v1581
        %v1599 = vsub.f32 %v1549, %v1583
        %v1600 = vmul.f32 %v1584, 1.442695
        %v1601 = vpow.pop %v1600
        %v1602 = vmul.f32 %v1585, 1.442695
        %v1603 = vpow.pop %v1602
        %v1604 = vmul.f32 %v1586, 1.442695
        %v1605 = vpow.pop %v1604
        %v1606 = vmul.f32 %v1587, 1.442695
        %v1607 = vpow.pop %v1606
        %v1608 = vmul.f32 %v1588, 1.442695
        %v1609 = vpow.pop %v1608
        %v1610 = vmul.f32 %v1589, 1.442695
        %v1611 = vpow.pop %v1610
        %v1612 = vmul.f32 %v1590, 1.442695
        %v1613 = vpow.pop %v1612
        %v1614 = vmul.f32 %v1591, 1.442695
        %v1615 = vpow.pop %v1614
        %v1616 = vmul.f32 %v1592, 1.442695
        %v1617 = vpow.pop %v1616
        %v1618 = vmul.f32 %v1593, 1.442695
        %v1619 = vpow.pop %v1618
        %v1620 = vmul.f32 %v1594, 1.442695
        %v1621 = vpow.pop %v1620
        %v1622 = vmul.f32 %v1595, 1.442695
        %v1623 = vpow.pop %v1622
        %v1624 = vmul.f32 %v1596, 1.442695
        %v1625 = vpow.pop %v1624
        %v1626 = vmul.f32 %v1597, 1.442695
        %v1627 = vpow.pop %v1626
        %v1628 = vmul.f32 %v1598, 1.442695
        %v1629 = vpow.pop %v1628
        %v1630 = vmul.f32 %v1599, 1.442695
        %v1631 = vpow.pop %v1630
        %1632 = vadd.xlane.f32.xlu0 %v1601
        %v1633 = vpop.xlane.xlu0 %1632
        %1634 = vadd.xlane.f32.xlu0 %v1603
        %v1635 = vpop.xlane.xlu0 %1634
        %1636 = vadd.xlane.f32.xlu0 %v1605
        %v1637 = vpop.xlane.xlu0 %1636
        %1638 = vadd.xlane.f32.xlu0 %v1607
        %v1639 = vpop.xlane.xlu0 %1638
        %1640 = vadd.xlane.f32.xlu0 %v1609
        %v1641 = vpop.xlane.xlu0 %1640
        %1642 = vadd.xlane.f32.xlu0 %v1611
        %v1643 = vpop.xlane.xlu0 %1642
        %1644 = vadd.xlane.f32.xlu0 %v1613
        %v1645 = vpop.xlane.xlu0 %1644
        %1646 = vadd.xlane.f32.xlu0 %v1615
        %v1647 = vpop.xlane.xlu0 %1646
        %1648 = vadd.xlane.f32.xlu0 %v1617
        %v1649 = vpop.xlane.xlu0 %1648
        %1650 = vadd.xlane.f32.xlu0 %v1619
        %v1651 = vpop.xlane.xlu0 %1650
        %1652 = vadd.xlane.f32.xlu0 %v1621
        %v1653 = vpop.xlane.xlu0 %1652
        %1654 = vadd.xlane.f32.xlu0 %v1623
        %v1655 = vpop.xlane.xlu0 %1654
        %1656 = vadd.xlane.f32.xlu0 %v1625
        %v1657 = vpop.xlane.xlu0 %1656
        %1658 = vadd.xlane.f32.xlu0 %v1627
        %v1659 = vpop.xlane.xlu0 %1658
        %1660 = vadd.xlane.f32.xlu0 %v1629
        %v1661 = vpop.xlane.xlu0 %1660
        %1662 = vadd.xlane.f32.xlu0 %v1631
        %v1663 = vpop.xlane.xlu0 %1662
        %v1664 = vrcp.pop %v1633
        %v1665 = vrcp.pop %v1635
        %v1666 = vrcp.pop %v1637
        %v1667 = vrcp.pop %v1639
        %v1668 = vrcp.pop %v1641
        %v1669 = vrcp.pop %v1643
        %v1670 = vrcp.pop %v1645
        %v1671 = vrcp.pop %v1647
        %v1672 = vrcp.pop %v1649
        %v1673 = vrcp.pop %v1651
        %v1674 = vrcp.pop %v1653
        %v1675 = vrcp.pop %v1655
        %v1676 = vrcp.pop %v1657
        %v1677 = vrcp.pop %v1659
        %v1678 = vrcp.pop %v1661
        %v1679 = vrcp.pop %v1663
        %1680 = vrot.lane.b32.xlu0 %v545, 56
        %v1681 = vpop.permute.xlu0 %1680
        %1682 = vrot.lane.b32.xlu0 %v550, 56
        %v1683 = vpop.permute.xlu0 %1682
        %1684 = vrot.lane.b32.xlu0 %v555, 56
        %v1685 = vpop.permute.xlu0 %1684
        %1686 = vrot.lane.b32.xlu0 %v560, 56
        %v1687 = vpop.permute.xlu0 %1686
        %1688 = vrot.lane.b32.xlu0 %v565, 56
        %v1689 = vpop.permute.xlu0 %1688
        %1690 = vrot.lane.b32.xlu0 %v570, 56
        %v1691 = vpop.permute.xlu0 %1690
        %1692 = vrot.lane.b32.xlu0 %v575, 56
        %v1693 = vpop.permute.xlu0 %1692
        %1694 = vrot.lane.b32.xlu0 %v580, 56
        %v1695 = vpop.permute.xlu0 %1694
        %1696 = vrot.lane.b32.xlu0 %v585, 56
        %v1697 = vpop.permute.xlu0 %1696
        %1698 = vrot.lane.b32.xlu0 %v590, 56
        %v1699 = vpop.permute.xlu0 %1698
        %1700 = vrot.lane.b32.xlu0 %v595, 56
        %v1701 = vpop.permute.xlu0 %1700
        %1702 = vrot.lane.b32.xlu0 %v600, 56
        %v1703 = vpop.permute.xlu0 %1702
        %1704 = vrot.lane.b32.xlu0 %v605, 56
        %v1705 = vpop.permute.xlu0 %1704
        %1706 = vrot.lane.b32.xlu0 %v610, 56
        %v1707 = vpop.permute.xlu0 %1706
        %1708 = vrot.lane.b32.xlu0 %v615, 56
        %v1709 = vpop.permute.xlu0 %1708
        %1710 = vrot.lane.b32.xlu0 %v620, 56
        %v1711 = vpop.permute.xlu0 %1710
        %1728 = vmatprep.subr.mxu0 0.0
        %1729 = vmatpush1.msra.mxu0 %v1681
        %1730 = vmatprep.subr.mxu0 0.0
        %1731 = vmatpush1.msra.mxu0 %v1683
        %1732 = vmatprep.subr.mxu0 0.0
        %1733 = vmatpush1.msra.mxu0 %v1685
        %1734 = vmatprep.subr.mxu0 0.0
        %1735 = vmatpush1.msra.mxu0 %v1687
        %1736 = vmatprep.subr.mxu0 0.0
        %1737 = vmatpush1.msra.mxu0 %v1689
        %1738 = vmatprep.subr.mxu0 0.0
        %1739 = vmatpush1.msra.mxu0 %v1691
        %1740 = vmatprep.subr.mxu0 0.0
        %1741 = vmatpush1.msra.mxu0 %v1693
        %1742 = vmatprep.subr.mxu0 0.0
        %1743 = vmatpush1.msra.mxu0 %v1695
        %1744 = vmatprep.subr.mxu0 0.0
        %1745 = vmatpush1.msra.mxu0 %v1697
        %1746 = vmatprep.subr.mxu0 0.0
        %1747 = vmatpush1.msra.mxu0 %v1699
        %1748 = vmatprep.subr.mxu0 0.0
        %1749 = vmatpush1.msra.mxu0 %v1701
        %1750 = vmatprep.subr.mxu0 0.0
        %1751 = vmatpush1.msra.mxu0 %v1703
        %1752 = vmatprep.subr.mxu0 0.0
        %1753 = vmatpush1.msra.mxu0 %v1705
        %1754 = vmatprep.subr.mxu0 0.0
        %1755 = vmatpush1.msra.mxu0 %v1707
        %1756 = vmatprep.subr.mxu0 0.0
        %1757 = vmatpush1.msra.mxu0 %v1709
        %1758 = vmatprep.subr.mxu0 0.0
        %1759 = vmatpush1.msra.mxu0 %v1711
        %1760 = vmatprep.subr.mxu0 0.0
        %1761 = vmatpush1.msra.mxu0 0.0
        %1762 = vmatprep.subr.mxu0 0.0
        %1763 = vmatpush1.msra.mxu0 0.0
        %1764 = vmatprep.subr.mxu0 0.0
        %1765 = vmatpush1.msra.mxu0 0.0
        %1766 = vmatprep.subr.mxu0 0.0
        %1767 = vmatpush1.msra.mxu0 0.0
        %1768 = vmatprep.subr.mxu0 0.0
        %1769 = vmatpush1.msra.mxu0 0.0
        %1770 = vmatprep.subr.mxu0 0.0
        %1771 = vmatpush1.msra.mxu0 0.0
        %1772 = vmatprep.subr.mxu0 0.0
        %1773 = vmatpush1.msra.mxu0 0.0
        %1774 = vmatprep.subr.mxu0 0.0
        %1775 = vmatpush1.msra.mxu0 0.0
        %1776 = vmatprep.subr.mxu0 0.0
        %1777 = vmatpush1.msra.mxu0 0.0
        %1778 = vmatprep.subr.mxu0 0.0
        %1779 = vmatpush1.msra.mxu0 0.0
        %1780 = vmatprep.subr.mxu0 0.0
        %1781 = vmatpush1.msra.mxu0 0.0
        %1782 = vmatprep.subr.mxu0 0.0
        %1783 = vmatpush1.msra.mxu0 0.0
        %1784 = vmatprep.subr.mxu0 0.0
        %1785 = vmatpush1.msra.mxu0 0.0
        %1786 = vmatprep.subr.mxu0 0.0
        %1787 = vmatpush1.msra.mxu0 0.0
        %1788 = vmatprep.subr.mxu0 0.0
        %1789 = vmatpush1.msra.mxu0 0.0
        %1790 = vmatprep.subr.mxu0 0.0
        %1791 = vmatpush1.msra.mxu0 0.0
        %1792 = vmatprep.mubr.f32.mxu0 0.0
        %1793 = vmatmul.mubr.f32.gmra.mrb[0].mxu0 %v1601
        %v1794 = vpop.f32.mrb[0].mxu0
        %v1795 = vadd.f32 0.0, %v1794
        %v1796 = vpop.f32.mrb[0].mxu0
        %1797 = vmatprep.mubr.f32.mxu0 0.0
        %1798 = vmatmul.mubr.f32.gmra.mrb[0].mxu0 %v1603
        %v1799 = vpop.f32.mrb[0].mxu0
        %v1800 = vadd.f32 0.0, %v1799
        %v1801 = vpop.f32.mrb[0].mxu0
        %1802 = vmatprep.mubr.f32.mxu0 0.0
        %1803 = vmatmul.mubr.f32.gmra.mrb[0].mxu0 %v1605
        %v1804 = vpop.f32.mrb[0].mxu0
        %v1805 = vadd.f32 0.0, %v1804
        %v1806 = vpop.f32.mrb[0].mxu0
        %1807 = vmatprep.mubr.f32.mxu0 0.0
        %1808 = vmatmul.mubr.f32.gmra.mrb[0].mxu0 %v1607
        %v1809 = vpop.f32.mrb[0].mxu0
        %v1810 = vadd.f32 0.0, %v1809
        %v1811 = vpop.f32.mrb[0].mxu0
        %1812 = vmatprep.mubr.f32.mxu0 0.0
        %1813 = vmatmul.mubr.f32.gmra.mrb[0].mxu0 %v1609
        %v1814 = vpop.f32.mrb[0].mxu0
        %v1815 = vadd.f32 0.0, %v1814
        %v1816 = vpop.f32.mrb[0].mxu0
        %1817 = vmatprep.mubr.f32.mxu0 0.0
        %1818 = vmatmul.mubr.f32.gmra.mrb[0].mxu0 %v1611
        %v1819 = vpop.f32.mrb[0].mxu0
        %v1820 = vadd.f32 0.0, %v1819
        %v1821 = vpop.f32.mrb[0].mxu0
        %1822 = vmatprep.mubr.f32.mxu0 0.0
        %1823 = vmatmul.mubr.f32.gmra.mrb[0].mxu0 %v1613
        %v1824 = vpop.f32.mrb[0].mxu0
        %v1825 = vadd.f32 0.0, %v1824
        %v1826 = vpop.f32.mrb[0].mxu0
        %1827 = vmatprep.mubr.f32.mxu0 0.0
        %1828 = vmatmul.mubr.f32.gmra.mrb[0].mxu0 %v1615
        %v1829 = vpop.f32.mrb[0].mxu0
        %v1830 = vadd.f32 0.0, %v1829
        %v1831 = vpop.f32.mrb[0].mxu0
        %1832 = vmatprep.mubr.f32.mxu0 0.0
        %1833 = vmatmul.mubr.f32.gmra.mrb[0].mxu0 %v1617
        %v1834 = vpop.f32.mrb[0].mxu0
        %v1835 = vadd.f32 0.0, %v1834
        %v1836 = vpop.f32.mrb[0].mxu0
        %1837 = vmatprep.mubr.f32.mxu0 0.0
        %1838 = vmatmul.mubr.f32.gmra.mrb[0].mxu0 %v1619
        %v1839 = vpop.f32.mrb[0].mxu0
        %v1840 = vadd.f32 0.0, %v1839
        %v1841 = vpop.f32.mrb[0].mxu0
        %1842 = vmatprep.mubr.f32.mxu0 0.0
        %1843 = vmatmul.mubr.f32.gmra.mrb[0].mxu0 %v1621
        %v1844 = vpop.f32.mrb[0].mxu0
        %v1845 = vadd.f32 0.0, %v1844
        %v1846 = vpop.f32.mrb[0].mxu0
        %1847 = vmatprep.mubr.f32.mxu0 0.0
        %1848 = vmatmul.mubr.f32.gmra.mrb[0].mxu0 %v1623
        %v1849 = vpop.f32.mrb[0].mxu0
        %v1850 = vadd.f32 0.0, %v1849
        %v1851 = vpop.f32.mrb[0].mxu0
        %1852 = vmatprep.mubr.f32.mxu0 0.0
        %1853 = vmatmul.mubr.f32.gmra.mrb[0].mxu0 %v1625
        %v1854 = vpop.f32.mrb[0].mxu0
        %v1855 = vadd.f32 0.0, %v1854
        %v1856 = vpop.f32.mrb[0].mxu0
        %1857 = vmatprep.mubr.f32.mxu0 0.0
        %1858 = vmatmul.mubr.f32.gmra.mrb[0].mxu0 %v1627
        %v1859 = vpop.f32.mrb[0].mxu0
        %v1860 = vadd.f32 0.0, %v1859
        %v1861 = vpop.f32.mrb[0].mxu0
        %1862 = vmatprep.mubr.f32.mxu0 0.0
        %1863 = vmatmul.mubr.f32.gmra.mrb[0].mxu0 %v1629
        %v1864 = vpop.f32.mrb[0].mxu0
        %v1865 = vadd.f32 0.0, %v1864
        %v1866 = vpop.f32.mrb[0].mxu0
        %1867 = vmatprep.mubr.f32.mxu0 0.0
        %1868 = vmatmul.mubr.f32.gmra.mrb[0].mxu0 %v1631
        %v1869 = vpop.f32.mrb[0].mxu0
        %v1870 = vadd.f32 0.0, %v1869
        %v1871 = vpop.f32.mrb[0].mxu0
        %1872 = vdwg.mxu0
        %v1873 = vmul.f32 %v1795, %v1664
        %v1874 = vmul.f32 %v1800, %v1665
        %v1875 = vmul.f32 %v1805, %v1666
        %v1876 = vmul.f32 %v1810, %v1667
        %v1877 = vmul.f32 %v1815, %v1668
        %v1878 = vmul.f32 %v1820, %v1669
        %v1879 = vmul.f32 %v1825, %v1670
        %v1880 = vmul.f32 %v1830, %v1671
        %v1881 = vmul.f32 %v1835, %v1672
        %v1882 = vmul.f32 %v1840, %v1673
        %v1883 = vmul.f32 %v1845, %v1674
        %v1884 = vmul.f32 %v1850, %v1675
        %v1885 = vmul.f32 %v1855, %v1676
        %v1886 = vmul.f32 %v1860, %v1677
        %v1887 = vmul.f32 %v1865, %v1678
        %v1888 = vmul.f32 %v1870, %v1679
        %1905 = vrot.lane.b32.xlu0 %v1873, 8
        %v1906 = vpop.permute.xlu0 %1905
        %1907 = vrot.lane.b32.xlu0 %v1874, 8
        %v1908 = vpop.permute.xlu0 %1907
        %1909 = vrot.lane.b32.xlu0 %v1875, 8
        %v1910 = vpop.permute.xlu0 %1909
        %1911 = vrot.lane.b32.xlu0 %v1876, 8
        %v1912 = vpop.permute.xlu0 %1911
        %1913 = vrot.lane.b32.xlu0 %v1877, 8
        %v1914 = vpop.permute.xlu0 %1913
        %1915 = vrot.lane.b32.xlu0 %v1878, 8
        %v1916 = vpop.permute.xlu0 %1915
        %1917 = vrot.lane.b32.xlu0 %v1879, 8
        %v1918 = vpop.permute.xlu0 %1917
        %1919 = vrot.lane.b32.xlu0 %v1880, 8
        %v1920 = vpop.permute.xlu0 %1919
        %1921 = vrot.lane.b32.xlu0 %v1881, 8
        %v1922 = vpop.permute.xlu0 %1921
        %1923 = vrot.lane.b32.xlu0 %v1882, 8
        %v1924 = vpop.permute.xlu0 %1923
        %1925 = vrot.lane.b32.xlu0 %v1883, 8
        %v1926 = vpop.permute.xlu0 %1925
        %1927 = vrot.lane.b32.xlu0 %v1884, 8
        %v1928 = vpop.permute.xlu0 %1927
        %1929 = vrot.lane.b32.xlu0 %v1885, 8
        %v1930 = vpop.permute.xlu0 %1929
        %1931 = vrot.lane.b32.xlu0 %v1886, 8
        %v1932 = vpop.permute.xlu0 %1931
        %1933 = vrot.lane.b32.xlu0 %v1887, 8
        %v1934 = vpop.permute.xlu0 %1933
        %1935 = vrot.lane.b32.xlu0 %v1888, 8
        %v1936 = vpop.permute.xlu0 %1935
        %vm1953 = vcmask 130112
        %1954 = vst.msk [vmem:[#allocation3] sm:$0xff] %vm1953, %v1906
        %1955 = vst.msk [vmem:[#allocation3 + $0x8] sm:$0xff] %vm1953, %v1908
        %1956 = vst.msk [vmem:[#allocation3 + $0x10] sm:$0xff] %vm1953, %v1910
        %1957 = vst.msk [vmem:[#allocation3 + $0x18] sm:$0xff] %vm1953, %v1912
        %1958 = vst.msk [vmem:[#allocation3 + $0x20] sm:$0xff] %vm1953, %v1914
        %1959 = vst.msk [vmem:[#allocation3 + $0x28] sm:$0xff] %vm1953, %v1916
        %1960 = vst.msk [vmem:[#allocation3 + $0x30] sm:$0xff] %vm1953, %v1918
        %1961 = vst.msk [vmem:[#allocation3 + $0x38] sm:$0xff] %vm1953, %v1920
        %1962 = vst.msk [vmem:[#allocation3 + $0x40] sm:$0xff] %vm1953, %v1922
        %1963 = vst.msk [vmem:[#allocation3 + $0x48] sm:$0xff] %vm1953, %v1924
        %1964 = vst.msk [vmem:[#allocation3 + $0x50] sm:$0xff] %vm1953, %v1926
        %1965 = vst.msk [vmem:[#allocation3 + $0x58] sm:$0xff] %vm1953, %v1928
        %1966 = vst.msk [vmem:[#allocation3 + $0x60] sm:$0xff] %vm1953, %v1930
        %1967 = vst.msk [vmem:[#allocation3 + $0x68] sm:$0xff] %vm1953, %v1932
        %1968 = vst.msk [vmem:[#allocation3 + $0x70] sm:$0xff] %vm1953, %v1934
        %1969 = vst.msk [vmem:[#allocation3 + $0x78] sm:$0xff] %vm1953, %v1936
        %1970 = vrot.lane.b32.xlu0 %v630, 112
        %v1971 = vpop.permute.xlu0 %1970
        %1972 = vrot.lane.b32.xlu0 %v631, 112
        %v1973 = vpop.permute.xlu0 %1972
        %1974 = vrot.lane.b32.xlu0 %v632, 112
        %v1975 = vpop.permute.xlu0 %1974
        %1976 = vrot.lane.b32.xlu0 %v633, 112
        %v1977 = vpop.permute.xlu0 %1976
        %1978 = vrot.lane.b32.xlu0 %v634, 112
        %v1979 = vpop.permute.xlu0 %1978
        %1980 = vrot.lane.b32.xlu0 %v635, 112
        %v1981 = vpop.permute.xlu0 %1980
        %1982 = vrot.lane.b32.xlu0 %v636, 112
        %v1983 = vpop.permute.xlu0 %1982
        %1984 = vrot.lane.b32.xlu0 %v637, 112
        %v1985 = vpop.permute.xlu0 %1984
        %1986 = vrot.lane.b32.xlu0 %v638, 112
        %v1987 = vpop.permute.xlu0 %1986
        %1988 = vrot.lane.b32.xlu0 %v639, 112
        %v1989 = vpop.permute.xlu0 %1988
        %1990 = vrot.lane.b32.xlu0 %v640, 112
        %v1991 = vpop.permute.xlu0 %1990
        %1992 = vrot.lane.b32.xlu0 %v641, 112
        %v1993 = vpop.permute.xlu0 %1992
        %1994 = vrot.lane.b32.xlu0 %v642, 112
        %v1995 = vpop.permute.xlu0 %1994
        %1996 = vrot.lane.b32.xlu0 %v643, 112
        %v1997 = vpop.permute.xlu0 %1996
        %1998 = vrot.lane.b32.xlu0 %v644, 112
        %v1999 = vpop.permute.xlu0 %1998
        %2000 = vrot.lane.b32.xlu0 %v645, 112
        %v2001 = vpop.permute.xlu0 %2000
        %2002 = vrot.lane.b32.xlu0 %v545, 80
        %v2003 = vpop.permute.xlu0 %2002
        %2004 = vrot.lane.b32.xlu0 %v550, 80
        %v2005 = vpop.permute.xlu0 %2004
        %2006 = vrot.lane.b32.xlu0 %v555, 80
        %v2007 = vpop.permute.xlu0 %2006
        %2008 = vrot.lane.b32.xlu0 %v560, 80
        %v2009 = vpop.permute.xlu0 %2008
        %2010 = vrot.lane.b32.xlu0 %v565, 80
        %v2011 = vpop.permute.xlu0 %2010
        %2012 = vrot.lane.b32.xlu0 %v570, 80
        %v2013 = vpop.permute.xlu0 %2012
        %2014 = vrot.lane.b32.xlu0 %v575, 80
        %v2015 = vpop.permute.xlu0 %2014
        %2016 = vrot.lane.b32.xlu0 %v580, 80
        %v2017 = vpop.permute.xlu0 %2016
        %2018 = vrot.lane.b32.xlu0 %v585, 80
        %v2019 = vpop.permute.xlu0 %2018
        %2020 = vrot.lane.b32.xlu0 %v590, 80
        %v2021 = vpop.permute.xlu0 %2020
        %2022 = vrot.lane.b32.xlu0 %v595, 80
        %v2023 = vpop.permute.xlu0 %2022
        %2024 = vrot.lane.b32.xlu0 %v600, 80
        %v2025 = vpop.permute.xlu0 %2024
        %2026 = vrot.lane.b32.xlu0 %v605, 80
        %v2027 = vpop.permute.xlu0 %2026
        %2028 = vrot.lane.b32.xlu0 %v610, 80
        %v2029 = vpop.permute.xlu0 %2028
        %2030 = vrot.lane.b32.xlu0 %v615, 80
        %v2031 = vpop.permute.xlu0 %2030
        %2032 = vrot.lane.b32.xlu0 %v620, 80
        %v2033 = vpop.permute.xlu0 %2032
        %v2034 = vsel %vm700, %v1971, 0
        %v2036 = vsel %vm700, %v1973, 0
        %v2038 = vsel %vm700, %v1975, 0
        %v2040 = vsel %vm700, %v1977, 0
        %v2042 = vsel %vm700, %v1979, 0
        %v2044 = vsel %vm700, %v1981, 0
        %v2046 = vsel %vm700, %v1983, 0
        %v2048 = vsel %vm700, %v1985, 0
        %v2050 = vsel %vm700, %v1987, 0
        %v2052 = vsel %vm700, %v1989, 0
        %v2054 = vsel %vm700, %v1991, 0
        %v2056 = vsel %vm700, %v1993, 0
        %v2058 = vsel %vm700, %v1995, 0
        %v2060 = vsel %vm700, %v1997, 0
        %v2062 = vsel %vm700, %v1999, 0
        %v2064 = vsel %vm700, %v2001, 0
        %v2066 = vsel %vm700, %v2003, 0
        %v2068 = vsel %vm700, %v2005, 0
        %v2070 = vsel %vm700, %v2007, 0
        %v2072 = vsel %vm700, %v2009, 0
        %v2074 = vsel %vm700, %v2011, 0
        %v2076 = vsel %vm700, %v2013, 0
        %v2078 = vsel %vm700, %v2015, 0
        %v2080 = vsel %vm700, %v2017, 0
        %v2082 = vsel %vm700, %v2019, 0
        %v2084 = vsel %vm700, %v2021, 0
        %v2086 = vsel %vm700, %v2023, 0
        %v2088 = vsel %vm700, %v2025, 0
        %v2090 = vsel %vm700, %v2027, 0
        %v2092 = vsel %vm700, %v2029, 0
        %v2094 = vsel %vm700, %v2031, 0
        %v2096 = vsel %vm700, %v2033, 0
        %2098 = vmatprep.subr.mxu0 0.0
        %2099 = vmatpush1.xpose.msra.mxu0 %v2066
        %2100 = vmatprep.subr.mxu0 0.0
        %2101 = vmatpush1.xpose.msra.mxu0 %v2068
        %2102 = vmatprep.subr.mxu0 0.0
        %2103 = vmatpush1.xpose.msra.mxu0 %v2070
        %2104 = vmatprep.subr.mxu0 0.0
        %2105 = vmatpush1.xpose.msra.mxu0 %v2072
        %2106 = vmatprep.subr.mxu0 0.0
        %2107 = vmatpush1.xpose.msra.mxu0 %v2074
        %2108 = vmatprep.subr.mxu0 0.0
        %2109 = vmatpush1.xpose.msra.mxu0 %v2076
        %2110 = vmatprep.subr.mxu0 0.0
        %2111 = vmatpush1.xpose.msra.mxu0 %v2078
        %2112 = vmatprep.subr.mxu0 0.0
        %2113 = vmatpush1.xpose.msra.mxu0 %v2080
        %2114 = vmatprep.subr.mxu0 0.0
        %2115 = vmatpush1.xpose.msra.mxu0 %v2082
        %2116 = vmatprep.subr.mxu0 0.0
        %2117 = vmatpush1.xpose.msra.mxu0 %v2084
        %2118 = vmatprep.subr.mxu0 0.0
        %2119 = vmatpush1.xpose.msra.mxu0 %v2086
        %2120 = vmatprep.subr.mxu0 0.0
        %2121 = vmatpush1.xpose.msra.mxu0 %v2088
        %2122 = vmatprep.subr.mxu0 0.0
        %2123 = vmatpush1.xpose.msra.mxu0 %v2090
        %2124 = vmatprep.subr.mxu0 0.0
        %2125 = vmatpush1.xpose.msra.mxu0 %v2092
        %2126 = vmatprep.subr.mxu0 0.0
        %2127 = vmatpush1.xpose.msra.mxu0 %v2094
        %2128 = vmatprep.subr.mxu0 0.0
        %2129 = vmatpush1.xpose.msra.mxu0 %v2096
        %2130 = vmatprep.subr.mxu0 0.0
        %2131 = vmatpush1.xpose.msra.mxu0 0.0
        %2132 = vmatprep.subr.mxu0 0.0
        %2133 = vmatpush1.xpose.msra.mxu0 0.0
        %2134 = vmatprep.subr.mxu0 0.0
        %2135 = vmatpush1.xpose.msra.mxu0 0.0
        %2136 = vmatprep.subr.mxu0 0.0
        %2137 = vmatpush1.xpose.msra.mxu0 0.0
        %2138 = vmatprep.subr.mxu0 0.0
        %2139 = vmatpush1.xpose.msra.mxu0 0.0
        %2140 = vmatprep.subr.mxu0 0.0
        %2141 = vmatpush1.xpose.msra.mxu0 0.0
        %2142 = vmatprep.subr.mxu0 0.0
        %2143 = vmatpush1.xpose.msra.mxu0 0.0
        %2144 = vmatprep.subr.mxu0 0.0
        %2145 = vmatpush1.xpose.msra.mxu0 0.0
        %2146 = vmatprep.subr.mxu0 0.0
        %2147 = vmatpush1.xpose.msra.mxu0 0.0
        %2148 = vmatprep.subr.mxu0 0.0
        %2149 = vmatpush1.xpose.msra.mxu0 0.0
        %2150 = vmatprep.subr.mxu0 0.0
        %2151 = vmatpush1.xpose.msra.mxu0 0.0
        %2152 = vmatprep.subr.mxu0 0.0
        %2153 = vmatpush1.xpose.msra.mxu0 0.0
        %2154 = vmatprep.subr.mxu0 0.0
        %2155 = vmatpush1.xpose.msra.mxu0 0.0
        %2156 = vmatprep.subr.mxu0 0.0
        %2157 = vmatpush1.xpose.msra.mxu0 0.0
        %2158 = vmatprep.subr.mxu0 0.0
        %2159 = vmatpush1.xpose.msra.mxu0 0.0
        %2160 = vmatprep.subr.mxu0 0.0
        %2161 = vmatpush1.xpose.msra.mxu0 0.0
        %2162 = vmatprep.mubr.f32.mxu0 0.0
        %2163 = vmatmul.mubr.f32.gmra.mrb[0].mxu0 %v2034
        %v2164 = vpop.f32.mrb[0].mxu0
        %v2165 = vadd.f32 %v650, %v2164
        %v2166 = vpop.f32.mrb[0].mxu0
        %2167 = vmatprep.mubr.f32.mxu0 0.0
        %2168 = vmatmul.mubr.f32.gmra.mrb[0].mxu0 %v2036
        %v2169 = vpop.f32.mrb[0].mxu0
        %v2170 = vadd.f32 %v650, %v2169
        %v2171 = vpop.f32.mrb[0].mxu0
        %2172 = vmatprep.mubr.f32.mxu0 0.0
        %2173 = vmatmul.mubr.f32.gmra.mrb[0].mxu0 %v2038
        %v2174 = vpop.f32.mrb[0].mxu0
        %v2175 = vadd.f32 %v650, %v2174
        %v2176 = vpop.f32.mrb[0].mxu0
        %2177 = vmatprep.mubr.f32.mxu0 0.0
        %2178 = vmatmul.mubr.f32.gmra.mrb[0].mxu0 %v2040
        %v2179 = vpop.f32.mrb[0].mxu0
        %v2180 = vadd.f32 %v650, %v2179
        %v2181 = vpop.f32.mrb[0].mxu0
        %2182 = vmatprep.mubr.f32.mxu0 0.0
        %2183 = vmatmul.mubr.f32.gmra.mrb[0].mxu0 %v2042
        %v2184 = vpop.f32.mrb[0].mxu0
        %v2185 = vadd.f32 %v650, %v2184
        %v2186 = vpop.f32.mrb[0].mxu0
        %2187 = vmatprep.mubr.f32.mxu0 0.0
        %2188 = vmatmul.mubr.f32.gmra.mrb[0].mxu0 %v2044
        %v2189 = vpop.f32.mrb[0].mxu0
        %v2190 = vadd.f32 %v650, %v2189
        %v2191 = vpop.f32.mrb[0].mxu0
        %2192 = vmatprep.mubr.f32.mxu0 0.0
        %2193 = vmatmul.mubr.f32.gmra.mrb[0].mxu0 %v2046
        %v2194 = vpop.f32.mrb[0].mxu0
        %v2195 = vadd.f32 %v650, %v2194
        %v2196 = vpop.f32.mrb[0].mxu0
        %2197 = vmatprep.mubr.f32.mxu0 0.0
        %2198 = vmatmul.mubr.f32.gmra.mrb[0].mxu0 %v2048
        %v2199 = vpop.f32.mrb[0].mxu0
        %v2200 = vadd.f32 %v650, %v2199
        %v2201 = vpop.f32.mrb[0].mxu0
        %2202 = vmatprep.mubr.f32.mxu0 0.0
        %2203 = vmatmul.mubr.f32.gmra.mrb[0].mxu0 %v2050
        %v2204 = vpop.f32.mrb[0].mxu0
        %v2205 = vadd.f32 %v650, %v2204
        %v2206 = vpop.f32.mrb[0].mxu0
        %2207 = vmatprep.mubr.f32.mxu0 0.0
        %2208 = vmatmul.mubr.f32.gmra.mrb[0].mxu0 %v2052
        %v2209 = vpop.f32.mrb[0].mxu0
        %v2210 = vadd.f32 %v650, %v2209
        %v2211 = vpop.f32.mrb[0].mxu0
        %2212 = vmatprep.mubr.f32.mxu0 0.0
        %2213 = vmatmul.mubr.f32.gmra.mrb[0].mxu0 %v2054
        %v2214 = vpop.f32.mrb[0].mxu0
        %v2215 = vadd.f32 %v650, %v2214
        %v2216 = vpop.f32.mrb[0].mxu0
        %2217 = vmatprep.mubr.f32.mxu0 0.0
        %2218 = vmatmul.mubr.f32.gmra.mrb[0].mxu0 %v2056
        %v2219 = vpop.f32.mrb[0].mxu0
        %v2220 = vadd.f32 %v650, %v2219
        %v2221 = vpop.f32.mrb[0].mxu0
        %2222 = vmatprep.mubr.f32.mxu0 0.0
        %2223 = vmatmul.mubr.f32.gmra.mrb[0].mxu0 %v2058
        %v2224 = vpop.f32.mrb[0].mxu0
        %v2225 = vadd.f32 %v650, %v2224
        %v2226 = vpop.f32.mrb[0].mxu0
        %2227 = vmatprep.mubr.f32.mxu0 0.0
        %2228 = vmatmul.mubr.f32.gmra.mrb[0].mxu0 %v2060
        %v2229 = vpop.f32.mrb[0].mxu0
        %v2230 = vadd.f32 %v650, %v2229
        %v2231 = vpop.f32.mrb[0].mxu0
        %2232 = vmatprep.mubr.f32.mxu0 0.0
        %2233 = vmatmul.mubr.f32.gmra.mrb[0].mxu0 %v2062
        %v2234 = vpop.f32.mrb[0].mxu0
        %v2235 = vadd.f32 %v650, %v2234
        %v2236 = vpop.f32.mrb[0].mxu0
        %2237 = vmatprep.mubr.f32.mxu0 0.0
        %2238 = vmatmul.mubr.f32.gmra.mrb[0].mxu0 %v2064
        %v2239 = vpop.f32.mrb[0].mxu0
        %v2240 = vadd.f32 %v650, %v2239
        %v2241 = vpop.f32.mrb[0].mxu0
        %2242 = vdwg.mxu0
        %2243 = vmax.xlane.f32.xlu0 %v2165
        %v2244 = vpop.xlane.xlu0 %2243
        %2245 = vmax.xlane.f32.xlu0 %v2170
        %v2246 = vpop.xlane.xlu0 %2245
        %2247 = vmax.xlane.f32.xlu0 %v2175
        %v2248 = vpop.xlane.xlu0 %2247
        %2249 = vmax.xlane.f32.xlu0 %v2180
        %v2250 = vpop.xlane.xlu0 %2249
        %2251 = vmax.xlane.f32.xlu0 %v2185
        %v2252 = vpop.xlane.xlu0 %2251
        %2253 = vmax.xlane.f32.xlu0 %v2190
        %v2254 = vpop.xlane.xlu0 %2253
        %2255 = vmax.xlane.f32.xlu0 %v2195
        %v2256 = vpop.xlane.xlu0 %2255
        %2257 = vmax.xlane.f32.xlu0 %v2200
        %v2258 = vpop.xlane.xlu0 %2257
        %2259 = vmax.xlane.f32.xlu0 %v2205
        %v2260 = vpop.xlane.xlu0 %2259
        %2261 = vmax.xlane.f32.xlu0 %v2210
        %v2262 = vpop.xlane.xlu0 %2261
        %2263 = vmax.xlane.f32.xlu0 %v2215
        %v2264 = vpop.xlane.xlu0 %2263
        %2265 = vmax.xlane.f32.xlu0 %v2220
        %v2266 = vpop.xlane.xlu0 %2265
        %2267 = vmax.xlane.f32.xlu0 %v2225
        %v2268 = vpop.xlane.xlu0 %2267
        %2269 = vmax.xlane.f32.xlu0 %v2230
        %v2270 = vpop.xlane.xlu0 %2269
        %2271 = vmax.xlane.f32.xlu0 %v2235
        %v2272 = vpop.xlane.xlu0 %2271
        %2273 = vmax.xlane.f32.xlu0 %v2240
        %v2274 = vpop.xlane.xlu0 %2273
        %v2275 = vsub.f32 %v2165, %v2244
        %v2276 = vsub.f32 %v2170, %v2246
        %v2277 = vsub.f32 %v2175, %v2248
        %v2278 = vsub.f32 %v2180, %v2250
        %v2279 = vsub.f32 %v2185, %v2252
        %v2280 = vsub.f32 %v2190, %v2254
        %v2281 = vsub.f32 %v2195, %v2256
        %v2282 = vsub.f32 %v2200, %v2258
        %v2283 = vsub.f32 %v2205, %v2260
        %v2284 = vsub.f32 %v2210, %v2262
        %v2285 = vsub.f32 %v2215, %v2264
        %v2286 = vsub.f32 %v2220, %v2266
        %v2287 = vsub.f32 %v2225, %v2268
        %v2288 = vsub.f32 %v2230, %v2270
        %v2289 = vsub.f32 %v2235, %v2272
        %v2290 = vsub.f32 %v2240, %v2274
        %v2291 = vmul.f32 %v2275, 1.442695
        %v2292 = vpow.pop %v2291
        %v2293 = vmul.f32 %v2276, 1.442695
        %v2294 = vpow.pop %v2293
        %v2295 = vmul.f32 %v2277, 1.442695
        %v2296 = vpow.pop %v2295
        %v2297 = vmul.f32 %v2278, 1.442695
        %v2298 = vpow.pop %v2297
        %v2299 = vmul.f32 %v2279, 1.442695
        %v2300 = vpow.pop %v2299
        %v2301 = vmul.f32 %v2280, 1.442695
        %v2302 = vpow.pop %v2301
        %v2303 = vmul.f32 %v2281, 1.442695
        %v2304 = vpow.pop %v2303
        %v2305 = vmul.f32 %v2282, 1.442695
        %v2306 = vpow.pop %v2305
        %v2307 = vmul.f32 %v2283, 1.442695
        %v2308 = vpow.pop %v2307
        %v2309 = vmul.f32 %v2284, 1.442695
        %v2310 = vpow.pop %v2309
        %v2311 = vmul.f32 %v2285, 1.442695
        %v2312 = vpow.pop %v2311
        %v2313 = vmul.f32 %v2286, 1.442695
        %v2314 = vpow.pop %v2313
        %v2315 = vmul.f32 %v2287, 1.442695
        %v2316 = vpow.pop %v2315
        %v2317 = vmul.f32 %v2288, 1.442695
        %v2318 = vpow.pop %v2317
        %v2319 = vmul.f32 %v2289, 1.442695
        %v2320 = vpow.pop %v2319
        %v2321 = vmul.f32 %v2290, 1.442695
        %v2322 = vpow.pop %v2321
        %2323 = vadd.xlane.f32.xlu0 %v2292
        %v2324 = vpop.xlane.xlu0 %2323
        %2325 = vadd.xlane.f32.xlu0 %v2294
        %v2326 = vpop.xlane.xlu0 %2325
        %2327 = vadd.xlane.f32.xlu0 %v2296
        %v2328 = vpop.xlane.xlu0 %2327
        %2329 = vadd.xlane.f32.xlu0 %v2298
        %v2330 = vpop.xlane.xlu0 %2329
        %2331 = vadd.xlane.f32.xlu0 %v2300
        %v2332 = vpop.xlane.xlu0 %2331
        %2333 = vadd.xlane.f32.xlu0 %v2302
        %v2334 = vpop.xlane.xlu0 %2333
        %2335 = vadd.xlane.f32.xlu0 %v2304
        %v2336 = vpop.xlane.xlu0 %2335
        %2337 = vadd.xlane.f32.xlu0 %v2306
        %v2338 = vpop.xlane.xlu0 %2337
        %2339 = vadd.xlane.f32.xlu0 %v2308
        %v2340 = vpop.xlane.xlu0 %2339
        %2341 = vadd.xlane.f32.xlu0 %v2310
        %v2342 = vpop.xlane.xlu0 %2341
        %2343 = vadd.xlane.f32.xlu0 %v2312
        %v2344 = vpop.xlane.xlu0 %2343
        %2345 = vadd.xlane.f32.xlu0 %v2314
        %v2346 = vpop.xlane.xlu0 %2345
        %2347 = vadd.xlane.f32.xlu0 %v2316
        %v2348 = vpop.xlane.xlu0 %2347
        %2349 = vadd.xlane.f32.xlu0 %v2318
        %v2350 = vpop.xlane.xlu0 %2349
        %2351 = vadd.xlane.f32.xlu0 %v2320
        %v2352 = vpop.xlane.xlu0 %2351
        %2353 = vadd.xlane.f32.xlu0 %v2322
        %v2354 = vpop.xlane.xlu0 %2353
        %v2355 = vrcp.pop %v2324
        %v2356 = vrcp.pop %v2326
        %v2357 = vrcp.pop %v2328
        %v2358 = vrcp.pop %v2330
        %v2359 = vrcp.pop %v2332
        %v2360 = vrcp.pop %v2334
        %v2361 = vrcp.pop %v2336
        %v2362 = vrcp.pop %v2338
        %v2363 = vrcp.pop %v2340
        %v2364 = vrcp.pop %v2342
        %v2365 = vrcp.pop %v2344
        %v2366 = vrcp.pop %v2346
        %v2367 = vrcp.pop %v2348
        %v2368 = vrcp.pop %v2350
        %v2369 = vrcp.pop %v2352
        %v2370 = vrcp.pop %v2354
        %2371 = vrot.lane.b32.xlu0 %v545, 48
        %v2372 = vpop.permute.xlu0 %2371
        %2373 = vrot.lane.b32.xlu0 %v550, 48
        %v2374 = vpop.permute.xlu0 %2373
        %2375 = vrot.lane.b32.xlu0 %v555, 48
        %v2376 = vpop.permute.xlu0 %2375
        %2377 = vrot.lane.b32.xlu0 %v560, 48
        %v2378 = vpop.permute.xlu0 %2377
        %2379 = vrot.lane.b32.xlu0 %v565, 48
        %v2380 = vpop.permute.xlu0 %2379
        %2381 = vrot.lane.b32.xlu0 %v570, 48
        %v2382 = vpop.permute.xlu0 %2381
        %2383 = vrot.lane.b32.xlu0 %v575, 48
        %v2384 = vpop.permute.xlu0 %2383
        %2385 = vrot.lane.b32.xlu0 %v580, 48
        %v2386 = vpop.permute.xlu0 %2385
        %2387 = vrot.lane.b32.xlu0 %v585, 48
        %v2388 = vpop.permute.xlu0 %2387
        %2389 = vrot.lane.b32.xlu0 %v590, 48
        %v2390 = vpop.permute.xlu0 %2389
        %2391 = vrot.lane.b32.xlu0 %v595, 48
        %v2392 = vpop.permute.xlu0 %2391
        %2393 = vrot.lane.b32.xlu0 %v600, 48
        %v2394 = vpop.permute.xlu0 %2393
        %2395 = vrot.lane.b32.xlu0 %v605, 48
        %v2396 = vpop.permute.xlu0 %2395
        %2397 = vrot.lane.b32.xlu0 %v610, 48
        %v2398 = vpop.permute.xlu0 %2397
        %2399 = vrot.lane.b32.xlu0 %v615, 48
        %v2400 = vpop.permute.xlu0 %2399
        %2401 = vrot.lane.b32.xlu0 %v620, 48
        %v2402 = vpop.permute.xlu0 %2401
        %2419 = vmatprep.subr.mxu0 0.0
        %2420 = vmatpush1.msra.mxu0 %v2372
        %2421 = vmatprep.subr.mxu0 0.0
        %2422 = vmatpush1.msra.mxu0 %v2374
        %2423 = vmatprep.subr.mxu0 0.0
        %2424 = vmatpush1.msra.mxu0 %v2376
        %2425 = vmatprep.subr.mxu0 0.0
        %2426 = vmatpush1.msra.mxu0 %v2378
        %2427 = vmatprep.subr.mxu0 0.0
        %2428 = vmatpush1.msra.mxu0 %v2380
        %2429 = vmatprep.subr.mxu0 0.0
        %2430 = vmatpush1.msra.mxu0 %v2382
        %2431 = vmatprep.subr.mxu0 0.0
        %2432 = vmatpush1.msra.mxu0 %v2384
        %2433 = vmatprep.subr.mxu0 0.0
        %2434 = vmatpush1.msra.mxu0 %v2386
        %2435 = vmatprep.subr.mxu0 0.0
        %2436 = vmatpush1.msra.mxu0 %v2388
        %2437 = vmatprep.subr.mxu0 0.0
        %2438 = vmatpush1.msra.mxu0 %v2390
        %2439 = vmatprep.subr.mxu0 0.0
        %2440 = vmatpush1.msra.mxu0 %v2392
        %2441 = vmatprep.subr.mxu0 0.0
        %2442 = vmatpush1.msra.mxu0 %v2394
        %2443 = vmatprep.subr.mxu0 0.0
        %2444 = vmatpush1.msra.mxu0 %v2396
        %2445 = vmatprep.subr.mxu0 0.0
        %2446 = vmatpush1.msra.mxu0 %v2398
        %2447 = vmatprep.subr.mxu0 0.0
        %2448 = vmatpush1.msra.mxu0 %v2400
        %2449 = vmatprep.subr.mxu0 0.0
        %2450 = vmatpush1.msra.mxu0 %v2402
        %2451 = vmatprep.subr.mxu0 0.0
        %2452 = vmatpush1.msra.mxu0 0.0
        %2453 = vmatprep.subr.mxu0 0.0
        %2454 = vmatpush1.msra.mxu0 0.0
        %2455 = vmatprep.subr.mxu0 0.0
        %2456 = vmatpush1.msra.mxu0 0.0
        %2457 = vmatprep.subr.mxu0 0.0
        %2458 = vmatpush1.msra.mxu0 0.0
        %2459 = vmatprep.subr.mxu0 0.0
        %2460 = vmatpush1.msra.mxu0 0.0
        %2461 = vmatprep.subr.mxu0 0.0
        %2462 = vmatpush1.msra.mxu0 0.0
        %2463 = vmatprep.subr.mxu0 0.0
        %2464 = vmatpush1.msra.mxu0 0.0
        %2465 = vmatprep.subr.mxu0 0.0
        %2466 = vmatpush1.msra.mxu0 0.0
        %2467 = vmatprep.subr.mxu0 0.0
        %2468 = vmatpush1.msra.mxu0 0.0
        %2469 = vmatprep.subr.mxu0 0.0
        %2470 = vmatpush1.msra.mxu0 0.0
        %2471 = vmatprep.subr.mxu0 0.0
        %2472 = vmatpush1.msra.mxu0 0.0
        %2473 = vmatprep.subr.mxu0 0.0
        %2474 = vmatpush1.msra.mxu0 0.0
        %2475 = vmatprep.subr.mxu0 0.0
        %2476 = vmatpush1.msra.mxu0 0.0
        %2477 = vmatprep.subr.mxu0 0.0
        %2478 = vmatpush1.msra.mxu0 0.0
        %2479 = vmatprep.subr.mxu0 0.0
        %2480 = vmatpush1.msra.mxu0 0.0
        %2481 = vmatprep.subr.mxu0 0.0
        %2482 = vmatpush1.msra.mxu0 0.0
        %2483 = vmatprep.mubr.f32.mxu0 0.0
        %2484 = vmatmul.mubr.f32.gmra.mrb[0].mxu0 %v2292
        %v2485 = vpop.f32.mrb[0].mxu0
        %v2486 = vadd.f32 0.0, %v2485
        %v2487 = vpop.f32.mrb[0].mxu0
        %2488 = vmatprep.mubr.f32.mxu0 0.0
        %2489 = vmatmul.mubr.f32.gmra.mrb[0].mxu0 %v2294
        %v2490 = vpop.f32.mrb[0].mxu0
        %v2491 = vadd.f32 0.0, %v2490
        %v2492 = vpop.f32.mrb[0].mxu0
        %2493 = vmatprep.mubr.f32.mxu0 0.0
        %2494 = vmatmul.mubr.f32.gmra.mrb[0].mxu0 %v2296
        %v2495 = vpop.f32.mrb[0].mxu0
        %v2496 = vadd.f32 0.0, %v2495
        %v2497 = vpop.f32.mrb[0].mxu0
        %2498 = vmatprep.mubr.f32.mxu0 0.0
        %2499 = vmatmul.mubr.f32.gmra.mrb[0].mxu0 %v2298
        %v2500 = vpop.f32.mrb[0].mxu0
        %v2501 = vadd.f32 0.0, %v2500
        %v2502 = vpop.f32.mrb[0].mxu0
        %2503 = vmatprep.mubr.f32.mxu0 0.0
        %2504 = vmatmul.mubr.f32.gmra.mrb[0].mxu0 %v2300
        %v2505 = vpop.f32.mrb[0].mxu0
        %v2506 = vadd.f32 0.0, %v2505
        %v2507 = vpop.f32.mrb[0].mxu0
        %2508 = vmatprep.mubr.f32.mxu0 0.0
        %2509 = vmatmul.mubr.f32.gmra.mrb[0].mxu0 %v2302
        %v2510 = vpop.f32.mrb[0].mxu0
        %v2511 = vadd.f32 0.0, %v2510
        %v2512 = vpop.f32.mrb[0].mxu0
        %2513 = vmatprep.mubr.f32.mxu0 0.0
        %2514 = vmatmul.mubr.f32.gmra.mrb[0].mxu0 %v2304
        %v2515 = vpop.f32.mrb[0].mxu0
        %v2516 = vadd.f32 0.0, %v2515
        %v2517 = vpop.f32.mrb[0].mxu0
        %2518 = vmatprep.mubr.f32.mxu0 0.0
        %2519 = vmatmul.mubr.f32.gmra.mrb[0].mxu0 %v2306
        %v2520 = vpop.f32.mrb[0].mxu0
        %v2521 = vadd.f32 0.0, %v2520
        %v2522 = vpop.f32.mrb[0].mxu0
        %2523 = vmatprep.mubr.f32.mxu0 0.0
        %2524 = vmatmul.mubr.f32.gmra.mrb[0].mxu0 %v2308
        %v2525 = vpop.f32.mrb[0].mxu0
        %v2526 = vadd.f32 0.0, %v2525
        %v2527 = vpop.f32.mrb[0].mxu0
        %2528 = vmatprep.mubr.f32.mxu0 0.0
        %2529 = vmatmul.mubr.f32.gmra.mrb[0].mxu0 %v2310
        %v2530 = vpop.f32.mrb[0].mxu0
        %v2531 = vadd.f32 0.0, %v2530
        %v2532 = vpop.f32.mrb[0].mxu0
        %2533 = vmatprep.mubr.f32.mxu0 0.0
        %2534 = vmatmul.mubr.f32.gmra.mrb[0].mxu0 %v2312
        %v2535 = vpop.f32.mrb[0].mxu0
        %v2536 = vadd.f32 0.0, %v2535
        %v2537 = vpop.f32.mrb[0].mxu0
        %2538 = vmatprep.mubr.f32.mxu0 0.0
        %2539 = vmatmul.mubr.f32.gmra.mrb[0].mxu0 %v2314
        %v2540 = vpop.f32.mrb[0].mxu0
        %v2541 = vadd.f32 0.0, %v2540
        %v2542 = vpop.f32.mrb[0].mxu0
        %2543 = vmatprep.mubr.f32.mxu0 0.0
        %2544 = vmatmul.mubr.f32.gmra.mrb[0].mxu0 %v2316
        %v2545 = vpop.f32.mrb[0].mxu0
        %v2546 = vadd.f32 0.0, %v2545
        %v2547 = vpop.f32.mrb[0].mxu0
        %2548 = vmatprep.mubr.f32.mxu0 0.0
        %2549 = vmatmul.mubr.f32.gmra.mrb[0].mxu0 %v2318
        %v2550 = vpop.f32.mrb[0].mxu0
        %v2551 = vadd.f32 0.0, %v2550
        %v2552 = vpop.f32.mrb[0].mxu0
        %2553 = vmatprep.mubr.f32.mxu0 0.0
        %2554 = vmatmul.mubr.f32.gmra.mrb[0].mxu0 %v2320
        %v2555 = vpop.f32.mrb[0].mxu0
        %v2556 = vadd.f32 0.0, %v2555
        %v2557 = vpop.f32.mrb[0].mxu0
        %2558 = vmatprep.mubr.f32.mxu0 0.0
        %2559 = vmatmul.mubr.f32.gmra.mrb[0].mxu0 %v2322
        %v2560 = vpop.f32.mrb[0].mxu0
        %v2561 = vadd.f32 0.0, %v2560
        %v2562 = vpop.f32.mrb[0].mxu0
        %2563 = vdwg.mxu0
        %v2564 = vmul.f32 %v2486, %v2355
        %v2565 = vmul.f32 %v2491, %v2356
        %v2566 = vmul.f32 %v2496, %v2357
        %v2567 = vmul.f32 %v2501, %v2358
        %v2568 = vmul.f32 %v2506, %v2359
        %v2569 = vmul.f32 %v2511, %v2360
        %v2570 = vmul.f32 %v2516, %v2361
        %v2571 = vmul.f32 %v2521, %v2362
        %v2572 = vmul.f32 %v2526, %v2363
        %v2573 = vmul.f32 %v2531, %v2364
        %v2574 = vmul.f32 %v2536, %v2365
        %v2575 = vmul.f32 %v2541, %v2366
        %v2576 = vmul.f32 %v2546, %v2367
        %v2577 = vmul.f32 %v2551, %v2368
        %v2578 = vmul.f32 %v2556, %v2369
        %v2579 = vmul.f32 %v2561, %v2370
        %2596 = vrot.lane.b32.xlu0 %v2564, 16
        %v2597 = vpop.permute.xlu0 %2596
        %2598 = vrot.lane.b32.xlu0 %v2565, 16
        %v2599 = vpop.permute.xlu0 %2598
        %2600 = vrot.lane.b32.xlu0 %v2566, 16
        %v2601 = vpop.permute.xlu0 %2600
        %2602 = vrot.lane.b32.xlu0 %v2567, 16
        %v2603 = vpop.permute.xlu0 %2602
        %2604 = vrot.lane.b32.xlu0 %v2568, 16
        %v2605 = vpop.permute.xlu0 %2604
        %2606 = vrot.lane.b32.xlu0 %v2569, 16
        %v2607 = vpop.permute.xlu0 %2606
        %2608 = vrot.lane.b32.xlu0 %v2570, 16
        %v2609 = vpop.permute.xlu0 %2608
        %2610 = vrot.lane.b32.xlu0 %v2571, 16
        %v2611 = vpop.permute.xlu0 %2610
        %2612 = vrot.lane.b32.xlu0 %v2572, 16
        %v2613 = vpop.permute.xlu0 %2612
        %2614 = vrot.lane.b32.xlu0 %v2573, 16
        %v2615 = vpop.permute.xlu0 %2614
        %2616 = vrot.lane.b32.xlu0 %v2574, 16
        %v2617 = vpop.permute.xlu0 %2616
        %2618 = vrot.lane.b32.xlu0 %v2575, 16
        %v2619 = vpop.permute.xlu0 %2618
        %2620 = vrot.lane.b32.xlu0 %v2576, 16
        %v2621 = vpop.permute.xlu0 %2620
        %2622 = vrot.lane.b32.xlu0 %v2577, 16
        %v2623 = vpop.permute.xlu0 %2622
        %2624 = vrot.lane.b32.xlu0 %v2578, 16
        %v2625 = vpop.permute.xlu0 %2624
        %2626 = vrot.lane.b32.xlu0 %v2579, 16
        %v2627 = vpop.permute.xlu0 %2626
        %vm2644 = vcmask 195712
        %2645 = vst.msk [vmem:[#allocation3] sm:$0xff] %vm2644, %v2597
        %2646 = vst.msk [vmem:[#allocation3 + $0x8] sm:$0xff] %vm2644, %v2599
        %2647 = vst.msk [vmem:[#allocation3 + $0x10] sm:$0xff] %vm2644, %v2601
        %2648 = vst.msk [vmem:[#allocation3 + $0x18] sm:$0xff] %vm2644, %v2603
        %2649 = vst.msk [vmem:[#allocation3 + $0x20] sm:$0xff] %vm2644, %v2605
        %2650 = vst.msk [vmem:[#allocation3 + $0x28] sm:$0xff] %vm2644, %v2607
        %2651 = vst.msk [vmem:[#allocation3 + $0x30] sm:$0xff] %vm2644, %v2609
        %2652 = vst.msk [vmem:[#allocation3 + $0x38] sm:$0xff] %vm2644, %v2611
        %2653 = vst.msk [vmem:[#allocation3 + $0x40] sm:$0xff] %vm2644, %v2613
        %2654 = vst.msk [vmem:[#allocation3 + $0x48] sm:$0xff] %vm2644, %v2615
        %2655 = vst.msk [vmem:[#allocation3 + $0x50] sm:$0xff] %vm2644, %v2617
        %2656 = vst.msk [vmem:[#allocation3 + $0x58] sm:$0xff] %vm2644, %v2619
        %2657 = vst.msk [vmem:[#allocation3 + $0x60] sm:$0xff] %vm2644, %v2621
        %2658 = vst.msk [vmem:[#allocation3 + $0x68] sm:$0xff] %vm2644, %v2623
        %2659 = vst.msk [vmem:[#allocation3 + $0x70] sm:$0xff] %vm2644, %v2625
        %2660 = vst.msk [vmem:[#allocation3 + $0x78] sm:$0xff] %vm2644, %v2627
        %2661 = vrot.lane.b32.xlu0 %v630, 104
        %v2662 = vpop.permute.xlu0 %2661
        %2663 = vrot.lane.b32.xlu0 %v631, 104
        %v2664 = vpop.permute.xlu0 %2663
        %2665 = vrot.lane.b32.xlu0 %v632, 104
        %v2666 = vpop.permute.xlu0 %2665
        %2667 = vrot.lane.b32.xlu0 %v633, 104
        %v2668 = vpop.permute.xlu0 %2667
        %2669 = vrot.lane.b32.xlu0 %v634, 104
        %v2670 = vpop.permute.xlu0 %2669
        %2671 = vrot.lane.b32.xlu0 %v635, 104
        %v2672 = vpop.permute.xlu0 %2671
        %2673 = vrot.lane.b32.xlu0 %v636, 104
        %v2674 = vpop.permute.xlu0 %2673
        %2675 = vrot.lane.b32.xlu0 %v637, 104
        %v2676 = vpop.permute.xlu0 %2675
        %2677 = vrot.lane.b32.xlu0 %v638, 104
        %v2678 = vpop.permute.xlu0 %2677
        %2679 = vrot.lane.b32.xlu0 %v639, 104
        %v2680 = vpop.permute.xlu0 %2679
        %2681 = vrot.lane.b32.xlu0 %v640, 104
        %v2682 = vpop.permute.xlu0 %2681
        %2683 = vrot.lane.b32.xlu0 %v641, 104
        %v2684 = vpop.permute.xlu0 %2683
        %2685 = vrot.lane.b32.xlu0 %v642, 104
        %v2686 = vpop.permute.xlu0 %2685
        %2687 = vrot.lane.b32.xlu0 %v643, 104
        %v2688 = vpop.permute.xlu0 %2687
        %2689 = vrot.lane.b32.xlu0 %v644, 104
        %v2690 = vpop.permute.xlu0 %2689
        %2691 = vrot.lane.b32.xlu0 %v645, 104
        %v2692 = vpop.permute.xlu0 %2691
        %2693 = vrot.lane.b32.xlu0 %v545, 72
        %v2694 = vpop.permute.xlu0 %2693
        %2695 = vrot.lane.b32.xlu0 %v550, 72
        %v2696 = vpop.permute.xlu0 %2695
        %2697 = vrot.lane.b32.xlu0 %v555, 72
        %v2698 = vpop.permute.xlu0 %2697
        %2699 = vrot.lane.b32.xlu0 %v560, 72
        %v2700 = vpop.permute.xlu0 %2699
        %2701 = vrot.lane.b32.xlu0 %v565, 72
        %v2702 = vpop.permute.xlu0 %2701
        %2703 = vrot.lane.b32.xlu0 %v570, 72
        %v2704 = vpop.permute.xlu0 %2703
        %2705 = vrot.lane.b32.xlu0 %v575, 72
        %v2706 = vpop.permute.xlu0 %2705
        %2707 = vrot.lane.b32.xlu0 %v580, 72
        %v2708 = vpop.permute.xlu0 %2707
        %2709 = vrot.lane.b32.xlu0 %v585, 72
        %v2710 = vpop.permute.xlu0 %2709
        %2711 = vrot.lane.b32.xlu0 %v590, 72
        %v2712 = vpop.permute.xlu0 %2711
        %2713 = vrot.lane.b32.xlu0 %v595, 72
        %v2714 = vpop.permute.xlu0 %2713
        %2715 = vrot.lane.b32.xlu0 %v600, 72
        %v2716 = vpop.permute.xlu0 %2715
        %2717 = vrot.lane.b32.xlu0 %v605, 72
        %v2718 = vpop.permute.xlu0 %2717
        %2719 = vrot.lane.b32.xlu0 %v610, 72
        %v2720 = vpop.permute.xlu0 %2719
        %2721 = vrot.lane.b32.xlu0 %v615, 72
        %v2722 = vpop.permute.xlu0 %2721
        %2723 = vrot.lane.b32.xlu0 %v620, 72
        %v2724 = vpop.permute.xlu0 %2723
        %v2725 = vsel %vm700, %v2662, 0
        %v2727 = vsel %vm700, %v2664, 0
        %v2729 = vsel %vm700, %v2666, 0
        %v2731 = vsel %vm700, %v2668, 0
        %v2733 = vsel %vm700, %v2670, 0
        %v2735 = vsel %vm700, %v2672, 0
        %v2737 = vsel %vm700, %v2674, 0
        %v2739 = vsel %vm700, %v2676, 0
        %v2741 = vsel %vm700, %v2678, 0
        %v2743 = vsel %vm700, %v2680, 0
        %v2745 = vsel %vm700, %v2682, 0
        %v2747 = vsel %vm700, %v2684, 0
        %v2749 = vsel %vm700, %v2686, 0
        %v2751 = vsel %vm700, %v2688, 0
        %v2753 = vsel %vm700, %v2690, 0
        %v2755 = vsel %vm700, %v2692, 0
        %v2757 = vsel %vm700, %v2694, 0
        %v2759 = vsel %vm700, %v2696, 0
        %v2761 = vsel %vm700, %v2698, 0
        %v2763 = vsel %vm700, %v2700, 0
        %v2765 = vsel %vm700, %v2702, 0
        %v2767 = vsel %vm700, %v2704, 0
        %v2769 = vsel %vm700, %v2706, 0
        %v2771 = vsel %vm700, %v2708, 0
        %v2773 = vsel %vm700, %v2710, 0
        %v2775 = vsel %vm700, %v2712, 0
        %v2777 = vsel %vm700, %v2714, 0
        %v2779 = vsel %vm700, %v2716, 0
        %v2781 = vsel %vm700, %v2718, 0
        %v2783 = vsel %vm700, %v2720, 0
        %v2785 = vsel %vm700, %v2722, 0
        %v2787 = vsel %vm700, %v2724, 0
        %2789 = vmatprep.subr.mxu0 0.0
        %2790 = vmatpush1.xpose.msra.mxu0 %v2757
        %2791 = vmatprep.subr.mxu0 0.0
        %2792 = vmatpush1.xpose.msra.mxu0 %v2759
        %2793 = vmatprep.subr.mxu0 0.0
        %2794 = vmatpush1.xpose.msra.mxu0 %v2761
        %2795 = vmatprep.subr.mxu0 0.0
        %2796 = vmatpush1.xpose.msra.mxu0 %v2763
        %2797 = vmatprep.subr.mxu0 0.0
        %2798 = vmatpush1.xpose.msra.mxu0 %v2765
        %2799 = vmatprep.subr.mxu0 0.0
        %2800 = vmatpush1.xpose.msra.mxu0 %v2767
        %2801 = vmatprep.subr.mxu0 0.0
        %2802 = vmatpush1.xpose.msra.mxu0 %v2769
        %2803 = vmatprep.subr.mxu0 0.0
        %2804 = vmatpush1.xpose.msra.mxu0 %v2771
        %2805 = vmatprep.subr.mxu0 0.0
        %2806 = vmatpush1.xpose.msra.mxu0 %v2773
        %2807 = vmatprep.subr.mxu0 0.0
        %2808 = vmatpush1.xpose.msra.mxu0 %v2775
        %2809 = vmatprep.subr.mxu0 0.0
        %2810 = vmatpush1.xpose.msra.mxu0 %v2777
        %2811 = vmatprep.subr.mxu0 0.0
        %2812 = vmatpush1.xpose.msra.mxu0 %v2779
        %2813 = vmatprep.subr.mxu0 0.0
        %2814 = vmatpush1.xpose.msra.mxu0 %v2781
        %2815 = vmatprep.subr.mxu0 0.0
        %2816 = vmatpush1.xpose.msra.mxu0 %v2783
        %2817 = vmatprep.subr.mxu0 0.0
        %2818 = vmatpush1.xpose.msra.mxu0 %v2785
        %2819 = vmatprep.subr.mxu0 0.0
        %2820 = vmatpush1.xpose.msra.mxu0 %v2787
        %2821 = vmatprep.subr.mxu0 0.0
        %2822 = vmatpush1.xpose.msra.mxu0 0.0
        %2823 = vmatprep.subr.mxu0 0.0
        %2824 = vmatpush1.xpose.msra.mxu0 0.0
        %2825 = vmatprep.subr.mxu0 0.0
        %2826 = vmatpush1.xpose.msra.mxu0 0.0
        %2827 = vmatprep.subr.mxu0 0.0
        %2828 = vmatpush1.xpose.msra.mxu0 0.0
        %2829 = vmatprep.subr.mxu0 0.0
        %2830 = vmatpush1.xpose.msra.mxu0 0.0
        %2831 = vmatprep.subr.mxu0 0.0
        %2832 = vmatpush1.xpose.msra.mxu0 0.0
        %2833 = vmatprep.subr.mxu0 0.0
        %2834 = vmatpush1.xpose.msra.mxu0 0.0
        %2835 = vmatprep.subr.mxu0 0.0
        %2836 = vmatpush1.xpose.msra.mxu0 0.0
        %2837 = vmatprep.subr.mxu0 0.0
        %2838 = vmatpush1.xpose.msra.mxu0 0.0
        %2839 = vmatprep.subr.mxu0 0.0
        %2840 = vmatpush1.xpose.msra.mxu0 0.0
        %2841 = vmatprep.subr.mxu0 0.0
        %2842 = vmatpush1.xpose.msra.mxu0 0.0
        %2843 = vmatprep.subr.mxu0 0.0
        %2844 = vmatpush1.xpose.msra.mxu0 0.0
        %2845 = vmatprep.subr.mxu0 0.0
        %2846 = vmatpush1.xpose.msra.mxu0 0.0
        %2847 = vmatprep.subr.mxu0 0.0
        %2848 = vmatpush1.xpose.msra.mxu0 0.0
        %2849 = vmatprep.subr.mxu0 0.0
        %2850 = vmatpush1.xpose.msra.mxu0 0.0
        %2851 = vmatprep.subr.mxu0 0.0
        %2852 = vmatpush1.xpose.msra.mxu0 0.0
        %2853 = vmatprep.mubr.f32.mxu0 0.0
        %2854 = vmatmul.mubr.f32.gmra.mrb[0].mxu0 %v2725
        %v2855 = vpop.f32.mrb[0].mxu0
        %v2856 = vadd.f32 %v650, %v2855
        %v2857 = vpop.f32.mrb[0].mxu0
        %2858 = vmatprep.mubr.f32.mxu0 0.0
        %2859 = vmatmul.mubr.f32.gmra.mrb[0].mxu0 %v2727
        %v2860 = vpop.f32.mrb[0].mxu0
        %v2861 = vadd.f32 %v650, %v2860
        %v2862 = vpop.f32.mrb[0].mxu0
        %2863 = vmatprep.mubr.f32.mxu0 0.0
        %2864 = vmatmul.mubr.f32.gmra.mrb[0].mxu0 %v2729
        %v2865 = vpop.f32.mrb[0].mxu0
        %v2866 = vadd.f32 %v650, %v2865
        %v2867 = vpop.f32.mrb[0].mxu0
        %2868 = vmatprep.mubr.f32.mxu0 0.0
        %2869 = vmatmul.mubr.f32.gmra.mrb[0].mxu0 %v2731
        %v2870 = vpop.f32.mrb[0].mxu0
        %v2871 = vadd.f32 %v650, %v2870
        %v2872 = vpop.f32.mrb[0].mxu0
        %2873 = vmatprep.mubr.f32.mxu0 0.0
        %2874 = vmatmul.mubr.f32.gmra.mrb[0].mxu0 %v2733
        %v2875 = vpop.f32.mrb[0].mxu0
        %v2876 = vadd.f32 %v650, %v2875
        %v2877 = vpop.f32.mrb[0].mxu0
        %2878 = vmatprep.mubr.f32.mxu0 0.0
        %2879 = vmatmul.mubr.f32.gmra.mrb[0].mxu0 %v2735
        %v2880 = vpop.f32.mrb[0].mxu0
        %v2881 = vadd.f32 %v650, %v2880
        %v2882 = vpop.f32.mrb[0].mxu0
        %2883 = vmatprep.mubr.f32.mxu0 0.0
        %2884 = vmatmul.mubr.f32.gmra.mrb[0].mxu0 %v2737
        %v2885 = vpop.f32.mrb[0].mxu0
        %v2886 = vadd.f32 %v650, %v2885
        %v2887 = vpop.f32.mrb[0].mxu0
        %2888 = vmatprep.mubr.f32.mxu0 0.0
        %2889 = vmatmul.mubr.f32.gmra.mrb[0].mxu0 %v2739
        %v2890 = vpop.f32.mrb[0].mxu0
        %v2891 = vadd.f32 %v650, %v2890
        %v2892 = vpop.f32.mrb[0].mxu0
        %2893 = vmatprep.mubr.f32.mxu0 0.0
        %2894 = vmatmul.mubr.f32.gmra.mrb[0].mxu0 %v2741
        %v2895 = vpop.f32.mrb[0].mxu0
        %v2896 = vadd.f32 %v650, %v2895
        %v2897 = vpop.f32.mrb[0].mxu0
        %2898 = vmatprep.mubr.f32.mxu0 0.0
        %2899 = vmatmul.mubr.f32.gmra.mrb[0].mxu0 %v2743
        %v2900 = vpop.f32.mrb[0].mxu0
        %v2901 = vadd.f32 %v650, %v2900
        %v2902 = vpop.f32.mrb[0].mxu0
        %2903 = vmatprep.mubr.f32.mxu0 0.0
        %2904 = vmatmul.mubr.f32.gmra.mrb[0].mxu0 %v2745
        %v2905 = vpop.f32.mrb[0].mxu0
        %v2906 = vadd.f32 %v650, %v2905
        %v2907 = vpop.f32.mrb[0].mxu0
        %2908 = vmatprep.mubr.f32.mxu0 0.0
        %2909 = vmatmul.mubr.f32.gmra.mrb[0].mxu0 %v2747
        %v2910 = vpop.f32.mrb[0].mxu0
        %v2911 = vadd.f32 %v650, %v2910
        %v2912 = vpop.f32.mrb[0].mxu0
        %2913 = vmatprep.mubr.f32.mxu0 0.0
        %2914 = vmatmul.mubr.f32.gmra.mrb[0].mxu0 %v2749
        %v2915 = vpop.f32.mrb[0].mxu0
        %v2916 = vadd.f32 %v650, %v2915
        %v2917 = vpop.f32.mrb[0].mxu0
        %2918 = vmatprep.mubr.f32.mxu0 0.0
        %2919 = vmatmul.mubr.f32.gmra.mrb[0].mxu0 %v2751
        %v2920 = vpop.f32.mrb[0].mxu0
        %v2921 = vadd.f32 %v650, %v2920
        %v2922 = vpop.f32.mrb[0].mxu0
        %2923 = vmatprep.mubr.f32.mxu0 0.0
        %2924 = vmatmul.mubr.f32.gmra.mrb[0].mxu0 %v2753
        %v2925 = vpop.f32.mrb[0].mxu0
        %v2926 = vadd.f32 %v650, %v2925
        %v2927 = vpop.f32.mrb[0].mxu0
        %2928 = vmatprep.mubr.f32.mxu0 0.0
        %2929 = vmatmul.mubr.f32.gmra.mrb[0].mxu0 %v2755
        %v2930 = vpop.f32.mrb[0].mxu0
        %v2931 = vadd.f32 %v650, %v2930
        %v2932 = vpop.f32.mrb[0].mxu0
        %2933 = vdwg.mxu0
        %2934 = vmax.xlane.f32.xlu0 %v2856
        %v2935 = vpop.xlane.xlu0 %2934
        %2936 = vmax.xlane.f32.xlu0 %v2861
        %v2937 = vpop.xlane.xlu0 %2936
        %2938 = vmax.xlane.f32.xlu0 %v2866
        %v2939 = vpop.xlane.xlu0 %2938
        %2940 = vmax.xlane.f32.xlu0 %v2871
        %v2941 = vpop.xlane.xlu0 %2940
        %2942 = vmax.xlane.f32.xlu0 %v2876
        %v2943 = vpop.xlane.xlu0 %2942
        %2944 = vmax.xlane.f32.xlu0 %v2881
        %v2945 = vpop.xlane.xlu0 %2944
        %2946 = vmax.xlane.f32.xlu0 %v2886
        %v2947 = vpop.xlane.xlu0 %2946
        %2948 = vmax.xlane.f32.xlu0 %v2891
        %v2949 = vpop.xlane.xlu0 %2948
        %2950 = vmax.xlane.f32.xlu0 %v2896
        %v2951 = vpop.xlane.xlu0 %2950
        %2952 = vmax.xlane.f32.xlu0 %v2901
        %v2953 = vpop.xlane.xlu0 %2952
        %2954 = vmax.xlane.f32.xlu0 %v2906
        %v2955 = vpop.xlane.xlu0 %2954
        %2956 = vmax.xlane.f32.xlu0 %v2911
        %v2957 = vpop.xlane.xlu0 %2956
        %2958 = vmax.xlane.f32.xlu0 %v2916
        %v2959 = vpop.xlane.xlu0 %2958
        %2960 = vmax.xlane.f32.xlu0 %v2921
        %v2961 = vpop.xlane.xlu0 %2960
        %2962 = vmax.xlane.f32.xlu0 %v2926
        %v2963 = vpop.xlane.xlu0 %2962
        %2964 = vmax.xlane.f32.xlu0 %v2931
        %v2965 = vpop.xlane.xlu0 %2964
        %v2966 = vsub.f32 %v2856, %v2935
        %v2967 = vsub.f32 %v2861, %v2937
        %v2968 = vsub.f32 %v2866, %v2939
        %v2969 = vsub.f32 %v2871, %v2941
        %v2970 = vsub.f32 %v2876, %v2943
        %v2971 = vsub.f32 %v2881, %v2945
        %v2972 = vsub.f32 %v2886, %v2947
        %v2973 = vsub.f32 %v2891, %v2949
        %v2974 = vsub.f32 %v2896, %v2951
        %v2975 = vsub.f32 %v2901, %v2953
        %v2976 = vsub.f32 %v2906, %v2955
        %v2977 = vsub.f32 %v2911, %v2957
        %v2978 = vsub.f32 %v2916, %v2959
        %v2979 = vsub.f32 %v2921, %v2961
        %v2980 = vsub.f32 %v2926, %v2963
        %v2981 = vsub.f32 %v2931, %v2965
        %v2982 = vmul.f32 %v2966, 1.442695
        %v2983 = vpow.pop %v2982
        %v2984 = vmul.f32 %v2967, 1.442695
        %v2985 = vpow.pop %v2984
        %v2986 = vmul.f32 %v2968, 1.442695
        %v2987 = vpow.pop %v2986
        %v2988 = vmul.f32 %v2969, 1.442695
        %v2989 = vpow.pop %v2988
        %v2990 = vmul.f32 %v2970, 1.442695
        %v2991 = vpow.pop %v2990
        %v2992 = vmul.f32 %v2971, 1.442695
        %v2993 = vpow.pop %v2992
        %v2994 = vmul.f32 %v2972, 1.442695
        %v2995 = vpow.pop %v2994
        %v2996 = vmul.f32 %v2973, 1.442695
        %v2997 = vpow.pop %v2996
        %v2998 = vmul.f32 %v2974, 1.442695
        %v2999 = vpow.pop %v2998
        %v3000 = vmul.f32 %v2975, 1.442695
        %v3001 = vpow.pop %v3000
        %v3002 = vmul.f32 %v2976, 1.442695
        %v3003 = vpow.pop %v3002
        %v3004 = vmul.f32 %v2977, 1.442695
        %v3005 = vpow.pop %v3004
        %v3006 = vmul.f32 %v2978, 1.442695
        %v3007 = vpow.pop %v3006
        %v3008 = vmul.f32 %v2979, 1.442695
        %v3009 = vpow.pop %v3008
        %v3010 = vmul.f32 %v2980, 1.442695
        %v3011 = vpow.pop %v3010
        %v3012 = vmul.f32 %v2981, 1.442695
        %v3013 = vpow.pop %v3012
        %3014 = vadd.xlane.f32.xlu0 %v2983
        %v3015 = vpop.xlane.xlu0 %3014
        %3016 = vadd.xlane.f32.xlu0 %v2985
        %v3017 = vpop.xlane.xlu0 %3016
        %3018 = vadd.xlane.f32.xlu0 %v2987
        %v3019 = vpop.xlane.xlu0 %3018
        %3020 = vadd.xlane.f32.xlu0 %v2989
        %v3021 = vpop.xlane.xlu0 %3020
        %3022 = vadd.xlane.f32.xlu0 %v2991
        %v3023 = vpop.xlane.xlu0 %3022
        %3024 = vadd.xlane.f32.xlu0 %v2993
        %v3025 = vpop.xlane.xlu0 %3024
        %3026 = vadd.xlane.f32.xlu0 %v2995
        %v3027 = vpop.xlane.xlu0 %3026
        %3028 = vadd.xlane.f32.xlu0 %v2997
        %v3029 = vpop.xlane.xlu0 %3028
        %3030 = vadd.xlane.f32.xlu0 %v2999
        %v3031 = vpop.xlane.xlu0 %3030
        %3032 = vadd.xlane.f32.xlu0 %v3001
        %v3033 = vpop.xlane.xlu0 %3032
        %3034 = vadd.xlane.f32.xlu0 %v3003
        %v3035 = vpop.xlane.xlu0 %3034
        %3036 = vadd.xlane.f32.xlu0 %v3005
        %v3037 = vpop.xlane.xlu0 %3036
        %3038 = vadd.xlane.f32.xlu0 %v3007
        %v3039 = vpop.xlane.xlu0 %3038
        %3040 = vadd.xlane.f32.xlu0 %v3009
        %v3041 = vpop.xlane.xlu0 %3040
        %3042 = vadd.xlane.f32.xlu0 %v3011
        %v3043 = vpop.xlane.xlu0 %3042
        %3044 = vadd.xlane.f32.xlu0 %v3013
        %v3045 = vpop.xlane.xlu0 %3044
        %v3046 = vrcp.pop %v3015
        %v3047 = vrcp.pop %v3017
        %v3048 = vrcp.pop %v3019
        %v3049 = vrcp.pop %v3021
        %v3050 = vrcp.pop %v3023
        %v3051 = vrcp.pop %v3025
        %v3052 = vrcp.pop %v3027
        %v3053 = vrcp.pop %v3029
        %v3054 = vrcp.pop %v3031
        %v3055 = vrcp.pop %v3033
        %v3056 = vrcp.pop %v3035
        %v3057 = vrcp.pop %v3037
        %v3058 = vrcp.pop %v3039
        %v3059 = vrcp.pop %v3041
        %v3060 = vrcp.pop %v3043
        %v3061 = vrcp.pop %v3045
        %3062 = vrot.lane.b32.xlu0 %v545, 40
        %v3063 = vpop.permute.xlu0 %3062
        %3064 = vrot.lane.b32.xlu0 %v550, 40
        %v3065 = vpop.permute.xlu0 %3064
        %3066 = vrot.lane.b32.xlu0 %v555, 40
        %v3067 = vpop.permute.xlu0 %3066
        %3068 = vrot.lane.b32.xlu0 %v560, 40
        %v3069 = vpop.permute.xlu0 %3068
        %3070 = vrot.lane.b32.xlu0 %v565, 40
        %v3071 = vpop.permute.xlu0 %3070
        %3072 = vrot.lane.b32.xlu0 %v570, 40
        %v3073 = vpop.permute.xlu0 %3072
        %3074 = vrot.lane.b32.xlu0 %v575, 40
        %v3075 = vpop.permute.xlu0 %3074
        %3076 = vrot.lane.b32.xlu0 %v580, 40
        %v3077 = vpop.permute.xlu0 %3076
        %3078 = vrot.lane.b32.xlu0 %v585, 40
        %v3079 = vpop.permute.xlu0 %3078
        %3080 = vrot.lane.b32.xlu0 %v590, 40
        %v3081 = vpop.permute.xlu0 %3080
        %3082 = vrot.lane.b32.xlu0 %v595, 40
        %v3083 = vpop.permute.xlu0 %3082
        %3084 = vrot.lane.b32.xlu0 %v600, 40
        %v3085 = vpop.permute.xlu0 %3084
        %3086 = vrot.lane.b32.xlu0 %v605, 40
        %v3087 = vpop.permute.xlu0 %3086
        %3088 = vrot.lane.b32.xlu0 %v610, 40
        %v3089 = vpop.permute.xlu0 %3088
        %3090 = vrot.lane.b32.xlu0 %v615, 40
        %v3091 = vpop.permute.xlu0 %3090
        %3092 = vrot.lane.b32.xlu0 %v620, 40
        %v3093 = vpop.permute.xlu0 %3092
        %3110 = vmatprep.subr.mxu0 0.0
        %3111 = vmatpush1.msra.mxu0 %v3063
        %3112 = vmatprep.subr.mxu0 0.0
        %3113 = vmatpush1.msra.mxu0 %v3065
        %3114 = vmatprep.subr.mxu0 0.0
        %3115 = vmatpush1.msra.mxu0 %v3067
        %3116 = vmatprep.subr.mxu0 0.0
        %3117 = vmatpush1.msra.mxu0 %v3069
        %3118 = vmatprep.subr.mxu0 0.0
        %3119 = vmatpush1.msra.mxu0 %v3071
        %3120 = vmatprep.subr.mxu0 0.0
        %3121 = vmatpush1.msra.mxu0 %v3073
        %3122 = vmatprep.subr.mxu0 0.0
        %3123 = vmatpush1.msra.mxu0 %v3075
        %3124 = vmatprep.subr.mxu0 0.0
        %3125 = vmatpush1.msra.mxu0 %v3077
        %3126 = vmatprep.subr.mxu0 0.0
        %3127 = vmatpush1.msra.mxu0 %v3079
        %3128 = vmatprep.subr.mxu0 0.0
        %3129 = vmatpush1.msra.mxu0 %v3081
        %3130 = vmatprep.subr.mxu0 0.0
        %3131 = vmatpush1.msra.mxu0 %v3083
        %3132 = vmatprep.subr.mxu0 0.0
        %3133 = vmatpush1.msra.mxu0 %v3085
        %3134 = vmatprep.subr.mxu0 0.0
        %3135 = vmatpush1.msra.mxu0 %v3087
        %3136 = vmatprep.subr.mxu0 0.0
        %3137 = vmatpush1.msra.mxu0 %v3089
        %3138 = vmatprep.subr.mxu0 0.0
        %3139 = vmatpush1.msra.mxu0 %v3091
        %3140 = vmatprep.subr.mxu0 0.0
        %3141 = vmatpush1.msra.mxu0 %v3093
        %3142 = vmatprep.subr.mxu0 0.0
        %3143 = vmatpush1.msra.mxu0 0.0
        %3144 = vmatprep.subr.mxu0 0.0
        %3145 = vmatpush1.msra.mxu0 0.0
        %3146 = vmatprep.subr.mxu0 0.0
        %3147 = vmatpush1.msra.mxu0 0.0
        %3148 = vmatprep.subr.mxu0 0.0
        %3149 = vmatpush1.msra.mxu0 0.0
        %3150 = vmatprep.subr.mxu0 0.0
        %3151 = vmatpush1.msra.mxu0 0.0
        %3152 = vmatprep.subr.mxu0 0.0
        %3153 = vmatpush1.msra.mxu0 0.0
        %3154 = vmatprep.subr.mxu0 0.0
        %3155 = vmatpush1.msra.mxu0 0.0
        %3156 = vmatprep.subr.mxu0 0.0
        %3157 = vmatpush1.msra.mxu0 0.0
        %3158 = vmatprep.subr.mxu0 0.0
        %3159 = vmatpush1.msra.mxu0 0.0
        %3160 = vmatprep.subr.mxu0 0.0
        %3161 = vmatpush1.msra.mxu0 0.0
        %3162 = vmatprep.subr.mxu0 0.0
        %3163 = vmatpush1.msra.mxu0 0.0
        %3164 = vmatprep.subr.mxu0 0.0
        %3165 = vmatpush1.msra.mxu0 0.0
        %3166 = vmatprep.subr.mxu0 0.0
        %3167 = vmatpush1.msra.mxu0 0.0
        %3168 = vmatprep.subr.mxu0 0.0
        %3169 = vmatpush1.msra.mxu0 0.0
        %3170 = vmatprep.subr.mxu0 0.0
        %3171 = vmatpush1.msra.mxu0 0.0
        %3172 = vmatprep.subr.mxu0 0.0
        %3173 = vmatpush1.msra.mxu0 0.0
        %3174 = vmatprep.mubr.f32.mxu0 0.0
        %3175 = vmatmul.mubr.f32.gmra.mrb[0].mxu0 %v2983
        %v3176 = vpop.f32.mrb[0].mxu0
        %v3177 = vadd.f32 0.0, %v3176
        %v3178 = vpop.f32.mrb[0].mxu0
        %3179 = vmatprep.mubr.f32.mxu0 0.0
        %3180 = vmatmul.mubr.f32.gmra.mrb[0].mxu0 %v2985
        %v3181 = vpop.f32.mrb[0].mxu0
        %v3182 = vadd.f32 0.0, %v3181
        %v3183 = vpop.f32.mrb[0].mxu0
        %3184 = vmatprep.mubr.f32.mxu0 0.0
        %3185 = vmatmul.mubr.f32.gmra.mrb[0].mxu0 %v2987
        %v3186 = vpop.f32.mrb[0].mxu0
        %v3187 = vadd.f32 0.0, %v3186
        %v3188 = vpop.f32.mrb[0].mxu0
        %3189 = vmatprep.mubr.f32.mxu0 0.0
        %3190 = vmatmul.mubr.f32.gmra.mrb[0].mxu0 %v2989
        %v3191 = vpop.f32.mrb[0].mxu0
        %v3192 = vadd.f32 0.0, %v3191
        %v3193 = vpop.f32.mrb[0].mxu0
        %3194 = vmatprep.mubr.f32.mxu0 0.0
        %3195 = vmatmul.mubr.f32.gmra.mrb[0].mxu0 %v2991
        %v3196 = vpop.f32.mrb[0].mxu0
        %v3197 = vadd.f32 0.0, %v3196
        %v3198 = vpop.f32.mrb[0].mxu0
        %3199 = vmatprep.mubr.f32.mxu0 0.0
        %3200 = vmatmul.mubr.f32.gmra.mrb[0].mxu0 %v2993
        %v3201 = vpop.f32.mrb[0].mxu0
        %v3202 = vadd.f32 0.0, %v3201
        %v3203 = vpop.f32.mrb[0].mxu0
        %3204 = vmatprep.mubr.f32.mxu0 0.0
        %3205 = vmatmul.mubr.f32.gmra.mrb[0].mxu0 %v2995
        %v3206 = vpop.f32.mrb[0].mxu0
        %v3207 = vadd.f32 0.0, %v3206
        %v3208 = vpop.f32.mrb[0].mxu0
        %3209 = vmatprep.mubr.f32.mxu0 0.0
        %3210 = vmatmul.mubr.f32.gmra.mrb[0].mxu0 %v2997
        %v3211 = vpop.f32.mrb[0].mxu0
        %v3212 = vadd.f32 0.0, %v3211
        %v3213 = vpop.f32.mrb[0].mxu0
        %3214 = vmatprep.mubr.f32.mxu0 0.0
        %3215 = vmatmul.mubr.f32.gmra.mrb[0].mxu0 %v2999
        %v3216 = vpop.f32.mrb[0].mxu0
        %v3217 = vadd.f32 0.0, %v3216
        %v3218 = vpop.f32.mrb[0].mxu0
        %3219 = vmatprep.mubr.f32.mxu0 0.0
        %3220 = vmatmul.mubr.f32.gmra.mrb[0].mxu0 %v3001
        %v3221 = vpop.f32.mrb[0].mxu0
        %v3222 = vadd.f32 0.0, %v3221
        %v3223 = vpop.f32.mrb[0].mxu0
        %3224 = vmatprep.mubr.f32.mxu0 0.0
        %3225 = vmatmul.mubr.f32.gmra.mrb[0].mxu0 %v3003
        %v3226 = vpop.f32.mrb[0].mxu0
        %v3227 = vadd.f32 0.0, %v3226
        %v3228 = vpop.f32.mrb[0].mxu0
        %3229 = vmatprep.mubr.f32.mxu0 0.0
        %3230 = vmatmul.mubr.f32.gmra.mrb[0].mxu0 %v3005
        %v3231 = vpop.f32.mrb[0].mxu0
        %v3232 = vadd.f32 0.0, %v3231
        %v3233 = vpop.f32.mrb[0].mxu0
        %3234 = vmatprep.mubr.f32.mxu0 0.0
        %3235 = vmatmul.mubr.f32.gmra.mrb[0].mxu0 %v3007
        %v3236 = vpop.f32.mrb[0].mxu0
        %v3237 = vadd.f32 0.0, %v3236
        %v3238 = vpop.f32.mrb[0].mxu0
        %3239 = vmatprep.mubr.f32.mxu0 0.0
        %3240 = vmatmul.mubr.f32.gmra.mrb[0].mxu0 %v3009
        %v3241 = vpop.f32.mrb[0].mxu0
        %v3242 = vadd.f32 0.0, %v3241
        %v3243 = vpop.f32.mrb[0].mxu0
        %3244 = vmatprep.mubr.f32.mxu0 0.0
        %3245 = vmatmul.mubr.f32.gmra.mrb[0].mxu0 %v3011
        %v3246 = vpop.f32.mrb[0].mxu0
        %v3247 = vadd.f32 0.0, %v3246
        %v3248 = vpop.f32.mrb[0].mxu0
        %3249 = vmatprep.mubr.f32.mxu0 0.0
        %3250 = vmatmul.mubr.f32.gmra.mrb[0].mxu0 %v3013
        %v3251 = vpop.f32.mrb[0].mxu0
        %v3252 = vadd.f32 0.0, %v3251
        %v3253 = vpop.f32.mrb[0].mxu0
        %3254 = vdwg.mxu0
        %v3255 = vmul.f32 %v3177, %v3046
        %v3256 = vmul.f32 %v3182, %v3047
        %v3257 = vmul.f32 %v3187, %v3048
        %v3258 = vmul.f32 %v3192, %v3049
        %v3259 = vmul.f32 %v3197, %v3050
        %v3260 = vmul.f32 %v3202, %v3051
        %v3261 = vmul.f32 %v3207, %v3052
        %v3262 = vmul.f32 %v3212, %v3053
        %v3263 = vmul.f32 %v3217, %v3054
        %v3264 = vmul.f32 %v3222, %v3055
        %v3265 = vmul.f32 %v3227, %v3056
        %v3266 = vmul.f32 %v3232, %v3057
        %v3267 = vmul.f32 %v3237, %v3058
        %v3268 = vmul.f32 %v3242, %v3059
        %v3269 = vmul.f32 %v3247, %v3060
        %v3270 = vmul.f32 %v3252, %v3061
        %3287 = vrot.lane.b32.xlu0 %v3255, 24
        %v3288 = vpop.permute.xlu0 %3287
        %3289 = vrot.lane.b32.xlu0 %v3256, 24
        %v3290 = vpop.permute.xlu0 %3289
        %3291 = vrot.lane.b32.xlu0 %v3257, 24
        %v3292 = vpop.permute.xlu0 %3291
        %3293 = vrot.lane.b32.xlu0 %v3258, 24
        %v3294 = vpop.permute.xlu0 %3293
        %3295 = vrot.lane.b32.xlu0 %v3259, 24
        %v3296 = vpop.permute.xlu0 %3295
        %3297 = vrot.lane.b32.xlu0 %v3260, 24
        %v3298 = vpop.permute.xlu0 %3297
        %3299 = vrot.lane.b32.xlu0 %v3261, 24
        %v3300 = vpop.permute.xlu0 %3299
        %3301 = vrot.lane.b32.xlu0 %v3262, 24
        %v3302 = vpop.permute.xlu0 %3301
        %3303 = vrot.lane.b32.xlu0 %v3263, 24
        %v3304 = vpop.permute.xlu0 %3303
        %3305 = vrot.lane.b32.xlu0 %v3264, 24
        %v3306 = vpop.permute.xlu0 %3305
        %3307 = vrot.lane.b32.xlu0 %v3265, 24
        %v3308 = vpop.permute.xlu0 %3307
        %3309 = vrot.lane.b32.xlu0 %v3266, 24
        %v3310 = vpop.permute.xlu0 %3309
        %3311 = vrot.lane.b32.xlu0 %v3267, 24
        %v3312 = vpop.permute.xlu0 %3311
        %3313 = vrot.lane.b32.xlu0 %v3268, 24
        %v3314 = vpop.permute.xlu0 %3313
        %3315 = vrot.lane.b32.xlu0 %v3269, 24
        %v3316 = vpop.permute.xlu0 %3315
        %3317 = vrot.lane.b32.xlu0 %v3270, 24
        %v3318 = vpop.permute.xlu0 %3317
        %vm3335 = vcmask 261312
        %3336 = vst.msk [vmem:[#allocation3] sm:$0xff] %vm3335, %v3288
        %3337 = vst.msk [vmem:[#allocation3 + $0x8] sm:$0xff] %vm3335, %v3290
        %3338 = vst.msk [vmem:[#allocation3 + $0x10] sm:$0xff] %vm3335, %v3292
        %3339 = vst.msk [vmem:[#allocation3 + $0x18] sm:$0xff] %vm3335, %v3294
        %3340 = vst.msk [vmem:[#allocation3 + $0x20] sm:$0xff] %vm3335, %v3296
        %3341 = vst.msk [vmem:[#allocation3 + $0x28] sm:$0xff] %vm3335, %v3298
        %3342 = vst.msk [vmem:[#allocation3 + $0x30] sm:$0xff] %vm3335, %v3300
        %3343 = vst.msk [vmem:[#allocation3 + $0x38] sm:$0xff] %vm3335, %v3302
        %3344 = vst.msk [vmem:[#allocation3 + $0x40] sm:$0xff] %vm3335, %v3304
        %3345 = vst.msk [vmem:[#allocation3 + $0x48] sm:$0xff] %vm3335, %v3306
        %3346 = vst.msk [vmem:[#allocation3 + $0x50] sm:$0xff] %vm3335, %v3308
        %3347 = vst.msk [vmem:[#allocation3 + $0x58] sm:$0xff] %vm3335, %v3310
        %3348 = vst.msk [vmem:[#allocation3 + $0x60] sm:$0xff] %vm3335, %v3312
        %3349 = vst.msk [vmem:[#allocation3 + $0x68] sm:$0xff] %vm3335, %v3314
        %3350 = vst.msk [vmem:[#allocation3 + $0x70] sm:$0xff] %vm3335, %v3316
        %3351 = vst.msk [vmem:[#allocation3 + $0x78] sm:$0xff] %vm3335, %v3318
        %v3352 = vld [vmem:[#allocation3] sm:$0xff]
        %v3353 = vld [vmem:[#allocation3 + $0x8] sm:$0xff]
        %v3354 = vld [vmem:[#allocation3 + $0x10] sm:$0xff]
        %v3355 = vld [vmem:[#allocation3 + $0x18] sm:$0xff]
        %v3356 = vld [vmem:[#allocation3 + $0x20] sm:$0xff]
        %v3357 = vld [vmem:[#allocation3 + $0x28] sm:$0xff]
        %v3358 = vld [vmem:[#allocation3 + $0x30] sm:$0xff]
        %v3359 = vld [vmem:[#allocation3 + $0x38] sm:$0xff]
        %v3360 = vld [vmem:[#allocation3 + $0x40] sm:$0xff]
        %v3361 = vld [vmem:[#allocation3 + $0x48] sm:$0xff]
        %v3362 = vld [vmem:[#allocation3 + $0x50] sm:$0xff]
        %v3363 = vld [vmem:[#allocation3 + $0x58] sm:$0xff]
        %v3364 = vld [vmem:[#allocation3 + $0x60] sm:$0xff]
        %v3365 = vld [vmem:[#allocation3 + $0x68] sm:$0xff]
        %v3366 = vld [vmem:[#allocation3 + $0x70] sm:$0xff]
        %v3367 = vld [vmem:[#allocation3 + $0x78] sm:$0xff]
        %v3368 = vld [vmem:[#allocation13] sm:$0xff]
        %v3369 = vld [vmem:[#allocation13 + $0x8] sm:$0xff]
        %v3370 = vld [vmem:[#allocation13 + $0x10] sm:$0xff]
        %v3371 = vld [vmem:[#allocation13 + $0x18] sm:$0xff]
        %v3373 = vsel %vm429, %v3352, 0
        %v3376 = vsel %vm429, %v3353, 0
        %v3379 = vsel %vm429, %v3354, 0
        %v3382 = vsel %vm429, %v3355, 0
        %v3385 = vsel %vm429, %v3356, 0
        %v3388 = vsel %vm429, %v3357, 0
        %v3391 = vsel %vm429, %v3358, 0
        %v3394 = vsel %vm429, %v3359, 0
        %v3397 = vsel %vm429, %v3360, 0
        %v3400 = vsel %vm429, %v3361, 0
        %v3403 = vsel %vm429, %v3362, 0
        %v3406 = vsel %vm429, %v3363, 0
        %v3409 = vsel %vm429, %v3364, 0
        %v3412 = vsel %vm429, %v3365, 0
        %v3415 = vsel %vm429, %v3366, 0
        %v3418 = vsel %vm429, %v3367, 0
        %3420 = vmatprep.subr.mxu0 0.0
        %3421 = vmatpush1.msra.mxu0 %v3368
        %3422 = vmatprep.subr.mxu0 0.0
        %3423 = vmatpush1.msra.mxu0 %v3369
        %3424 = vmatprep.subr.mxu0 0.0
        %3425 = vmatpush1.msra.mxu0 %v3370
        %3426 = vmatprep.subr.mxu0 0.0
        %3427 = vmatpush1.msra.mxu0 %v3371
        %3428 = vmatprep.subr.mxu0 0.0
        %3429 = vmatpush1.msra.mxu0 0.0
        %3430 = vmatprep.subr.mxu0 0.0
        %3431 = vmatpush1.msra.mxu0 0.0
        %3432 = vmatprep.subr.mxu0 0.0
        %3433 = vmatpush1.msra.mxu0 0.0
        %3434 = vmatprep.subr.mxu0 0.0
        %3435 = vmatpush1.msra.mxu0 0.0
        %3436 = vmatprep.subr.mxu0 0.0
        %3437 = vmatpush1.msra.mxu0 0.0
        %3438 = vmatprep.subr.mxu0 0.0
        %3439 = vmatpush1.msra.mxu0 0.0
        %3440 = vmatprep.subr.mxu0 0.0
        %3441 = vmatpush1.msra.mxu0 0.0
        %3442 = vmatprep.subr.mxu0 0.0
        %3443 = vmatpush1.msra.mxu0 0.0
        %3444 = vmatprep.subr.mxu0 0.0
        %3445 = vmatpush1.msra.mxu0 0.0
        %3446 = vmatprep.subr.mxu0 0.0
        %3447 = vmatpush1.msra.mxu0 0.0
        %3448 = vmatprep.subr.mxu0 0.0
        %3449 = vmatpush1.msra.mxu0 0.0
        %3450 = vmatprep.subr.mxu0 0.0
        %3451 = vmatpush1.msra.mxu0 0.0
        %3452 = vmatprep.subr.mxu0 0.0
        %3453 = vmatpush1.msra.mxu0 0.0
        %3454 = vmatprep.subr.mxu0 0.0
        %3455 = vmatpush1.msra.mxu0 0.0
        %3456 = vmatprep.subr.mxu0 0.0
        %3457 = vmatpush1.msra.mxu0 0.0
        %3458 = vmatprep.subr.mxu0 0.0
        %3459 = vmatpush1.msra.mxu0 0.0
        %3460 = vmatprep.subr.mxu0 0.0
        %3461 = vmatpush1.msra.mxu0 0.0
        %3462 = vmatprep.subr.mxu0 0.0
        %3463 = vmatpush1.msra.mxu0 0.0
        %3464 = vmatprep.subr.mxu0 0.0
        %3465 = vmatpush1.msra.mxu0 0.0
        %3466 = vmatprep.subr.mxu0 0.0
        %3467 = vmatpush1.msra.mxu0 0.0
        %3468 = vmatprep.subr.mxu0 0.0
        %3469 = vmatpush1.msra.mxu0 0.0
        %3470 = vmatprep.subr.mxu0 0.0
        %3471 = vmatpush1.msra.mxu0 0.0
        %3472 = vmatprep.subr.mxu0 0.0
        %3473 = vmatpush1.msra.mxu0 0.0
        %3474 = vmatprep.subr.mxu0 0.0
        %3475 = vmatpush1.msra.mxu0 0.0
        %3476 = vmatprep.subr.mxu0 0.0
        %3477 = vmatpush1.msra.mxu0 0.0
        %3478 = vmatprep.subr.mxu0 0.0
        %3479 = vmatpush1.msra.mxu0 0.0
        %3480 = vmatprep.subr.mxu0 0.0
        %3481 = vmatpush1.msra.mxu0 0.0
        %3482 = vmatprep.subr.mxu0 0.0
        %3483 = vmatpush1.msra.mxu0 0.0
        %3484 = vmatprep.mubr.f32.mxu0 0.0
        %3485 = vmatmul.mubr.f32.gmra.mrb[0].mxu0 %v3373
        %v3486 = vpop.f32.mrb[0].mxu0
        %v3487 = vadd.f32 0.0, %v3486
        %v3488 = vpop.f32.mrb[0].mxu0
        %3489 = vmatprep.mubr.f32.mxu0 0.0
        %3490 = vmatmul.mubr.f32.gmra.mrb[0].mxu0 %v3376
        %v3491 = vpop.f32.mrb[0].mxu0
        %v3492 = vadd.f32 0.0, %v3491
        %v3493 = vpop.f32.mrb[0].mxu0
        %3494 = vmatprep.mubr.f32.mxu0 0.0
        %3495 = vmatmul.mubr.f32.gmra.mrb[0].mxu0 %v3379
        %v3496 = vpop.f32.mrb[0].mxu0
        %v3497 = vadd.f32 0.0, %v3496
        %v3498 = vpop.f32.mrb[0].mxu0
        %3499 = vmatprep.mubr.f32.mxu0 0.0
        %3500 = vmatmul.mubr.f32.gmra.mrb[0].mxu0 %v3382
        %v3501 = vpop.f32.mrb[0].mxu0
        %v3502 = vadd.f32 0.0, %v3501
        %v3503 = vpop.f32.mrb[0].mxu0
        %3504 = vmatprep.mubr.f32.mxu0 0.0
        %3505 = vmatmul.mubr.f32.gmra.mrb[0].mxu0 %v3385
        %v3506 = vpop.f32.mrb[0].mxu0
        %v3507 = vadd.f32 0.0, %v3506
        %v3508 = vpop.f32.mrb[0].mxu0
        %3509 = vmatprep.mubr.f32.mxu0 0.0
        %3510 = vmatmul.mubr.f32.gmra.mrb[0].mxu0 %v3388
        %v3511 = vpop.f32.mrb[0].mxu0
        %v3512 = vadd.f32 0.0, %v3511
        %v3513 = vpop.f32.mrb[0].mxu0
        %3514 = vmatprep.mubr.f32.mxu0 0.0
        %3515 = vmatmul.mubr.f32.gmra.mrb[0].mxu0 %v3391
        %v3516 = vpop.f32.mrb[0].mxu0
        %v3517 = vadd.f32 0.0, %v3516
        %v3518 = vpop.f32.mrb[0].mxu0
        %3519 = vmatprep.mubr.f32.mxu0 0.0
        %3520 = vmatmul.mubr.f32.gmra.mrb[0].mxu0 %v3394
        %v3521 = vpop.f32.mrb[0].mxu0
        %v3522 = vadd.f32 0.0, %v3521
        %v3523 = vpop.f32.mrb[0].mxu0
        %3524 = vmatprep.mubr.f32.mxu0 0.0
        %3525 = vmatmul.mubr.f32.gmra.mrb[0].mxu0 %v3397
        %v3526 = vpop.f32.mrb[0].mxu0
        %v3527 = vadd.f32 0.0, %v3526
        %v3528 = vpop.f32.mrb[0].mxu0
        %3529 = vmatprep.mubr.f32.mxu0 0.0
        %3530 = vmatmul.mubr.f32.gmra.mrb[0].mxu0 %v3400
        %v3531 = vpop.f32.mrb[0].mxu0
        %v3532 = vadd.f32 0.0, %v3531
        %v3533 = vpop.f32.mrb[0].mxu0
        %3534 = vmatprep.mubr.f32.mxu0 0.0
        %3535 = vmatmul.mubr.f32.gmra.mrb[0].mxu0 %v3403
        %v3536 = vpop.f32.mrb[0].mxu0
        %v3537 = vadd.f32 0.0, %v3536
        %v3538 = vpop.f32.mrb[0].mxu0
        %3539 = vmatprep.mubr.f32.mxu0 0.0
        %3540 = vmatmul.mubr.f32.gmra.mrb[0].mxu0 %v3406
        %v3541 = vpop.f32.mrb[0].mxu0
        %v3542 = vadd.f32 0.0, %v3541
        %v3543 = vpop.f32.mrb[0].mxu0
        %3544 = vmatprep.mubr.f32.mxu0 0.0
        %3545 = vmatmul.mubr.f32.gmra.mrb[0].mxu0 %v3409
        %v3546 = vpop.f32.mrb[0].mxu0
        %v3547 = vadd.f32 0.0, %v3546
        %v3548 = vpop.f32.mrb[0].mxu0
        %3549 = vmatprep.mubr.f32.mxu0 0.0
        %3550 = vmatmul.mubr.f32.gmra.mrb[0].mxu0 %v3412
        %v3551 = vpop.f32.mrb[0].mxu0
        %v3552 = vadd.f32 0.0, %v3551
        %v3553 = vpop.f32.mrb[0].mxu0
        %3554 = vmatprep.mubr.f32.mxu0 0.0
        %3555 = vmatmul.mubr.f32.gmra.mrb[0].mxu0 %v3415
        %v3556 = vpop.f32.mrb[0].mxu0
        %v3557 = vadd.f32 0.0, %v3556
        %v3558 = vpop.f32.mrb[0].mxu0
        %3559 = vmatprep.mubr.f32.mxu0 0.0
        %3560 = vmatmul.mubr.f32.gmra.mrb[0].mxu0 %v3418
        %v3561 = vpop.f32.mrb[0].mxu0
        %v3562 = vadd.f32 0.0, %v3561
        %v3563 = vpop.f32.mrb[0].mxu0
        %3564 = vdwg.mxu0
        %p3565 = scmp.eq.s32.totalorder %s30, 0
        // Predicated region
        $region77: #{tpu_custom_call.1} parent=47 // pred_check
          %p3566 = pneg %p3565
        $region78: #{tpu_custom_call.1} parent=47 // pred_check_branch
          %3568 = sbr.rel (%p3566) target = $region80
        $region79: #{tpu_custom_call.1} parent=47 // pred_region
          %v3569 = vld [vmem:[#allocation15] sm:$0x1]
          %v3571 = vlaneseq
          %v3572 = vshrl.u32 %v3571, 7
          %v3573 = vsub.s32 0, %v3572
          %v3574 = vrot.slane %v3569, %v3573
          %v3576 = vadd.f32 %v3487, %v3574
          %v3577 = vadd.f32 %v3492, %v3574
          %v3578 = vadd.f32 %v3497, %v3574
          %v3579 = vadd.f32 %v3502, %v3574
          %v3580 = vadd.f32 %v3507, %v3574
          %v3581 = vadd.f32 %v3512, %v3574
          %v3582 = vadd.f32 %v3517, %v3574
          %v3583 = vadd.f32 %v3522, %v3574
          %v3584 = vadd.f32 %v3527, %v3574
          %v3585 = vadd.f32 %v3532, %v3574
          %v3586 = vadd.f32 %v3537, %v3574
          %v3587 = vadd.f32 %v3542, %v3574
          %v3588 = vadd.f32 %v3547, %v3574
          %v3589 = vadd.f32 %v3552, %v3574
          %v3590 = vadd.f32 %v3557, %v3574
          %v3591 = vadd.f32 %v3562, %v3574
          %3592 = vst.msk [vmem:[#allocation2] sm:$0xff] %vm429, %v3576
          %3593 = vst.msk [vmem:[#allocation2 + $0x8] sm:$0xff] %vm429, %v3577
          %3594 = vst.msk [vmem:[#allocation2 + $0x10] sm:$0xff] %vm429, %v3578
          %3595 = vst.msk [vmem:[#allocation2 + $0x18] sm:$0xff] %vm429, %v3579
          %3596 = vst.msk [vmem:[#allocation2 + $0x20] sm:$0xff] %vm429, %v3580
          %3597 = vst.msk [vmem:[#allocation2 + $0x28] sm:$0xff] %vm429, %v3581
          %3598 = vst.msk [vmem:[#allocation2 + $0x30] sm:$0xff] %vm429, %v3582
          %3599 = vst.msk [vmem:[#allocation2 + $0x38] sm:$0xff] %vm429, %v3583
          %3600 = vst.msk [vmem:[#allocation2 + $0x40] sm:$0xff] %vm429, %v3584
          %3601 = vst.msk [vmem:[#allocation2 + $0x48] sm:$0xff] %vm429, %v3585
          %3602 = vst.msk [vmem:[#allocation2 + $0x50] sm:$0xff] %vm429, %v3586
          %3603 = vst.msk [vmem:[#allocation2 + $0x58] sm:$0xff] %vm429, %v3587
          %3604 = vst.msk [vmem:[#allocation2 + $0x60] sm:$0xff] %vm429, %v3588
          %3605 = vst.msk [vmem:[#allocation2 + $0x68] sm:$0xff] %vm429, %v3589
          %3606 = vst.msk [vmem:[#allocation2 + $0x70] sm:$0xff] %vm429, %v3590
          %3607 = vst.msk [vmem:[#allocation2 + $0x78] sm:$0xff] %vm429, %v3591
        $region80: #{tpu_custom_call.1} parent=47 // pred_fallthru
          _
        %p3608 = scmp.ne.s32.totalorder %s30, 0
        // Predicated region
        $region81: #{tpu_custom_call.1} parent=47 // pred_check
          %p3609 = pneg %p3608
        $region82: #{tpu_custom_call.1} parent=47 // pred_check_branch
          %3611 = sbr.rel (%p3609) target = $region84
        $region83: #{tpu_custom_call.1} parent=47 // pred_region
          %v3612 = vld [vmem:[#allocation2] sm:$0xff]
          %v3613 = vld [vmem:[#allocation2 + $0x8] sm:$0xff]
          %v3614 = vld [vmem:[#allocation2 + $0x10] sm:$0xff]
          %v3615 = vld [vmem:[#allocation2 + $0x18] sm:$0xff]
          %v3616 = vld [vmem:[#allocation2 + $0x20] sm:$0xff]
          %v3617 = vld [vmem:[#allocation2 + $0x28] sm:$0xff]
          %v3618 = vld [vmem:[#allocation2 + $0x30] sm:$0xff]
          %v3619 = vld [vmem:[#allocation2 + $0x38] sm:$0xff]
          %v3620 = vld [vmem:[#allocation2 + $0x40] sm:$0xff]
          %v3621 = vld [vmem:[#allocation2 + $0x48] sm:$0xff]
          %v3622 = vld [vmem:[#allocation2 + $0x50] sm:$0xff]
          %v3623 = vld [vmem:[#allocation2 + $0x58] sm:$0xff]
          %v3624 = vld [vmem:[#allocation2 + $0x60] sm:$0xff]
          %v3625 = vld [vmem:[#allocation2 + $0x68] sm:$0xff]
          %v3626 = vld [vmem:[#allocation2 + $0x70] sm:$0xff]
          %v3627 = vld [vmem:[#allocation2 + $0x78] sm:$0xff]
          %v3628 = vadd.f32 %v3612, %v3487
          %v3629 = vadd.f32 %v3613, %v3492
          %v3630 = vadd.f32 %v3614, %v3497
          %v3631 = vadd.f32 %v3615, %v3502
          %v3632 = vadd.f32 %v3616, %v3507
          %v3633 = vadd.f32 %v3617, %v3512
          %v3634 = vadd.f32 %v3618, %v3517
          %v3635 = vadd.f32 %v3619, %v3522
          %v3636 = vadd.f32 %v3620, %v3527
          %v3637 = vadd.f32 %v3621, %v3532
          %v3638 = vadd.f32 %v3622, %v3537
          %v3639 = vadd.f32 %v3623, %v3542
          %v3640 = vadd.f32 %v3624, %v3547
          %v3641 = vadd.f32 %v3625, %v3552
          %v3642 = vadd.f32 %v3626, %v3557
          %v3643 = vadd.f32 %v3627, %v3562
          %3644 = vst.msk [vmem:[#allocation2] sm:$0xff] %vm429, %v3628
          %3645 = vst.msk [vmem:[#allocation2 + $0x8] sm:$0xff] %vm429, %v3629
          %3646 = vst.msk [vmem:[#allocation2 + $0x10] sm:$0xff] %vm429, %v3630
          %3647 = vst.msk [vmem:[#allocation2 + $0x18] sm:$0xff] %vm429, %v3631
          %3648 = vst.msk [vmem:[#allocation2 + $0x20] sm:$0xff] %vm429, %v3632
          %3649 = vst.msk [vmem:[#allocation2 + $0x28] sm:$0xff] %vm429, %v3633
          %3650 = vst.msk [vmem:[#allocation2 + $0x30] sm:$0xff] %vm429, %v3634
          %3651 = vst.msk [vmem:[#allocation2 + $0x38] sm:$0xff] %vm429, %v3635
          %3652 = vst.msk [vmem:[#allocation2 + $0x40] sm:$0xff] %vm429, %v3636
          %3653 = vst.msk [vmem:[#allocation2 + $0x48] sm:$0xff] %vm429, %v3637
          %3654 = vst.msk [vmem:[#allocation2 + $0x50] sm:$0xff] %vm429, %v3638
          %3655 = vst.msk [vmem:[#allocation2 + $0x58] sm:$0xff] %vm429, %v3639
          %3656 = vst.msk [vmem:[#allocation2 + $0x60] sm:$0xff] %vm429, %v3640
          %3657 = vst.msk [vmem:[#allocation2 + $0x68] sm:$0xff] %vm429, %v3641
          %3658 = vst.msk [vmem:[#allocation2 + $0x70] sm:$0xff] %vm429, %v3642
          %3659 = vst.msk [vmem:[#allocation2 + $0x78] sm:$0xff] %vm429, %v3643
        $region84: #{tpu_custom_call.1} parent=47 // pred_fallthru
          _
        // Predicated region
        $region85: #{tpu_custom_call.1} parent=47 // pred_check
          %p3660 = pneg %p3565
        $region86: #{tpu_custom_call.1} parent=47 // pred_check_branch
          %3662 = sbr.rel (%p3660) target = $region88
        $region87: #{tpu_custom_call.1} parent=47 // pred_region
          %v3663 = vld [vmem:[#allocation2] sm:$0xff]
          %v3664 = vld [vmem:[#allocation2 + $0x8] sm:$0xff]
          %v3665 = vld [vmem:[#allocation2 + $0x10] sm:$0xff]
          %v3666 = vld [vmem:[#allocation2 + $0x18] sm:$0xff]
          %v3667 = vld [vmem:[#allocation2 + $0x20] sm:$0xff]
          %v3668 = vld [vmem:[#allocation2 + $0x28] sm:$0xff]
          %v3669 = vld [vmem:[#allocation2 + $0x30] sm:$0xff]
          %v3670 = vld [vmem:[#allocation2 + $0x38] sm:$0xff]
          %v3671 = vld [vmem:[#allocation2 + $0x40] sm:$0xff]
          %v3672 = vld [vmem:[#allocation2 + $0x48] sm:$0xff]
          %v3673 = vld [vmem:[#allocation2 + $0x50] sm:$0xff]
          %v3674 = vld [vmem:[#allocation2 + $0x58] sm:$0xff]
          %v3675 = vld [vmem:[#allocation2 + $0x60] sm:$0xff]
          %v3676 = vld [vmem:[#allocation2 + $0x68] sm:$0xff]
          %v3677 = vld [vmem:[#allocation2 + $0x70] sm:$0xff]
          %v3678 = vld [vmem:[#allocation2 + $0x78] sm:$0xff]
          %3679 = vst.msk [vmem:[%s400] sm:$0xff] %vm429, %v3663
          %3680 = vst.msk [vmem:[%s400 + $0x8] sm:$0xff] %vm429, %v3664
          %3681 = vst.msk [vmem:[%s400 + $0x10] sm:$0xff] %vm429, %v3665
          %3682 = vst.msk [vmem:[%s400 + $0x18] sm:$0xff] %vm429, %v3666
          %3683 = vst.msk [vmem:[%s400 + $0x20] sm:$0xff] %vm429, %v3667
          %3684 = vst.msk [vmem:[%s400 + $0x28] sm:$0xff] %vm429, %v3668
          %3685 = vst.msk [vmem:[%s400 + $0x30] sm:$0xff] %vm429, %v3669
          %3686 = vst.msk [vmem:[%s400 + $0x38] sm:$0xff] %vm429, %v3670
          %3687 = vst.msk [vmem:[%s400 + $0x40] sm:$0xff] %vm429, %v3671
          %3688 = vst.msk [vmem:[%s400 + $0x48] sm:$0xff] %vm429, %v3672
          %3689 = vst.msk [vmem:[%s400 + $0x50] sm:$0xff] %vm429, %v3673
          %3690 = vst.msk [vmem:[%s400 + $0x58] sm:$0xff] %vm429, %v3674
          %3691 = vst.msk [vmem:[%s400 + $0x60] sm:$0xff] %vm429, %v3675
          %3692 = vst.msk [vmem:[%s400 + $0x68] sm:$0xff] %vm429, %v3676
          %3693 = vst.msk [vmem:[%s400 + $0x70] sm:$0xff] %vm429, %v3677
          %3694 = vst.msk [vmem:[%s400 + $0x78] sm:$0xff] %vm429, %v3678
        $region88: #{tpu_custom_call.1} parent=47 // pred_fallthru
          _
        %s3695 = sand.u32 %s217, 1
        %s3696 = scalar_lea.sflag [#allocation6], %s3695
        %s3697 = sand.u32 %s217, 1
        %s3698 = smul.addr %s3697, 128
        %s3699 = scalar_lea.vmem [#allocation16], %s3698
        // Predicated region
        $region89: #{tpu_custom_call.1} parent=47 // pred_check
          %p3700 = pneg %p227
        $region90: #{tpu_custom_call.1} parent=47 // pred_check_branch
          %3702 = sbr.rel (%p3700) target = $region92
        $region91: #{tpu_custom_call.1} parent=47 // pred_region
          %s3704 = ssub.s32 2048, 2048
          %3705 = vsyncadd %s3696, %s3704
          %s3706 = smul.addr %s29, 16
          %s3707 = smul.addr %s3706, 128
          %s3708 = scalar_lea.hbm %s7, %s3707
          %s3709 = sshll.u32 %s3699, 4
          %s3710 = int_to_ptr.vmem [resolvable:$true] %s3709
          %3715 = dma.vmem_to_hbm [thread:$0]  %s3710, 2048, %s3708, %s3696, 128, 128, 8
        $region92: #{tpu_custom_call.1} parent=47 // pred_fallthru
          _
      $region48: #{tpu_custom_call.1} parent=5 // pred_fallthru
        _
      %p3716 = scmp.le.s32.totalorder 2, %s20
      // Predicated region
      $region93: #{tpu_custom_call.1} parent=5 // pred_check
        %p3717 = pneg %p3716
      $region94: #{tpu_custom_call.1} parent=5 // pred_check_branch
        %3719 = sbr.rel (%p3717) target = $region96
      $region95: #{tpu_custom_call.1} parent=5 // pred_region
        %s3720 = ssub.s32 %s20, 2
        // Predicated region
        $region97: #{tpu_custom_call.1} parent=95 // pred_check
          %p3721 = pneg %p233
        $region98: #{tpu_custom_call.1} parent=95 // pred_check_branch
          %3723 = sbr.rel (%p3721) target = $region100
        $region99: #{tpu_custom_call.1} parent=95 // pred_region
          %s3724 = sand.u32 %s218, 1
          %s3725 = scalar_lea.sflag [#allocation6], %s3724
          %s3726 = sand.u32 %s218, 1
          %s3727 = smul.addr %s3726, 128
          %s3728 = scalar_lea.vmem [#allocation16], %s3727
          %3729 = dma.done %s3725, 2048
        $region100: #{tpu_custom_call.1} parent=95 // pred_fallthru
          _
      $region96: #{tpu_custom_call.1} parent=5 // pred_fallthru
        _
    $region6: #{tpu_custom_call.1} parent=1 // loop_footer
      %s24 = sadd.s32 1, %s20
    $region7: #{tpu_custom_call.1} parent=1 // loop_footer_branch
      %19 = sbr.rel target = $region3
    $region8: #{tpu_custom_call.1} parent=1 // loop_exit
      _
    %3730 = vsyncpa [#allocation5], 1
    %s3731 = scalar_lea.sflag [#allocation5], 1
    %3732 = vsyncpa %s3731, 1
    %3733 = vsyncpa [#allocation8], 1
    %3734 = vsyncpa [#allocation11], 1
    %3735 = vsyncpa [#allocation14], 1
    %3736 = vsyncpa [#allocation6], 1
    %s3737 = scalar_lea.sflag [#allocation6], 1
    %3738 = vsyncpa %s3737, 1

// kernel: tpu_custom_call.1
$region0: #{tpu_custom_call.1}
  #allocation0 [shape = 'u32[]', space=smem, size = 0x4, offset = 0x4, fixed_abs, tag = 'smem constant byte address 0x4 - core index']
  #allocation1 [shape = 'u32[144,128]{1,0:T(1,128)}', space=vmem, size = 0x12000, scoped, tag = 'internal scratch']
  #allocation2 [shape = 'f32[128,32]{1,0:T(8,128)}', space=vmem, size = 0x10000, scoped, tag = 'scratch operand']
  #allocation3 [shape = 'f32[128,32]{1,0:T(8,128)}', space=vmem, size = 0x10000, scoped, tag = 'scratch operand']
  %s0 = inlined_call_operand.hbm [shape: f32[2,128,32], index: 0, kind: input, shape index: {}]
  %s1 = inlined_call_operand.hbm [shape: f32[2,1,128], index: 1, kind: input, shape index: {}]
  %s2 = inlined_call_operand.hbm [shape: f32[1,32,96], index: 2, kind: input, shape index: {}]
  %s3 = inlined_call_operand.hbm [shape: f32[1,1,96], index: 3, kind: input, shape index: {}]
  %s4 = inlined_call_operand.hbm [shape: f32[1,32], index: 4, kind: input, shape index: {}]
  %s5 = inlined_call_operand.hbm [shape: f32[1,32,32], index: 5, kind: input, shape index: {}]
  %s6 = inlined_call_operand.hbm [shape: f32[1,32], index: 6, kind: input, shape index: {}]
  %s7 = inlined_call_operand.hbm [shape: f32[2,128,32], index: 7, kind: output, shape index: {}]
  %s8 = sld [smem:[#allocation0]]
  $region101: #{tpu_custom_call.1} parent=0
    _
  %s10 = ssub.s32 1, %s8
  %s11 = scalar_select 0, %s10, %s8
  $region1: #{tpu_custom_call.1} parent=0
    #allocation4 [shape = 'u8[131072]{0}', space=vmem, size = 0x20000, scoped, tag = 'input window, operand 0']
    #allocation5 [shape = 's32[2]{0}', space=sflag, size = 0x8, scoped, tag = 'scoped memory for tpu_custom_call.1']
    #allocation6 [shape = 's32[2]{0}', space=sflag, size = 0x8, scoped, tag = 'scoped memory for tpu_custom_call.1']
    #allocation7 [shape = 'u8[1024]{0}', space=vmem, size = 0x400, scoped, tag = 'input window, operand 1']
    #allocation8 [shape = 's32[2]{0}', space=sflag, size = 0x8, scoped, tag = 'scoped memory for tpu_custom_call.1']
    #allocation9 [shape = 'u8[16384]{0}', space=vmem, size = 0x4000, scoped, tag = 'input window, operand 2, single buffered']
    #allocation10 [shape = 'u8[512]{0}', space=vmem, size = 0x400, scoped, tag = 'input window, operand 3, single buffered']
    #allocation11 [shape = 's32[1]{0}', space=sflag, size = 0x4, scoped, tag = 'scoped memory for tpu_custom_call.1']
    #allocation12 [shape = 'u8[512]{0}', space=vmem, size = 0x400, scoped, tag = 'input window, operand 4, single buffered']
    #allocation13 [shape = 'u8[16384]{0}', space=vmem, size = 0x4000, scoped, tag = 'input window, operand 5, single buffered']
    #allocation14 [shape = 's32[1]{0}', space=sflag, size = 0x4, scoped, tag = 'scoped memory for tpu_custom_call.1']
    #allocation15 [shape = 'u8[512]{0}', space=vmem, size = 0x400, scoped, tag = 'input window, operand 6, single buffered']
    #allocation16 [shape = 'u8[131072]{0}', space=vmem, size = 0x20000, scoped, tag = 'output window, operand 0']
    %12 = vsyncpa [#allocation5], 0
    %s13 = scalar_lea.sflag [#allocation5], 1
    %14 = vsyncpa %s13, 0
    %15 = vsyncpa [#allocation8], 0
    %s16 = scalar_lea.sflag [#allocation8], 1
    %17 = vsyncpa %s16, 0
    %18 = vsyncpa [#allocation11], 0
    %19 = vsyncpa [#allocation14], 0
    %20 = vsyncpa [#allocation6], 0
    %s21 = scalar_lea.sflag [#allocation6], 1
    %22 = vsyncpa %s21, 0
    loop: start=0, step=1, limit=4
    $region2: #{tpu_custom_call.1} parent=1 // loop_pre_header
      _
    $region3: #{tpu_custom_call.1} parent=1 // loop_header
      %s24 = sphi 0, %s28
      %p25 = scmp.ge.s32.totalorder %s24, 4
      %s31 = sphi 0, %s43
      %s32 = sphi 0, %s39
      %s33 = sphi 0, %s31
      %s34 = sphi 0, %s32
      %s35 = sphi 0, %s33
      %s36 = sphi 0, %s34
      %s46 = sphi 0, %s48
      %s49 = sphi 0, %s46
      %s50 = sphi 0, %s49
      %s66 = sphi 0, %s50
      %s72 = sphi 0, %s74
      %s75 = sphi 0, %s72
      %s76 = sphi 0, %s75
      %s92 = sphi 0, %s76
      %s98 = sphi 0, %s100
      %s101 = sphi 0, %s98
      %s102 = sphi 0, %s101
      %s118 = sphi 0, %s102
      %s124 = sphi 0, %s126
      %s127 = sphi 0, %s124
      %s128 = sphi 0, %s127
      %s144 = sphi 0, %s128
      %s148 = sphi 0, %s148
      %s150 = sphi 0, %s148
      %s151 = sphi 0, %s150
      %s165 = sphi 0, %s151
      %s171 = sphi 0, %s173
      %s174 = sphi 0, %s171
      %s175 = sphi 0, %s174
      %s191 = sphi 0, %s175
      %s195 = sphi 0, %s195
      %s197 = sphi 0, %s195
      %s198 = sphi 0, %s197
      %s212 = sphi 0, %s198
      %s218 = sphi 0, %s220
      %s221 = sphi 0, %s218
      %s222 = sphi 0, %s221
      %s238 = sphi 0, %s222
    $region4: #{tpu_custom_call.1} parent=1 // loop_header_branch
      %27 = sbr.rel (%p25) target = $region8
    $region5: #{tpu_custom_call.1} parent=1 // loop_body
      %s29 = ssub.s32 %s24, 1
      %s30 = ssub.s32 %s24, 2
      %s37 = sadd.s32 1, %s32
      %p38 = scmp.ge.s32.totalorder %s37, 1
      %s39 = scalar_select %p38, 0, %s37
      %s40 = sadd.s32 1, %s31
      %s41 = scalar_select %p38, %s40, %s31
      %p42 = scmp.ge.s32.totalorder %s41, 2
      %s43 = scalar_select %p42, 0, %s41
      %s44 = ssub.s32 %s31, %s43
      %p45 = scmp.eq.s32.totalorder %s44, 0
      %s47 = sadd.s32 %s46, 1
      %s48 = scalar_select %p45, %s46, %s47
      %p51 = pneg %p45
      %p52 = scmp.eq.s32.totalorder %s24, 1
      %p53 = por %p51, %p52
      %p54 = scmp.ne.s32.totalorder %s46, %s49
      %p55 = scmp.eq.s32.totalorder %s24, 0
      %p56 = por %p54, %p55
      %p57 = scmp.ne.s32.totalorder %s46, %s49
      %p58 = scmp.eq.s32.totalorder %s29, 1
      %p59 = por %p57, %p58
      %p60 = scmp.ne.s32.totalorder %s49, %s50
      %p61 = scmp.eq.s32.totalorder %s29, 0
      %p62 = por %p60, %p61
      %p63 = scmp.ne.s32.totalorder %s49, %s50
      %p64 = scmp.eq.s32.totalorder %s30, 1
      %p65 = por %p63, %p64
      %p67 = scmp.ne.s32.totalorder %s50, %s66
      %p68 = scmp.eq.s32.totalorder %s30, 0
      %p69 = por %p67, %p68
      %s70 = ssub.s32 %s31, %s43
      %p71 = scmp.eq.s32.totalorder %s70, 0
      %s73 = sadd.s32 %s72, 1
      %s74 = scalar_select %p71, %s72, %s73
      %p77 = pneg %p71
      %p78 = scmp.eq.s32.totalorder %s24, 1
      %p79 = por %p77, %p78
      %p80 = scmp.ne.s32.totalorder %s72, %s75
      %p81 = scmp.eq.s32.totalorder %s24, 0
      %p82 = por %p80, %p81
      %p83 = scmp.ne.s32.totalorder %s72, %s75
      %p84 = scmp.eq.s32.totalorder %s29, 1
      %p85 = por %p83, %p84
      %p86 = scmp.ne.s32.totalorder %s75, %s76
      %p87 = scmp.eq.s32.totalorder %s29, 0
      %p88 = por %p86, %p87
      %p89 = scmp.ne.s32.totalorder %s75, %s76
      %p90 = scmp.eq.s32.totalorder %s30, 1
      %p91 = por %p89, %p90
      %p93 = scmp.ne.s32.totalorder %s76, %s92
      %p94 = scmp.eq.s32.totalorder %s30, 0
      %p95 = por %p93, %p94
      %s96 = ssub.s32 %s32, %s39
      %p97 = scmp.eq.s32.totalorder %s96, 0
      %s99 = sadd.s32 %s98, 1
      %s100 = scalar_select %p97, %s98, %s99
      %p103 = pneg %p97
      %p104 = scmp.eq.s32.totalorder %s24, 1
      %p105 = por %p103, %p104
      %p106 = scmp.ne.s32.totalorder %s98, %s101
      %p107 = scmp.eq.s32.totalorder %s24, 0
      %p108 = por %p106, %p107
      %p109 = scmp.ne.s32.totalorder %s98, %s101
      %p110 = scmp.eq.s32.totalorder %s29, 1
      %p111 = por %p109, %p110
      %p112 = scmp.ne.s32.totalorder %s101, %s102
      %p113 = scmp.eq.s32.totalorder %s29, 0
      %p114 = por %p112, %p113
      %p115 = scmp.ne.s32.totalorder %s101, %s102
      %p116 = scmp.eq.s32.totalorder %s30, 1
      %p117 = por %p115, %p116
      %p119 = scmp.ne.s32.totalorder %s102, %s118
      %p120 = scmp.eq.s32.totalorder %s30, 0
      %p121 = por %p119, %p120
      %s122 = ssub.s32 %s32, %s39
      %p123 = scmp.eq.s32.totalorder %s122, 0
      %s125 = sadd.s32 %s124, 1
      %s126 = scalar_select %p123, %s124, %s125
      %p129 = pneg %p123
      %p130 = scmp.eq.s32.totalorder %s24, 1
      %p131 = por %p129, %p130
      %p132 = scmp.ne.s32.totalorder %s124, %s127
      %p133 = scmp.eq.s32.totalorder %s24, 0
      %p134 = por %p132, %p133
      %p135 = scmp.ne.s32.totalorder %s124, %s127
      %p136 = scmp.eq.s32.totalorder %s29, 1
      %p137 = por %p135, %p136
      %p138 = scmp.ne.s32.totalorder %s127, %s128
      %p139 = scmp.eq.s32.totalorder %s29, 0
      %p140 = por %p138, %p139
      %p141 = scmp.ne.s32.totalorder %s127, %s128
      %p142 = scmp.eq.s32.totalorder %s30, 1
      %p143 = por %p141, %p142
      %p145 = scmp.ne.s32.totalorder %s128, %s144
      %p146 = scmp.eq.s32.totalorder %s30, 0
      %p147 = por %p145, %p146
      %s149 = sadd.s32 %s148, 1
      %p152 = scmp.eq.s32.totalorder %s24, 1
      %p153 = scmp.ne.s32.totalorder %s148, %s150
      %p154 = scmp.eq.s32.totalorder %s24, 0
      %p155 = por %p153, %p154
      %p156 = scmp.ne.s32.totalorder %s148, %s150
      %p157 = scmp.eq.s32.totalorder %s29, 1
      %p158 = por %p156, %p157
      %p159 = scmp.ne.s32.totalorder %s150, %s151
      %p160 = scmp.eq.s32.totalorder %s29, 0
      %p161 = por %p159, %p160
      %p162 = scmp.ne.s32.totalorder %s150, %s151
      %p163 = scmp.eq.s32.totalorder %s30, 1
      %p164 = por %p162, %p163
      %p166 = scmp.ne.s32.totalorder %s151, %s165
      %p167 = scmp.eq.s32.totalorder %s30, 0
      %p168 = por %p166, %p167
      %s169 = ssub.s32 %s32, %s39
      %p170 = scmp.eq.s32.totalorder %s169, 0
      %s172 = sadd.s32 %s171, 1
      %s173 = scalar_select %p170, %s171, %s172
      %p176 = pneg %p170
      %p177 = scmp.eq.s32.totalorder %s24, 1
      %p178 = por %p176, %p177
      %p179 = scmp.ne.s32.totalorder %s171, %s174
      %p180 = scmp.eq.s32.totalorder %s24, 0
      %p181 = por %p179, %p180
      %p182 = scmp.ne.s32.totalorder %s171, %s174
      %p183 = scmp.eq.s32.totalorder %s29, 1
      %p184 = por %p182, %p183
      %p185 = scmp.ne.s32.totalorder %s174, %s175
      %p186 = scmp.eq.s32.totalorder %s29, 0
      %p187 = por %p185, %p186
      %p188 = scmp.ne.s32.totalorder %s174, %s175
      %p189 = scmp.eq.s32.totalorder %s30, 1
      %p190 = por %p188, %p189
      %p192 = scmp.ne.s32.totalorder %s175, %s191
      %p193 = scmp.eq.s32.totalorder %s30, 0
      %p194 = por %p192, %p193
      %s196 = sadd.s32 %s195, 1
      %p199 = scmp.eq.s32.totalorder %s24, 1
      %p200 = scmp.ne.s32.totalorder %s195, %s197
      %p201 = scmp.eq.s32.totalorder %s24, 0
      %p202 = por %p200, %p201
      %p203 = scmp.ne.s32.totalorder %s195, %s197
      %p204 = scmp.eq.s32.totalorder %s29, 1
      %p205 = por %p203, %p204
      %p206 = scmp.ne.s32.totalorder %s197, %s198
      %p207 = scmp.eq.s32.totalorder %s29, 0
      %p208 = por %p206, %p207
      %p209 = scmp.ne.s32.totalorder %s197, %s198
      %p210 = scmp.eq.s32.totalorder %s30, 1
      %p211 = por %p209, %p210
      %p213 = scmp.ne.s32.totalorder %s198, %s212
      %p214 = scmp.eq.s32.totalorder %s30, 0
      %p215 = por %p213, %p214
      %s216 = ssub.s32 %s31, %s43
      %p217 = scmp.eq.s32.totalorder %s216, 0
      %s219 = sadd.s32 %s218, 1
      %s220 = scalar_select %p217, %s218, %s219
      %p223 = pneg %p217
      %p224 = scmp.eq.s32.totalorder %s24, 1
      %p225 = por %p223, %p224
      %p226 = scmp.ne.s32.totalorder %s218, %s221
      %p227 = scmp.eq.s32.totalorder %s24, 0
      %p228 = por %p226, %p227
      %p229 = scmp.ne.s32.totalorder %s218, %s221
      %p230 = scmp.eq.s32.totalorder %s29, 1
      %p231 = por %p229, %p230
      %p232 = scmp.ne.s32.totalorder %s221, %s222
      %p233 = scmp.eq.s32.totalorder %s29, 0
      %p234 = por %p232, %p233
      %p235 = scmp.ne.s32.totalorder %s221, %s222
      %p236 = scmp.eq.s32.totalorder %s30, 1
      %p237 = por %p235, %p236
      %p239 = scmp.ne.s32.totalorder %s222, %s238
      %p240 = scmp.eq.s32.totalorder %s30, 0
      %p241 = por %p239, %p240
      %p242 = scmp.le.s32.totalorder 1, %s24
      %p243 = scmp.lt.s32.totalorder %s24, 3
      %p244 = pnand %p242, %p243
      %p245 = pneg %p244
      // Predicated region
      $region9: #{tpu_custom_call.1} parent=5 // pred_check
        _
      $region10: #{tpu_custom_call.1} parent=5 // pred_check_branch
        %247 = sbr.rel (%p244) target = $region12
      $region11: #{tpu_custom_call.1} parent=5 // pred_region
        %s248 = ssub.s32 %s24, 1
        // Predicated region
        $region13: #{tpu_custom_call.1} parent=11 // pred_check
          %p249 = pneg %p114
        $region14: #{tpu_custom_call.1} parent=11 // pred_check_branch
          %251 = sbr.rel (%p249) target = $region16
        $region15: #{tpu_custom_call.1} parent=11 // pred_region
          %s253 = ssub.s32 512, 512
          %254 = vsyncadd [#allocation8], %s253
          %s255 = smul.addr %s34, 4
          %s256 = smul.addr %s255, 128
          %s257 = scalar_lea.hbm %s2, %s256
          %s258 = sshll.u32 [#allocation9], 4
          %s259 = int_to_ptr.vmem [resolvable:$true] %s258
          %264 = dma.hbm_to_vmem [thread:$0]  %s257, 512, %s259, [#allocation8], 128, 128, 8
        $region16: #{tpu_custom_call.1} parent=11 // pred_fallthru
          _
        // Predicated region
        $region17: #{tpu_custom_call.1} parent=11 // pred_check
          %p265 = pneg %p140
        $region18: #{tpu_custom_call.1} parent=11 // pred_check_branch
          %267 = sbr.rel (%p265) target = $region20
        $region19: #{tpu_custom_call.1} parent=11 // pred_region
          %s269 = ssub.s32 16, 16
          %270 = vsyncadd [#allocation11], %s269
          %s271 = smul.addr %s34, 16
          %s272 = scalar_lea.hbm %s3, %s271
          %s274 = sshll.u32 [#allocation10], 4
          %s275 = int_to_ptr.vmem [resolvable:$true] %s274
          %277 = dma.hbm_to_vmem [thread:$0]  %s272, 16, %s275, [#allocation11]
        $region20: #{tpu_custom_call.1} parent=11 // pred_fallthru
          _
        // Predicated region
        $region21: #{tpu_custom_call.1} parent=11 // pred_check
          %p278 = pneg %p161
        $region22: #{tpu_custom_call.1} parent=11 // pred_check_branch
          %280 = sbr.rel (%p278) target = $region24
        $region23: #{tpu_custom_call.1} parent=11 // pred_region
          %s282 = ssub.s32 16, 16
          %283 = vsyncadd [#allocation11], %s282
          %s285 = sshll.u32 [#allocation12], 4
          %s286 = int_to_ptr.vmem [resolvable:$true] %s285
          %288 = dma.hbm_to_vmem [thread:$0]  %s4, 16, %s286, [#allocation11]
        $region24: #{tpu_custom_call.1} parent=11 // pred_fallthru
          _
        // Predicated region
        $region25: #{tpu_custom_call.1} parent=11 // pred_check
          %p289 = pneg %p187
        $region26: #{tpu_custom_call.1} parent=11 // pred_check_branch
          %291 = sbr.rel (%p289) target = $region28
        $region27: #{tpu_custom_call.1} parent=11 // pred_region
          %s293 = ssub.s32 512, 512
          %294 = vsyncadd [#allocation14], %s293
          %s295 = smul.addr %s34, 4
          %s296 = smul.addr %s295, 128
          %s297 = scalar_lea.hbm %s5, %s296
          %s298 = sshll.u32 [#allocation13], 4
          %s299 = int_to_ptr.vmem [resolvable:$true] %s298
          %304 = dma.hbm_to_vmem [thread:$0]  %s297, 512, %s299, [#allocation14], 128, 128, 8
        $region28: #{tpu_custom_call.1} parent=11 // pred_fallthru
          _
        // Predicated region
        $region29: #{tpu_custom_call.1} parent=11 // pred_check
          %p305 = pneg %p208
        $region30: #{tpu_custom_call.1} parent=11 // pred_check_branch
          %307 = sbr.rel (%p305) target = $region32
        $region31: #{tpu_custom_call.1} parent=11 // pred_region
          %s309 = ssub.s32 16, 16
          %310 = vsyncadd [#allocation14], %s309
          %s312 = sshll.u32 [#allocation15], 4
          %s313 = int_to_ptr.vmem [resolvable:$true] %s312
          %315 = dma.hbm_to_vmem [thread:$0]  %s6, 16, %s313, [#allocation14]
        $region32: #{tpu_custom_call.1} parent=11 // pred_fallthru
          _
      $region12: #{tpu_custom_call.1} parent=5 // pred_fallthru
        _
      %p316 = scmp.lt.s32.totalorder %s24, 2
      // Predicated region
      $region33: #{tpu_custom_call.1} parent=5 // pred_check
        %p317 = pneg %p316
      $region34: #{tpu_custom_call.1} parent=5 // pred_check_branch
        %319 = sbr.rel (%p317) target = $region36
      $region35: #{tpu_custom_call.1} parent=5 // pred_region
        // Predicated region
        $region37: #{tpu_custom_call.1} parent=35 // pred_check
          %p320 = pneg %p56
        $region38: #{tpu_custom_call.1} parent=35 // pred_check_branch
          %322 = sbr.rel (%p320) target = $region40
        $region39: #{tpu_custom_call.1} parent=35 // pred_region
          %s323 = sand.u32 %s46, 1
          %s324 = scalar_lea.sflag [#allocation5], %s323
          %s325 = sand.u32 %s46, 1
          %s326 = smul.addr %s325, 128
          %s327 = scalar_lea.vmem [#allocation4], %s326
          %s329 = ssub.s32 2048, 2048
          %330 = vsyncadd %s324, %s329
          %s331 = smul.addr %s31, 16
          %s332 = smul.addr %s331, 128
          %s333 = scalar_lea.hbm %s0, %s332
          %s334 = sshll.u32 %s327, 4
          %s335 = int_to_ptr.vmem [resolvable:$true] %s334
          %340 = dma.hbm_to_vmem [thread:$0]  %s333, 2048, %s335, %s324, 128, 128, 8
        $region40: #{tpu_custom_call.1} parent=35 // pred_fallthru
          _
        // Predicated region
        $region41: #{tpu_custom_call.1} parent=35 // pred_check
          %p341 = pneg %p82
        $region42: #{tpu_custom_call.1} parent=35 // pred_check_branch
          %343 = sbr.rel (%p341) target = $region44
        $region43: #{tpu_custom_call.1} parent=35 // pred_region
          %s344 = sand.u32 %s24, 1
          %s345 = scalar_lea.sflag [#allocation8], %s344
          %s346 = sand.u32 %s72, 1
          %s347 = scalar_lea.vmem [#allocation7], %s346
          %s349 = ssub.s32 16, 16
          %350 = vsyncadd %s345, %s349
          %s351 = smul.addr %s31, 16
          %s352 = scalar_lea.hbm %s1, %s351
          %s354 = sshll.u32 %s347, 4
          %s355 = int_to_ptr.vmem [resolvable:$true] %s354
          %357 = dma.hbm_to_vmem [thread:$0]  %s352, 16, %s355, %s345
        $region44: #{tpu_custom_call.1} parent=35 // pred_fallthru
          _
      $region36: #{tpu_custom_call.1} parent=5 // pred_fallthru
        _
      %p358 = scmp.le.s32.totalorder 1, %s24
      %p359 = scmp.lt.s32.totalorder %s24, 3
      %p360 = pnand %p358, %p359
      %p361 = pneg %p360
      // Predicated region
      $region45: #{tpu_custom_call.1} parent=5 // pred_check
        _
      $region46: #{tpu_custom_call.1} parent=5 // pred_check_branch
        %363 = sbr.rel (%p360) target = $region48
      $region47: #{tpu_custom_call.1} parent=5 // pred_region
        %s364 = ssub.s32 %s24, 1
        %s365 = sand.u32 %s49, 1
        %s366 = scalar_lea.sflag [#allocation5], %s365
        %s367 = sand.u32 %s49, 1
        %s368 = smul.addr %s367, 128
        %s369 = scalar_lea.vmem [#allocation4], %s368
        // Predicated region
        $region49: #{tpu_custom_call.1} parent=47 // pred_check
          %p370 = pneg %p62
        $region50: #{tpu_custom_call.1} parent=47 // pred_check_branch
          %372 = sbr.rel (%p370) target = $region52
        $region51: #{tpu_custom_call.1} parent=47 // pred_region
          %373 = dma.done %s366, 2048
        $region52: #{tpu_custom_call.1} parent=47 // pred_fallthru
          _
        %s374 = sand.u32 %s29, 1
        %s375 = scalar_lea.sflag [#allocation8], %s374
        %s376 = sand.u32 %s75, 1
        %s377 = scalar_lea.vmem [#allocation7], %s376
        // Predicated region
        $region53: #{tpu_custom_call.1} parent=47 // pred_check
          %p378 = pneg %p88
        $region54: #{tpu_custom_call.1} parent=47 // pred_check_branch
          %380 = sbr.rel (%p378) target = $region56
        $region55: #{tpu_custom_call.1} parent=47 // pred_region
          %381 = dma.done %s375, 16
        $region56: #{tpu_custom_call.1} parent=47 // pred_fallthru
          _
        // Predicated region
        $region57: #{tpu_custom_call.1} parent=47 // pred_check
          %p382 = pneg %p114
        $region58: #{tpu_custom_call.1} parent=47 // pred_check_branch
          %384 = sbr.rel (%p382) target = $region60
        $region59: #{tpu_custom_call.1} parent=47 // pred_region
          %385 = dma.done [#allocation8], 512
        $region60: #{tpu_custom_call.1} parent=47 // pred_fallthru
          _
        // Predicated region
        $region61: #{tpu_custom_call.1} parent=47 // pred_check
          %p386 = pneg %p140
        $region62: #{tpu_custom_call.1} parent=47 // pred_check_branch
          %388 = sbr.rel (%p386) target = $region64
        $region63: #{tpu_custom_call.1} parent=47 // pred_region
          %389 = dma.done [#allocation11], 16
        $region64: #{tpu_custom_call.1} parent=47 // pred_fallthru
          _
        // Predicated region
        $region65: #{tpu_custom_call.1} parent=47 // pred_check
          %p390 = pneg %p161
        $region66: #{tpu_custom_call.1} parent=47 // pred_check_branch
          %392 = sbr.rel (%p390) target = $region68
        $region67: #{tpu_custom_call.1} parent=47 // pred_region
          %393 = dma.done [#allocation11], 16
        $region68: #{tpu_custom_call.1} parent=47 // pred_fallthru
          _
        // Predicated region
        $region69: #{tpu_custom_call.1} parent=47 // pred_check
          %p394 = pneg %p187
        $region70: #{tpu_custom_call.1} parent=47 // pred_check_branch
          %396 = sbr.rel (%p394) target = $region72
        $region71: #{tpu_custom_call.1} parent=47 // pred_region
          %397 = dma.done [#allocation14], 512
        $region72: #{tpu_custom_call.1} parent=47 // pred_fallthru
          _
        // Predicated region
        $region73: #{tpu_custom_call.1} parent=47 // pred_check
          %p398 = pneg %p208
        $region74: #{tpu_custom_call.1} parent=47 // pred_check_branch
          %400 = sbr.rel (%p398) target = $region76
        $region75: #{tpu_custom_call.1} parent=47 // pred_region
          %401 = dma.done [#allocation14], 16
        $region76: #{tpu_custom_call.1} parent=47 // pred_fallthru
          _
        %s402 = sand.u32 %s49, 1
        %s403 = scalar_lea.sflag [#allocation5], %s402
        %s404 = sand.u32 %s49, 1
        %s405 = smul.addr %s404, 128
        %s406 = scalar_lea.vmem [#allocation4], %s405
        %p407 = pneg %p62
        %p408 = pneg %p59
        %s409 = sand.u32 %s29, 1
        %s410 = scalar_lea.sflag [#allocation8], %s409
        %s411 = sand.u32 %s75, 1
        %s412 = scalar_lea.vmem [#allocation7], %s411
        %p413 = pneg %p88
        %p414 = pneg %p85
        %p415 = pneg %p114
        %p416 = pneg %p111
        %p417 = pneg %p140
        %p418 = pneg %p137
        %p419 = pneg %p161
        %p420 = pneg %p158
        %p421 = pneg %p187
        %p422 = pneg %p184
        %p423 = pneg %p208
        %p424 = pneg %p205
        %p425 = pneg %p234
        %p426 = pneg %p231
        %s427 = sand.u32 %s221, 1
        %s428 = scalar_lea.sflag [#allocation6], %s427
        %s429 = sand.u32 %s221, 1
        %s430 = smul.addr %s429, 128
        %s431 = scalar_lea.vmem [#allocation16], %s430
        %v432 = vld [vmem:[%s369] sm:$0xff]
        %v433 = vld [vmem:[%s369 + $0x8] sm:$0xff]
        %v434 = vld [vmem:[%s369 + $0x10] sm:$0xff]
        %v435 = vld [vmem:[%s369 + $0x18] sm:$0xff]
        %v436 = vld [vmem:[%s369 + $0x20] sm:$0xff]
        %v437 = vld [vmem:[%s369 + $0x28] sm:$0xff]
        %v438 = vld [vmem:[%s369 + $0x30] sm:$0xff]
        %v439 = vld [vmem:[%s369 + $0x38] sm:$0xff]
        %v440 = vld [vmem:[%s369 + $0x40] sm:$0xff]
        %v441 = vld [vmem:[%s369 + $0x48] sm:$0xff]
        %v442 = vld [vmem:[%s369 + $0x50] sm:$0xff]
        %v443 = vld [vmem:[%s369 + $0x58] sm:$0xff]
        %v444 = vld [vmem:[%s369 + $0x60] sm:$0xff]
        %v445 = vld [vmem:[%s369 + $0x68] sm:$0xff]
        %v446 = vld [vmem:[%s369 + $0x70] sm:$0xff]
        %v447 = vld [vmem:[%s369 + $0x78] sm:$0xff]
        %v448 = vld [vmem:[%s377] sm:$0x1]
        %v449 = vld [vmem:[#allocation9] sm:$0xff]
        %v450 = vld [vmem:[#allocation9 + $0x8] sm:$0xff]
        %v451 = vld [vmem:[#allocation9 + $0x10] sm:$0xff]
        %v452 = vld [vmem:[#allocation9 + $0x18] sm:$0xff]
        %v453 = vld [vmem:[#allocation10] sm:$0x1]
        %v455 = vlaneseq
        %v456 = vshrl.u32 %v455, 7
        %v457 = vsub.s32 0, %v456
        %v458 = vrot.slane %v453, %v457
        %vm460 = vcmask 261120
        %v462 = vsel %vm460, %v432, 0
        %v465 = vsel %vm460, %v433, 0
        %v468 = vsel %vm460, %v434, 0
        %v471 = vsel %vm460, %v435, 0
        %v474 = vsel %vm460, %v436, 0
        %v477 = vsel %vm460, %v437, 0
        %v480 = vsel %vm460, %v438, 0
        %v483 = vsel %vm460, %v439, 0
        %v486 = vsel %vm460, %v440, 0
        %v489 = vsel %vm460, %v441, 0
        %v492 = vsel %vm460, %v442, 0
        %v495 = vsel %vm460, %v443, 0
        %v498 = vsel %vm460, %v444, 0
        %v501 = vsel %vm460, %v445, 0
        %v504 = vsel %vm460, %v446, 0
        %v507 = vsel %vm460, %v447, 0
        %509 = vmatprep.subr.mxu0 0.0
        %510 = vmatpush1.msra.mxu0 %v449
        %511 = vmatprep.subr.mxu0 0.0
        %512 = vmatpush1.msra.mxu0 %v450
        %513 = vmatprep.subr.mxu0 0.0
        %514 = vmatpush1.msra.mxu0 %v451
        %515 = vmatprep.subr.mxu0 0.0
        %516 = vmatpush1.msra.mxu0 %v452
        %517 = vmatprep.subr.mxu0 0.0
        %518 = vmatpush1.msra.mxu0 0.0
        %519 = vmatprep.subr.mxu0 0.0
        %520 = vmatpush1.msra.mxu0 0.0
        %521 = vmatprep.subr.mxu0 0.0
        %522 = vmatpush1.msra.mxu0 0.0
        %523 = vmatprep.subr.mxu0 0.0
        %524 = vmatpush1.msra.mxu0 0.0
        %525 = vmatprep.subr.mxu0 0.0
        %526 = vmatpush1.msra.mxu0 0.0
        %527 = vmatprep.subr.mxu0 0.0
        %528 = vmatpush1.msra.mxu0 0.0
        %529 = vmatprep.subr.mxu0 0.0
        %530 = vmatpush1.msra.mxu0 0.0
        %531 = vmatprep.subr.mxu0 0.0
        %532 = vmatpush1.msra.mxu0 0.0
        %533 = vmatprep.subr.mxu0 0.0
        %534 = vmatpush1.msra.mxu0 0.0
        %535 = vmatprep.subr.mxu0 0.0
        %536 = vmatpush1.msra.mxu0 0.0
        %537 = vmatprep.subr.mxu0 0.0
        %538 = vmatpush1.msra.mxu0 0.0
        %539 = vmatprep.subr.mxu0 0.0
        %540 = vmatpush1.msra.mxu0 0.0
        %541 = vmatprep.subr.mxu0 0.0
        %542 = vmatpush1.msra.mxu0 0.0
        %543 = vmatprep.subr.mxu0 0.0
        %544 = vmatpush1.msra.mxu0 0.0
        %545 = vmatprep.subr.mxu0 0.0
        %546 = vmatpush1.msra.mxu0 0.0
        %547 = vmatprep.subr.mxu0 0.0
        %548 = vmatpush1.msra.mxu0 0.0
        %549 = vmatprep.subr.mxu0 0.0
        %550 = vmatpush1.msra.mxu0 0.0
        %551 = vmatprep.subr.mxu0 0.0
        %552 = vmatpush1.msra.mxu0 0.0
        %553 = vmatprep.subr.mxu0 0.0
        %554 = vmatpush1.msra.mxu0 0.0
        %555 = vmatprep.subr.mxu0 0.0
        %556 = vmatpush1.msra.mxu0 0.0
        %557 = vmatprep.subr.mxu0 0.0
        %558 = vmatpush1.msra.mxu0 0.0
        %559 = vmatprep.subr.mxu0 0.0
        %560 = vmatpush1.msra.mxu0 0.0
        %561 = vmatprep.subr.mxu0 0.0
        %562 = vmatpush1.msra.mxu0 0.0
        %563 = vmatprep.subr.mxu0 0.0
        %564 = vmatpush1.msra.mxu0 0.0
        %565 = vmatprep.subr.mxu0 0.0
        %566 = vmatpush1.msra.mxu0 0.0
        %567 = vmatprep.subr.mxu0 0.0
        %568 = vmatpush1.msra.mxu0 0.0
        %569 = vmatprep.subr.mxu0 0.0
        %570 = vmatpush1.msra.mxu0 0.0
        %571 = vmatprep.subr.mxu0 0.0
        %572 = vmatpush1.msra.mxu0 0.0
        %573 = vmatprep.mubr.f32.mxu0 0.0
        %574 = vmatmul.mubr.f32.gmra.mrb[0].mxu0 %v462
        %v575 = vpop.f32.mrb[0].mxu0
        %v576 = vadd.f32 %v458, %v575
        %v577 = vpop.f32.mrb[0].mxu0
        %578 = vmatprep.mubr.f32.mxu0 0.0
        %579 = vmatmul.mubr.f32.gmra.mrb[0].mxu0 %v465
        %v580 = vpop.f32.mrb[0].mxu0
        %v581 = vadd.f32 %v458, %v580
        %v582 = vpop.f32.mrb[0].mxu0
        %583 = vmatprep.mubr.f32.mxu0 0.0
        %584 = vmatmul.mubr.f32.gmra.mrb[0].mxu0 %v468
        %v585 = vpop.f32.mrb[0].mxu0
        %v586 = vadd.f32 %v458, %v585
        %v587 = vpop.f32.mrb[0].mxu0
        %588 = vmatprep.mubr.f32.mxu0 0.0
        %589 = vmatmul.mubr.f32.gmra.mrb[0].mxu0 %v471
        %v590 = vpop.f32.mrb[0].mxu0
        %v591 = vadd.f32 %v458, %v590
        %v592 = vpop.f32.mrb[0].mxu0
        %593 = vmatprep.mubr.f32.mxu0 0.0
        %594 = vmatmul.mubr.f32.gmra.mrb[0].mxu0 %v474
        %v595 = vpop.f32.mrb[0].mxu0
        %v596 = vadd.f32 %v458, %v595
        %v597 = vpop.f32.mrb[0].mxu0
        %598 = vmatprep.mubr.f32.mxu0 0.0
        %599 = vmatmul.mubr.f32.gmra.mrb[0].mxu0 %v477
        %v600 = vpop.f32.mrb[0].mxu0
        %v601 = vadd.f32 %v458, %v600
        %v602 = vpop.f32.mrb[0].mxu0
        %603 = vmatprep.mubr.f32.mxu0 0.0
        %604 = vmatmul.mubr.f32.gmra.mrb[0].mxu0 %v480
        %v605 = vpop.f32.mrb[0].mxu0
        %v606 = vadd.f32 %v458, %v605
        %v607 = vpop.f32.mrb[0].mxu0
        %608 = vmatprep.mubr.f32.mxu0 0.0
        %609 = vmatmul.mubr.f32.gmra.mrb[0].mxu0 %v483
        %v610 = vpop.f32.mrb[0].mxu0
        %v611 = vadd.f32 %v458, %v610
        %v612 = vpop.f32.mrb[0].mxu0
        %613 = vmatprep.mubr.f32.mxu0 0.0
        %614 = vmatmul.mubr.f32.gmra.mrb[0].mxu0 %v486
        %v615 = vpop.f32.mrb[0].mxu0
        %v616 = vadd.f32 %v458, %v615
        %v617 = vpop.f32.mrb[0].mxu0
        %618 = vmatprep.mubr.f32.mxu0 0.0
        %619 = vmatmul.mubr.f32.gmra.mrb[0].mxu0 %v489
        %v620 = vpop.f32.mrb[0].mxu0
        %v621 = vadd.f32 %v458, %v620
        %v622 = vpop.f32.mrb[0].mxu0
        %623 = vmatprep.mubr.f32.mxu0 0.0
        %624 = vmatmul.mubr.f32.gmra.mrb[0].mxu0 %v492
        %v625 = vpop.f32.mrb[0].mxu0
        %v626 = vadd.f32 %v458, %v625
        %v627 = vpop.f32.mrb[0].mxu0
        %628 = vmatprep.mubr.f32.mxu0 0.0
        %629 = vmatmul.mubr.f32.gmra.mrb[0].mxu0 %v495
        %v630 = vpop.f32.mrb[0].mxu0
        %v631 = vadd.f32 %v458, %v630
        %v632 = vpop.f32.mrb[0].mxu0
        %633 = vmatprep.mubr.f32.mxu0 0.0
        %634 = vmatmul.mubr.f32.gmra.mrb[0].mxu0 %v498
        %v635 = vpop.f32.mrb[0].mxu0
        %v636 = vadd.f32 %v458, %v635
        %v637 = vpop.f32.mrb[0].mxu0
        %638 = vmatprep.mubr.f32.mxu0 0.0
        %639 = vmatmul.mubr.f32.gmra.mrb[0].mxu0 %v501
        %v640 = vpop.f32.mrb[0].mxu0
        %v641 = vadd.f32 %v458, %v640
        %v642 = vpop.f32.mrb[0].mxu0
        %643 = vmatprep.mubr.f32.mxu0 0.0
        %644 = vmatmul.mubr.f32.gmra.mrb[0].mxu0 %v504
        %v645 = vpop.f32.mrb[0].mxu0
        %v646 = vadd.f32 %v458, %v645
        %v647 = vpop.f32.mrb[0].mxu0
        %648 = vmatprep.mubr.f32.mxu0 0.0
        %649 = vmatmul.mubr.f32.gmra.mrb[0].mxu0 %v507
        %v650 = vpop.f32.mrb[0].mxu0
        %v651 = vadd.f32 %v458, %v650
        %v652 = vpop.f32.mrb[0].mxu0
        %653 = vdwg.mxu0
        %v654 = vld [vmem:[#allocation12] sm:$0x1]
        %v656 = vlaneseq
        %v657 = vshrl.u32 %v656, 7
        %v658 = vsub.s32 0, %v657
        %v659 = vrot.slane %v654, %v658
        %v661 = vmul.f32 %v576, %v659
        %v662 = vmul.f32 %v581, %v659
        %v663 = vmul.f32 %v586, %v659
        %v664 = vmul.f32 %v591, %v659
        %v665 = vmul.f32 %v596, %v659
        %v666 = vmul.f32 %v601, %v659
        %v667 = vmul.f32 %v606, %v659
        %v668 = vmul.f32 %v611, %v659
        %v669 = vmul.f32 %v616, %v659
        %v670 = vmul.f32 %v621, %v659
        %v671 = vmul.f32 %v626, %v659
        %v672 = vmul.f32 %v631, %v659
        %v673 = vmul.f32 %v636, %v659
        %v674 = vmul.f32 %v641, %v659
        %v675 = vmul.f32 %v646, %v659
        %v676 = vmul.f32 %v651, %v659
        %v678 = vlaneseq
        %v679 = vshrl.u32 %v678, 7
        %v680 = vsub.s32 0, %v679
        %v681 = vrot.slane %v448, %v680
        %699 = vrot.lane.b32.xlu0 %v576, 96
        %v700 = vpop.permute.xlu0 %699
        %701 = vrot.lane.b32.xlu0 %v581, 96
        %v702 = vpop.permute.xlu0 %701
        %703 = vrot.lane.b32.xlu0 %v586, 96
        %v704 = vpop.permute.xlu0 %703
        %705 = vrot.lane.b32.xlu0 %v591, 96
        %v706 = vpop.permute.xlu0 %705
        %707 = vrot.lane.b32.xlu0 %v596, 96
        %v708 = vpop.permute.xlu0 %707
        %709 = vrot.lane.b32.xlu0 %v601, 96
        %v710 = vpop.permute.xlu0 %709
        %711 = vrot.lane.b32.xlu0 %v606, 96
        %v712 = vpop.permute.xlu0 %711
        %713 = vrot.lane.b32.xlu0 %v611, 96
        %v714 = vpop.permute.xlu0 %713
        %715 = vrot.lane.b32.xlu0 %v616, 96
        %v716 = vpop.permute.xlu0 %715
        %717 = vrot.lane.b32.xlu0 %v621, 96
        %v718 = vpop.permute.xlu0 %717
        %719 = vrot.lane.b32.xlu0 %v626, 96
        %v720 = vpop.permute.xlu0 %719
        %721 = vrot.lane.b32.xlu0 %v631, 96
        %v722 = vpop.permute.xlu0 %721
        %723 = vrot.lane.b32.xlu0 %v636, 96
        %v724 = vpop.permute.xlu0 %723
        %725 = vrot.lane.b32.xlu0 %v641, 96
        %v726 = vpop.permute.xlu0 %725
        %727 = vrot.lane.b32.xlu0 %v646, 96
        %v728 = vpop.permute.xlu0 %727
        %729 = vrot.lane.b32.xlu0 %v651, 96
        %v730 = vpop.permute.xlu0 %729
        %vm731 = vcmask 64512
        %v733 = vsel %vm731, %v661, 0
        %v736 = vsel %vm731, %v662, 0
        %v739 = vsel %vm731, %v663, 0
        %v742 = vsel %vm731, %v664, 0
        %v745 = vsel %vm731, %v665, 0
        %v748 = vsel %vm731, %v666, 0
        %v751 = vsel %vm731, %v667, 0
        %v754 = vsel %vm731, %v668, 0
        %v757 = vsel %vm731, %v669, 0
        %v760 = vsel %vm731, %v670, 0
        %v763 = vsel %vm731, %v671, 0
        %v766 = vsel %vm731, %v672, 0
        %v769 = vsel %vm731, %v673, 0
        %v772 = vsel %vm731, %v674, 0
        %v775 = vsel %vm731, %v675, 0
        %v778 = vsel %vm731, %v676, 0
        %v780 = vsel %vm731, %v700, 0
        %v782 = vsel %vm731, %v702, 0
        %v784 = vsel %vm731, %v704, 0
        %v786 = vsel %vm731, %v706, 0
        %v788 = vsel %vm731, %v708, 0
        %v790 = vsel %vm731, %v710, 0
        %v792 = vsel %vm731, %v712, 0
        %v794 = vsel %vm731, %v714, 0
        %v796 = vsel %vm731, %v716, 0
        %v798 = vsel %vm731, %v718, 0
        %v800 = vsel %vm731, %v720, 0
        %v802 = vsel %vm731, %v722, 0
        %v804 = vsel %vm731, %v724, 0
        %v806 = vsel %vm731, %v726, 0
        %v808 = vsel %vm731, %v728, 0
        %v810 = vsel %vm731, %v730, 0
        %812 = vmatprep.subr.mxu0 0.0
        %813 = vmatpush1.xpose.msra.mxu0 %v780
        %814 = vmatprep.subr.mxu0 0.0
        %815 = vmatpush1.xpose.msra.mxu0 %v782
        %816 = vmatprep.subr.mxu0 0.0
        %817 = vmatpush1.xpose.msra.mxu0 %v784
        %818 = vmatprep.subr.mxu0 0.0
        %819 = vmatpush1.xpose.msra.mxu0 %v786
        %820 = vmatprep.subr.mxu0 0.0
        %821 = vmatpush1.xpose.msra.mxu0 %v788
        %822 = vmatprep.subr.mxu0 0.0
        %823 = vmatpush1.xpose.msra.mxu0 %v790
        %824 = vmatprep.subr.mxu0 0.0
        %825 = vmatpush1.xpose.msra.mxu0 %v792
        %826 = vmatprep.subr.mxu0 0.0
        %827 = vmatpush1.xpose.msra.mxu0 %v794
        %828 = vmatprep.subr.mxu0 0.0
        %829 = vmatpush1.xpose.msra.mxu0 %v796
        %830 = vmatprep.subr.mxu0 0.0
        %831 = vmatpush1.xpose.msra.mxu0 %v798
        %832 = vmatprep.subr.mxu0 0.0
        %833 = vmatpush1.xpose.msra.mxu0 %v800
        %834 = vmatprep.subr.mxu0 0.0
        %835 = vmatpush1.xpose.msra.mxu0 %v802
        %836 = vmatprep.subr.mxu0 0.0
        %837 = vmatpush1.xpose.msra.mxu0 %v804
        %838 = vmatprep.subr.mxu0 0.0
        %839 = vmatpush1.xpose.msra.mxu0 %v806
        %840 = vmatprep.subr.mxu0 0.0
        %841 = vmatpush1.xpose.msra.mxu0 %v808
        %842 = vmatprep.subr.mxu0 0.0
        %843 = vmatpush1.xpose.msra.mxu0 %v810
        %844 = vmatprep.subr.mxu0 0.0
        %845 = vmatpush1.xpose.msra.mxu0 0.0
        %846 = vmatprep.subr.mxu0 0.0
        %847 = vmatpush1.xpose.msra.mxu0 0.0
        %848 = vmatprep.subr.mxu0 0.0
        %849 = vmatpush1.xpose.msra.mxu0 0.0
        %850 = vmatprep.subr.mxu0 0.0
        %851 = vmatpush1.xpose.msra.mxu0 0.0
        %852 = vmatprep.subr.mxu0 0.0
        %853 = vmatpush1.xpose.msra.mxu0 0.0
        %854 = vmatprep.subr.mxu0 0.0
        %855 = vmatpush1.xpose.msra.mxu0 0.0
        %856 = vmatprep.subr.mxu0 0.0
        %857 = vmatpush1.xpose.msra.mxu0 0.0
        %858 = vmatprep.subr.mxu0 0.0
        %859 = vmatpush1.xpose.msra.mxu0 0.0
        %860 = vmatprep.subr.mxu0 0.0
        %861 = vmatpush1.xpose.msra.mxu0 0.0
        %862 = vmatprep.subr.mxu0 0.0
        %863 = vmatpush1.xpose.msra.mxu0 0.0
        %864 = vmatprep.subr.mxu0 0.0
        %865 = vmatpush1.xpose.msra.mxu0 0.0
        %866 = vmatprep.subr.mxu0 0.0
        %867 = vmatpush1.xpose.msra.mxu0 0.0
        %868 = vmatprep.subr.mxu0 0.0
        %869 = vmatpush1.xpose.msra.mxu0 0.0
        %870 = vmatprep.subr.mxu0 0.0
        %871 = vmatpush1.xpose.msra.mxu0 0.0
        %872 = vmatprep.subr.mxu0 0.0
        %873 = vmatpush1.xpose.msra.mxu0 0.0
        %874 = vmatprep.subr.mxu0 0.0
        %875 = vmatpush1.xpose.msra.mxu0 0.0
        %876 = vmatprep.mubr.f32.mxu0 0.0
        %877 = vmatmul.mubr.f32.gmra.mrb[0].mxu0 %v733
        %v878 = vpop.f32.mrb[0].mxu0
        %v879 = vadd.f32 %v681, %v878
        %v880 = vpop.f32.mrb[0].mxu0
        %881 = vmatprep.mubr.f32.mxu0 0.0
        %882 = vmatmul.mubr.f32.gmra.mrb[0].mxu0 %v736
        %v883 = vpop.f32.mrb[0].mxu0
        %v884 = vadd.f32 %v681, %v883
        %v885 = vpop.f32.mrb[0].mxu0
        %886 = vmatprep.mubr.f32.mxu0 0.0
        %887 = vmatmul.mubr.f32.gmra.mrb[0].mxu0 %v739
        %v888 = vpop.f32.mrb[0].mxu0
        %v889 = vadd.f32 %v681, %v888
        %v890 = vpop.f32.mrb[0].mxu0
        %891 = vmatprep.mubr.f32.mxu0 0.0
        %892 = vmatmul.mubr.f32.gmra.mrb[0].mxu0 %v742
        %v893 = vpop.f32.mrb[0].mxu0
        %v894 = vadd.f32 %v681, %v893
        %v895 = vpop.f32.mrb[0].mxu0
        %896 = vmatprep.mubr.f32.mxu0 0.0
        %897 = vmatmul.mubr.f32.gmra.mrb[0].mxu0 %v745
        %v898 = vpop.f32.mrb[0].mxu0
        %v899 = vadd.f32 %v681, %v898
        %v900 = vpop.f32.mrb[0].mxu0
        %901 = vmatprep.mubr.f32.mxu0 0.0
        %902 = vmatmul.mubr.f32.gmra.mrb[0].mxu0 %v748
        %v903 = vpop.f32.mrb[0].mxu0
        %v904 = vadd.f32 %v681, %v903
        %v905 = vpop.f32.mrb[0].mxu0
        %906 = vmatprep.mubr.f32.mxu0 0.0
        %907 = vmatmul.mubr.f32.gmra.mrb[0].mxu0 %v751
        %v908 = vpop.f32.mrb[0].mxu0
        %v909 = vadd.f32 %v681, %v908
        %v910 = vpop.f32.mrb[0].mxu0
        %911 = vmatprep.mubr.f32.mxu0 0.0
        %912 = vmatmul.mubr.f32.gmra.mrb[0].mxu0 %v754
        %v913 = vpop.f32.mrb[0].mxu0
        %v914 = vadd.f32 %v681, %v913
        %v915 = vpop.f32.mrb[0].mxu0
        %916 = vmatprep.mubr.f32.mxu0 0.0
        %917 = vmatmul.mubr.f32.gmra.mrb[0].mxu0 %v757
        %v918 = vpop.f32.mrb[0].mxu0
        %v919 = vadd.f32 %v681, %v918
        %v920 = vpop.f32.mrb[0].mxu0
        %921 = vmatprep.mubr.f32.mxu0 0.0
        %922 = vmatmul.mubr.f32.gmra.mrb[0].mxu0 %v760
        %v923 = vpop.f32.mrb[0].mxu0
        %v924 = vadd.f32 %v681, %v923
        %v925 = vpop.f32.mrb[0].mxu0
        %926 = vmatprep.mubr.f32.mxu0 0.0
        %927 = vmatmul.mubr.f32.gmra.mrb[0].mxu0 %v763
        %v928 = vpop.f32.mrb[0].mxu0
        %v929 = vadd.f32 %v681, %v928
        %v930 = vpop.f32.mrb[0].mxu0
        %931 = vmatprep.mubr.f32.mxu0 0.0
        %932 = vmatmul.mubr.f32.gmra.mrb[0].mxu0 %v766
        %v933 = vpop.f32.mrb[0].mxu0
        %v934 = vadd.f32 %v681, %v933
        %v935 = vpop.f32.mrb[0].mxu0
        %936 = vmatprep.mubr.f32.mxu0 0.0
        %937 = vmatmul.mubr.f32.gmra.mrb[0].mxu0 %v769
        %v938 = vpop.f32.mrb[0].mxu0
        %v939 = vadd.f32 %v681, %v938
        %v940 = vpop.f32.mrb[0].mxu0
        %941 = vmatprep.mubr.f32.mxu0 0.0
        %942 = vmatmul.mubr.f32.gmra.mrb[0].mxu0 %v772
        %v943 = vpop.f32.mrb[0].mxu0
        %v944 = vadd.f32 %v681, %v943
        %v945 = vpop.f32.mrb[0].mxu0
        %946 = vmatprep.mubr.f32.mxu0 0.0
        %947 = vmatmul.mubr.f32.gmra.mrb[0].mxu0 %v775
        %v948 = vpop.f32.mrb[0].mxu0
        %v949 = vadd.f32 %v681, %v948
        %v950 = vpop.f32.mrb[0].mxu0
        %951 = vmatprep.mubr.f32.mxu0 0.0
        %952 = vmatmul.mubr.f32.gmra.mrb[0].mxu0 %v778
        %v953 = vpop.f32.mrb[0].mxu0
        %v954 = vadd.f32 %v681, %v953
        %v955 = vpop.f32.mrb[0].mxu0
        %956 = vdwg.mxu0
        %957 = vmax.xlane.f32.xlu0 %v879
        %v958 = vpop.xlane.xlu0 %957
        %959 = vmax.xlane.f32.xlu0 %v884
        %v960 = vpop.xlane.xlu0 %959
        %961 = vmax.xlane.f32.xlu0 %v889
        %v962 = vpop.xlane.xlu0 %961
        %963 = vmax.xlane.f32.xlu0 %v894
        %v964 = vpop.xlane.xlu0 %963
        %965 = vmax.xlane.f32.xlu0 %v899
        %v966 = vpop.xlane.xlu0 %965
        %967 = vmax.xlane.f32.xlu0 %v904
        %v968 = vpop.xlane.xlu0 %967
        %969 = vmax.xlane.f32.xlu0 %v909
        %v970 = vpop.xlane.xlu0 %969
        %971 = vmax.xlane.f32.xlu0 %v914
        %v972 = vpop.xlane.xlu0 %971
        %973 = vmax.xlane.f32.xlu0 %v919
        %v974 = vpop.xlane.xlu0 %973
        %975 = vmax.xlane.f32.xlu0 %v924
        %v976 = vpop.xlane.xlu0 %975
        %977 = vmax.xlane.f32.xlu0 %v929
        %v978 = vpop.xlane.xlu0 %977
        %979 = vmax.xlane.f32.xlu0 %v934
        %v980 = vpop.xlane.xlu0 %979
        %981 = vmax.xlane.f32.xlu0 %v939
        %v982 = vpop.xlane.xlu0 %981
        %983 = vmax.xlane.f32.xlu0 %v944
        %v984 = vpop.xlane.xlu0 %983
        %985 = vmax.xlane.f32.xlu0 %v949
        %v986 = vpop.xlane.xlu0 %985
        %987 = vmax.xlane.f32.xlu0 %v954
        %v988 = vpop.xlane.xlu0 %987
        %v989 = vsub.f32 %v879, %v958
        %v990 = vsub.f32 %v884, %v960
        %v991 = vsub.f32 %v889, %v962
        %v992 = vsub.f32 %v894, %v964
        %v993 = vsub.f32 %v899, %v966
        %v994 = vsub.f32 %v904, %v968
        %v995 = vsub.f32 %v909, %v970
        %v996 = vsub.f32 %v914, %v972
        %v997 = vsub.f32 %v919, %v974
        %v998 = vsub.f32 %v924, %v976
        %v999 = vsub.f32 %v929, %v978
        %v1000 = vsub.f32 %v934, %v980
        %v1001 = vsub.f32 %v939, %v982
        %v1002 = vsub.f32 %v944, %v984
        %v1003 = vsub.f32 %v949, %v986
        %v1004 = vsub.f32 %v954, %v988
        %v1005 = vmul.f32 %v989, 1.442695
        %v1006 = vpow.pop %v1005
        %v1007 = vmul.f32 %v990, 1.442695
        %v1008 = vpow.pop %v1007
        %v1009 = vmul.f32 %v991, 1.442695
        %v1010 = vpow.pop %v1009
        %v1011 = vmul.f32 %v992, 1.442695
        %v1012 = vpow.pop %v1011
        %v1013 = vmul.f32 %v993, 1.442695
        %v1014 = vpow.pop %v1013
        %v1015 = vmul.f32 %v994, 1.442695
        %v1016 = vpow.pop %v1015
        %v1017 = vmul.f32 %v995, 1.442695
        %v1018 = vpow.pop %v1017
        %v1019 = vmul.f32 %v996, 1.442695
        %v1020 = vpow.pop %v1019
        %v1021 = vmul.f32 %v997, 1.442695
        %v1022 = vpow.pop %v1021
        %v1023 = vmul.f32 %v998, 1.442695
        %v1024 = vpow.pop %v1023
        %v1025 = vmul.f32 %v999, 1.442695
        %v1026 = vpow.pop %v1025
        %v1027 = vmul.f32 %v1000, 1.442695
        %v1028 = vpow.pop %v1027
        %v1029 = vmul.f32 %v1001, 1.442695
        %v1030 = vpow.pop %v1029
        %v1031 = vmul.f32 %v1002, 1.442695
        %v1032 = vpow.pop %v1031
        %v1033 = vmul.f32 %v1003, 1.442695
        %v1034 = vpow.pop %v1033
        %v1035 = vmul.f32 %v1004, 1.442695
        %v1036 = vpow.pop %v1035
        %1037 = vadd.xlane.f32.xlu0 %v1006
        %v1038 = vpop.xlane.xlu0 %1037
        %1039 = vadd.xlane.f32.xlu0 %v1008
        %v1040 = vpop.xlane.xlu0 %1039
        %1041 = vadd.xlane.f32.xlu0 %v1010
        %v1042 = vpop.xlane.xlu0 %1041
        %1043 = vadd.xlane.f32.xlu0 %v1012
        %v1044 = vpop.xlane.xlu0 %1043
        %1045 = vadd.xlane.f32.xlu0 %v1014
        %v1046 = vpop.xlane.xlu0 %1045
        %1047 = vadd.xlane.f32.xlu0 %v1016
        %v1048 = vpop.xlane.xlu0 %1047
        %1049 = vadd.xlane.f32.xlu0 %v1018
        %v1050 = vpop.xlane.xlu0 %1049
        %1051 = vadd.xlane.f32.xlu0 %v1020
        %v1052 = vpop.xlane.xlu0 %1051
        %1053 = vadd.xlane.f32.xlu0 %v1022
        %v1054 = vpop.xlane.xlu0 %1053
        %1055 = vadd.xlane.f32.xlu0 %v1024
        %v1056 = vpop.xlane.xlu0 %1055
        %1057 = vadd.xlane.f32.xlu0 %v1026
        %v1058 = vpop.xlane.xlu0 %1057
        %1059 = vadd.xlane.f32.xlu0 %v1028
        %v1060 = vpop.xlane.xlu0 %1059
        %1061 = vadd.xlane.f32.xlu0 %v1030
        %v1062 = vpop.xlane.xlu0 %1061
        %1063 = vadd.xlane.f32.xlu0 %v1032
        %v1064 = vpop.xlane.xlu0 %1063
        %1065 = vadd.xlane.f32.xlu0 %v1034
        %v1066 = vpop.xlane.xlu0 %1065
        %1067 = vadd.xlane.f32.xlu0 %v1036
        %v1068 = vpop.xlane.xlu0 %1067
        %v1069 = vrcp.pop %v1038
        %v1070 = vrcp.pop %v1040
        %v1071 = vrcp.pop %v1042
        %v1072 = vrcp.pop %v1044
        %v1073 = vrcp.pop %v1046
        %v1074 = vrcp.pop %v1048
        %v1075 = vrcp.pop %v1050
        %v1076 = vrcp.pop %v1052
        %v1077 = vrcp.pop %v1054
        %v1078 = vrcp.pop %v1056
        %v1079 = vrcp.pop %v1058
        %v1080 = vrcp.pop %v1060
        %v1081 = vrcp.pop %v1062
        %v1082 = vrcp.pop %v1064
        %v1083 = vrcp.pop %v1066
        %v1084 = vrcp.pop %v1068
        %1085 = vrot.lane.b32.xlu0 %v576, 64
        %v1086 = vpop.permute.xlu0 %1085
        %1087 = vrot.lane.b32.xlu0 %v581, 64
        %v1088 = vpop.permute.xlu0 %1087
        %1089 = vrot.lane.b32.xlu0 %v586, 64
        %v1090 = vpop.permute.xlu0 %1089
        %1091 = vrot.lane.b32.xlu0 %v591, 64
        %v1092 = vpop.permute.xlu0 %1091
        %1093 = vrot.lane.b32.xlu0 %v596, 64
        %v1094 = vpop.permute.xlu0 %1093
        %1095 = vrot.lane.b32.xlu0 %v601, 64
        %v1096 = vpop.permute.xlu0 %1095
        %1097 = vrot.lane.b32.xlu0 %v606, 64
        %v1098 = vpop.permute.xlu0 %1097
        %1099 = vrot.lane.b32.xlu0 %v611, 64
        %v1100 = vpop.permute.xlu0 %1099
        %1101 = vrot.lane.b32.xlu0 %v616, 64
        %v1102 = vpop.permute.xlu0 %1101
        %1103 = vrot.lane.b32.xlu0 %v621, 64
        %v1104 = vpop.permute.xlu0 %1103
        %1105 = vrot.lane.b32.xlu0 %v626, 64
        %v1106 = vpop.permute.xlu0 %1105
        %1107 = vrot.lane.b32.xlu0 %v631, 64
        %v1108 = vpop.permute.xlu0 %1107
        %1109 = vrot.lane.b32.xlu0 %v636, 64
        %v1110 = vpop.permute.xlu0 %1109
        %1111 = vrot.lane.b32.xlu0 %v641, 64
        %v1112 = vpop.permute.xlu0 %1111
        %1113 = vrot.lane.b32.xlu0 %v646, 64
        %v1114 = vpop.permute.xlu0 %1113
        %1115 = vrot.lane.b32.xlu0 %v651, 64
        %v1116 = vpop.permute.xlu0 %1115
        %1133 = vmatprep.subr.mxu0 0.0
        %1134 = vmatpush1.msra.mxu0 %v1086
        %1135 = vmatprep.subr.mxu0 0.0
        %1136 = vmatpush1.msra.mxu0 %v1088
        %1137 = vmatprep.subr.mxu0 0.0
        %1138 = vmatpush1.msra.mxu0 %v1090
        %1139 = vmatprep.subr.mxu0 0.0
        %1140 = vmatpush1.msra.mxu0 %v1092
        %1141 = vmatprep.subr.mxu0 0.0
        %1142 = vmatpush1.msra.mxu0 %v1094
        %1143 = vmatprep.subr.mxu0 0.0
        %1144 = vmatpush1.msra.mxu0 %v1096
        %1145 = vmatprep.subr.mxu0 0.0
        %1146 = vmatpush1.msra.mxu0 %v1098
        %1147 = vmatprep.subr.mxu0 0.0
        %1148 = vmatpush1.msra.mxu0 %v1100
        %1149 = vmatprep.subr.mxu0 0.0
        %1150 = vmatpush1.msra.mxu0 %v1102
        %1151 = vmatprep.subr.mxu0 0.0
        %1152 = vmatpush1.msra.mxu0 %v1104
        %1153 = vmatprep.subr.mxu0 0.0
        %1154 = vmatpush1.msra.mxu0 %v1106
        %1155 = vmatprep.subr.mxu0 0.0
        %1156 = vmatpush1.msra.mxu0 %v1108
        %1157 = vmatprep.subr.mxu0 0.0
        %1158 = vmatpush1.msra.mxu0 %v1110
        %1159 = vmatprep.subr.mxu0 0.0
        %1160 = vmatpush1.msra.mxu0 %v1112
        %1161 = vmatprep.subr.mxu0 0.0
        %1162 = vmatpush1.msra.mxu0 %v1114
        %1163 = vmatprep.subr.mxu0 0.0
        %1164 = vmatpush1.msra.mxu0 %v1116
        %1165 = vmatprep.subr.mxu0 0.0
        %1166 = vmatpush1.msra.mxu0 0.0
        %1167 = vmatprep.subr.mxu0 0.0
        %1168 = vmatpush1.msra.mxu0 0.0
        %1169 = vmatprep.subr.mxu0 0.0
        %1170 = vmatpush1.msra.mxu0 0.0
        %1171 = vmatprep.subr.mxu0 0.0
        %1172 = vmatpush1.msra.mxu0 0.0
        %1173 = vmatprep.subr.mxu0 0.0
        %1174 = vmatpush1.msra.mxu0 0.0
        %1175 = vmatprep.subr.mxu0 0.0
        %1176 = vmatpush1.msra.mxu0 0.0
        %1177 = vmatprep.subr.mxu0 0.0
        %1178 = vmatpush1.msra.mxu0 0.0
        %1179 = vmatprep.subr.mxu0 0.0
        %1180 = vmatpush1.msra.mxu0 0.0
        %1181 = vmatprep.subr.mxu0 0.0
        %1182 = vmatpush1.msra.mxu0 0.0
        %1183 = vmatprep.subr.mxu0 0.0
        %1184 = vmatpush1.msra.mxu0 0.0
        %1185 = vmatprep.subr.mxu0 0.0
        %1186 = vmatpush1.msra.mxu0 0.0
        %1187 = vmatprep.subr.mxu0 0.0
        %1188 = vmatpush1.msra.mxu0 0.0
        %1189 = vmatprep.subr.mxu0 0.0
        %1190 = vmatpush1.msra.mxu0 0.0
        %1191 = vmatprep.subr.mxu0 0.0
        %1192 = vmatpush1.msra.mxu0 0.0
        %1193 = vmatprep.subr.mxu0 0.0
        %1194 = vmatpush1.msra.mxu0 0.0
        %1195 = vmatprep.subr.mxu0 0.0
        %1196 = vmatpush1.msra.mxu0 0.0
        %1197 = vmatprep.mubr.f32.mxu0 0.0
        %1198 = vmatmul.mubr.f32.gmra.mrb[0].mxu0 %v1006
        %v1199 = vpop.f32.mrb[0].mxu0
        %v1200 = vadd.f32 0.0, %v1199
        %v1201 = vpop.f32.mrb[0].mxu0
        %1202 = vmatprep.mubr.f32.mxu0 0.0
        %1203 = vmatmul.mubr.f32.gmra.mrb[0].mxu0 %v1008
        %v1204 = vpop.f32.mrb[0].mxu0
        %v1205 = vadd.f32 0.0, %v1204
        %v1206 = vpop.f32.mrb[0].mxu0
        %1207 = vmatprep.mubr.f32.mxu0 0.0
        %1208 = vmatmul.mubr.f32.gmra.mrb[0].mxu0 %v1010
        %v1209 = vpop.f32.mrb[0].mxu0
        %v1210 = vadd.f32 0.0, %v1209
        %v1211 = vpop.f32.mrb[0].mxu0
        %1212 = vmatprep.mubr.f32.mxu0 0.0
        %1213 = vmatmul.mubr.f32.gmra.mrb[0].mxu0 %v1012
        %v1214 = vpop.f32.mrb[0].mxu0
        %v1215 = vadd.f32 0.0, %v1214
        %v1216 = vpop.f32.mrb[0].mxu0
        %1217 = vmatprep.mubr.f32.mxu0 0.0
        %1218 = vmatmul.mubr.f32.gmra.mrb[0].mxu0 %v1014
        %v1219 = vpop.f32.mrb[0].mxu0
        %v1220 = vadd.f32 0.0, %v1219
        %v1221 = vpop.f32.mrb[0].mxu0
        %1222 = vmatprep.mubr.f32.mxu0 0.0
        %1223 = vmatmul.mubr.f32.gmra.mrb[0].mxu0 %v1016
        %v1224 = vpop.f32.mrb[0].mxu0
        %v1225 = vadd.f32 0.0, %v1224
        %v1226 = vpop.f32.mrb[0].mxu0
        %1227 = vmatprep.mubr.f32.mxu0 0.0
        %1228 = vmatmul.mubr.f32.gmra.mrb[0].mxu0 %v1018
        %v1229 = vpop.f32.mrb[0].mxu0
        %v1230 = vadd.f32 0.0, %v1229
        %v1231 = vpop.f32.mrb[0].mxu0
        %1232 = vmatprep.mubr.f32.mxu0 0.0
        %1233 = vmatmul.mubr.f32.gmra.mrb[0].mxu0 %v1020
        %v1234 = vpop.f32.mrb[0].mxu0
        %v1235 = vadd.f32 0.0, %v1234
        %v1236 = vpop.f32.mrb[0].mxu0
        %1237 = vmatprep.mubr.f32.mxu0 0.0
        %1238 = vmatmul.mubr.f32.gmra.mrb[0].mxu0 %v1022
        %v1239 = vpop.f32.mrb[0].mxu0
        %v1240 = vadd.f32 0.0, %v1239
        %v1241 = vpop.f32.mrb[0].mxu0
        %1242 = vmatprep.mubr.f32.mxu0 0.0
        %1243 = vmatmul.mubr.f32.gmra.mrb[0].mxu0 %v1024
        %v1244 = vpop.f32.mrb[0].mxu0
        %v1245 = vadd.f32 0.0, %v1244
        %v1246 = vpop.f32.mrb[0].mxu0
        %1247 = vmatprep.mubr.f32.mxu0 0.0
        %1248 = vmatmul.mubr.f32.gmra.mrb[0].mxu0 %v1026
        %v1249 = vpop.f32.mrb[0].mxu0
        %v1250 = vadd.f32 0.0, %v1249
        %v1251 = vpop.f32.mrb[0].mxu0
        %1252 = vmatprep.mubr.f32.mxu0 0.0
        %1253 = vmatmul.mubr.f32.gmra.mrb[0].mxu0 %v1028
        %v1254 = vpop.f32.mrb[0].mxu0
        %v1255 = vadd.f32 0.0, %v1254
        %v1256 = vpop.f32.mrb[0].mxu0
        %1257 = vmatprep.mubr.f32.mxu0 0.0
        %1258 = vmatmul.mubr.f32.gmra.mrb[0].mxu0 %v1030
        %v1259 = vpop.f32.mrb[0].mxu0
        %v1260 = vadd.f32 0.0, %v1259
        %v1261 = vpop.f32.mrb[0].mxu0
        %1262 = vmatprep.mubr.f32.mxu0 0.0
        %1263 = vmatmul.mubr.f32.gmra.mrb[0].mxu0 %v1032
        %v1264 = vpop.f32.mrb[0].mxu0
        %v1265 = vadd.f32 0.0, %v1264
        %v1266 = vpop.f32.mrb[0].mxu0
        %1267 = vmatprep.mubr.f32.mxu0 0.0
        %1268 = vmatmul.mubr.f32.gmra.mrb[0].mxu0 %v1034
        %v1269 = vpop.f32.mrb[0].mxu0
        %v1270 = vadd.f32 0.0, %v1269
        %v1271 = vpop.f32.mrb[0].mxu0
        %1272 = vmatprep.mubr.f32.mxu0 0.0
        %1273 = vmatmul.mubr.f32.gmra.mrb[0].mxu0 %v1036
        %v1274 = vpop.f32.mrb[0].mxu0
        %v1275 = vadd.f32 0.0, %v1274
        %v1276 = vpop.f32.mrb[0].mxu0
        %1277 = vdwg.mxu0
        %v1278 = vmul.f32 %v1200, %v1069
        %v1279 = vmul.f32 %v1205, %v1070
        %v1280 = vmul.f32 %v1210, %v1071
        %v1281 = vmul.f32 %v1215, %v1072
        %v1282 = vmul.f32 %v1220, %v1073
        %v1283 = vmul.f32 %v1225, %v1074
        %v1284 = vmul.f32 %v1230, %v1075
        %v1285 = vmul.f32 %v1235, %v1076
        %v1286 = vmul.f32 %v1240, %v1077
        %v1287 = vmul.f32 %v1245, %v1078
        %v1288 = vmul.f32 %v1250, %v1079
        %v1289 = vmul.f32 %v1255, %v1080
        %v1290 = vmul.f32 %v1260, %v1081
        %v1291 = vmul.f32 %v1265, %v1082
        %v1292 = vmul.f32 %v1270, %v1083
        %v1293 = vmul.f32 %v1275, %v1084
        %1294 = vst.msk [vmem:[#allocation3] sm:$0xff] %vm731, %v1278
        %1295 = vst.msk [vmem:[#allocation3 + $0x8] sm:$0xff] %vm731, %v1279
        %1296 = vst.msk [vmem:[#allocation3 + $0x10] sm:$0xff] %vm731, %v1280
        %1297 = vst.msk [vmem:[#allocation3 + $0x18] sm:$0xff] %vm731, %v1281
        %1298 = vst.msk [vmem:[#allocation3 + $0x20] sm:$0xff] %vm731, %v1282
        %1299 = vst.msk [vmem:[#allocation3 + $0x28] sm:$0xff] %vm731, %v1283
        %1300 = vst.msk [vmem:[#allocation3 + $0x30] sm:$0xff] %vm731, %v1284
        %1301 = vst.msk [vmem:[#allocation3 + $0x38] sm:$0xff] %vm731, %v1285
        %1302 = vst.msk [vmem:[#allocation3 + $0x40] sm:$0xff] %vm731, %v1286
        %1303 = vst.msk [vmem:[#allocation3 + $0x48] sm:$0xff] %vm731, %v1287
        %1304 = vst.msk [vmem:[#allocation3 + $0x50] sm:$0xff] %vm731, %v1288
        %1305 = vst.msk [vmem:[#allocation3 + $0x58] sm:$0xff] %vm731, %v1289
        %1306 = vst.msk [vmem:[#allocation3 + $0x60] sm:$0xff] %vm731, %v1290
        %1307 = vst.msk [vmem:[#allocation3 + $0x68] sm:$0xff] %vm731, %v1291
        %1308 = vst.msk [vmem:[#allocation3 + $0x70] sm:$0xff] %vm731, %v1292
        %1309 = vst.msk [vmem:[#allocation3 + $0x78] sm:$0xff] %vm731, %v1293
        %1310 = vrot.lane.b32.xlu0 %v661, 120
        %v1311 = vpop.permute.xlu0 %1310
        %1312 = vrot.lane.b32.xlu0 %v662, 120
        %v1313 = vpop.permute.xlu0 %1312
        %1314 = vrot.lane.b32.xlu0 %v663, 120
        %v1315 = vpop.permute.xlu0 %1314
        %1316 = vrot.lane.b32.xlu0 %v664, 120
        %v1317 = vpop.permute.xlu0 %1316
        %1318 = vrot.lane.b32.xlu0 %v665, 120
        %v1319 = vpop.permute.xlu0 %1318
        %1320 = vrot.lane.b32.xlu0 %v666, 120
        %v1321 = vpop.permute.xlu0 %1320
        %1322 = vrot.lane.b32.xlu0 %v667, 120
        %v1323 = vpop.permute.xlu0 %1322
        %1324 = vrot.lane.b32.xlu0 %v668, 120
        %v1325 = vpop.permute.xlu0 %1324
        %1326 = vrot.lane.b32.xlu0 %v669, 120
        %v1327 = vpop.permute.xlu0 %1326
        %1328 = vrot.lane.b32.xlu0 %v670, 120
        %v1329 = vpop.permute.xlu0 %1328
        %1330 = vrot.lane.b32.xlu0 %v671, 120
        %v1331 = vpop.permute.xlu0 %1330
        %1332 = vrot.lane.b32.xlu0 %v672, 120
        %v1333 = vpop.permute.xlu0 %1332
        %1334 = vrot.lane.b32.xlu0 %v673, 120
        %v1335 = vpop.permute.xlu0 %1334
        %1336 = vrot.lane.b32.xlu0 %v674, 120
        %v1337 = vpop.permute.xlu0 %1336
        %1338 = vrot.lane.b32.xlu0 %v675, 120
        %v1339 = vpop.permute.xlu0 %1338
        %1340 = vrot.lane.b32.xlu0 %v676, 120
        %v1341 = vpop.permute.xlu0 %1340
        %1342 = vrot.lane.b32.xlu0 %v576, 88
        %v1343 = vpop.permute.xlu0 %1342
        %1344 = vrot.lane.b32.xlu0 %v581, 88
        %v1345 = vpop.permute.xlu0 %1344
        %1346 = vrot.lane.b32.xlu0 %v586, 88
        %v1347 = vpop.permute.xlu0 %1346
        %1348 = vrot.lane.b32.xlu0 %v591, 88
        %v1349 = vpop.permute.xlu0 %1348
        %1350 = vrot.lane.b32.xlu0 %v596, 88
        %v1351 = vpop.permute.xlu0 %1350
        %1352 = vrot.lane.b32.xlu0 %v601, 88
        %v1353 = vpop.permute.xlu0 %1352
        %1354 = vrot.lane.b32.xlu0 %v606, 88
        %v1355 = vpop.permute.xlu0 %1354
        %1356 = vrot.lane.b32.xlu0 %v611, 88
        %v1357 = vpop.permute.xlu0 %1356
        %1358 = vrot.lane.b32.xlu0 %v616, 88
        %v1359 = vpop.permute.xlu0 %1358
        %1360 = vrot.lane.b32.xlu0 %v621, 88
        %v1361 = vpop.permute.xlu0 %1360
        %1362 = vrot.lane.b32.xlu0 %v626, 88
        %v1363 = vpop.permute.xlu0 %1362
        %1364 = vrot.lane.b32.xlu0 %v631, 88
        %v1365 = vpop.permute.xlu0 %1364
        %1366 = vrot.lane.b32.xlu0 %v636, 88
        %v1367 = vpop.permute.xlu0 %1366
        %1368 = vrot.lane.b32.xlu0 %v641, 88
        %v1369 = vpop.permute.xlu0 %1368
        %1370 = vrot.lane.b32.xlu0 %v646, 88
        %v1371 = vpop.permute.xlu0 %1370
        %1372 = vrot.lane.b32.xlu0 %v651, 88
        %v1373 = vpop.permute.xlu0 %1372
        %v1374 = vsel %vm731, %v1311, 0
        %v1376 = vsel %vm731, %v1313, 0
        %v1378 = vsel %vm731, %v1315, 0
        %v1380 = vsel %vm731, %v1317, 0
        %v1382 = vsel %vm731, %v1319, 0
        %v1384 = vsel %vm731, %v1321, 0
        %v1386 = vsel %vm731, %v1323, 0
        %v1388 = vsel %vm731, %v1325, 0
        %v1390 = vsel %vm731, %v1327, 0
        %v1392 = vsel %vm731, %v1329, 0
        %v1394 = vsel %vm731, %v1331, 0
        %v1396 = vsel %vm731, %v1333, 0
        %v1398 = vsel %vm731, %v1335, 0
        %v1400 = vsel %vm731, %v1337, 0
        %v1402 = vsel %vm731, %v1339, 0
        %v1404 = vsel %vm731, %v1341, 0
        %v1406 = vsel %vm731, %v1343, 0
        %v1408 = vsel %vm731, %v1345, 0
        %v1410 = vsel %vm731, %v1347, 0
        %v1412 = vsel %vm731, %v1349, 0
        %v1414 = vsel %vm731, %v1351, 0
        %v1416 = vsel %vm731, %v1353, 0
        %v1418 = vsel %vm731, %v1355, 0
        %v1420 = vsel %vm731, %v1357, 0
        %v1422 = vsel %vm731, %v1359, 0
        %v1424 = vsel %vm731, %v1361, 0
        %v1426 = vsel %vm731, %v1363, 0
        %v1428 = vsel %vm731, %v1365, 0
        %v1430 = vsel %vm731, %v1367, 0
        %v1432 = vsel %vm731, %v1369, 0
        %v1434 = vsel %vm731, %v1371, 0
        %v1436 = vsel %vm731, %v1373, 0
        %1438 = vmatprep.subr.mxu0 0.0
        %1439 = vmatpush1.xpose.msra.mxu0 %v1406
        %1440 = vmatprep.subr.mxu0 0.0
        %1441 = vmatpush1.xpose.msra.mxu0 %v1408
        %1442 = vmatprep.subr.mxu0 0.0
        %1443 = vmatpush1.xpose.msra.mxu0 %v1410
        %1444 = vmatprep.subr.mxu0 0.0
        %1445 = vmatpush1.xpose.msra.mxu0 %v1412
        %1446 = vmatprep.subr.mxu0 0.0
        %1447 = vmatpush1.xpose.msra.mxu0 %v1414
        %1448 = vmatprep.subr.mxu0 0.0
        %1449 = vmatpush1.xpose.msra.mxu0 %v1416
        %1450 = vmatprep.subr.mxu0 0.0
        %1451 = vmatpush1.xpose.msra.mxu0 %v1418
        %1452 = vmatprep.subr.mxu0 0.0
        %1453 = vmatpush1.xpose.msra.mxu0 %v1420
        %1454 = vmatprep.subr.mxu0 0.0
        %1455 = vmatpush1.xpose.msra.mxu0 %v1422
        %1456 = vmatprep.subr.mxu0 0.0
        %1457 = vmatpush1.xpose.msra.mxu0 %v1424
        %1458 = vmatprep.subr.mxu0 0.0
        %1459 = vmatpush1.xpose.msra.mxu0 %v1426
        %1460 = vmatprep.subr.mxu0 0.0
        %1461 = vmatpush1.xpose.msra.mxu0 %v1428
        %1462 = vmatprep.subr.mxu0 0.0
        %1463 = vmatpush1.xpose.msra.mxu0 %v1430
        %1464 = vmatprep.subr.mxu0 0.0
        %1465 = vmatpush1.xpose.msra.mxu0 %v1432
        %1466 = vmatprep.subr.mxu0 0.0
        %1467 = vmatpush1.xpose.msra.mxu0 %v1434
        %1468 = vmatprep.subr.mxu0 0.0
        %1469 = vmatpush1.xpose.msra.mxu0 %v1436
        %1470 = vmatprep.subr.mxu0 0.0
        %1471 = vmatpush1.xpose.msra.mxu0 0.0
        %1472 = vmatprep.subr.mxu0 0.0
        %1473 = vmatpush1.xpose.msra.mxu0 0.0
        %1474 = vmatprep.subr.mxu0 0.0
        %1475 = vmatpush1.xpose.msra.mxu0 0.0
        %1476 = vmatprep.subr.mxu0 0.0
        %1477 = vmatpush1.xpose.msra.mxu0 0.0
        %1478 = vmatprep.subr.mxu0 0.0
        %1479 = vmatpush1.xpose.msra.mxu0 0.0
        %1480 = vmatprep.subr.mxu0 0.0
        %1481 = vmatpush1.xpose.msra.mxu0 0.0
        %1482 = vmatprep.subr.mxu0 0.0
        %1483 = vmatpush1.xpose.msra.mxu0 0.0
        %1484 = vmatprep.subr.mxu0 0.0
        %1485 = vmatpush1.xpose.msra.mxu0 0.0
        %1486 = vmatprep.subr.mxu0 0.0
        %1487 = vmatpush1.xpose.msra.mxu0 0.0
        %1488 = vmatprep.subr.mxu0 0.0
        %1489 = vmatpush1.xpose.msra.mxu0 0.0
        %1490 = vmatprep.subr.mxu0 0.0
        %1491 = vmatpush1.xpose.msra.mxu0 0.0
        %1492 = vmatprep.subr.mxu0 0.0
        %1493 = vmatpush1.xpose.msra.mxu0 0.0
        %1494 = vmatprep.subr.mxu0 0.0
        %1495 = vmatpush1.xpose.msra.mxu0 0.0
        %1496 = vmatprep.subr.mxu0 0.0
        %1497 = vmatpush1.xpose.msra.mxu0 0.0
        %1498 = vmatprep.subr.mxu0 0.0
        %1499 = vmatpush1.xpose.msra.mxu0 0.0
        %1500 = vmatprep.subr.mxu0 0.0
        %1501 = vmatpush1.xpose.msra.mxu0 0.0
        %1502 = vmatprep.mubr.f32.mxu0 0.0
        %1503 = vmatmul.mubr.f32.gmra.mrb[0].mxu0 %v1374
        %v1504 = vpop.f32.mrb[0].mxu0
        %v1505 = vadd.f32 %v681, %v1504
        %v1506 = vpop.f32.mrb[0].mxu0
        %1507 = vmatprep.mubr.f32.mxu0 0.0
        %1508 = vmatmul.mubr.f32.gmra.mrb[0].mxu0 %v1376
        %v1509 = vpop.f32.mrb[0].mxu0
        %v1510 = vadd.f32 %v681, %v1509
        %v1511 = vpop.f32.mrb[0].mxu0
        %1512 = vmatprep.mubr.f32.mxu0 0.0
        %1513 = vmatmul.mubr.f32.gmra.mrb[0].mxu0 %v1378
        %v1514 = vpop.f32.mrb[0].mxu0
        %v1515 = vadd.f32 %v681, %v1514
        %v1516 = vpop.f32.mrb[0].mxu0
        %1517 = vmatprep.mubr.f32.mxu0 0.0
        %1518 = vmatmul.mubr.f32.gmra.mrb[0].mxu0 %v1380
        %v1519 = vpop.f32.mrb[0].mxu0
        %v1520 = vadd.f32 %v681, %v1519
        %v1521 = vpop.f32.mrb[0].mxu0
        %1522 = vmatprep.mubr.f32.mxu0 0.0
        %1523 = vmatmul.mubr.f32.gmra.mrb[0].mxu0 %v1382
        %v1524 = vpop.f32.mrb[0].mxu0
        %v1525 = vadd.f32 %v681, %v1524
        %v1526 = vpop.f32.mrb[0].mxu0
        %1527 = vmatprep.mubr.f32.mxu0 0.0
        %1528 = vmatmul.mubr.f32.gmra.mrb[0].mxu0 %v1384
        %v1529 = vpop.f32.mrb[0].mxu0
        %v1530 = vadd.f32 %v681, %v1529
        %v1531 = vpop.f32.mrb[0].mxu0
        %1532 = vmatprep.mubr.f32.mxu0 0.0
        %1533 = vmatmul.mubr.f32.gmra.mrb[0].mxu0 %v1386
        %v1534 = vpop.f32.mrb[0].mxu0
        %v1535 = vadd.f32 %v681, %v1534
        %v1536 = vpop.f32.mrb[0].mxu0
        %1537 = vmatprep.mubr.f32.mxu0 0.0
        %1538 = vmatmul.mubr.f32.gmra.mrb[0].mxu0 %v1388
        %v1539 = vpop.f32.mrb[0].mxu0
        %v1540 = vadd.f32 %v681, %v1539
        %v1541 = vpop.f32.mrb[0].mxu0
        %1542 = vmatprep.mubr.f32.mxu0 0.0
        %1543 = vmatmul.mubr.f32.gmra.mrb[0].mxu0 %v1390
        %v1544 = vpop.f32.mrb[0].mxu0
        %v1545 = vadd.f32 %v681, %v1544
        %v1546 = vpop.f32.mrb[0].mxu0
        %1547 = vmatprep.mubr.f32.mxu0 0.0
        %1548 = vmatmul.mubr.f32.gmra.mrb[0].mxu0 %v1392
        %v1549 = vpop.f32.mrb[0].mxu0
        %v1550 = vadd.f32 %v681, %v1549
        %v1551 = vpop.f32.mrb[0].mxu0
        %1552 = vmatprep.mubr.f32.mxu0 0.0
        %1553 = vmatmul.mubr.f32.gmra.mrb[0].mxu0 %v1394
        %v1554 = vpop.f32.mrb[0].mxu0
        %v1555 = vadd.f32 %v681, %v1554
        %v1556 = vpop.f32.mrb[0].mxu0
        %1557 = vmatprep.mubr.f32.mxu0 0.0
        %1558 = vmatmul.mubr.f32.gmra.mrb[0].mxu0 %v1396
        %v1559 = vpop.f32.mrb[0].mxu0
        %v1560 = vadd.f32 %v681, %v1559
        %v1561 = vpop.f32.mrb[0].mxu0
        %1562 = vmatprep.mubr.f32.mxu0 0.0
        %1563 = vmatmul.mubr.f32.gmra.mrb[0].mxu0 %v1398
        %v1564 = vpop.f32.mrb[0].mxu0
        %v1565 = vadd.f32 %v681, %v1564
        %v1566 = vpop.f32.mrb[0].mxu0
        %1567 = vmatprep.mubr.f32.mxu0 0.0
        %1568 = vmatmul.mubr.f32.gmra.mrb[0].mxu0 %v1400
        %v1569 = vpop.f32.mrb[0].mxu0
        %v1570 = vadd.f32 %v681, %v1569
        %v1571 = vpop.f32.mrb[0].mxu0
        %1572 = vmatprep.mubr.f32.mxu0 0.0
        %1573 = vmatmul.mubr.f32.gmra.mrb[0].mxu0 %v1402
        %v1574 = vpop.f32.mrb[0].mxu0
        %v1575 = vadd.f32 %v681, %v1574
        %v1576 = vpop.f32.mrb[0].mxu0
        %1577 = vmatprep.mubr.f32.mxu0 0.0
        %1578 = vmatmul.mubr.f32.gmra.mrb[0].mxu0 %v1404
        %v1579 = vpop.f32.mrb[0].mxu0
        %v1580 = vadd.f32 %v681, %v1579
        %v1581 = vpop.f32.mrb[0].mxu0
        %1582 = vdwg.mxu0
        %1583 = vmax.xlane.f32.xlu0 %v1505
        %v1584 = vpop.xlane.xlu0 %1583
        %1585 = vmax.xlane.f32.xlu0 %v1510
        %v1586 = vpop.xlane.xlu0 %1585
        %1587 = vmax.xlane.f32.xlu0 %v1515
        %v1588 = vpop.xlane.xlu0 %1587
        %1589 = vmax.xlane.f32.xlu0 %v1520
        %v1590 = vpop.xlane.xlu0 %1589
        %1591 = vmax.xlane.f32.xlu0 %v1525
        %v1592 = vpop.xlane.xlu0 %1591
        %1593 = vmax.xlane.f32.xlu0 %v1530
        %v1594 = vpop.xlane.xlu0 %1593
        %1595 = vmax.xlane.f32.xlu0 %v1535
        %v1596 = vpop.xlane.xlu0 %1595
        %1597 = vmax.xlane.f32.xlu0 %v1540
        %v1598 = vpop.xlane.xlu0 %1597
        %1599 = vmax.xlane.f32.xlu0 %v1545
        %v1600 = vpop.xlane.xlu0 %1599
        %1601 = vmax.xlane.f32.xlu0 %v1550
        %v1602 = vpop.xlane.xlu0 %1601
        %1603 = vmax.xlane.f32.xlu0 %v1555
        %v1604 = vpop.xlane.xlu0 %1603
        %1605 = vmax.xlane.f32.xlu0 %v1560
        %v1606 = vpop.xlane.xlu0 %1605
        %1607 = vmax.xlane.f32.xlu0 %v1565
        %v1608 = vpop.xlane.xlu0 %1607
        %1609 = vmax.xlane.f32.xlu0 %v1570
        %v1610 = vpop.xlane.xlu0 %1609
        %1611 = vmax.xlane.f32.xlu0 %v1575
        %v1612 = vpop.xlane.xlu0 %1611
        %1613 = vmax.xlane.f32.xlu0 %v1580
        %v1614 = vpop.xlane.xlu0 %1613
        %v1615 = vsub.f32 %v1505, %v1584
        %v1616 = vsub.f32 %v1510, %v1586
        %v1617 = vsub.f32 %v1515, %v1588
        %v1618 = vsub.f32 %v1520, %v1590
        %v1619 = vsub.f32 %v1525, %v1592
        %v1620 = vsub.f32 %v1530, %v1594
        %v1621 = vsub.f32 %v1535, %v1596
        %v1622 = vsub.f32 %v1540, %v1598
        %v1623 = vsub.f32 %v1545, %v1600
        %v1624 = vsub.f32 %v1550, %v1602
        %v1625 = vsub.f32 %v1555, %v1604
        %v1626 = vsub.f32 %v1560, %v1606
        %v1627 = vsub.f32 %v1565, %v1608
        %v1628 = vsub.f32 %v1570, %v1610
        %v1629 = vsub.f32 %v1575, %v1612
        %v1630 = vsub.f32 %v1580, %v1614
        %v1631 = vmul.f32 %v1615, 1.442695
        %v1632 = vpow.pop %v1631
        %v1633 = vmul.f32 %v1616, 1.442695
        %v1634 = vpow.pop %v1633
        %v1635 = vmul.f32 %v1617, 1.442695
        %v1636 = vpow.pop %v1635
        %v1637 = vmul.f32 %v1618, 1.442695
        %v1638 = vpow.pop %v1637
        %v1639 = vmul.f32 %v1619, 1.442695
        %v1640 = vpow.pop %v1639
        %v1641 = vmul.f32 %v1620, 1.442695
        %v1642 = vpow.pop %v1641
        %v1643 = vmul.f32 %v1621, 1.442695
        %v1644 = vpow.pop %v1643
        %v1645 = vmul.f32 %v1622, 1.442695
        %v1646 = vpow.pop %v1645
        %v1647 = vmul.f32 %v1623, 1.442695
        %v1648 = vpow.pop %v1647
        %v1649 = vmul.f32 %v1624, 1.442695
        %v1650 = vpow.pop %v1649
        %v1651 = vmul.f32 %v1625, 1.442695
        %v1652 = vpow.pop %v1651
        %v1653 = vmul.f32 %v1626, 1.442695
        %v1654 = vpow.pop %v1653
        %v1655 = vmul.f32 %v1627, 1.442695
        %v1656 = vpow.pop %v1655
        %v1657 = vmul.f32 %v1628, 1.442695
        %v1658 = vpow.pop %v1657
        %v1659 = vmul.f32 %v1629, 1.442695
        %v1660 = vpow.pop %v1659
        %v1661 = vmul.f32 %v1630, 1.442695
        %v1662 = vpow.pop %v1661
        %1663 = vadd.xlane.f32.xlu0 %v1632
        %v1664 = vpop.xlane.xlu0 %1663
        %1665 = vadd.xlane.f32.xlu0 %v1634
        %v1666 = vpop.xlane.xlu0 %1665
        %1667 = vadd.xlane.f32.xlu0 %v1636
        %v1668 = vpop.xlane.xlu0 %1667
        %1669 = vadd.xlane.f32.xlu0 %v1638
        %v1670 = vpop.xlane.xlu0 %1669
        %1671 = vadd.xlane.f32.xlu0 %v1640
        %v1672 = vpop.xlane.xlu0 %1671
        %1673 = vadd.xlane.f32.xlu0 %v1642
        %v1674 = vpop.xlane.xlu0 %1673
        %1675 = vadd.xlane.f32.xlu0 %v1644
        %v1676 = vpop.xlane.xlu0 %1675
        %1677 = vadd.xlane.f32.xlu0 %v1646
        %v1678 = vpop.xlane.xlu0 %1677
        %1679 = vadd.xlane.f32.xlu0 %v1648
        %v1680 = vpop.xlane.xlu0 %1679
        %1681 = vadd.xlane.f32.xlu0 %v1650
        %v1682 = vpop.xlane.xlu0 %1681
        %1683 = vadd.xlane.f32.xlu0 %v1652
        %v1684 = vpop.xlane.xlu0 %1683
        %1685 = vadd.xlane.f32.xlu0 %v1654
        %v1686 = vpop.xlane.xlu0 %1685
        %1687 = vadd.xlane.f32.xlu0 %v1656
        %v1688 = vpop.xlane.xlu0 %1687
        %1689 = vadd.xlane.f32.xlu0 %v1658
        %v1690 = vpop.xlane.xlu0 %1689
        %1691 = vadd.xlane.f32.xlu0 %v1660
        %v1692 = vpop.xlane.xlu0 %1691
        %1693 = vadd.xlane.f32.xlu0 %v1662
        %v1694 = vpop.xlane.xlu0 %1693
        %v1695 = vrcp.pop %v1664
        %v1696 = vrcp.pop %v1666
        %v1697 = vrcp.pop %v1668
        %v1698 = vrcp.pop %v1670
        %v1699 = vrcp.pop %v1672
        %v1700 = vrcp.pop %v1674
        %v1701 = vrcp.pop %v1676
        %v1702 = vrcp.pop %v1678
        %v1703 = vrcp.pop %v1680
        %v1704 = vrcp.pop %v1682
        %v1705 = vrcp.pop %v1684
        %v1706 = vrcp.pop %v1686
        %v1707 = vrcp.pop %v1688
        %v1708 = vrcp.pop %v1690
        %v1709 = vrcp.pop %v1692
        %v1710 = vrcp.pop %v1694
        %1711 = vrot.lane.b32.xlu0 %v576, 56
        %v1712 = vpop.permute.xlu0 %1711
        %1713 = vrot.lane.b32.xlu0 %v581, 56
        %v1714 = vpop.permute.xlu0 %1713
        %1715 = vrot.lane.b32.xlu0 %v586, 56
        %v1716 = vpop.permute.xlu0 %1715
        %1717 = vrot.lane.b32.xlu0 %v591, 56
        %v1718 = vpop.permute.xlu0 %1717
        %1719 = vrot.lane.b32.xlu0 %v596, 56
        %v1720 = vpop.permute.xlu0 %1719
        %1721 = vrot.lane.b32.xlu0 %v601, 56
        %v1722 = vpop.permute.xlu0 %1721
        %1723 = vrot.lane.b32.xlu0 %v606, 56
        %v1724 = vpop.permute.xlu0 %1723
        %1725 = vrot.lane.b32.xlu0 %v611, 56
        %v1726 = vpop.permute.xlu0 %1725
        %1727 = vrot.lane.b32.xlu0 %v616, 56
        %v1728 = vpop.permute.xlu0 %1727
        %1729 = vrot.lane.b32.xlu0 %v621, 56
        %v1730 = vpop.permute.xlu0 %1729
        %1731 = vrot.lane.b32.xlu0 %v626, 56
        %v1732 = vpop.permute.xlu0 %1731
        %1733 = vrot.lane.b32.xlu0 %v631, 56
        %v1734 = vpop.permute.xlu0 %1733
        %1735 = vrot.lane.b32.xlu0 %v636, 56
        %v1736 = vpop.permute.xlu0 %1735
        %1737 = vrot.lane.b32.xlu0 %v641, 56
        %v1738 = vpop.permute.xlu0 %1737
        %1739 = vrot.lane.b32.xlu0 %v646, 56
        %v1740 = vpop.permute.xlu0 %1739
        %1741 = vrot.lane.b32.xlu0 %v651, 56
        %v1742 = vpop.permute.xlu0 %1741
        %1759 = vmatprep.subr.mxu0 0.0
        %1760 = vmatpush1.msra.mxu0 %v1712
        %1761 = vmatprep.subr.mxu0 0.0
        %1762 = vmatpush1.msra.mxu0 %v1714
        %1763 = vmatprep.subr.mxu0 0.0
        %1764 = vmatpush1.msra.mxu0 %v1716
        %1765 = vmatprep.subr.mxu0 0.0
        %1766 = vmatpush1.msra.mxu0 %v1718
        %1767 = vmatprep.subr.mxu0 0.0
        %1768 = vmatpush1.msra.mxu0 %v1720
        %1769 = vmatprep.subr.mxu0 0.0
        %1770 = vmatpush1.msra.mxu0 %v1722
        %1771 = vmatprep.subr.mxu0 0.0
        %1772 = vmatpush1.msra.mxu0 %v1724
        %1773 = vmatprep.subr.mxu0 0.0
        %1774 = vmatpush1.msra.mxu0 %v1726
        %1775 = vmatprep.subr.mxu0 0.0
        %1776 = vmatpush1.msra.mxu0 %v1728
        %1777 = vmatprep.subr.mxu0 0.0
        %1778 = vmatpush1.msra.mxu0 %v1730
        %1779 = vmatprep.subr.mxu0 0.0
        %1780 = vmatpush1.msra.mxu0 %v1732
        %1781 = vmatprep.subr.mxu0 0.0
        %1782 = vmatpush1.msra.mxu0 %v1734
        %1783 = vmatprep.subr.mxu0 0.0
        %1784 = vmatpush1.msra.mxu0 %v1736
        %1785 = vmatprep.subr.mxu0 0.0
        %1786 = vmatpush1.msra.mxu0 %v1738
        %1787 = vmatprep.subr.mxu0 0.0
        %1788 = vmatpush1.msra.mxu0 %v1740
        %1789 = vmatprep.subr.mxu0 0.0
        %1790 = vmatpush1.msra.mxu0 %v1742
        %1791 = vmatprep.subr.mxu0 0.0
        %1792 = vmatpush1.msra.mxu0 0.0
        %1793 = vmatprep.subr.mxu0 0.0
        %1794 = vmatpush1.msra.mxu0 0.0
        %1795 = vmatprep.subr.mxu0 0.0
        %1796 = vmatpush1.msra.mxu0 0.0
        %1797 = vmatprep.subr.mxu0 0.0
        %1798 = vmatpush1.msra.mxu0 0.0
        %1799 = vmatprep.subr.mxu0 0.0
        %1800 = vmatpush1.msra.mxu0 0.0
        %1801 = vmatprep.subr.mxu0 0.0
        %1802 = vmatpush1.msra.mxu0 0.0
        %1803 = vmatprep.subr.mxu0 0.0
        %1804 = vmatpush1.msra.mxu0 0.0
        %1805 = vmatprep.subr.mxu0 0.0
        %1806 = vmatpush1.msra.mxu0 0.0
        %1807 = vmatprep.subr.mxu0 0.0
        %1808 = vmatpush1.msra.mxu0 0.0
        %1809 = vmatprep.subr.mxu0 0.0
        %1810 = vmatpush1.msra.mxu0 0.0
        %1811 = vmatprep.subr.mxu0 0.0
        %1812 = vmatpush1.msra.mxu0 0.0
        %1813 = vmatprep.subr.mxu0 0.0
        %1814 = vmatpush1.msra.mxu0 0.0
        %1815 = vmatprep.subr.mxu0 0.0
        %1816 = vmatpush1.msra.mxu0 0.0
        %1817 = vmatprep.subr.mxu0 0.0
        %1818 = vmatpush1.msra.mxu0 0.0
        %1819 = vmatprep.subr.mxu0 0.0
        %1820 = vmatpush1.msra.mxu0 0.0
        %1821 = vmatprep.subr.mxu0 0.0
        %1822 = vmatpush1.msra.mxu0 0.0
        %1823 = vmatprep.mubr.f32.mxu0 0.0
        %1824 = vmatmul.mubr.f32.gmra.mrb[0].mxu0 %v1632
        %v1825 = vpop.f32.mrb[0].mxu0
        %v1826 = vadd.f32 0.0, %v1825
        %v1827 = vpop.f32.mrb[0].mxu0
        %1828 = vmatprep.mubr.f32.mxu0 0.0
        %1829 = vmatmul.mubr.f32.gmra.mrb[0].mxu0 %v1634
        %v1830 = vpop.f32.mrb[0].mxu0
        %v1831 = vadd.f32 0.0, %v1830
        %v1832 = vpop.f32.mrb[0].mxu0
        %1833 = vmatprep.mubr.f32.mxu0 0.0
        %1834 = vmatmul.mubr.f32.gmra.mrb[0].mxu0 %v1636
        %v1835 = vpop.f32.mrb[0].mxu0
        %v1836 = vadd.f32 0.0, %v1835
        %v1837 = vpop.f32.mrb[0].mxu0
        %1838 = vmatprep.mubr.f32.mxu0 0.0
        %1839 = vmatmul.mubr.f32.gmra.mrb[0].mxu0 %v1638
        %v1840 = vpop.f32.mrb[0].mxu0
        %v1841 = vadd.f32 0.0, %v1840
        %v1842 = vpop.f32.mrb[0].mxu0
        %1843 = vmatprep.mubr.f32.mxu0 0.0
        %1844 = vmatmul.mubr.f32.gmra.mrb[0].mxu0 %v1640
        %v1845 = vpop.f32.mrb[0].mxu0
        %v1846 = vadd.f32 0.0, %v1845
        %v1847 = vpop.f32.mrb[0].mxu0
        %1848 = vmatprep.mubr.f32.mxu0 0.0
        %1849 = vmatmul.mubr.f32.gmra.mrb[0].mxu0 %v1642
        %v1850 = vpop.f32.mrb[0].mxu0
        %v1851 = vadd.f32 0.0, %v1850
        %v1852 = vpop.f32.mrb[0].mxu0
        %1853 = vmatprep.mubr.f32.mxu0 0.0
        %1854 = vmatmul.mubr.f32.gmra.mrb[0].mxu0 %v1644
        %v1855 = vpop.f32.mrb[0].mxu0
        %v1856 = vadd.f32 0.0, %v1855
        %v1857 = vpop.f32.mrb[0].mxu0
        %1858 = vmatprep.mubr.f32.mxu0 0.0
        %1859 = vmatmul.mubr.f32.gmra.mrb[0].mxu0 %v1646
        %v1860 = vpop.f32.mrb[0].mxu0
        %v1861 = vadd.f32 0.0, %v1860
        %v1862 = vpop.f32.mrb[0].mxu0
        %1863 = vmatprep.mubr.f32.mxu0 0.0
        %1864 = vmatmul.mubr.f32.gmra.mrb[0].mxu0 %v1648
        %v1865 = vpop.f32.mrb[0].mxu0
        %v1866 = vadd.f32 0.0, %v1865
        %v1867 = vpop.f32.mrb[0].mxu0
        %1868 = vmatprep.mubr.f32.mxu0 0.0
        %1869 = vmatmul.mubr.f32.gmra.mrb[0].mxu0 %v1650
        %v1870 = vpop.f32.mrb[0].mxu0
        %v1871 = vadd.f32 0.0, %v1870
        %v1872 = vpop.f32.mrb[0].mxu0
        %1873 = vmatprep.mubr.f32.mxu0 0.0
        %1874 = vmatmul.mubr.f32.gmra.mrb[0].mxu0 %v1652
        %v1875 = vpop.f32.mrb[0].mxu0
        %v1876 = vadd.f32 0.0, %v1875
        %v1877 = vpop.f32.mrb[0].mxu0
        %1878 = vmatprep.mubr.f32.mxu0 0.0
        %1879 = vmatmul.mubr.f32.gmra.mrb[0].mxu0 %v1654
        %v1880 = vpop.f32.mrb[0].mxu0
        %v1881 = vadd.f32 0.0, %v1880
        %v1882 = vpop.f32.mrb[0].mxu0
        %1883 = vmatprep.mubr.f32.mxu0 0.0
        %1884 = vmatmul.mubr.f32.gmra.mrb[0].mxu0 %v1656
        %v1885 = vpop.f32.mrb[0].mxu0
        %v1886 = vadd.f32 0.0, %v1885
        %v1887 = vpop.f32.mrb[0].mxu0
        %1888 = vmatprep.mubr.f32.mxu0 0.0
        %1889 = vmatmul.mubr.f32.gmra.mrb[0].mxu0 %v1658
        %v1890 = vpop.f32.mrb[0].mxu0
        %v1891 = vadd.f32 0.0, %v1890
        %v1892 = vpop.f32.mrb[0].mxu0
        %1893 = vmatprep.mubr.f32.mxu0 0.0
        %1894 = vmatmul.mubr.f32.gmra.mrb[0].mxu0 %v1660
        %v1895 = vpop.f32.mrb[0].mxu0
        %v1896 = vadd.f32 0.0, %v1895
        %v1897 = vpop.f32.mrb[0].mxu0
        %1898 = vmatprep.mubr.f32.mxu0 0.0
        %1899 = vmatmul.mubr.f32.gmra.mrb[0].mxu0 %v1662
        %v1900 = vpop.f32.mrb[0].mxu0
        %v1901 = vadd.f32 0.0, %v1900
        %v1902 = vpop.f32.mrb[0].mxu0
        %1903 = vdwg.mxu0
        %v1904 = vmul.f32 %v1826, %v1695
        %v1905 = vmul.f32 %v1831, %v1696
        %v1906 = vmul.f32 %v1836, %v1697
        %v1907 = vmul.f32 %v1841, %v1698
        %v1908 = vmul.f32 %v1846, %v1699
        %v1909 = vmul.f32 %v1851, %v1700
        %v1910 = vmul.f32 %v1856, %v1701
        %v1911 = vmul.f32 %v1861, %v1702
        %v1912 = vmul.f32 %v1866, %v1703
        %v1913 = vmul.f32 %v1871, %v1704
        %v1914 = vmul.f32 %v1876, %v1705
        %v1915 = vmul.f32 %v1881, %v1706
        %v1916 = vmul.f32 %v1886, %v1707
        %v1917 = vmul.f32 %v1891, %v1708
        %v1918 = vmul.f32 %v1896, %v1709
        %v1919 = vmul.f32 %v1901, %v1710
        %1936 = vrot.lane.b32.xlu0 %v1904, 8
        %v1937 = vpop.permute.xlu0 %1936
        %1938 = vrot.lane.b32.xlu0 %v1905, 8
        %v1939 = vpop.permute.xlu0 %1938
        %1940 = vrot.lane.b32.xlu0 %v1906, 8
        %v1941 = vpop.permute.xlu0 %1940
        %1942 = vrot.lane.b32.xlu0 %v1907, 8
        %v1943 = vpop.permute.xlu0 %1942
        %1944 = vrot.lane.b32.xlu0 %v1908, 8
        %v1945 = vpop.permute.xlu0 %1944
        %1946 = vrot.lane.b32.xlu0 %v1909, 8
        %v1947 = vpop.permute.xlu0 %1946
        %1948 = vrot.lane.b32.xlu0 %v1910, 8
        %v1949 = vpop.permute.xlu0 %1948
        %1950 = vrot.lane.b32.xlu0 %v1911, 8
        %v1951 = vpop.permute.xlu0 %1950
        %1952 = vrot.lane.b32.xlu0 %v1912, 8
        %v1953 = vpop.permute.xlu0 %1952
        %1954 = vrot.lane.b32.xlu0 %v1913, 8
        %v1955 = vpop.permute.xlu0 %1954
        %1956 = vrot.lane.b32.xlu0 %v1914, 8
        %v1957 = vpop.permute.xlu0 %1956
        %1958 = vrot.lane.b32.xlu0 %v1915, 8
        %v1959 = vpop.permute.xlu0 %1958
        %1960 = vrot.lane.b32.xlu0 %v1916, 8
        %v1961 = vpop.permute.xlu0 %1960
        %1962 = vrot.lane.b32.xlu0 %v1917, 8
        %v1963 = vpop.permute.xlu0 %1962
        %1964 = vrot.lane.b32.xlu0 %v1918, 8
        %v1965 = vpop.permute.xlu0 %1964
        %1966 = vrot.lane.b32.xlu0 %v1919, 8
        %v1967 = vpop.permute.xlu0 %1966
        %vm1984 = vcmask 130112
        %1985 = vst.msk [vmem:[#allocation3] sm:$0xff] %vm1984, %v1937
        %1986 = vst.msk [vmem:[#allocation3 + $0x8] sm:$0xff] %vm1984, %v1939
        %1987 = vst.msk [vmem:[#allocation3 + $0x10] sm:$0xff] %vm1984, %v1941
        %1988 = vst.msk [vmem:[#allocation3 + $0x18] sm:$0xff] %vm1984, %v1943
        %1989 = vst.msk [vmem:[#allocation3 + $0x20] sm:$0xff] %vm1984, %v1945
        %1990 = vst.msk [vmem:[#allocation3 + $0x28] sm:$0xff] %vm1984, %v1947
        %1991 = vst.msk [vmem:[#allocation3 + $0x30] sm:$0xff] %vm1984, %v1949
        %1992 = vst.msk [vmem:[#allocation3 + $0x38] sm:$0xff] %vm1984, %v1951
        %1993 = vst.msk [vmem:[#allocation3 + $0x40] sm:$0xff] %vm1984, %v1953
        %1994 = vst.msk [vmem:[#allocation3 + $0x48] sm:$0xff] %vm1984, %v1955
        %1995 = vst.msk [vmem:[#allocation3 + $0x50] sm:$0xff] %vm1984, %v1957
        %1996 = vst.msk [vmem:[#allocation3 + $0x58] sm:$0xff] %vm1984, %v1959
        %1997 = vst.msk [vmem:[#allocation3 + $0x60] sm:$0xff] %vm1984, %v1961
        %1998 = vst.msk [vmem:[#allocation3 + $0x68] sm:$0xff] %vm1984, %v1963
        %1999 = vst.msk [vmem:[#allocation3 + $0x70] sm:$0xff] %vm1984, %v1965
        %2000 = vst.msk [vmem:[#allocation3 + $0x78] sm:$0xff] %vm1984, %v1967
        %2001 = vrot.lane.b32.xlu0 %v661, 112
        %v2002 = vpop.permute.xlu0 %2001
        %2003 = vrot.lane.b32.xlu0 %v662, 112
        %v2004 = vpop.permute.xlu0 %2003
        %2005 = vrot.lane.b32.xlu0 %v663, 112
        %v2006 = vpop.permute.xlu0 %2005
        %2007 = vrot.lane.b32.xlu0 %v664, 112
        %v2008 = vpop.permute.xlu0 %2007
        %2009 = vrot.lane.b32.xlu0 %v665, 112
        %v2010 = vpop.permute.xlu0 %2009
        %2011 = vrot.lane.b32.xlu0 %v666, 112
        %v2012 = vpop.permute.xlu0 %2011
        %2013 = vrot.lane.b32.xlu0 %v667, 112
        %v2014 = vpop.permute.xlu0 %2013
        %2015 = vrot.lane.b32.xlu0 %v668, 112
        %v2016 = vpop.permute.xlu0 %2015
        %2017 = vrot.lane.b32.xlu0 %v669, 112
        %v2018 = vpop.permute.xlu0 %2017
        %2019 = vrot.lane.b32.xlu0 %v670, 112
        %v2020 = vpop.permute.xlu0 %2019
        %2021 = vrot.lane.b32.xlu0 %v671, 112
        %v2022 = vpop.permute.xlu0 %2021
        %2023 = vrot.lane.b32.xlu0 %v672, 112
        %v2024 = vpop.permute.xlu0 %2023
        %2025 = vrot.lane.b32.xlu0 %v673, 112
        %v2026 = vpop.permute.xlu0 %2025
        %2027 = vrot.lane.b32.xlu0 %v674, 112
        %v2028 = vpop.permute.xlu0 %2027
        %2029 = vrot.lane.b32.xlu0 %v675, 112
        %v2030 = vpop.permute.xlu0 %2029
        %2031 = vrot.lane.b32.xlu0 %v676, 112
        %v2032 = vpop.permute.xlu0 %2031
        %2033 = vrot.lane.b32.xlu0 %v576, 80
        %v2034 = vpop.permute.xlu0 %2033
        %2035 = vrot.lane.b32.xlu0 %v581, 80
        %v2036 = vpop.permute.xlu0 %2035
        %2037 = vrot.lane.b32.xlu0 %v586, 80
        %v2038 = vpop.permute.xlu0 %2037
        %2039 = vrot.lane.b32.xlu0 %v591, 80
        %v2040 = vpop.permute.xlu0 %2039
        %2041 = vrot.lane.b32.xlu0 %v596, 80
        %v2042 = vpop.permute.xlu0 %2041
        %2043 = vrot.lane.b32.xlu0 %v601, 80
        %v2044 = vpop.permute.xlu0 %2043
        %2045 = vrot.lane.b32.xlu0 %v606, 80
        %v2046 = vpop.permute.xlu0 %2045
        %2047 = vrot.lane.b32.xlu0 %v611, 80
        %v2048 = vpop.permute.xlu0 %2047
        %2049 = vrot.lane.b32.xlu0 %v616, 80
        %v2050 = vpop.permute.xlu0 %2049
        %2051 = vrot.lane.b32.xlu0 %v621, 80
        %v2052 = vpop.permute.xlu0 %2051
        %2053 = vrot.lane.b32.xlu0 %v626, 80
        %v2054 = vpop.permute.xlu0 %2053
        %2055 = vrot.lane.b32.xlu0 %v631, 80
        %v2056 = vpop.permute.xlu0 %2055
        %2057 = vrot.lane.b32.xlu0 %v636, 80
        %v2058 = vpop.permute.xlu0 %2057
        %2059 = vrot.lane.b32.xlu0 %v641, 80
        %v2060 = vpop.permute.xlu0 %2059
        %2061 = vrot.lane.b32.xlu0 %v646, 80
        %v2062 = vpop.permute.xlu0 %2061
        %2063 = vrot.lane.b32.xlu0 %v651, 80
        %v2064 = vpop.permute.xlu0 %2063
        %v2065 = vsel %vm731, %v2002, 0
        %v2067 = vsel %vm731, %v2004, 0
        %v2069 = vsel %vm731, %v2006, 0
        %v2071 = vsel %vm731, %v2008, 0
        %v2073 = vsel %vm731, %v2010, 0
        %v2075 = vsel %vm731, %v2012, 0
        %v2077 = vsel %vm731, %v2014, 0
        %v2079 = vsel %vm731, %v2016, 0
        %v2081 = vsel %vm731, %v2018, 0
        %v2083 = vsel %vm731, %v2020, 0
        %v2085 = vsel %vm731, %v2022, 0
        %v2087 = vsel %vm731, %v2024, 0
        %v2089 = vsel %vm731, %v2026, 0
        %v2091 = vsel %vm731, %v2028, 0
        %v2093 = vsel %vm731, %v2030, 0
        %v2095 = vsel %vm731, %v2032, 0
        %v2097 = vsel %vm731, %v2034, 0
        %v2099 = vsel %vm731, %v2036, 0
        %v2101 = vsel %vm731, %v2038, 0
        %v2103 = vsel %vm731, %v2040, 0
        %v2105 = vsel %vm731, %v2042, 0
        %v2107 = vsel %vm731, %v2044, 0
        %v2109 = vsel %vm731, %v2046, 0
        %v2111 = vsel %vm731, %v2048, 0
        %v2113 = vsel %vm731, %v2050, 0
        %v2115 = vsel %vm731, %v2052, 0
        %v2117 = vsel %vm731, %v2054, 0
        %v2119 = vsel %vm731, %v2056, 0
        %v2121 = vsel %vm731, %v2058, 0
        %v2123 = vsel %vm731, %v2060, 0
        %v2125 = vsel %vm731, %v2062, 0
        %v2127 = vsel %vm731, %v2064, 0
        %2129 = vmatprep.subr.mxu0 0.0
        %2130 = vmatpush1.xpose.msra.mxu0 %v2097
        %2131 = vmatprep.subr.mxu0 0.0
        %2132 = vmatpush1.xpose.msra.mxu0 %v2099
        %2133 = vmatprep.subr.mxu0 0.0
        %2134 = vmatpush1.xpose.msra.mxu0 %v2101
        %2135 = vmatprep.subr.mxu0 0.0
        %2136 = vmatpush1.xpose.msra.mxu0 %v2103
        %2137 = vmatprep.subr.mxu0 0.0
        %2138 = vmatpush1.xpose.msra.mxu0 %v2105
        %2139 = vmatprep.subr.mxu0 0.0
        %2140 = vmatpush1.xpose.msra.mxu0 %v2107
        %2141 = vmatprep.subr.mxu0 0.0
        %2142 = vmatpush1.xpose.msra.mxu0 %v2109
        %2143 = vmatprep.subr.mxu0 0.0
        %2144 = vmatpush1.xpose.msra.mxu0 %v2111
        %2145 = vmatprep.subr.mxu0 0.0
        %2146 = vmatpush1.xpose.msra.mxu0 %v2113
        %2147 = vmatprep.subr.mxu0 0.0
        %2148 = vmatpush1.xpose.msra.mxu0 %v2115
        %2149 = vmatprep.subr.mxu0 0.0
        %2150 = vmatpush1.xpose.msra.mxu0 %v2117
        %2151 = vmatprep.subr.mxu0 0.0
        %2152 = vmatpush1.xpose.msra.mxu0 %v2119
        %2153 = vmatprep.subr.mxu0 0.0
        %2154 = vmatpush1.xpose.msra.mxu0 %v2121
        %2155 = vmatprep.subr.mxu0 0.0
        %2156 = vmatpush1.xpose.msra.mxu0 %v2123
        %2157 = vmatprep.subr.mxu0 0.0
        %2158 = vmatpush1.xpose.msra.mxu0 %v2125
        %2159 = vmatprep.subr.mxu0 0.0
        %2160 = vmatpush1.xpose.msra.mxu0 %v2127
        %2161 = vmatprep.subr.mxu0 0.0
        %2162 = vmatpush1.xpose.msra.mxu0 0.0
        %2163 = vmatprep.subr.mxu0 0.0
        %2164 = vmatpush1.xpose.msra.mxu0 0.0
        %2165 = vmatprep.subr.mxu0 0.0
        %2166 = vmatpush1.xpose.msra.mxu0 0.0
        %2167 = vmatprep.subr.mxu0 0.0
        %2168 = vmatpush1.xpose.msra.mxu0 0.0
        %2169 = vmatprep.subr.mxu0 0.0
        %2170 = vmatpush1.xpose.msra.mxu0 0.0
        %2171 = vmatprep.subr.mxu0 0.0
        %2172 = vmatpush1.xpose.msra.mxu0 0.0
        %2173 = vmatprep.subr.mxu0 0.0
        %2174 = vmatpush1.xpose.msra.mxu0 0.0
        %2175 = vmatprep.subr.mxu0 0.0
        %2176 = vmatpush1.xpose.msra.mxu0 0.0
        %2177 = vmatprep.subr.mxu0 0.0
        %2178 = vmatpush1.xpose.msra.mxu0 0.0
        %2179 = vmatprep.subr.mxu0 0.0
        %2180 = vmatpush1.xpose.msra.mxu0 0.0
        %2181 = vmatprep.subr.mxu0 0.0
        %2182 = vmatpush1.xpose.msra.mxu0 0.0
        %2183 = vmatprep.subr.mxu0 0.0
        %2184 = vmatpush1.xpose.msra.mxu0 0.0
        %2185 = vmatprep.subr.mxu0 0.0
        %2186 = vmatpush1.xpose.msra.mxu0 0.0
        %2187 = vmatprep.subr.mxu0 0.0
        %2188 = vmatpush1.xpose.msra.mxu0 0.0
        %2189 = vmatprep.subr.mxu0 0.0
        %2190 = vmatpush1.xpose.msra.mxu0 0.0
        %2191 = vmatprep.subr.mxu0 0.0
        %2192 = vmatpush1.xpose.msra.mxu0 0.0
        %2193 = vmatprep.mubr.f32.mxu0 0.0
        %2194 = vmatmul.mubr.f32.gmra.mrb[0].mxu0 %v2065
        %v2195 = vpop.f32.mrb[0].mxu0
        %v2196 = vadd.f32 %v681, %v2195
        %v2197 = vpop.f32.mrb[0].mxu0
        %2198 = vmatprep.mubr.f32.mxu0 0.0
        %2199 = vmatmul.mubr.f32.gmra.mrb[0].mxu0 %v2067
        %v2200 = vpop.f32.mrb[0].mxu0
        %v2201 = vadd.f32 %v681, %v2200
        %v2202 = vpop.f32.mrb[0].mxu0
        %2203 = vmatprep.mubr.f32.mxu0 0.0
        %2204 = vmatmul.mubr.f32.gmra.mrb[0].mxu0 %v2069
        %v2205 = vpop.f32.mrb[0].mxu0
        %v2206 = vadd.f32 %v681, %v2205
        %v2207 = vpop.f32.mrb[0].mxu0
        %2208 = vmatprep.mubr.f32.mxu0 0.0
        %2209 = vmatmul.mubr.f32.gmra.mrb[0].mxu0 %v2071
        %v2210 = vpop.f32.mrb[0].mxu0
        %v2211 = vadd.f32 %v681, %v2210
        %v2212 = vpop.f32.mrb[0].mxu0
        %2213 = vmatprep.mubr.f32.mxu0 0.0
        %2214 = vmatmul.mubr.f32.gmra.mrb[0].mxu0 %v2073
        %v2215 = vpop.f32.mrb[0].mxu0
        %v2216 = vadd.f32 %v681, %v2215
        %v2217 = vpop.f32.mrb[0].mxu0
        %2218 = vmatprep.mubr.f32.mxu0 0.0
        %2219 = vmatmul.mubr.f32.gmra.mrb[0].mxu0 %v2075
        %v2220 = vpop.f32.mrb[0].mxu0
        %v2221 = vadd.f32 %v681, %v2220
        %v2222 = vpop.f32.mrb[0].mxu0
        %2223 = vmatprep.mubr.f32.mxu0 0.0
        %2224 = vmatmul.mubr.f32.gmra.mrb[0].mxu0 %v2077
        %v2225 = vpop.f32.mrb[0].mxu0
        %v2226 = vadd.f32 %v681, %v2225
        %v2227 = vpop.f32.mrb[0].mxu0
        %2228 = vmatprep.mubr.f32.mxu0 0.0
        %2229 = vmatmul.mubr.f32.gmra.mrb[0].mxu0 %v2079
        %v2230 = vpop.f32.mrb[0].mxu0
        %v2231 = vadd.f32 %v681, %v2230
        %v2232 = vpop.f32.mrb[0].mxu0
        %2233 = vmatprep.mubr.f32.mxu0 0.0
        %2234 = vmatmul.mubr.f32.gmra.mrb[0].mxu0 %v2081
        %v2235 = vpop.f32.mrb[0].mxu0
        %v2236 = vadd.f32 %v681, %v2235
        %v2237 = vpop.f32.mrb[0].mxu0
        %2238 = vmatprep.mubr.f32.mxu0 0.0
        %2239 = vmatmul.mubr.f32.gmra.mrb[0].mxu0 %v2083
        %v2240 = vpop.f32.mrb[0].mxu0
        %v2241 = vadd.f32 %v681, %v2240
        %v2242 = vpop.f32.mrb[0].mxu0
        %2243 = vmatprep.mubr.f32.mxu0 0.0
        %2244 = vmatmul.mubr.f32.gmra.mrb[0].mxu0 %v2085
        %v2245 = vpop.f32.mrb[0].mxu0
        %v2246 = vadd.f32 %v681, %v2245
        %v2247 = vpop.f32.mrb[0].mxu0
        %2248 = vmatprep.mubr.f32.mxu0 0.0
        %2249 = vmatmul.mubr.f32.gmra.mrb[0].mxu0 %v2087
        %v2250 = vpop.f32.mrb[0].mxu0
        %v2251 = vadd.f32 %v681, %v2250
        %v2252 = vpop.f32.mrb[0].mxu0
        %2253 = vmatprep.mubr.f32.mxu0 0.0
        %2254 = vmatmul.mubr.f32.gmra.mrb[0].mxu0 %v2089
        %v2255 = vpop.f32.mrb[0].mxu0
        %v2256 = vadd.f32 %v681, %v2255
        %v2257 = vpop.f32.mrb[0].mxu0
        %2258 = vmatprep.mubr.f32.mxu0 0.0
        %2259 = vmatmul.mubr.f32.gmra.mrb[0].mxu0 %v2091
        %v2260 = vpop.f32.mrb[0].mxu0
        %v2261 = vadd.f32 %v681, %v2260
        %v2262 = vpop.f32.mrb[0].mxu0
        %2263 = vmatprep.mubr.f32.mxu0 0.0
        %2264 = vmatmul.mubr.f32.gmra.mrb[0].mxu0 %v2093
        %v2265 = vpop.f32.mrb[0].mxu0
        %v2266 = vadd.f32 %v681, %v2265
        %v2267 = vpop.f32.mrb[0].mxu0
        %2268 = vmatprep.mubr.f32.mxu0 0.0
        %2269 = vmatmul.mubr.f32.gmra.mrb[0].mxu0 %v2095
        %v2270 = vpop.f32.mrb[0].mxu0
        %v2271 = vadd.f32 %v681, %v2270
        %v2272 = vpop.f32.mrb[0].mxu0
        %2273 = vdwg.mxu0
        %2274 = vmax.xlane.f32.xlu0 %v2196
        %v2275 = vpop.xlane.xlu0 %2274
        %2276 = vmax.xlane.f32.xlu0 %v2201
        %v2277 = vpop.xlane.xlu0 %2276
        %2278 = vmax.xlane.f32.xlu0 %v2206
        %v2279 = vpop.xlane.xlu0 %2278
        %2280 = vmax.xlane.f32.xlu0 %v2211
        %v2281 = vpop.xlane.xlu0 %2280
        %2282 = vmax.xlane.f32.xlu0 %v2216
        %v2283 = vpop.xlane.xlu0 %2282
        %2284 = vmax.xlane.f32.xlu0 %v2221
        %v2285 = vpop.xlane.xlu0 %2284
        %2286 = vmax.xlane.f32.xlu0 %v2226
        %v2287 = vpop.xlane.xlu0 %2286
        %2288 = vmax.xlane.f32.xlu0 %v2231
        %v2289 = vpop.xlane.xlu0 %2288
        %2290 = vmax.xlane.f32.xlu0 %v2236
        %v2291 = vpop.xlane.xlu0 %2290
        %2292 = vmax.xlane.f32.xlu0 %v2241
        %v2293 = vpop.xlane.xlu0 %2292
        %2294 = vmax.xlane.f32.xlu0 %v2246
        %v2295 = vpop.xlane.xlu0 %2294
        %2296 = vmax.xlane.f32.xlu0 %v2251
        %v2297 = vpop.xlane.xlu0 %2296
        %2298 = vmax.xlane.f32.xlu0 %v2256
        %v2299 = vpop.xlane.xlu0 %2298
        %2300 = vmax.xlane.f32.xlu0 %v2261
        %v2301 = vpop.xlane.xlu0 %2300
        %2302 = vmax.xlane.f32.xlu0 %v2266
        %v2303 = vpop.xlane.xlu0 %2302
        %2304 = vmax.xlane.f32.xlu0 %v2271
        %v2305 = vpop.xlane.xlu0 %2304
        %v2306 = vsub.f32 %v2196, %v2275
        %v2307 = vsub.f32 %v2201, %v2277
        %v2308 = vsub.f32 %v2206, %v2279
        %v2309 = vsub.f32 %v2211, %v2281
        %v2310 = vsub.f32 %v2216, %v2283
        %v2311 = vsub.f32 %v2221, %v2285
        %v2312 = vsub.f32 %v2226, %v2287
        %v2313 = vsub.f32 %v2231, %v2289
        %v2314 = vsub.f32 %v2236, %v2291
        %v2315 = vsub.f32 %v2241, %v2293
        %v2316 = vsub.f32 %v2246, %v2295
        %v2317 = vsub.f32 %v2251, %v2297
        %v2318 = vsub.f32 %v2256, %v2299
        %v2319 = vsub.f32 %v2261, %v2301
        %v2320 = vsub.f32 %v2266, %v2303
        %v2321 = vsub.f32 %v2271, %v2305
        %v2322 = vmul.f32 %v2306, 1.442695
        %v2323 = vpow.pop %v2322
        %v2324 = vmul.f32 %v2307, 1.442695
        %v2325 = vpow.pop %v2324
        %v2326 = vmul.f32 %v2308, 1.442695
        %v2327 = vpow.pop %v2326
        %v2328 = vmul.f32 %v2309, 1.442695
        %v2329 = vpow.pop %v2328
        %v2330 = vmul.f32 %v2310, 1.442695
        %v2331 = vpow.pop %v2330
        %v2332 = vmul.f32 %v2311, 1.442695
        %v2333 = vpow.pop %v2332
        %v2334 = vmul.f32 %v2312, 1.442695
        %v2335 = vpow.pop %v2334
        %v2336 = vmul.f32 %v2313, 1.442695
        %v2337 = vpow.pop %v2336
        %v2338 = vmul.f32 %v2314, 1.442695
        %v2339 = vpow.pop %v2338
        %v2340 = vmul.f32 %v2315, 1.442695
        %v2341 = vpow.pop %v2340
        %v2342 = vmul.f32 %v2316, 1.442695
        %v2343 = vpow.pop %v2342
        %v2344 = vmul.f32 %v2317, 1.442695
        %v2345 = vpow.pop %v2344
        %v2346 = vmul.f32 %v2318, 1.442695
        %v2347 = vpow.pop %v2346
        %v2348 = vmul.f32 %v2319, 1.442695
        %v2349 = vpow.pop %v2348
        %v2350 = vmul.f32 %v2320, 1.442695
        %v2351 = vpow.pop %v2350
        %v2352 = vmul.f32 %v2321, 1.442695
        %v2353 = vpow.pop %v2352
        %2354 = vadd.xlane.f32.xlu0 %v2323
        %v2355 = vpop.xlane.xlu0 %2354
        %2356 = vadd.xlane.f32.xlu0 %v2325
        %v2357 = vpop.xlane.xlu0 %2356
        %2358 = vadd.xlane.f32.xlu0 %v2327
        %v2359 = vpop.xlane.xlu0 %2358
        %2360 = vadd.xlane.f32.xlu0 %v2329
        %v2361 = vpop.xlane.xlu0 %2360
        %2362 = vadd.xlane.f32.xlu0 %v2331
        %v2363 = vpop.xlane.xlu0 %2362
        %2364 = vadd.xlane.f32.xlu0 %v2333
        %v2365 = vpop.xlane.xlu0 %2364
        %2366 = vadd.xlane.f32.xlu0 %v2335
        %v2367 = vpop.xlane.xlu0 %2366
        %2368 = vadd.xlane.f32.xlu0 %v2337
        %v2369 = vpop.xlane.xlu0 %2368
        %2370 = vadd.xlane.f32.xlu0 %v2339
        %v2371 = vpop.xlane.xlu0 %2370
        %2372 = vadd.xlane.f32.xlu0 %v2341
        %v2373 = vpop.xlane.xlu0 %2372
        %2374 = vadd.xlane.f32.xlu0 %v2343
        %v2375 = vpop.xlane.xlu0 %2374
        %2376 = vadd.xlane.f32.xlu0 %v2345
        %v2377 = vpop.xlane.xlu0 %2376
        %2378 = vadd.xlane.f32.xlu0 %v2347
        %v2379 = vpop.xlane.xlu0 %2378
        %2380 = vadd.xlane.f32.xlu0 %v2349
        %v2381 = vpop.xlane.xlu0 %2380
        %2382 = vadd.xlane.f32.xlu0 %v2351
        %v2383 = vpop.xlane.xlu0 %2382
        %2384 = vadd.xlane.f32.xlu0 %v2353
        %v2385 = vpop.xlane.xlu0 %2384
        %v2386 = vrcp.pop %v2355
        %v2387 = vrcp.pop %v2357
        %v2388 = vrcp.pop %v2359
        %v2389 = vrcp.pop %v2361
        %v2390 = vrcp.pop %v2363
        %v2391 = vrcp.pop %v2365
        %v2392 = vrcp.pop %v2367
        %v2393 = vrcp.pop %v2369
        %v2394 = vrcp.pop %v2371
        %v2395 = vrcp.pop %v2373
        %v2396 = vrcp.pop %v2375
        %v2397 = vrcp.pop %v2377
        %v2398 = vrcp.pop %v2379
        %v2399 = vrcp.pop %v2381
        %v2400 = vrcp.pop %v2383
        %v2401 = vrcp.pop %v2385
        %2402 = vrot.lane.b32.xlu0 %v576, 48
        %v2403 = vpop.permute.xlu0 %2402
        %2404 = vrot.lane.b32.xlu0 %v581, 48
        %v2405 = vpop.permute.xlu0 %2404
        %2406 = vrot.lane.b32.xlu0 %v586, 48
        %v2407 = vpop.permute.xlu0 %2406
        %2408 = vrot.lane.b32.xlu0 %v591, 48
        %v2409 = vpop.permute.xlu0 %2408
        %2410 = vrot.lane.b32.xlu0 %v596, 48
        %v2411 = vpop.permute.xlu0 %2410
        %2412 = vrot.lane.b32.xlu0 %v601, 48
        %v2413 = vpop.permute.xlu0 %2412
        %2414 = vrot.lane.b32.xlu0 %v606, 48
        %v2415 = vpop.permute.xlu0 %2414
        %2416 = vrot.lane.b32.xlu0 %v611, 48
        %v2417 = vpop.permute.xlu0 %2416
        %2418 = vrot.lane.b32.xlu0 %v616, 48
        %v2419 = vpop.permute.xlu0 %2418
        %2420 = vrot.lane.b32.xlu0 %v621, 48
        %v2421 = vpop.permute.xlu0 %2420
        %2422 = vrot.lane.b32.xlu0 %v626, 48
        %v2423 = vpop.permute.xlu0 %2422
        %2424 = vrot.lane.b32.xlu0 %v631, 48
        %v2425 = vpop.permute.xlu0 %2424
        %2426 = vrot.lane.b32.xlu0 %v636, 48
        %v2427 = vpop.permute.xlu0 %2426
        %2428 = vrot.lane.b32.xlu0 %v641, 48
        %v2429 = vpop.permute.xlu0 %2428
        %2430 = vrot.lane.b32.xlu0 %v646, 48
        %v2431 = vpop.permute.xlu0 %2430
        %2432 = vrot.lane.b32.xlu0 %v651, 48
        %v2433 = vpop.permute.xlu0 %2432
        %2450 = vmatprep.subr.mxu0 0.0
        %2451 = vmatpush1.msra.mxu0 %v2403
        %2452 = vmatprep.subr.mxu0 0.0
        %2453 = vmatpush1.msra.mxu0 %v2405
        %2454 = vmatprep.subr.mxu0 0.0
        %2455 = vmatpush1.msra.mxu0 %v2407
        %2456 = vmatprep.subr.mxu0 0.0
        %2457 = vmatpush1.msra.mxu0 %v2409
        %2458 = vmatprep.subr.mxu0 0.0
        %2459 = vmatpush1.msra.mxu0 %v2411
        %2460 = vmatprep.subr.mxu0 0.0
        %2461 = vmatpush1.msra.mxu0 %v2413
        %2462 = vmatprep.subr.mxu0 0.0
        %2463 = vmatpush1.msra.mxu0 %v2415
        %2464 = vmatprep.subr.mxu0 0.0
        %2465 = vmatpush1.msra.mxu0 %v2417
        %2466 = vmatprep.subr.mxu0 0.0
        %2467 = vmatpush1.msra.mxu0 %v2419
        %2468 = vmatprep.subr.mxu0 0.0
        %2469 = vmatpush1.msra.mxu0 %v2421
        %2470 = vmatprep.subr.mxu0 0.0
        %2471 = vmatpush1.msra.mxu0 %v2423
        %2472 = vmatprep.subr.mxu0 0.0
        %2473 = vmatpush1.msra.mxu0 %v2425
        %2474 = vmatprep.subr.mxu0 0.0
        %2475 = vmatpush1.msra.mxu0 %v2427
        %2476 = vmatprep.subr.mxu0 0.0
        %2477 = vmatpush1.msra.mxu0 %v2429
        %2478 = vmatprep.subr.mxu0 0.0
        %2479 = vmatpush1.msra.mxu0 %v2431
        %2480 = vmatprep.subr.mxu0 0.0
        %2481 = vmatpush1.msra.mxu0 %v2433
        %2482 = vmatprep.subr.mxu0 0.0
        %2483 = vmatpush1.msra.mxu0 0.0
        %2484 = vmatprep.subr.mxu0 0.0
        %2485 = vmatpush1.msra.mxu0 0.0
        %2486 = vmatprep.subr.mxu0 0.0
        %2487 = vmatpush1.msra.mxu0 0.0
        %2488 = vmatprep.subr.mxu0 0.0
        %2489 = vmatpush1.msra.mxu0 0.0
        %2490 = vmatprep.subr.mxu0 0.0
        %2491 = vmatpush1.msra.mxu0 0.0
        %2492 = vmatprep.subr.mxu0 0.0
        %2493 = vmatpush1.msra.mxu0 0.0
        %2494 = vmatprep.subr.mxu0 0.0
        %2495 = vmatpush1.msra.mxu0 0.0
        %2496 = vmatprep.subr.mxu0 0.0
        %2497 = vmatpush1.msra.mxu0 0.0
        %2498 = vmatprep.subr.mxu0 0.0
        %2499 = vmatpush1.msra.mxu0 0.0
        %2500 = vmatprep.subr.mxu0 0.0
        %2501 = vmatpush1.msra.mxu0 0.0
        %2502 = vmatprep.subr.mxu0 0.0
        %2503 = vmatpush1.msra.mxu0 0.0
        %2504 = vmatprep.subr.mxu0 0.0
        %2505 = vmatpush1.msra.mxu0 0.0
        %2506 = vmatprep.subr.mxu0 0.0
        %2507 = vmatpush1.msra.mxu0 0.0
        %2508 = vmatprep.subr.mxu0 0.0
        %2509 = vmatpush1.msra.mxu0 0.0
        %2510 = vmatprep.subr.mxu0 0.0
        %2511 = vmatpush1.msra.mxu0 0.0
        %2512 = vmatprep.subr.mxu0 0.0
        %2513 = vmatpush1.msra.mxu0 0.0
        %2514 = vmatprep.mubr.f32.mxu0 0.0
        %2515 = vmatmul.mubr.f32.gmra.mrb[0].mxu0 %v2323
        %v2516 = vpop.f32.mrb[0].mxu0
        %v2517 = vadd.f32 0.0, %v2516
        %v2518 = vpop.f32.mrb[0].mxu0
        %2519 = vmatprep.mubr.f32.mxu0 0.0
        %2520 = vmatmul.mubr.f32.gmra.mrb[0].mxu0 %v2325
        %v2521 = vpop.f32.mrb[0].mxu0
        %v2522 = vadd.f32 0.0, %v2521
        %v2523 = vpop.f32.mrb[0].mxu0
        %2524 = vmatprep.mubr.f32.mxu0 0.0
        %2525 = vmatmul.mubr.f32.gmra.mrb[0].mxu0 %v2327
        %v2526 = vpop.f32.mrb[0].mxu0
        %v2527 = vadd.f32 0.0, %v2526
        %v2528 = vpop.f32.mrb[0].mxu0
        %2529 = vmatprep.mubr.f32.mxu0 0.0
        %2530 = vmatmul.mubr.f32.gmra.mrb[0].mxu0 %v2329
        %v2531 = vpop.f32.mrb[0].mxu0
        %v2532 = vadd.f32 0.0, %v2531
        %v2533 = vpop.f32.mrb[0].mxu0
        %2534 = vmatprep.mubr.f32.mxu0 0.0
        %2535 = vmatmul.mubr.f32.gmra.mrb[0].mxu0 %v2331
        %v2536 = vpop.f32.mrb[0].mxu0
        %v2537 = vadd.f32 0.0, %v2536
        %v2538 = vpop.f32.mrb[0].mxu0
        %2539 = vmatprep.mubr.f32.mxu0 0.0
        %2540 = vmatmul.mubr.f32.gmra.mrb[0].mxu0 %v2333
        %v2541 = vpop.f32.mrb[0].mxu0
        %v2542 = vadd.f32 0.0, %v2541
        %v2543 = vpop.f32.mrb[0].mxu0
        %2544 = vmatprep.mubr.f32.mxu0 0.0
        %2545 = vmatmul.mubr.f32.gmra.mrb[0].mxu0 %v2335
        %v2546 = vpop.f32.mrb[0].mxu0
        %v2547 = vadd.f32 0.0, %v2546
        %v2548 = vpop.f32.mrb[0].mxu0
        %2549 = vmatprep.mubr.f32.mxu0 0.0
        %2550 = vmatmul.mubr.f32.gmra.mrb[0].mxu0 %v2337
        %v2551 = vpop.f32.mrb[0].mxu0
        %v2552 = vadd.f32 0.0, %v2551
        %v2553 = vpop.f32.mrb[0].mxu0
        %2554 = vmatprep.mubr.f32.mxu0 0.0
        %2555 = vmatmul.mubr.f32.gmra.mrb[0].mxu0 %v2339
        %v2556 = vpop.f32.mrb[0].mxu0
        %v2557 = vadd.f32 0.0, %v2556
        %v2558 = vpop.f32.mrb[0].mxu0
        %2559 = vmatprep.mubr.f32.mxu0 0.0
        %2560 = vmatmul.mubr.f32.gmra.mrb[0].mxu0 %v2341
        %v2561 = vpop.f32.mrb[0].mxu0
        %v2562 = vadd.f32 0.0, %v2561
        %v2563 = vpop.f32.mrb[0].mxu0
        %2564 = vmatprep.mubr.f32.mxu0 0.0
        %2565 = vmatmul.mubr.f32.gmra.mrb[0].mxu0 %v2343
        %v2566 = vpop.f32.mrb[0].mxu0
        %v2567 = vadd.f32 0.0, %v2566
        %v2568 = vpop.f32.mrb[0].mxu0
        %2569 = vmatprep.mubr.f32.mxu0 0.0
        %2570 = vmatmul.mubr.f32.gmra.mrb[0].mxu0 %v2345
        %v2571 = vpop.f32.mrb[0].mxu0
        %v2572 = vadd.f32 0.0, %v2571
        %v2573 = vpop.f32.mrb[0].mxu0
        %2574 = vmatprep.mubr.f32.mxu0 0.0
        %2575 = vmatmul.mubr.f32.gmra.mrb[0].mxu0 %v2347
        %v2576 = vpop.f32.mrb[0].mxu0
        %v2577 = vadd.f32 0.0, %v2576
        %v2578 = vpop.f32.mrb[0].mxu0
        %2579 = vmatprep.mubr.f32.mxu0 0.0
        %2580 = vmatmul.mubr.f32.gmra.mrb[0].mxu0 %v2349
        %v2581 = vpop.f32.mrb[0].mxu0
        %v2582 = vadd.f32 0.0, %v2581
        %v2583 = vpop.f32.mrb[0].mxu0
        %2584 = vmatprep.mubr.f32.mxu0 0.0
        %2585 = vmatmul.mubr.f32.gmra.mrb[0].mxu0 %v2351
        %v2586 = vpop.f32.mrb[0].mxu0
        %v2587 = vadd.f32 0.0, %v2586
        %v2588 = vpop.f32.mrb[0].mxu0
        %2589 = vmatprep.mubr.f32.mxu0 0.0
        %2590 = vmatmul.mubr.f32.gmra.mrb[0].mxu0 %v2353
        %v2591 = vpop.f32.mrb[0].mxu0
        %v2592 = vadd.f32 0.0, %v2591
        %v2593 = vpop.f32.mrb[0].mxu0
        %2594 = vdwg.mxu0
        %v2595 = vmul.f32 %v2517, %v2386
        %v2596 = vmul.f32 %v2522, %v2387
        %v2597 = vmul.f32 %v2527, %v2388
        %v2598 = vmul.f32 %v2532, %v2389
        %v2599 = vmul.f32 %v2537, %v2390
        %v2600 = vmul.f32 %v2542, %v2391
        %v2601 = vmul.f32 %v2547, %v2392
        %v2602 = vmul.f32 %v2552, %v2393
        %v2603 = vmul.f32 %v2557, %v2394
        %v2604 = vmul.f32 %v2562, %v2395
        %v2605 = vmul.f32 %v2567, %v2396
        %v2606 = vmul.f32 %v2572, %v2397
        %v2607 = vmul.f32 %v2577, %v2398
        %v2608 = vmul.f32 %v2582, %v2399
        %v2609 = vmul.f32 %v2587, %v2400
        %v2610 = vmul.f32 %v2592, %v2401
        %2627 = vrot.lane.b32.xlu0 %v2595, 16
        %v2628 = vpop.permute.xlu0 %2627
        %2629 = vrot.lane.b32.xlu0 %v2596, 16
        %v2630 = vpop.permute.xlu0 %2629
        %2631 = vrot.lane.b32.xlu0 %v2597, 16
        %v2632 = vpop.permute.xlu0 %2631
        %2633 = vrot.lane.b32.xlu0 %v2598, 16
        %v2634 = vpop.permute.xlu0 %2633
        %2635 = vrot.lane.b32.xlu0 %v2599, 16
        %v2636 = vpop.permute.xlu0 %2635
        %2637 = vrot.lane.b32.xlu0 %v2600, 16
        %v2638 = vpop.permute.xlu0 %2637
        %2639 = vrot.lane.b32.xlu0 %v2601, 16
        %v2640 = vpop.permute.xlu0 %2639
        %2641 = vrot.lane.b32.xlu0 %v2602, 16
        %v2642 = vpop.permute.xlu0 %2641
        %2643 = vrot.lane.b32.xlu0 %v2603, 16
        %v2644 = vpop.permute.xlu0 %2643
        %2645 = vrot.lane.b32.xlu0 %v2604, 16
        %v2646 = vpop.permute.xlu0 %2645
        %2647 = vrot.lane.b32.xlu0 %v2605, 16
        %v2648 = vpop.permute.xlu0 %2647
        %2649 = vrot.lane.b32.xlu0 %v2606, 16
        %v2650 = vpop.permute.xlu0 %2649
        %2651 = vrot.lane.b32.xlu0 %v2607, 16
        %v2652 = vpop.permute.xlu0 %2651
        %2653 = vrot.lane.b32.xlu0 %v2608, 16
        %v2654 = vpop.permute.xlu0 %2653
        %2655 = vrot.lane.b32.xlu0 %v2609, 16
        %v2656 = vpop.permute.xlu0 %2655
        %2657 = vrot.lane.b32.xlu0 %v2610, 16
        %v2658 = vpop.permute.xlu0 %2657
        %vm2675 = vcmask 195712
        %2676 = vst.msk [vmem:[#allocation3] sm:$0xff] %vm2675, %v2628
        %2677 = vst.msk [vmem:[#allocation3 + $0x8] sm:$0xff] %vm2675, %v2630
        %2678 = vst.msk [vmem:[#allocation3 + $0x10] sm:$0xff] %vm2675, %v2632
        %2679 = vst.msk [vmem:[#allocation3 + $0x18] sm:$0xff] %vm2675, %v2634
        %2680 = vst.msk [vmem:[#allocation3 + $0x20] sm:$0xff] %vm2675, %v2636
        %2681 = vst.msk [vmem:[#allocation3 + $0x28] sm:$0xff] %vm2675, %v2638
        %2682 = vst.msk [vmem:[#allocation3 + $0x30] sm:$0xff] %vm2675, %v2640
        %2683 = vst.msk [vmem:[#allocation3 + $0x38] sm:$0xff] %vm2675, %v2642
        %2684 = vst.msk [vmem:[#allocation3 + $0x40] sm:$0xff] %vm2675, %v2644
        %2685 = vst.msk [vmem:[#allocation3 + $0x48] sm:$0xff] %vm2675, %v2646
        %2686 = vst.msk [vmem:[#allocation3 + $0x50] sm:$0xff] %vm2675, %v2648
        %2687 = vst.msk [vmem:[#allocation3 + $0x58] sm:$0xff] %vm2675, %v2650
        %2688 = vst.msk [vmem:[#allocation3 + $0x60] sm:$0xff] %vm2675, %v2652
        %2689 = vst.msk [vmem:[#allocation3 + $0x68] sm:$0xff] %vm2675, %v2654
        %2690 = vst.msk [vmem:[#allocation3 + $0x70] sm:$0xff] %vm2675, %v2656
        %2691 = vst.msk [vmem:[#allocation3 + $0x78] sm:$0xff] %vm2675, %v2658
        %2692 = vrot.lane.b32.xlu0 %v661, 104
        %v2693 = vpop.permute.xlu0 %2692
        %2694 = vrot.lane.b32.xlu0 %v662, 104
        %v2695 = vpop.permute.xlu0 %2694
        %2696 = vrot.lane.b32.xlu0 %v663, 104
        %v2697 = vpop.permute.xlu0 %2696
        %2698 = vrot.lane.b32.xlu0 %v664, 104
        %v2699 = vpop.permute.xlu0 %2698
        %2700 = vrot.lane.b32.xlu0 %v665, 104
        %v2701 = vpop.permute.xlu0 %2700
        %2702 = vrot.lane.b32.xlu0 %v666, 104
        %v2703 = vpop.permute.xlu0 %2702
        %2704 = vrot.lane.b32.xlu0 %v667, 104
        %v2705 = vpop.permute.xlu0 %2704
        %2706 = vrot.lane.b32.xlu0 %v668, 104
        %v2707 = vpop.permute.xlu0 %2706
        %2708 = vrot.lane.b32.xlu0 %v669, 104
        %v2709 = vpop.permute.xlu0 %2708
        %2710 = vrot.lane.b32.xlu0 %v670, 104
        %v2711 = vpop.permute.xlu0 %2710
        %2712 = vrot.lane.b32.xlu0 %v671, 104
        %v2713 = vpop.permute.xlu0 %2712
        %2714 = vrot.lane.b32.xlu0 %v672, 104
        %v2715 = vpop.permute.xlu0 %2714
        %2716 = vrot.lane.b32.xlu0 %v673, 104
        %v2717 = vpop.permute.xlu0 %2716
        %2718 = vrot.lane.b32.xlu0 %v674, 104
        %v2719 = vpop.permute.xlu0 %2718
        %2720 = vrot.lane.b32.xlu0 %v675, 104
        %v2721 = vpop.permute.xlu0 %2720
        %2722 = vrot.lane.b32.xlu0 %v676, 104
        %v2723 = vpop.permute.xlu0 %2722
        %2724 = vrot.lane.b32.xlu0 %v576, 72
        %v2725 = vpop.permute.xlu0 %2724
        %2726 = vrot.lane.b32.xlu0 %v581, 72
        %v2727 = vpop.permute.xlu0 %2726
        %2728 = vrot.lane.b32.xlu0 %v586, 72
        %v2729 = vpop.permute.xlu0 %2728
        %2730 = vrot.lane.b32.xlu0 %v591, 72
        %v2731 = vpop.permute.xlu0 %2730
        %2732 = vrot.lane.b32.xlu0 %v596, 72
        %v2733 = vpop.permute.xlu0 %2732
        %2734 = vrot.lane.b32.xlu0 %v601, 72
        %v2735 = vpop.permute.xlu0 %2734
        %2736 = vrot.lane.b32.xlu0 %v606, 72
        %v2737 = vpop.permute.xlu0 %2736
        %2738 = vrot.lane.b32.xlu0 %v611, 72
        %v2739 = vpop.permute.xlu0 %2738
        %2740 = vrot.lane.b32.xlu0 %v616, 72
        %v2741 = vpop.permute.xlu0 %2740
        %2742 = vrot.lane.b32.xlu0 %v621, 72
        %v2743 = vpop.permute.xlu0 %2742
        %2744 = vrot.lane.b32.xlu0 %v626, 72
        %v2745 = vpop.permute.xlu0 %2744
        %2746 = vrot.lane.b32.xlu0 %v631, 72
        %v2747 = vpop.permute.xlu0 %2746
        %2748 = vrot.lane.b32.xlu0 %v636, 72
        %v2749 = vpop.permute.xlu0 %2748
        %2750 = vrot.lane.b32.xlu0 %v641, 72
        %v2751 = vpop.permute.xlu0 %2750
        %2752 = vrot.lane.b32.xlu0 %v646, 72
        %v2753 = vpop.permute.xlu0 %2752
        %2754 = vrot.lane.b32.xlu0 %v651, 72
        %v2755 = vpop.permute.xlu0 %2754
        %v2756 = vsel %vm731, %v2693, 0
        %v2758 = vsel %vm731, %v2695, 0
        %v2760 = vsel %vm731, %v2697, 0
        %v2762 = vsel %vm731, %v2699, 0
        %v2764 = vsel %vm731, %v2701, 0
        %v2766 = vsel %vm731, %v2703, 0
        %v2768 = vsel %vm731, %v2705, 0
        %v2770 = vsel %vm731, %v2707, 0
        %v2772 = vsel %vm731, %v2709, 0
        %v2774 = vsel %vm731, %v2711, 0
        %v2776 = vsel %vm731, %v2713, 0
        %v2778 = vsel %vm731, %v2715, 0
        %v2780 = vsel %vm731, %v2717, 0
        %v2782 = vsel %vm731, %v2719, 0
        %v2784 = vsel %vm731, %v2721, 0
        %v2786 = vsel %vm731, %v2723, 0
        %v2788 = vsel %vm731, %v2725, 0
        %v2790 = vsel %vm731, %v2727, 0
        %v2792 = vsel %vm731, %v2729, 0
        %v2794 = vsel %vm731, %v2731, 0
        %v2796 = vsel %vm731, %v2733, 0
        %v2798 = vsel %vm731, %v2735, 0
        %v2800 = vsel %vm731, %v2737, 0
        %v2802 = vsel %vm731, %v2739, 0
        %v2804 = vsel %vm731, %v2741, 0
        %v2806 = vsel %vm731, %v2743, 0
        %v2808 = vsel %vm731, %v2745, 0
        %v2810 = vsel %vm731, %v2747, 0
        %v2812 = vsel %vm731, %v2749, 0
        %v2814 = vsel %vm731, %v2751, 0
        %v2816 = vsel %vm731, %v2753, 0
        %v2818 = vsel %vm731, %v2755, 0
        %2820 = vmatprep.subr.mxu0 0.0
        %2821 = vmatpush1.xpose.msra.mxu0 %v2788
        %2822 = vmatprep.subr.mxu0 0.0
        %2823 = vmatpush1.xpose.msra.mxu0 %v2790
        %2824 = vmatprep.subr.mxu0 0.0
        %2825 = vmatpush1.xpose.msra.mxu0 %v2792
        %2826 = vmatprep.subr.mxu0 0.0
        %2827 = vmatpush1.xpose.msra.mxu0 %v2794
        %2828 = vmatprep.subr.mxu0 0.0
        %2829 = vmatpush1.xpose.msra.mxu0 %v2796
        %2830 = vmatprep.subr.mxu0 0.0
        %2831 = vmatpush1.xpose.msra.mxu0 %v2798
        %2832 = vmatprep.subr.mxu0 0.0
        %2833 = vmatpush1.xpose.msra.mxu0 %v2800
        %2834 = vmatprep.subr.mxu0 0.0
        %2835 = vmatpush1.xpose.msra.mxu0 %v2802
        %2836 = vmatprep.subr.mxu0 0.0
        %2837 = vmatpush1.xpose.msra.mxu0 %v2804
        %2838 = vmatprep.subr.mxu0 0.0
        %2839 = vmatpush1.xpose.msra.mxu0 %v2806
        %2840 = vmatprep.subr.mxu0 0.0
        %2841 = vmatpush1.xpose.msra.mxu0 %v2808
        %2842 = vmatprep.subr.mxu0 0.0
        %2843 = vmatpush1.xpose.msra.mxu0 %v2810
        %2844 = vmatprep.subr.mxu0 0.0
        %2845 = vmatpush1.xpose.msra.mxu0 %v2812
        %2846 = vmatprep.subr.mxu0 0.0
        %2847 = vmatpush1.xpose.msra.mxu0 %v2814
        %2848 = vmatprep.subr.mxu0 0.0
        %2849 = vmatpush1.xpose.msra.mxu0 %v2816
        %2850 = vmatprep.subr.mxu0 0.0
        %2851 = vmatpush1.xpose.msra.mxu0 %v2818
        %2852 = vmatprep.subr.mxu0 0.0
        %2853 = vmatpush1.xpose.msra.mxu0 0.0
        %2854 = vmatprep.subr.mxu0 0.0
        %2855 = vmatpush1.xpose.msra.mxu0 0.0
        %2856 = vmatprep.subr.mxu0 0.0
        %2857 = vmatpush1.xpose.msra.mxu0 0.0
        %2858 = vmatprep.subr.mxu0 0.0
        %2859 = vmatpush1.xpose.msra.mxu0 0.0
        %2860 = vmatprep.subr.mxu0 0.0
        %2861 = vmatpush1.xpose.msra.mxu0 0.0
        %2862 = vmatprep.subr.mxu0 0.0
        %2863 = vmatpush1.xpose.msra.mxu0 0.0
        %2864 = vmatprep.subr.mxu0 0.0
        %2865 = vmatpush1.xpose.msra.mxu0 0.0
        %2866 = vmatprep.subr.mxu0 0.0
        %2867 = vmatpush1.xpose.msra.mxu0 0.0
        %2868 = vmatprep.subr.mxu0 0.0
        %2869 = vmatpush1.xpose.msra.mxu0 0.0
        %2870 = vmatprep.subr.mxu0 0.0
        %2871 = vmatpush1.xpose.msra.mxu0 0.0
        %2872 = vmatprep.subr.mxu0 0.0
        %2873 = vmatpush1.xpose.msra.mxu0 0.0
        %2874 = vmatprep.subr.mxu0 0.0
        %2875 = vmatpush1.xpose.msra.mxu0 0.0
        %2876 = vmatprep.subr.mxu0 0.0
        %2877 = vmatpush1.xpose.msra.mxu0 0.0
        %2878 = vmatprep.subr.mxu0 0.0
        %2879 = vmatpush1.xpose.msra.mxu0 0.0
        %2880 = vmatprep.subr.mxu0 0.0
        %2881 = vmatpush1.xpose.msra.mxu0 0.0
        %2882 = vmatprep.subr.mxu0 0.0
        %2883 = vmatpush1.xpose.msra.mxu0 0.0
        %2884 = vmatprep.mubr.f32.mxu0 0.0
        %2885 = vmatmul.mubr.f32.gmra.mrb[0].mxu0 %v2756
        %v2886 = vpop.f32.mrb[0].mxu0
        %v2887 = vadd.f32 %v681, %v2886
        %v2888 = vpop.f32.mrb[0].mxu0
        %2889 = vmatprep.mubr.f32.mxu0 0.0
        %2890 = vmatmul.mubr.f32.gmra.mrb[0].mxu0 %v2758
        %v2891 = vpop.f32.mrb[0].mxu0
        %v2892 = vadd.f32 %v681, %v2891
        %v2893 = vpop.f32.mrb[0].mxu0
        %2894 = vmatprep.mubr.f32.mxu0 0.0
        %2895 = vmatmul.mubr.f32.gmra.mrb[0].mxu0 %v2760
        %v2896 = vpop.f32.mrb[0].mxu0
        %v2897 = vadd.f32 %v681, %v2896
        %v2898 = vpop.f32.mrb[0].mxu0
        %2899 = vmatprep.mubr.f32.mxu0 0.0
        %2900 = vmatmul.mubr.f32.gmra.mrb[0].mxu0 %v2762
        %v2901 = vpop.f32.mrb[0].mxu0
        %v2902 = vadd.f32 %v681, %v2901
        %v2903 = vpop.f32.mrb[0].mxu0
        %2904 = vmatprep.mubr.f32.mxu0 0.0
        %2905 = vmatmul.mubr.f32.gmra.mrb[0].mxu0 %v2764
        %v2906 = vpop.f32.mrb[0].mxu0
        %v2907 = vadd.f32 %v681, %v2906
        %v2908 = vpop.f32.mrb[0].mxu0
        %2909 = vmatprep.mubr.f32.mxu0 0.0
        %2910 = vmatmul.mubr.f32.gmra.mrb[0].mxu0 %v2766
        %v2911 = vpop.f32.mrb[0].mxu0
        %v2912 = vadd.f32 %v681, %v2911
        %v2913 = vpop.f32.mrb[0].mxu0
        %2914 = vmatprep.mubr.f32.mxu0 0.0
        %2915 = vmatmul.mubr.f32.gmra.mrb[0].mxu0 %v2768
        %v2916 = vpop.f32.mrb[0].mxu0
        %v2917 = vadd.f32 %v681, %v2916
        %v2918 = vpop.f32.mrb[0].mxu0
        %2919 = vmatprep.mubr.f32.mxu0 0.0
        %2920 = vmatmul.mubr.f32.gmra.mrb[0].mxu0 %v2770
        %v2921 = vpop.f32.mrb[0].mxu0
        %v2922 = vadd.f32 %v681, %v2921
        %v2923 = vpop.f32.mrb[0].mxu0
        %2924 = vmatprep.mubr.f32.mxu0 0.0
        %2925 = vmatmul.mubr.f32.gmra.mrb[0].mxu0 %v2772
        %v2926 = vpop.f32.mrb[0].mxu0
        %v2927 = vadd.f32 %v681, %v2926
        %v2928 = vpop.f32.mrb[0].mxu0
        %2929 = vmatprep.mubr.f32.mxu0 0.0
        %2930 = vmatmul.mubr.f32.gmra.mrb[0].mxu0 %v2774
        %v2931 = vpop.f32.mrb[0].mxu0
        %v2932 = vadd.f32 %v681, %v2931
        %v2933 = vpop.f32.mrb[0].mxu0
        %2934 = vmatprep.mubr.f32.mxu0 0.0
        %2935 = vmatmul.mubr.f32.gmra.mrb[0].mxu0 %v2776
        %v2936 = vpop.f32.mrb[0].mxu0
        %v2937 = vadd.f32 %v681, %v2936
        %v2938 = vpop.f32.mrb[0].mxu0
        %2939 = vmatprep.mubr.f32.mxu0 0.0
        %2940 = vmatmul.mubr.f32.gmra.mrb[0].mxu0 %v2778
        %v2941 = vpop.f32.mrb[0].mxu0
        %v2942 = vadd.f32 %v681, %v2941
        %v2943 = vpop.f32.mrb[0].mxu0
        %2944 = vmatprep.mubr.f32.mxu0 0.0
        %2945 = vmatmul.mubr.f32.gmra.mrb[0].mxu0 %v2780
        %v2946 = vpop.f32.mrb[0].mxu0
        %v2947 = vadd.f32 %v681, %v2946
        %v2948 = vpop.f32.mrb[0].mxu0
        %2949 = vmatprep.mubr.f32.mxu0 0.0
        %2950 = vmatmul.mubr.f32.gmra.mrb[0].mxu0 %v2782
        %v2951 = vpop.f32.mrb[0].mxu0
        %v2952 = vadd.f32 %v681, %v2951
        %v2953 = vpop.f32.mrb[0].mxu0
        %2954 = vmatprep.mubr.f32.mxu0 0.0
        %2955 = vmatmul.mubr.f32.gmra.mrb[0].mxu0 %v2784
        %v2956 = vpop.f32.mrb[0].mxu0
        %v2957 = vadd.f32 %v681, %v2956
        %v2958 = vpop.f32.mrb[0].mxu0
        %2959 = vmatprep.mubr.f32.mxu0 0.0
        %2960 = vmatmul.mubr.f32.gmra.mrb[0].mxu0 %v2786
        %v2961 = vpop.f32.mrb[0].mxu0
        %v2962 = vadd.f32 %v681, %v2961
        %v2963 = vpop.f32.mrb[0].mxu0
        %2964 = vdwg.mxu0
        %2965 = vmax.xlane.f32.xlu0 %v2887
        %v2966 = vpop.xlane.xlu0 %2965
        %2967 = vmax.xlane.f32.xlu0 %v2892
        %v2968 = vpop.xlane.xlu0 %2967
        %2969 = vmax.xlane.f32.xlu0 %v2897
        %v2970 = vpop.xlane.xlu0 %2969
        %2971 = vmax.xlane.f32.xlu0 %v2902
        %v2972 = vpop.xlane.xlu0 %2971
        %2973 = vmax.xlane.f32.xlu0 %v2907
        %v2974 = vpop.xlane.xlu0 %2973
        %2975 = vmax.xlane.f32.xlu0 %v2912
        %v2976 = vpop.xlane.xlu0 %2975
        %2977 = vmax.xlane.f32.xlu0 %v2917
        %v2978 = vpop.xlane.xlu0 %2977
        %2979 = vmax.xlane.f32.xlu0 %v2922
        %v2980 = vpop.xlane.xlu0 %2979
        %2981 = vmax.xlane.f32.xlu0 %v2927
        %v2982 = vpop.xlane.xlu0 %2981
        %2983 = vmax.xlane.f32.xlu0 %v2932
        %v2984 = vpop.xlane.xlu0 %2983
        %2985 = vmax.xlane.f32.xlu0 %v2937
        %v2986 = vpop.xlane.xlu0 %2985
        %2987 = vmax.xlane.f32.xlu0 %v2942
        %v2988 = vpop.xlane.xlu0 %2987
        %2989 = vmax.xlane.f32.xlu0 %v2947
        %v2990 = vpop.xlane.xlu0 %2989
        %2991 = vmax.xlane.f32.xlu0 %v2952
        %v2992 = vpop.xlane.xlu0 %2991
        %2993 = vmax.xlane.f32.xlu0 %v2957
        %v2994 = vpop.xlane.xlu0 %2993
        %2995 = vmax.xlane.f32.xlu0 %v2962
        %v2996 = vpop.xlane.xlu0 %2995
        %v2997 = vsub.f32 %v2887, %v2966
        %v2998 = vsub.f32 %v2892, %v2968
        %v2999 = vsub.f32 %v2897, %v2970
        %v3000 = vsub.f32 %v2902, %v2972
        %v3001 = vsub.f32 %v2907, %v2974
        %v3002 = vsub.f32 %v2912, %v2976
        %v3003 = vsub.f32 %v2917, %v2978
        %v3004 = vsub.f32 %v2922, %v2980
        %v3005 = vsub.f32 %v2927, %v2982
        %v3006 = vsub.f32 %v2932, %v2984
        %v3007 = vsub.f32 %v2937, %v2986
        %v3008 = vsub.f32 %v2942, %v2988
        %v3009 = vsub.f32 %v2947, %v2990
        %v3010 = vsub.f32 %v2952, %v2992
        %v3011 = vsub.f32 %v2957, %v2994
        %v3012 = vsub.f32 %v2962, %v2996
        %v3013 = vmul.f32 %v2997, 1.442695
        %v3014 = vpow.pop %v3013
        %v3015 = vmul.f32 %v2998, 1.442695
        %v3016 = vpow.pop %v3015
        %v3017 = vmul.f32 %v2999, 1.442695
        %v3018 = vpow.pop %v3017
        %v3019 = vmul.f32 %v3000, 1.442695
        %v3020 = vpow.pop %v3019
        %v3021 = vmul.f32 %v3001, 1.442695
        %v3022 = vpow.pop %v3021
        %v3023 = vmul.f32 %v3002, 1.442695
        %v3024 = vpow.pop %v3023
        %v3025 = vmul.f32 %v3003, 1.442695
        %v3026 = vpow.pop %v3025
        %v3027 = vmul.f32 %v3004, 1.442695
        %v3028 = vpow.pop %v3027
        %v3029 = vmul.f32 %v3005, 1.442695
        %v3030 = vpow.pop %v3029
        %v3031 = vmul.f32 %v3006, 1.442695
        %v3032 = vpow.pop %v3031
        %v3033 = vmul.f32 %v3007, 1.442695
        %v3034 = vpow.pop %v3033
        %v3035 = vmul.f32 %v3008, 1.442695
        %v3036 = vpow.pop %v3035
        %v3037 = vmul.f32 %v3009, 1.442695
        %v3038 = vpow.pop %v3037
        %v3039 = vmul.f32 %v3010, 1.442695
        %v3040 = vpow.pop %v3039
        %v3041 = vmul.f32 %v3011, 1.442695
        %v3042 = vpow.pop %v3041
        %v3043 = vmul.f32 %v3012, 1.442695
        %v3044 = vpow.pop %v3043
        %3045 = vadd.xlane.f32.xlu0 %v3014
        %v3046 = vpop.xlane.xlu0 %3045
        %3047 = vadd.xlane.f32.xlu0 %v3016
        %v3048 = vpop.xlane.xlu0 %3047
        %3049 = vadd.xlane.f32.xlu0 %v3018
        %v3050 = vpop.xlane.xlu0 %3049
        %3051 = vadd.xlane.f32.xlu0 %v3020
        %v3052 = vpop.xlane.xlu0 %3051
        %3053 = vadd.xlane.f32.xlu0 %v3022
        %v3054 = vpop.xlane.xlu0 %3053
        %3055 = vadd.xlane.f32.xlu0 %v3024
        %v3056 = vpop.xlane.xlu0 %3055
        %3057 = vadd.xlane.f32.xlu0 %v3026
        %v3058 = vpop.xlane.xlu0 %3057
        %3059 = vadd.xlane.f32.xlu0 %v3028
        %v3060 = vpop.xlane.xlu0 %3059
        %3061 = vadd.xlane.f32.xlu0 %v3030
        %v3062 = vpop.xlane.xlu0 %3061
        %3063 = vadd.xlane.f32.xlu0 %v3032
        %v3064 = vpop.xlane.xlu0 %3063
        %3065 = vadd.xlane.f32.xlu0 %v3034
        %v3066 = vpop.xlane.xlu0 %3065
        %3067 = vadd.xlane.f32.xlu0 %v3036
        %v3068 = vpop.xlane.xlu0 %3067
        %3069 = vadd.xlane.f32.xlu0 %v3038
        %v3070 = vpop.xlane.xlu0 %3069
        %3071 = vadd.xlane.f32.xlu0 %v3040
        %v3072 = vpop.xlane.xlu0 %3071
        %3073 = vadd.xlane.f32.xlu0 %v3042
        %v3074 = vpop.xlane.xlu0 %3073
        %3075 = vadd.xlane.f32.xlu0 %v3044
        %v3076 = vpop.xlane.xlu0 %3075
        %v3077 = vrcp.pop %v3046
        %v3078 = vrcp.pop %v3048
        %v3079 = vrcp.pop %v3050
        %v3080 = vrcp.pop %v3052
        %v3081 = vrcp.pop %v3054
        %v3082 = vrcp.pop %v3056
        %v3083 = vrcp.pop %v3058
        %v3084 = vrcp.pop %v3060
        %v3085 = vrcp.pop %v3062
        %v3086 = vrcp.pop %v3064
        %v3087 = vrcp.pop %v3066
        %v3088 = vrcp.pop %v3068
        %v3089 = vrcp.pop %v3070
        %v3090 = vrcp.pop %v3072
        %v3091 = vrcp.pop %v3074
        %v3092 = vrcp.pop %v3076
        %3093 = vrot.lane.b32.xlu0 %v576, 40
        %v3094 = vpop.permute.xlu0 %3093
        %3095 = vrot.lane.b32.xlu0 %v581, 40
        %v3096 = vpop.permute.xlu0 %3095
        %3097 = vrot.lane.b32.xlu0 %v586, 40
        %v3098 = vpop.permute.xlu0 %3097
        %3099 = vrot.lane.b32.xlu0 %v591, 40
        %v3100 = vpop.permute.xlu0 %3099
        %3101 = vrot.lane.b32.xlu0 %v596, 40
        %v3102 = vpop.permute.xlu0 %3101
        %3103 = vrot.lane.b32.xlu0 %v601, 40
        %v3104 = vpop.permute.xlu0 %3103
        %3105 = vrot.lane.b32.xlu0 %v606, 40
        %v3106 = vpop.permute.xlu0 %3105
        %3107 = vrot.lane.b32.xlu0 %v611, 40
        %v3108 = vpop.permute.xlu0 %3107
        %3109 = vrot.lane.b32.xlu0 %v616, 40
        %v3110 = vpop.permute.xlu0 %3109
        %3111 = vrot.lane.b32.xlu0 %v621, 40
        %v3112 = vpop.permute.xlu0 %3111
        %3113 = vrot.lane.b32.xlu0 %v626, 40
        %v3114 = vpop.permute.xlu0 %3113
        %3115 = vrot.lane.b32.xlu0 %v631, 40
        %v3116 = vpop.permute.xlu0 %3115
        %3117 = vrot.lane.b32.xlu0 %v636, 40
        %v3118 = vpop.permute.xlu0 %3117
        %3119 = vrot.lane.b32.xlu0 %v641, 40
        %v3120 = vpop.permute.xlu0 %3119
        %3121 = vrot.lane.b32.xlu0 %v646, 40
        %v3122 = vpop.permute.xlu0 %3121
        %3123 = vrot.lane.b32.xlu0 %v651, 40
        %v3124 = vpop.permute.xlu0 %3123
        %3141 = vmatprep.subr.mxu0 0.0
        %3142 = vmatpush1.msra.mxu0 %v3094
        %3143 = vmatprep.subr.mxu0 0.0
        %3144 = vmatpush1.msra.mxu0 %v3096
        %3145 = vmatprep.subr.mxu0 0.0
        %3146 = vmatpush1.msra.mxu0 %v3098
        %3147 = vmatprep.subr.mxu0 0.0
        %3148 = vmatpush1.msra.mxu0 %v3100
        %3149 = vmatprep.subr.mxu0 0.0
        %3150 = vmatpush1.msra.mxu0 %v3102
        %3151 = vmatprep.subr.mxu0 0.0
        %3152 = vmatpush1.msra.mxu0 %v3104
        %3153 = vmatprep.subr.mxu0 0.0
        %3154 = vmatpush1.msra.mxu0 %v3106
        %3155 = vmatprep.subr.mxu0 0.0
        %3156 = vmatpush1.msra.mxu0 %v3108
        %3157 = vmatprep.subr.mxu0 0.0
        %3158 = vmatpush1.msra.mxu0 %v3110
        %3159 = vmatprep.subr.mxu0 0.0
        %3160 = vmatpush1.msra.mxu0 %v3112
        %3161 = vmatprep.subr.mxu0 0.0
        %3162 = vmatpush1.msra.mxu0 %v3114
        %3163 = vmatprep.subr.mxu0 0.0
        %3164 = vmatpush1.msra.mxu0 %v3116
        %3165 = vmatprep.subr.mxu0 0.0
        %3166 = vmatpush1.msra.mxu0 %v3118
        %3167 = vmatprep.subr.mxu0 0.0
        %3168 = vmatpush1.msra.mxu0 %v3120
        %3169 = vmatprep.subr.mxu0 0.0
        %3170 = vmatpush1.msra.mxu0 %v3122
        %3171 = vmatprep.subr.mxu0 0.0
        %3172 = vmatpush1.msra.mxu0 %v3124
        %3173 = vmatprep.subr.mxu0 0.0
        %3174 = vmatpush1.msra.mxu0 0.0
        %3175 = vmatprep.subr.mxu0 0.0
        %3176 = vmatpush1.msra.mxu0 0.0
        %3177 = vmatprep.subr.mxu0 0.0
        %3178 = vmatpush1.msra.mxu0 0.0
        %3179 = vmatprep.subr.mxu0 0.0
        %3180 = vmatpush1.msra.mxu0 0.0
        %3181 = vmatprep.subr.mxu0 0.0
        %3182 = vmatpush1.msra.mxu0 0.0
        %3183 = vmatprep.subr.mxu0 0.0
        %3184 = vmatpush1.msra.mxu0 0.0
        %3185 = vmatprep.subr.mxu0 0.0
        %3186 = vmatpush1.msra.mxu0 0.0
        %3187 = vmatprep.subr.mxu0 0.0
        %3188 = vmatpush1.msra.mxu0 0.0
        %3189 = vmatprep.subr.mxu0 0.0
        %3190 = vmatpush1.msra.mxu0 0.0
        %3191 = vmatprep.subr.mxu0 0.0
        %3192 = vmatpush1.msra.mxu0 0.0
        %3193 = vmatprep.subr.mxu0 0.0
        %3194 = vmatpush1.msra.mxu0 0.0
        %3195 = vmatprep.subr.mxu0 0.0
        %3196 = vmatpush1.msra.mxu0 0.0
        %3197 = vmatprep.subr.mxu0 0.0
        %3198 = vmatpush1.msra.mxu0 0.0
        %3199 = vmatprep.subr.mxu0 0.0
        %3200 = vmatpush1.msra.mxu0 0.0
        %3201 = vmatprep.subr.mxu0 0.0
        %3202 = vmatpush1.msra.mxu0 0.0
        %3203 = vmatprep.subr.mxu0 0.0
        %3204 = vmatpush1.msra.mxu0 0.0
        %3205 = vmatprep.mubr.f32.mxu0 0.0
        %3206 = vmatmul.mubr.f32.gmra.mrb[0].mxu0 %v3014
        %v3207 = vpop.f32.mrb[0].mxu0
        %v3208 = vadd.f32 0.0, %v3207
        %v3209 = vpop.f32.mrb[0].mxu0
        %3210 = vmatprep.mubr.f32.mxu0 0.0
        %3211 = vmatmul.mubr.f32.gmra.mrb[0].mxu0 %v3016
        %v3212 = vpop.f32.mrb[0].mxu0
        %v3213 = vadd.f32 0.0, %v3212
        %v3214 = vpop.f32.mrb[0].mxu0
        %3215 = vmatprep.mubr.f32.mxu0 0.0
        %3216 = vmatmul.mubr.f32.gmra.mrb[0].mxu0 %v3018
        %v3217 = vpop.f32.mrb[0].mxu0
        %v3218 = vadd.f32 0.0, %v3217
        %v3219 = vpop.f32.mrb[0].mxu0
        %3220 = vmatprep.mubr.f32.mxu0 0.0
        %3221 = vmatmul.mubr.f32.gmra.mrb[0].mxu0 %v3020
        %v3222 = vpop.f32.mrb[0].mxu0
        %v3223 = vadd.f32 0.0, %v3222
        %v3224 = vpop.f32.mrb[0].mxu0
        %3225 = vmatprep.mubr.f32.mxu0 0.0
        %3226 = vmatmul.mubr.f32.gmra.mrb[0].mxu0 %v3022
        %v3227 = vpop.f32.mrb[0].mxu0
        %v3228 = vadd.f32 0.0, %v3227
        %v3229 = vpop.f32.mrb[0].mxu0
        %3230 = vmatprep.mubr.f32.mxu0 0.0
        %3231 = vmatmul.mubr.f32.gmra.mrb[0].mxu0 %v3024
        %v3232 = vpop.f32.mrb[0].mxu0
        %v3233 = vadd.f32 0.0, %v3232
        %v3234 = vpop.f32.mrb[0].mxu0
        %3235 = vmatprep.mubr.f32.mxu0 0.0
        %3236 = vmatmul.mubr.f32.gmra.mrb[0].mxu0 %v3026
        %v3237 = vpop.f32.mrb[0].mxu0
        %v3238 = vadd.f32 0.0, %v3237
        %v3239 = vpop.f32.mrb[0].mxu0
        %3240 = vmatprep.mubr.f32.mxu0 0.0
        %3241 = vmatmul.mubr.f32.gmra.mrb[0].mxu0 %v3028
        %v3242 = vpop.f32.mrb[0].mxu0
        %v3243 = vadd.f32 0.0, %v3242
        %v3244 = vpop.f32.mrb[0].mxu0
        %3245 = vmatprep.mubr.f32.mxu0 0.0
        %3246 = vmatmul.mubr.f32.gmra.mrb[0].mxu0 %v3030
        %v3247 = vpop.f32.mrb[0].mxu0
        %v3248 = vadd.f32 0.0, %v3247
        %v3249 = vpop.f32.mrb[0].mxu0
        %3250 = vmatprep.mubr.f32.mxu0 0.0
        %3251 = vmatmul.mubr.f32.gmra.mrb[0].mxu0 %v3032
        %v3252 = vpop.f32.mrb[0].mxu0
        %v3253 = vadd.f32 0.0, %v3252
        %v3254 = vpop.f32.mrb[0].mxu0
        %3255 = vmatprep.mubr.f32.mxu0 0.0
        %3256 = vmatmul.mubr.f32.gmra.mrb[0].mxu0 %v3034
        %v3257 = vpop.f32.mrb[0].mxu0
        %v3258 = vadd.f32 0.0, %v3257
        %v3259 = vpop.f32.mrb[0].mxu0
        %3260 = vmatprep.mubr.f32.mxu0 0.0
        %3261 = vmatmul.mubr.f32.gmra.mrb[0].mxu0 %v3036
        %v3262 = vpop.f32.mrb[0].mxu0
        %v3263 = vadd.f32 0.0, %v3262
        %v3264 = vpop.f32.mrb[0].mxu0
        %3265 = vmatprep.mubr.f32.mxu0 0.0
        %3266 = vmatmul.mubr.f32.gmra.mrb[0].mxu0 %v3038
        %v3267 = vpop.f32.mrb[0].mxu0
        %v3268 = vadd.f32 0.0, %v3267
        %v3269 = vpop.f32.mrb[0].mxu0
        %3270 = vmatprep.mubr.f32.mxu0 0.0
        %3271 = vmatmul.mubr.f32.gmra.mrb[0].mxu0 %v3040
        %v3272 = vpop.f32.mrb[0].mxu0
        %v3273 = vadd.f32 0.0, %v3272
        %v3274 = vpop.f32.mrb[0].mxu0
        %3275 = vmatprep.mubr.f32.mxu0 0.0
        %3276 = vmatmul.mubr.f32.gmra.mrb[0].mxu0 %v3042
        %v3277 = vpop.f32.mrb[0].mxu0
        %v3278 = vadd.f32 0.0, %v3277
        %v3279 = vpop.f32.mrb[0].mxu0
        %3280 = vmatprep.mubr.f32.mxu0 0.0
        %3281 = vmatmul.mubr.f32.gmra.mrb[0].mxu0 %v3044
        %v3282 = vpop.f32.mrb[0].mxu0
        %v3283 = vadd.f32 0.0, %v3282
        %v3284 = vpop.f32.mrb[0].mxu0
        %3285 = vdwg.mxu0
        %v3286 = vmul.f32 %v3208, %v3077
        %v3287 = vmul.f32 %v3213, %v3078
        %v3288 = vmul.f32 %v3218, %v3079
        %v3289 = vmul.f32 %v3223, %v3080
        %v3290 = vmul.f32 %v3228, %v3081
        %v3291 = vmul.f32 %v3233, %v3082
        %v3292 = vmul.f32 %v3238, %v3083
        %v3293 = vmul.f32 %v3243, %v3084
        %v3294 = vmul.f32 %v3248, %v3085
        %v3295 = vmul.f32 %v3253, %v3086
        %v3296 = vmul.f32 %v3258, %v3087
        %v3297 = vmul.f32 %v3263, %v3088
        %v3298 = vmul.f32 %v3268, %v3089
        %v3299 = vmul.f32 %v3273, %v3090
        %v3300 = vmul.f32 %v3278, %v3091
        %v3301 = vmul.f32 %v3283, %v3092
        %3318 = vrot.lane.b32.xlu0 %v3286, 24
        %v3319 = vpop.permute.xlu0 %3318
        %3320 = vrot.lane.b32.xlu0 %v3287, 24
        %v3321 = vpop.permute.xlu0 %3320
        %3322 = vrot.lane.b32.xlu0 %v3288, 24
        %v3323 = vpop.permute.xlu0 %3322
        %3324 = vrot.lane.b32.xlu0 %v3289, 24
        %v3325 = vpop.permute.xlu0 %3324
        %3326 = vrot.lane.b32.xlu0 %v3290, 24
        %v3327 = vpop.permute.xlu0 %3326
        %3328 = vrot.lane.b32.xlu0 %v3291, 24
        %v3329 = vpop.permute.xlu0 %3328
        %3330 = vrot.lane.b32.xlu0 %v3292, 24
        %v3331 = vpop.permute.xlu0 %3330
        %3332 = vrot.lane.b32.xlu0 %v3293, 24
        %v3333 = vpop.permute.xlu0 %3332
        %3334 = vrot.lane.b32.xlu0 %v3294, 24
        %v3335 = vpop.permute.xlu0 %3334
        %3336 = vrot.lane.b32.xlu0 %v3295, 24
        %v3337 = vpop.permute.xlu0 %3336
        %3338 = vrot.lane.b32.xlu0 %v3296, 24
        %v3339 = vpop.permute.xlu0 %3338
        %3340 = vrot.lane.b32.xlu0 %v3297, 24
        %v3341 = vpop.permute.xlu0 %3340
        %3342 = vrot.lane.b32.xlu0 %v3298, 24
        %v3343 = vpop.permute.xlu0 %3342
        %3344 = vrot.lane.b32.xlu0 %v3299, 24
        %v3345 = vpop.permute.xlu0 %3344
        %3346 = vrot.lane.b32.xlu0 %v3300, 24
        %v3347 = vpop.permute.xlu0 %3346
        %3348 = vrot.lane.b32.xlu0 %v3301, 24
        %v3349 = vpop.permute.xlu0 %3348
        %vm3366 = vcmask 261312
        %3367 = vst.msk [vmem:[#allocation3] sm:$0xff] %vm3366, %v3319
        %3368 = vst.msk [vmem:[#allocation3 + $0x8] sm:$0xff] %vm3366, %v3321
        %3369 = vst.msk [vmem:[#allocation3 + $0x10] sm:$0xff] %vm3366, %v3323
        %3370 = vst.msk [vmem:[#allocation3 + $0x18] sm:$0xff] %vm3366, %v3325
        %3371 = vst.msk [vmem:[#allocation3 + $0x20] sm:$0xff] %vm3366, %v3327
        %3372 = vst.msk [vmem:[#allocation3 + $0x28] sm:$0xff] %vm3366, %v3329
        %3373 = vst.msk [vmem:[#allocation3 + $0x30] sm:$0xff] %vm3366, %v3331
        %3374 = vst.msk [vmem:[#allocation3 + $0x38] sm:$0xff] %vm3366, %v3333
        %3375 = vst.msk [vmem:[#allocation3 + $0x40] sm:$0xff] %vm3366, %v3335
        %3376 = vst.msk [vmem:[#allocation3 + $0x48] sm:$0xff] %vm3366, %v3337
        %3377 = vst.msk [vmem:[#allocation3 + $0x50] sm:$0xff] %vm3366, %v3339
        %3378 = vst.msk [vmem:[#allocation3 + $0x58] sm:$0xff] %vm3366, %v3341
        %3379 = vst.msk [vmem:[#allocation3 + $0x60] sm:$0xff] %vm3366, %v3343
        %3380 = vst.msk [vmem:[#allocation3 + $0x68] sm:$0xff] %vm3366, %v3345
        %3381 = vst.msk [vmem:[#allocation3 + $0x70] sm:$0xff] %vm3366, %v3347
        %3382 = vst.msk [vmem:[#allocation3 + $0x78] sm:$0xff] %vm3366, %v3349
        %v3383 = vld [vmem:[#allocation3] sm:$0xff]
        %v3384 = vld [vmem:[#allocation3 + $0x8] sm:$0xff]
        %v3385 = vld [vmem:[#allocation3 + $0x10] sm:$0xff]
        %v3386 = vld [vmem:[#allocation3 + $0x18] sm:$0xff]
        %v3387 = vld [vmem:[#allocation3 + $0x20] sm:$0xff]
        %v3388 = vld [vmem:[#allocation3 + $0x28] sm:$0xff]
        %v3389 = vld [vmem:[#allocation3 + $0x30] sm:$0xff]
        %v3390 = vld [vmem:[#allocation3 + $0x38] sm:$0xff]
        %v3391 = vld [vmem:[#allocation3 + $0x40] sm:$0xff]
        %v3392 = vld [vmem:[#allocation3 + $0x48] sm:$0xff]
        %v3393 = vld [vmem:[#allocation3 + $0x50] sm:$0xff]
        %v3394 = vld [vmem:[#allocation3 + $0x58] sm:$0xff]
        %v3395 = vld [vmem:[#allocation3 + $0x60] sm:$0xff]
        %v3396 = vld [vmem:[#allocation3 + $0x68] sm:$0xff]
        %v3397 = vld [vmem:[#allocation3 + $0x70] sm:$0xff]
        %v3398 = vld [vmem:[#allocation3 + $0x78] sm:$0xff]
        %v3399 = vld [vmem:[#allocation13] sm:$0xff]
        %v3400 = vld [vmem:[#allocation13 + $0x8] sm:$0xff]
        %v3401 = vld [vmem:[#allocation13 + $0x10] sm:$0xff]
        %v3402 = vld [vmem:[#allocation13 + $0x18] sm:$0xff]
        %v3404 = vsel %vm460, %v3383, 0
        %v3407 = vsel %vm460, %v3384, 0
        %v3410 = vsel %vm460, %v3385, 0
        %v3413 = vsel %vm460, %v3386, 0
        %v3416 = vsel %vm460, %v3387, 0
        %v3419 = vsel %vm460, %v3388, 0
        %v3422 = vsel %vm460, %v3389, 0
        %v3425 = vsel %vm460, %v3390, 0
        %v3428 = vsel %vm460, %v3391, 0
        %v3431 = vsel %vm460, %v3392, 0
        %v3434 = vsel %vm460, %v3393, 0
        %v3437 = vsel %vm460, %v3394, 0
        %v3440 = vsel %vm460, %v3395, 0
        %v3443 = vsel %vm460, %v3396, 0
        %v3446 = vsel %vm460, %v3397, 0
        %v3449 = vsel %vm460, %v3398, 0
        %3451 = vmatprep.subr.mxu0 0.0
        %3452 = vmatpush1.msra.mxu0 %v3399
        %3453 = vmatprep.subr.mxu0 0.0
        %3454 = vmatpush1.msra.mxu0 %v3400
        %3455 = vmatprep.subr.mxu0 0.0
        %3456 = vmatpush1.msra.mxu0 %v3401
        %3457 = vmatprep.subr.mxu0 0.0
        %3458 = vmatpush1.msra.mxu0 %v3402
        %3459 = vmatprep.subr.mxu0 0.0
        %3460 = vmatpush1.msra.mxu0 0.0
        %3461 = vmatprep.subr.mxu0 0.0
        %3462 = vmatpush1.msra.mxu0 0.0
        %3463 = vmatprep.subr.mxu0 0.0
        %3464 = vmatpush1.msra.mxu0 0.0
        %3465 = vmatprep.subr.mxu0 0.0
        %3466 = vmatpush1.msra.mxu0 0.0
        %3467 = vmatprep.subr.mxu0 0.0
        %3468 = vmatpush1.msra.mxu0 0.0
        %3469 = vmatprep.subr.mxu0 0.0
        %3470 = vmatpush1.msra.mxu0 0.0
        %3471 = vmatprep.subr.mxu0 0.0
        %3472 = vmatpush1.msra.mxu0 0.0
        %3473 = vmatprep.subr.mxu0 0.0
        %3474 = vmatpush1.msra.mxu0 0.0
        %3475 = vmatprep.subr.mxu0 0.0
        %3476 = vmatpush1.msra.mxu0 0.0
        %3477 = vmatprep.subr.mxu0 0.0
        %3478 = vmatpush1.msra.mxu0 0.0
        %3479 = vmatprep.subr.mxu0 0.0
        %3480 = vmatpush1.msra.mxu0 0.0
        %3481 = vmatprep.subr.mxu0 0.0
        %3482 = vmatpush1.msra.mxu0 0.0
        %3483 = vmatprep.subr.mxu0 0.0
        %3484 = vmatpush1.msra.mxu0 0.0
        %3485 = vmatprep.subr.mxu0 0.0
        %3486 = vmatpush1.msra.mxu0 0.0
        %3487 = vmatprep.subr.mxu0 0.0
        %3488 = vmatpush1.msra.mxu0 0.0
        %3489 = vmatprep.subr.mxu0 0.0
        %3490 = vmatpush1.msra.mxu0 0.0
        %3491 = vmatprep.subr.mxu0 0.0
        %3492 = vmatpush1.msra.mxu0 0.0
        %3493 = vmatprep.subr.mxu0 0.0
        %3494 = vmatpush1.msra.mxu0 0.0
        %3495 = vmatprep.subr.mxu0 0.0
        %3496 = vmatpush1.msra.mxu0 0.0
        %3497 = vmatprep.subr.mxu0 0.0
        %3498 = vmatpush1.msra.mxu0 0.0
        %3499 = vmatprep.subr.mxu0 0.0
        %3500 = vmatpush1.msra.mxu0 0.0
        %3501 = vmatprep.subr.mxu0 0.0
        %3502 = vmatpush1.msra.mxu0 0.0
        %3503 = vmatprep.subr.mxu0 0.0
        %3504 = vmatpush1.msra.mxu0 0.0
        %3505 = vmatprep.subr.mxu0 0.0
        %3506 = vmatpush1.msra.mxu0 0.0
        %3507 = vmatprep.subr.mxu0 0.0
        %3508 = vmatpush1.msra.mxu0 0.0
        %3509 = vmatprep.subr.mxu0 0.0
        %3510 = vmatpush1.msra.mxu0 0.0
        %3511 = vmatprep.subr.mxu0 0.0
        %3512 = vmatpush1.msra.mxu0 0.0
        %3513 = vmatprep.subr.mxu0 0.0
        %3514 = vmatpush1.msra.mxu0 0.0
        %3515 = vmatprep.mubr.f32.mxu0 0.0
        %3516 = vmatmul.mubr.f32.gmra.mrb[0].mxu0 %v3404
        %v3517 = vpop.f32.mrb[0].mxu0
        %v3518 = vadd.f32 0.0, %v3517
        %v3519 = vpop.f32.mrb[0].mxu0
        %3520 = vmatprep.mubr.f32.mxu0 0.0
        %3521 = vmatmul.mubr.f32.gmra.mrb[0].mxu0 %v3407
        %v3522 = vpop.f32.mrb[0].mxu0
        %v3523 = vadd.f32 0.0, %v3522
        %v3524 = vpop.f32.mrb[0].mxu0
        %3525 = vmatprep.mubr.f32.mxu0 0.0
        %3526 = vmatmul.mubr.f32.gmra.mrb[0].mxu0 %v3410
        %v3527 = vpop.f32.mrb[0].mxu0
        %v3528 = vadd.f32 0.0, %v3527
        %v3529 = vpop.f32.mrb[0].mxu0
        %3530 = vmatprep.mubr.f32.mxu0 0.0
        %3531 = vmatmul.mubr.f32.gmra.mrb[0].mxu0 %v3413
        %v3532 = vpop.f32.mrb[0].mxu0
        %v3533 = vadd.f32 0.0, %v3532
        %v3534 = vpop.f32.mrb[0].mxu0
        %3535 = vmatprep.mubr.f32.mxu0 0.0
        %3536 = vmatmul.mubr.f32.gmra.mrb[0].mxu0 %v3416
        %v3537 = vpop.f32.mrb[0].mxu0
        %v3538 = vadd.f32 0.0, %v3537
        %v3539 = vpop.f32.mrb[0].mxu0
        %3540 = vmatprep.mubr.f32.mxu0 0.0
        %3541 = vmatmul.mubr.f32.gmra.mrb[0].mxu0 %v3419
        %v3542 = vpop.f32.mrb[0].mxu0
        %v3543 = vadd.f32 0.0, %v3542
        %v3544 = vpop.f32.mrb[0].mxu0
        %3545 = vmatprep.mubr.f32.mxu0 0.0
        %3546 = vmatmul.mubr.f32.gmra.mrb[0].mxu0 %v3422
        %v3547 = vpop.f32.mrb[0].mxu0
        %v3548 = vadd.f32 0.0, %v3547
        %v3549 = vpop.f32.mrb[0].mxu0
        %3550 = vmatprep.mubr.f32.mxu0 0.0
        %3551 = vmatmul.mubr.f32.gmra.mrb[0].mxu0 %v3425
        %v3552 = vpop.f32.mrb[0].mxu0
        %v3553 = vadd.f32 0.0, %v3552
        %v3554 = vpop.f32.mrb[0].mxu0
        %3555 = vmatprep.mubr.f32.mxu0 0.0
        %3556 = vmatmul.mubr.f32.gmra.mrb[0].mxu0 %v3428
        %v3557 = vpop.f32.mrb[0].mxu0
        %v3558 = vadd.f32 0.0, %v3557
        %v3559 = vpop.f32.mrb[0].mxu0
        %3560 = vmatprep.mubr.f32.mxu0 0.0
        %3561 = vmatmul.mubr.f32.gmra.mrb[0].mxu0 %v3431
        %v3562 = vpop.f32.mrb[0].mxu0
        %v3563 = vadd.f32 0.0, %v3562
        %v3564 = vpop.f32.mrb[0].mxu0
        %3565 = vmatprep.mubr.f32.mxu0 0.0
        %3566 = vmatmul.mubr.f32.gmra.mrb[0].mxu0 %v3434
        %v3567 = vpop.f32.mrb[0].mxu0
        %v3568 = vadd.f32 0.0, %v3567
        %v3569 = vpop.f32.mrb[0].mxu0
        %3570 = vmatprep.mubr.f32.mxu0 0.0
        %3571 = vmatmul.mubr.f32.gmra.mrb[0].mxu0 %v3437
        %v3572 = vpop.f32.mrb[0].mxu0
        %v3573 = vadd.f32 0.0, %v3572
        %v3574 = vpop.f32.mrb[0].mxu0
        %3575 = vmatprep.mubr.f32.mxu0 0.0
        %3576 = vmatmul.mubr.f32.gmra.mrb[0].mxu0 %v3440
        %v3577 = vpop.f32.mrb[0].mxu0
        %v3578 = vadd.f32 0.0, %v3577
        %v3579 = vpop.f32.mrb[0].mxu0
        %3580 = vmatprep.mubr.f32.mxu0 0.0
        %3581 = vmatmul.mubr.f32.gmra.mrb[0].mxu0 %v3443
        %v3582 = vpop.f32.mrb[0].mxu0
        %v3583 = vadd.f32 0.0, %v3582
        %v3584 = vpop.f32.mrb[0].mxu0
        %3585 = vmatprep.mubr.f32.mxu0 0.0
        %3586 = vmatmul.mubr.f32.gmra.mrb[0].mxu0 %v3446
        %v3587 = vpop.f32.mrb[0].mxu0
        %v3588 = vadd.f32 0.0, %v3587
        %v3589 = vpop.f32.mrb[0].mxu0
        %3590 = vmatprep.mubr.f32.mxu0 0.0
        %3591 = vmatmul.mubr.f32.gmra.mrb[0].mxu0 %v3449
        %v3592 = vpop.f32.mrb[0].mxu0
        %v3593 = vadd.f32 0.0, %v3592
        %v3594 = vpop.f32.mrb[0].mxu0
        %3595 = vdwg.mxu0
        %p3596 = scmp.eq.s32.totalorder %s34, 0
        // Predicated region
        $region77: #{tpu_custom_call.1} parent=47 // pred_check
          %p3597 = pneg %p3596
        $region78: #{tpu_custom_call.1} parent=47 // pred_check_branch
          %3599 = sbr.rel (%p3597) target = $region80
        $region79: #{tpu_custom_call.1} parent=47 // pred_region
          %v3600 = vld [vmem:[#allocation15] sm:$0x1]
          %v3602 = vlaneseq
          %v3603 = vshrl.u32 %v3602, 7
          %v3604 = vsub.s32 0, %v3603
          %v3605 = vrot.slane %v3600, %v3604
          %v3607 = vadd.f32 %v3518, %v3605
          %v3608 = vadd.f32 %v3523, %v3605
          %v3609 = vadd.f32 %v3528, %v3605
          %v3610 = vadd.f32 %v3533, %v3605
          %v3611 = vadd.f32 %v3538, %v3605
          %v3612 = vadd.f32 %v3543, %v3605
          %v3613 = vadd.f32 %v3548, %v3605
          %v3614 = vadd.f32 %v3553, %v3605
          %v3615 = vadd.f32 %v3558, %v3605
          %v3616 = vadd.f32 %v3563, %v3605
          %v3617 = vadd.f32 %v3568, %v3605
          %v3618 = vadd.f32 %v3573, %v3605
          %v3619 = vadd.f32 %v3578, %v3605
          %v3620 = vadd.f32 %v3583, %v3605
          %v3621 = vadd.f32 %v3588, %v3605
          %v3622 = vadd.f32 %v3593, %v3605
          %3623 = vst.msk [vmem:[#allocation2] sm:$0xff] %vm460, %v3607
          %3624 = vst.msk [vmem:[#allocation2 + $0x8] sm:$0xff] %vm460, %v3608
          %3625 = vst.msk [vmem:[#allocation2 + $0x10] sm:$0xff] %vm460, %v3609
          %3626 = vst.msk [vmem:[#allocation2 + $0x18] sm:$0xff] %vm460, %v3610
          %3627 = vst.msk [vmem:[#allocation2 + $0x20] sm:$0xff] %vm460, %v3611
          %3628 = vst.msk [vmem:[#allocation2 + $0x28] sm:$0xff] %vm460, %v3612
          %3629 = vst.msk [vmem:[#allocation2 + $0x30] sm:$0xff] %vm460, %v3613
          %3630 = vst.msk [vmem:[#allocation2 + $0x38] sm:$0xff] %vm460, %v3614
          %3631 = vst.msk [vmem:[#allocation2 + $0x40] sm:$0xff] %vm460, %v3615
          %3632 = vst.msk [vmem:[#allocation2 + $0x48] sm:$0xff] %vm460, %v3616
          %3633 = vst.msk [vmem:[#allocation2 + $0x50] sm:$0xff] %vm460, %v3617
          %3634 = vst.msk [vmem:[#allocation2 + $0x58] sm:$0xff] %vm460, %v3618
          %3635 = vst.msk [vmem:[#allocation2 + $0x60] sm:$0xff] %vm460, %v3619
          %3636 = vst.msk [vmem:[#allocation2 + $0x68] sm:$0xff] %vm460, %v3620
          %3637 = vst.msk [vmem:[#allocation2 + $0x70] sm:$0xff] %vm460, %v3621
          %3638 = vst.msk [vmem:[#allocation2 + $0x78] sm:$0xff] %vm460, %v3622
        $region80: #{tpu_custom_call.1} parent=47 // pred_fallthru
          _
        %p3639 = scmp.ne.s32.totalorder %s34, 0
        // Predicated region
        $region81: #{tpu_custom_call.1} parent=47 // pred_check
          %p3640 = pneg %p3639
        $region82: #{tpu_custom_call.1} parent=47 // pred_check_branch
          %3642 = sbr.rel (%p3640) target = $region84
        $region83: #{tpu_custom_call.1} parent=47 // pred_region
          %v3643 = vld [vmem:[#allocation2] sm:$0xff]
          %v3644 = vld [vmem:[#allocation2 + $0x8] sm:$0xff]
          %v3645 = vld [vmem:[#allocation2 + $0x10] sm:$0xff]
          %v3646 = vld [vmem:[#allocation2 + $0x18] sm:$0xff]
          %v3647 = vld [vmem:[#allocation2 + $0x20] sm:$0xff]
          %v3648 = vld [vmem:[#allocation2 + $0x28] sm:$0xff]
          %v3649 = vld [vmem:[#allocation2 + $0x30] sm:$0xff]
          %v3650 = vld [vmem:[#allocation2 + $0x38] sm:$0xff]
          %v3651 = vld [vmem:[#allocation2 + $0x40] sm:$0xff]
          %v3652 = vld [vmem:[#allocation2 + $0x48] sm:$0xff]
          %v3653 = vld [vmem:[#allocation2 + $0x50] sm:$0xff]
          %v3654 = vld [vmem:[#allocation2 + $0x58] sm:$0xff]
          %v3655 = vld [vmem:[#allocation2 + $0x60] sm:$0xff]
          %v3656 = vld [vmem:[#allocation2 + $0x68] sm:$0xff]
          %v3657 = vld [vmem:[#allocation2 + $0x70] sm:$0xff]
          %v3658 = vld [vmem:[#allocation2 + $0x78] sm:$0xff]
          %v3659 = vadd.f32 %v3643, %v3518
          %v3660 = vadd.f32 %v3644, %v3523
          %v3661 = vadd.f32 %v3645, %v3528
          %v3662 = vadd.f32 %v3646, %v3533
          %v3663 = vadd.f32 %v3647, %v3538
          %v3664 = vadd.f32 %v3648, %v3543
          %v3665 = vadd.f32 %v3649, %v3548
          %v3666 = vadd.f32 %v3650, %v3553
          %v3667 = vadd.f32 %v3651, %v3558
          %v3668 = vadd.f32 %v3652, %v3563
          %v3669 = vadd.f32 %v3653, %v3568
          %v3670 = vadd.f32 %v3654, %v3573
          %v3671 = vadd.f32 %v3655, %v3578
          %v3672 = vadd.f32 %v3656, %v3583
          %v3673 = vadd.f32 %v3657, %v3588
          %v3674 = vadd.f32 %v3658, %v3593
          %3675 = vst.msk [vmem:[#allocation2] sm:$0xff] %vm460, %v3659
          %3676 = vst.msk [vmem:[#allocation2 + $0x8] sm:$0xff] %vm460, %v3660
          %3677 = vst.msk [vmem:[#allocation2 + $0x10] sm:$0xff] %vm460, %v3661
          %3678 = vst.msk [vmem:[#allocation2 + $0x18] sm:$0xff] %vm460, %v3662
          %3679 = vst.msk [vmem:[#allocation2 + $0x20] sm:$0xff] %vm460, %v3663
          %3680 = vst.msk [vmem:[#allocation2 + $0x28] sm:$0xff] %vm460, %v3664
          %3681 = vst.msk [vmem:[#allocation2 + $0x30] sm:$0xff] %vm460, %v3665
          %3682 = vst.msk [vmem:[#allocation2 + $0x38] sm:$0xff] %vm460, %v3666
          %3683 = vst.msk [vmem:[#allocation2 + $0x40] sm:$0xff] %vm460, %v3667
          %3684 = vst.msk [vmem:[#allocation2 + $0x48] sm:$0xff] %vm460, %v3668
          %3685 = vst.msk [vmem:[#allocation2 + $0x50] sm:$0xff] %vm460, %v3669
          %3686 = vst.msk [vmem:[#allocation2 + $0x58] sm:$0xff] %vm460, %v3670
          %3687 = vst.msk [vmem:[#allocation2 + $0x60] sm:$0xff] %vm460, %v3671
          %3688 = vst.msk [vmem:[#allocation2 + $0x68] sm:$0xff] %vm460, %v3672
          %3689 = vst.msk [vmem:[#allocation2 + $0x70] sm:$0xff] %vm460, %v3673
          %3690 = vst.msk [vmem:[#allocation2 + $0x78] sm:$0xff] %vm460, %v3674
        $region84: #{tpu_custom_call.1} parent=47 // pred_fallthru
          _
        // Predicated region
        $region85: #{tpu_custom_call.1} parent=47 // pred_check
          %p3691 = pneg %p3596
        $region86: #{tpu_custom_call.1} parent=47 // pred_check_branch
          %3693 = sbr.rel (%p3691) target = $region88
        $region87: #{tpu_custom_call.1} parent=47 // pred_region
          %v3694 = vld [vmem:[#allocation2] sm:$0xff]
          %v3695 = vld [vmem:[#allocation2 + $0x8] sm:$0xff]
          %v3696 = vld [vmem:[#allocation2 + $0x10] sm:$0xff]
          %v3697 = vld [vmem:[#allocation2 + $0x18] sm:$0xff]
          %v3698 = vld [vmem:[#allocation2 + $0x20] sm:$0xff]
          %v3699 = vld [vmem:[#allocation2 + $0x28] sm:$0xff]
          %v3700 = vld [vmem:[#allocation2 + $0x30] sm:$0xff]
          %v3701 = vld [vmem:[#allocation2 + $0x38] sm:$0xff]
          %v3702 = vld [vmem:[#allocation2 + $0x40] sm:$0xff]
          %v3703 = vld [vmem:[#allocation2 + $0x48] sm:$0xff]
          %v3704 = vld [vmem:[#allocation2 + $0x50] sm:$0xff]
          %v3705 = vld [vmem:[#allocation2 + $0x58] sm:$0xff]
          %v3706 = vld [vmem:[#allocation2 + $0x60] sm:$0xff]
          %v3707 = vld [vmem:[#allocation2 + $0x68] sm:$0xff]
          %v3708 = vld [vmem:[#allocation2 + $0x70] sm:$0xff]
          %v3709 = vld [vmem:[#allocation2 + $0x78] sm:$0xff]
          %3710 = vst.msk [vmem:[%s431] sm:$0xff] %vm460, %v3694
          %3711 = vst.msk [vmem:[%s431 + $0x8] sm:$0xff] %vm460, %v3695
          %3712 = vst.msk [vmem:[%s431 + $0x10] sm:$0xff] %vm460, %v3696
          %3713 = vst.msk [vmem:[%s431 + $0x18] sm:$0xff] %vm460, %v3697
          %3714 = vst.msk [vmem:[%s431 + $0x20] sm:$0xff] %vm460, %v3698
          %3715 = vst.msk [vmem:[%s431 + $0x28] sm:$0xff] %vm460, %v3699
          %3716 = vst.msk [vmem:[%s431 + $0x30] sm:$0xff] %vm460, %v3700
          %3717 = vst.msk [vmem:[%s431 + $0x38] sm:$0xff] %vm460, %v3701
          %3718 = vst.msk [vmem:[%s431 + $0x40] sm:$0xff] %vm460, %v3702
          %3719 = vst.msk [vmem:[%s431 + $0x48] sm:$0xff] %vm460, %v3703
          %3720 = vst.msk [vmem:[%s431 + $0x50] sm:$0xff] %vm460, %v3704
          %3721 = vst.msk [vmem:[%s431 + $0x58] sm:$0xff] %vm460, %v3705
          %3722 = vst.msk [vmem:[%s431 + $0x60] sm:$0xff] %vm460, %v3706
          %3723 = vst.msk [vmem:[%s431 + $0x68] sm:$0xff] %vm460, %v3707
          %3724 = vst.msk [vmem:[%s431 + $0x70] sm:$0xff] %vm460, %v3708
          %3725 = vst.msk [vmem:[%s431 + $0x78] sm:$0xff] %vm460, %v3709
        $region88: #{tpu_custom_call.1} parent=47 // pred_fallthru
          _
        %s3726 = sand.u32 %s221, 1
        %s3727 = scalar_lea.sflag [#allocation6], %s3726
        %s3728 = sand.u32 %s221, 1
        %s3729 = smul.addr %s3728, 128
        %s3730 = scalar_lea.vmem [#allocation16], %s3729
        // Predicated region
        $region89: #{tpu_custom_call.1} parent=47 // pred_check
          %p3731 = pneg %p231
        $region90: #{tpu_custom_call.1} parent=47 // pred_check_branch
          %3733 = sbr.rel (%p3731) target = $region92
        $region91: #{tpu_custom_call.1} parent=47 // pred_region
          %s3735 = ssub.s32 2048, 2048
          %3736 = vsyncadd %s3727, %s3735
          %s3737 = smul.addr %s33, 16
          %s3738 = smul.addr %s3737, 128
          %s3739 = scalar_lea.hbm %s7, %s3738
          %s3740 = sshll.u32 %s3730, 4
          %s3741 = int_to_ptr.vmem [resolvable:$true] %s3740
          %3746 = dma.vmem_to_hbm [thread:$0]  %s3741, 2048, %s3739, %s3727, 128, 128, 8
        $region92: #{tpu_custom_call.1} parent=47 // pred_fallthru
          _
      $region48: #{tpu_custom_call.1} parent=5 // pred_fallthru
        _
      %p3747 = scmp.le.s32.totalorder 2, %s24
      // Predicated region
      $region93: #{tpu_custom_call.1} parent=5 // pred_check
        %p3748 = pneg %p3747
      $region94: #{tpu_custom_call.1} parent=5 // pred_check_branch
        %3750 = sbr.rel (%p3748) target = $region96
      $region95: #{tpu_custom_call.1} parent=5 // pred_region
        %s3751 = ssub.s32 %s24, 2
        // Predicated region
        $region97: #{tpu_custom_call.1} parent=95 // pred_check
          %p3752 = pneg %p237
        $region98: #{tpu_custom_call.1} parent=95 // pred_check_branch
          %3754 = sbr.rel (%p3752) target = $region100
        $region99: #{tpu_custom_call.1} parent=95 // pred_region
          %s3755 = sand.u32 %s222, 1
          %s3756 = scalar_lea.sflag [#allocation6], %s3755
          %s3757 = sand.u32 %s222, 1
          %s3758 = smul.addr %s3757, 128
          %s3759 = scalar_lea.vmem [#allocation16], %s3758
          %3760 = dma.done %s3756, 2048
        $region100: #{tpu_custom_call.1} parent=95 // pred_fallthru
          _
      $region96: #{tpu_custom_call.1} parent=5 // pred_fallthru
        _
    $region6: #{tpu_custom_call.1} parent=1 // loop_footer
      %s28 = sadd.s32 1, %s24
    $region7: #{tpu_custom_call.1} parent=1 // loop_footer_branch
      %23 = sbr.rel target = $region3
    $region8: #{tpu_custom_call.1} parent=1 // loop_exit
      _
    %3761 = vsyncpa [#allocation5], 1
    %s3762 = scalar_lea.sflag [#allocation5], 1
    %3763 = vsyncpa %s3762, 1
    %3764 = vsyncpa [#allocation8], 1
    %s3765 = scalar_lea.sflag [#allocation8], 1
    %3766 = vsyncpa %s3765, 1
    %3767 = vsyncpa [#allocation11], 1
    %3768 = vsyncpa [#allocation14], 1
    %3769 = vsyncpa [#allocation6], 1
    %s3770 = scalar_lea.sflag [#allocation6], 1
    %3771 = vsyncpa %s3770, 1

</llo_original>
